<compile_context>
chip_gen: v7x
topology: tpu7x:2x2x1
jax: 0.10.0
libtpu: 0.0.40
codegen_flags: <defaults>
</compile_context>

<pallas_src>
import math

import jax
import jax.numpy as jnp
from jax.experimental import pallas as pl
from jax.experimental.pallas import tpu as pltpu


def _round_up(x: int, m: int) -> int:
    return ((x + m - 1) // m) * m


# ----------------------------------------------------------------------------
# Fused forward kernel (built per static shape configuration)
# ----------------------------------------------------------------------------
def make_fused_kernel(S: int, B: int, H: int, Hp: int, Hm: int, n_lstm: int):
    scale = 1.0 / math.sqrt(H)          # real hidden dim, not the padded one
    f32 = jnp.float32
    bf16 = jnp.bfloat16

    def kernel(data_ref,                         # (B*S, Din)      bf16
               smb_wT_ref, smb_b_ref,            # (Din, Hp) bf16, (1, Hp) f32
               wihT_ref, whhT_ref, lstm_b_ref,   # (L,Hp,4Hp) bf16 x2, (L,1,4Hp) f32
               wqkvT_ref, bqkv_ref,              # (Hp, 3Hp) bf16, (1, 3Hp) f32
               w1T_ref, b1_ref,                  # (S, Hp, Hm) bf16, (1, Hm) f32
               w2T_ref, b2_ref,                  # (Hm, Np) bf16, (1, Np) f32
               out_ref,                          # (B, Np) f32
               x_scr,                            # VMEM (B, S, Hp)  f32
               gx_scr):                          # VMEM (B, S, 4Hp) f32
        # ---- SMB: Linear(input_dim -> H) + ReLU over all B*S rows at once ----
        x0 = jnp.dot(data_ref[...], smb_wT_ref[...],
                     preferred_element_type=f32) + smb_b_ref[...]
        x0 = jnp.maximum(x0, 0.0)                          # (B*S, Hp)
        x_scr[...] = x0.reshape(B, S, Hp)                  # layout-preserving split

        # ---- stacked LSTM (PyTorch gate order i, f, g, o; zero-init h/c) ----
        for l in range(n_lstm):
            # Hoisted input projection: one lane-dense (B*S, 4Hp) matmul with
            # the bias folded in; only h @ W_hh^T stays in the recurrence.
            x_in = x_scr[...].reshape(B * S, Hp)           # previous layer output
            gx = jnp.dot(x_in.astype(bf16), wihT_ref[l],
                         preferred_element_type=f32) + lstm_b_ref[l]
            gx_scr[...] = gx.reshape(B, S, 4 * Hp)

            h = jnp.zeros((B, Hp), f32)
            c = jnp.zeros((B, Hp), f32)
            for t in range(S):                             # static unroll
                g = gx_scr[:, t, :] + jnp.dot(h.astype(bf16), whhT_ref[l],
                                              preferred_element_type=f32)
                # Hp is a multiple of 128 -> every gate slice is a whole vreg.
                i_g = jax.nn.sigmoid(g[:, 0 * Hp:1 * Hp])
                f_g = jax.nn.sigmoid(g[:, 1 * Hp:2 * Hp])
                g_g = jnp.tanh(g[:, 2 * Hp:3 * Hp])
                o_g = jax.nn.sigmoid(g[:, 3 * Hp:4 * Hp])
                c = f_g * c + i_g * g_g
                h = o_g * jnp.tanh(c)
                # Single per-step VMEM store; also becomes next layer's input
                # and is already in (B, S, Hp) order for the RSAB (replaces the
                # reference's x.transpose(0, 1)).
                x_scr[:, t, :] = h

        xt = x_scr[...]                                    # (B, S, Hp) f32

        # ---- RSAB: residual self-attention, fused Q|K|V projection ----
        qkv = jnp.dot(xt.reshape(B * S, Hp).astype(bf16), wqkvT_ref[...],
                      preferred_element_type=f32) + bqkv_ref[...]
        qkv = qkv.reshape(B, S, 3 * Hp)
        q = qkv[:, :, 0 * Hp:1 * Hp]                       # 128-aligned splits
        k = qkv[:, :, 1 * Hp:2 * Hp]
        v = qkv[:, :, 2 * Hp:3 * Hp]
        scores = jnp.einsum('bsd,btd->bst', q.astype(bf16), k.astype(bf16),
                            preferred_element_type=f32) * scale
        m = jnp.max(scores, axis=-1, keepdims=True)
        e = jnp.exp(scores - m)
        attn = e * pl.reciprocal(jnp.sum(e, axis=-1, keepdims=True), approx=True)
        ao = jnp.einsum('bst,btd->bsd', attn.astype(bf16), v.astype(bf16),
                        preferred_element_type=f32) + xt   # residual add

        # ---- MLP: Linear(S*H -> Hm) + ReLU + Linear(Hm -> padded out) ----
        # Accumulate over timesteps from scratch (avoids a sublane->lane
        # reshape); flatten order matches reference x.reshape(B, S*H).
        x_scr[...] = ao
        h1 = b1_ref[...]
        for s in range(S):
            h1 = h1 + jnp.dot(x_scr[:, s, :].astype(bf16), w1T_ref[s],
                              preferred_element_type=f32)
        h1 = jnp.maximum(h1, 0.0)                          # (B, Hm)
        # W2/b2 are padded to a 128-multiple -> lane-dense store.
        out_ref[...] = jnp.dot(h1.astype(bf16), w2T_ref[...],
                               preferred_element_type=f32) + b2_ref[...]

    return kernel


# ----------------------------------------------------------------------------
# Parameter init (deterministic, PyTorch-style uniform bounds, torch layouts)
# ----------------------------------------------------------------------------
def init_params(key, n_seq, input_dim, hidden_dim, output_dim, n_lstm):
    keys = iter(jax.random.split(key, 64))

    def uniform(k, shape, bound):
        return jax.random.uniform(k, shape, jnp.float32, -bound, bound)

    params = {}
    b = 1.0 / math.sqrt(input_dim)
    params['smb_w'] = uniform(next(keys), (hidden_dim, input_dim), b)
    params['smb_b'] = uniform(next(keys), (hidden_dim,), b)
    bound = 1.0 / math.sqrt(hidden_dim)
    params['lstm'] = []
    for _ in range(n_lstm):
        params['lstm'].append({
            'w_ih': uniform(next(keys), (4 * hidden_dim, hidden_dim), bound),
            'w_hh': uniform(next(keys), (4 * hidden_dim, hidden_dim), bound),
            'b_ih': uniform(next(keys), (4 * hidden_dim,), bound),
            'b_hh': uniform(next(keys), (4 * hidden_dim,), bound),
        })
    for name in ('q', 'k', 'v'):
        params[f'rsab_w{name}'] = uniform(next(keys), (hidden_dim, hidden_dim), bound)
        params[f'rsab_b{name}'] = uniform(next(keys), (hidden_dim,), bound)
    n_in = n_seq * hidden_dim
    b1 = 1.0 / math.sqrt(n_in)
    b2 = 1.0 / math.sqrt(hidden_dim)
    params['mlp_w1'] = uniform(next(keys), (hidden_dim, n_in), b1)
    params['mlp_b1'] = uniform(next(keys), (hidden_dim,), b1)
    params['mlp_w2'] = uniform(next(keys), (output_dim, hidden_dim), b2)
    params['mlp_b2'] = uniform(next(keys), (output_dim,), b2)
    return params


# ----------------------------------------------------------------------------
# Full forward pass (mirrors SISSA_LSTM.forward); single pallas_call
# ----------------------------------------------------------------------------
def sissa_lstm_forward(params, data):
    # data: (n_seq, batch, input_dim)   [seq-first, matching batch_first=False]
    S, B, Din = data.shape
    H = params['smb_w'].shape[0]
    n_lstm = len(params['lstm'])
    Hm = params['mlp_w1'].shape[0]
    Dout = params['mlp_w2'].shape[0]
    Hp = _round_up(H, 128)               # lane-aligned hidden dim (gate slices)
    Np = _round_up(Dout, 128)            # lane-dense padded MLP output width
    f32, bf16 = jnp.float32, jnp.bfloat16

    def pad2(a, rows, cols):
        return jnp.zeros((rows, cols), a.dtype).at[:a.shape[0], :a.shape[1]].set(a)

    def pad_gate_matT(w):                # (4H, H) -> (Hp, 4Hp), gate-blockwise pad
        w4 = w.reshape(4, H, H)
        w4p = jnp.zeros((4, Hp, Hp), w.dtype).at[:, :H, :H].set(w4)
        return w4p.reshape(4 * Hp, Hp).T

    def pad_gate_bias(b):                # (4H,) -> (1, 4Hp)
        b4 = b.reshape(4, H)
        return jnp.zeros((4, Hp), b.dtype).at[:, :H].set(b4).reshape(1, 4 * Hp)

    def pad_vec(b):                      # (H,) -> (Hp,)
        return jnp.zeros((Hp,), b.dtype).at[:H].set(b)

    # --- layout plumbing (wrapper-side): transpose / pad / stack / cast bf16 ---
    data_flat = jnp.transpose(data, (1, 0, 2)).reshape(B * S, Din).astype(bf16)
    smb_wT = pad2(params['smb_w'].T, Din, Hp).astype(bf16)            # (Din, Hp)
    smb_b = pad_vec(params['smb_b']).reshape(1, Hp)                   # f32
    wihT = jnp.stack([pad_gate_matT(l['w_ih']) for l in params['lstm']]).astype(bf16)
    whhT = jnp.stack([pad_gate_matT(l['w_hh']) for l in params['lstm']]).astype(bf16)
    lstm_b = jnp.stack([pad_gate_bias(l['b_ih'] + l['b_hh'])
                        for l in params['lstm']])                     # (L,1,4Hp) f32
    wqkvT = jnp.concatenate([pad2(params['rsab_wq'].T, Hp, Hp),
                             pad2(params['rsab_wk'].T, Hp, Hp),
                             pad2(params['rsab_wv'].T, Hp, Hp)],
                            axis=1).astype(bf16)                      # (Hp, 3Hp)
    bqkv = jnp.concatenate([pad_vec(params['rsab_bq']),
                            pad_vec(params['rsab_bk']),
                            pad_vec(params['rsab_bv'])]).reshape(1, 3 * Hp)
    w1_3d = params['mlp_w1'].reshape(Hm, S, H)
    w1_3d = jnp.zeros((Hm, S, Hp), f32).at[:, :, :H].set(w1_3d)
    w1T = jnp.transpose(w1_3d, (1, 2, 0)).astype(bf16)                # (S, Hp, Hm)
    b1 = params['mlp_b1'].reshape(1, Hm)
    w2T = jnp.zeros((Hm, Np), f32).at[:, :Dout].set(params['mlp_w2'].T).astype(bf16)
    b2 = jnp.zeros((1, Np), f32).at[:, :Dout].set(params['mlp_b2'].reshape(1, Dout))

    args = (data_flat, smb_wT, smb_b, wihT, whhT, lstm_b,
            wqkvT, bqkv, w1T, b1, w2T, b2)

    # Advisory cost estimate (lets XLA overlap this tiny latency-bound call).
    flops = (2 * B * S * Din * Hp
             + n_lstm * (2 * B * S * Hp * 4 * Hp + S * 2 * B * Hp * 4 * Hp)
             + 2 * B * S * Hp * 3 * Hp
             + 2 * 2 * B * S * S * Hp
             + 2 * B * S * Hp * Hm + 2 * B * Hm * Np)
    transcendentals = n_lstm * S * B * 5 * Hp + B * S * S
    bytes_accessed = sum(int(a.size) * a.dtype.itemsize for a in args) + B * Np * 4

    kernel = make_fused_kernel(S, B, H, Hp, Hm, n_lstm)
    out = pl.pallas_call(
        kernel,
        out_shape=jax.ShapeDtypeStruct((B, Np), f32),
        in_specs=[pl.BlockSpec(memory_space=pltpu.MemorySpace.VMEM)
                  for _ in args],
        out_specs=pl.BlockSpec(memory_space=pltpu.MemorySpace.VMEM),
        scratch_shapes=[pltpu.VMEM((B, S, Hp), f32),        # per-layer h sequence
                        pltpu.VMEM((B, S, 4 * Hp), f32)],   # hoisted gate inputs
        compiler_params=pltpu.CompilerParams(vmem_limit_bytes=64 * 1024 * 1024),
        cost_estimate=pl.CostEstimate(flops=int(flops),
                                      transcendentals=int(transcendentals),
                                      bytes_accessed=int(bytes_accessed)),
    )(*args)
    return out[:, :Dout]                                              # (B, Dout)


if __name__ == "__main__":
    n_seq, batch = 8, 2
    input_dim, hidden_dim, output_dim, n_lstm = 16, 32, 4, 2

    key = jax.random.PRNGKey(0)
    pkey, dkey = jax.random.split(key)
    params = init_params(pkey, n_seq, input_dim, hidden_dim, output_dim, n_lstm)
    data = jax.random.normal(dkey, (n_seq, batch, input_dim), jnp.float32)

    out = jax.jit(sissa_lstm_forward)(params, data)
    out = jax.block_until_ready(out)
    assert out.shape == (batch, output_dim), out.shape
    assert jnp.all(jnp.isfinite(out))
    print("KERNEL_OK")
</pallas_src>

<mosaic_0001>
module attributes {stable_mosaic.version = 11 : i64} {
  func.func @kernel(%arg0: memref<16x16xbf16, #tpu.memory_space<vmem>>, %arg1: memref<16x128xbf16, #tpu.memory_space<vmem>>, %arg2: memref<1x128xf32, #tpu.memory_space<vmem>>, %arg3: memref<2x128x512xbf16, #tpu.memory_space<vmem>>, %arg4: memref<2x128x512xbf16, #tpu.memory_space<vmem>>, %arg5: memref<2x1x512xf32, #tpu.memory_space<vmem>>, %arg6: memref<128x384xbf16, #tpu.memory_space<vmem>>, %arg7: memref<1x384xf32, #tpu.memory_space<vmem>>, %arg8: memref<8x128x32xbf16, #tpu.memory_space<vmem>>, %arg9: memref<1x32xf32, #tpu.memory_space<vmem>>, %arg10: memref<32x128xbf16, #tpu.memory_space<vmem>>, %arg11: memref<1x128xf32, #tpu.memory_space<vmem>>, %arg12: memref<2x128xf32, #tpu.memory_space<vmem>>, %arg13: memref<2x8x128xf32, #tpu.memory_space<vmem>>, %arg14: memref<2x8x512xf32, #tpu.memory_space<vmem>>) attributes {dimension_semantics = [], scalar_prefetch = 0 : i64, scratch_operands = 2 : i64, tpu.core_type = #tpu.core_type<tc>} {
    %c0 = arith.constant 0 : index
    %c0_0 = arith.constant 0 : index
    %0 = vector.load %arg0[%c0, %c0_0] : memref<16x16xbf16, #tpu.memory_space<vmem>>, vector<16x16xbf16>
    %c0_1 = arith.constant 0 : index
    %c0_2 = arith.constant 0 : index
    %1 = vector.load %arg1[%c0_1, %c0_2] : memref<16x128xbf16, #tpu.memory_space<vmem>>, vector<16x128xbf16>
    %cst = arith.constant dense<0.000000e+00> : vector<16x128xf32>
    %2 = tpu.matmul %0, %1, %cst {dimension_numbers = #tpu.dot_dimension_numbers<[1], [0], [0], [1], [0, 0, 1, 1], [], []>} : vector<16x16xbf16>, vector<16x128xbf16>, vector<16x128xf32> -> vector<16x128xf32>
    %c0_3 = arith.constant 0 : index
    %c0_4 = arith.constant 0 : index
    %3 = vector.load %arg2[%c0_3, %c0_4] : memref<1x128xf32, #tpu.memory_space<vmem>>, vector<1x128xf32>
    %4 = vector.broadcast %3 : vector<1x128xf32> to vector<16x128xf32>
    %5 = arith.addf %2, %4 : vector<16x128xf32>
    %cst_5 = arith.constant 0.000000e+00 : f32
    %6 = vector.broadcast %cst_5 : f32 to vector<16x128xf32>
    %7 = arith.maximumf %5, %6 : vector<16x128xf32>
    %8 = vector.shape_cast %7 : vector<16x128xf32> to vector<2x8x128xf32>
    %c0_6 = arith.constant 0 : index
    %c0_7 = arith.constant 0 : index
    %c0_8 = arith.constant 0 : index
    %9 = vector.load %arg13[%c0_6, %c0_7, %c0_8] : memref<2x8x128xf32, #tpu.memory_space<vmem>>, vector<2x8x128xf32>
    tpu.vector_store %arg13[%c0_6, %c0_7, %c0_8], %8 {strides = array<i32>} : memref<2x8x128xf32, #tpu.memory_space<vmem>>, vector<2x8x128xf32>,
    %c0_9 = arith.constant 0 : index
    %c0_10 = arith.constant 0 : index
    %c0_11 = arith.constant 0 : index
    %10 = vector.load %arg13[%c0_9, %c0_10, %c0_11] : memref<2x8x128xf32, #tpu.memory_space<vmem>>, vector<2x8x128xf32>
    %11 = vector.shape_cast %10 : vector<2x8x128xf32> to vector<16x128xf32>
    %12 = arith.truncf %11 : vector<16x128xf32> to vector<16x128xbf16>
    %c0_12 = arith.constant 0 : index
    %c0_13 = arith.constant 0 : index
    %c0_14 = arith.constant 0 : index
    %13 = vector.load %arg3[%c0_12, %c0_13, %c0_14] : memref<2x128x512xbf16, #tpu.memory_space<vmem>>, vector<1x128x512xbf16>
    %14 = vector.shape_cast %13 : vector<1x128x512xbf16> to vector<128x512xbf16>
    %cst_15 = arith.constant dense<0.000000e+00> : vector<16x512xf32>
    %15 = tpu.matmul %12, %14, %cst_15 {dimension_numbers = #tpu.dot_dimension_numbers<[1], [0], [0], [1], [0, 0, 1, 1], [], []>} : vector<16x128xbf16>, vector<128x512xbf16>, vector<16x512xf32> -> vector<16x512xf32>
    %c0_16 = arith.constant 0 : index
    %c0_17 = arith.constant 0 : index
    %c0_18 = arith.constant 0 : index
    %16 = vector.load %arg5[%c0_16, %c0_17, %c0_18] : memref<2x1x512xf32, #tpu.memory_space<vmem>>, vector<1x1x512xf32>
    %17 = vector.shape_cast %16 : vector<1x1x512xf32> to vector<1x512xf32>
    %18 = vector.broadcast %17 : vector<1x512xf32> to vector<16x512xf32>
    %19 = arith.addf %15, %18 : vector<16x512xf32>
    %20 = vector.shape_cast %19 : vector<16x512xf32> to vector<2x8x512xf32>
    %c0_19 = arith.constant 0 : index
    %c0_20 = arith.constant 0 : index
    %c0_21 = arith.constant 0 : index
    %21 = vector.load %arg14[%c0_19, %c0_20, %c0_21] : memref<2x8x512xf32, #tpu.memory_space<vmem>>, vector<2x8x512xf32>
    tpu.vector_store %arg14[%c0_19, %c0_20, %c0_21], %20 {strides = array<i32>} : memref<2x8x512xf32, #tpu.memory_space<vmem>>, vector<2x8x512xf32>,
    %cst_22 = arith.constant 0.000000e+00 : f32
    %22 = vector.broadcast %cst_22 : f32 to vector<2x128xf32>
    %cst_23 = arith.constant 0.000000e+00 : f32
    %23 = vector.broadcast %cst_23 : f32 to vector<2x128xf32>
    %c0_24 = arith.constant 0 : index
    %c0_25 = arith.constant 0 : index
    %c0_26 = arith.constant 0 : index
    %24 = vector.load %arg14[%c0_24, %c0_25, %c0_26] : memref<2x8x512xf32, #tpu.memory_space<vmem>>, vector<2x1x512xf32>
    %25 = vector.shape_cast %24 : vector<2x1x512xf32> to vector<2x512xf32>
    %26 = arith.truncf %22 : vector<2x128xf32> to vector<2x128xbf16>
    %c0_27 = arith.constant 0 : index
    %c0_28 = arith.constant 0 : index
    %c0_29 = arith.constant 0 : index
    %27 = vector.load %arg4[%c0_27, %c0_28, %c0_29] : memref<2x128x512xbf16, #tpu.memory_space<vmem>>, vector<1x128x512xbf16>
    %28 = vector.shape_cast %27 : vector<1x128x512xbf16> to vector<128x512xbf16>
    %cst_30 = arith.constant dense<0.000000e+00> : vector<2x512xf32>
    %29 = tpu.matmul %26, %28, %cst_30 {dimension_numbers = #tpu.dot_dimension_numbers<[1], [0], [0], [1], [0, 0, 1, 1], [], []>} : vector<2x128xbf16>, vector<128x512xbf16>, vector<2x512xf32> -> vector<2x512xf32>
    %30 = arith.addf %25, %29 : vector<2x512xf32>
    %31 = vector.extract_strided_slice %30 {offsets = [0, 0], sizes = [2, 128], strides = [1, 1]} : vector<2x512xf32> to vector<2x128xf32>
    %32 = arith.negf %31 : vector<2x128xf32>
    %33 = math.exp %32 : vector<2x128xf32>
    %cst_31 = arith.constant 1.000000e+00 : f32
    %34 = vector.broadcast %cst_31 : f32 to vector<2x128xf32>
    %35 = arith.addf %34, %33 : vector<2x128xf32>
    %36 = arith.divf %34, %35 : vector<2x128xf32>
    %37 = vector.extract_strided_slice %30 {offsets = [0, 128], sizes = [2, 128], strides = [1, 1]} : vector<2x512xf32> to vector<2x128xf32>
    %38 = arith.negf %37 : vector<2x128xf32>
    %39 = math.exp %38 : vector<2x128xf32>
    %cst_32 = arith.constant 1.000000e+00 : f32
    %40 = vector.broadcast %cst_32 : f32 to vector<2x128xf32>
    %41 = arith.addf %40, %39 : vector<2x128xf32>
    %42 = arith.divf %40, %41 : vector<2x128xf32>
    %43 = vector.extract_strided_slice %30 {offsets = [0, 256], sizes = [2, 128], strides = [1, 1]} : vector<2x512xf32> to vector<2x128xf32>
    %44 = math.tanh %43 : vector<2x128xf32>
    %45 = vector.extract_strided_slice %30 {offsets = [0, 384], sizes = [2, 128], strides = [1, 1]} : vector<2x512xf32> to vector<2x128xf32>
    %46 = arith.negf %45 : vector<2x128xf32>
    %47 = math.exp %46 : vector<2x128xf32>
    %cst_33 = arith.constant 1.000000e+00 : f32
    %48 = vector.broadcast %cst_33 : f32 to vector<2x128xf32>
    %49 = arith.addf %48, %47 : vector<2x128xf32>
    %50 = arith.divf %48, %49 : vector<2x128xf32>
    %51 = arith.mulf %42, %23 : vector<2x128xf32>
    %52 = arith.mulf %36, %44 : vector<2x128xf32>
    %53 = arith.addf %51, %52 : vector<2x128xf32>
    %54 = math.tanh %53 : vector<2x128xf32>
    %55 = arith.mulf %50, %54 : vector<2x128xf32>
    %c0_34 = arith.constant 0 : index
    %c0_35 = arith.constant 0 : index
    %c0_36 = arith.constant 0 : index
    %56 = vector.load %arg13[%c0_34, %c0_35, %c0_36] : memref<2x8x128xf32, #tpu.memory_space<vmem>>, vector<2x1x128xf32>
    %57 = vector.shape_cast %56 : vector<2x1x128xf32> to vector<2x128xf32>
    %58 = vector.shape_cast %55 : vector<2x128xf32> to vector<2x1x128xf32>
    tpu.vector_store %arg13[%c0_34, %c0_35, %c0_36], %58 {strides = array<i32>} : memref<2x8x128xf32, #tpu.memory_space<vmem>>, vector<2x1x128xf32>,
    %c0_37 = arith.constant 0 : index
    %c1 = arith.constant 1 : index
    %c0_38 = arith.constant 0 : index
    %59 = vector.load %arg14[%c0_37, %c1, %c0_38] : memref<2x8x512xf32, #tpu.memory_space<vmem>>, vector<2x1x512xf32>
    %60 = vector.shape_cast %59 : vector<2x1x512xf32> to vector<2x512xf32>
    %61 = arith.truncf %55 : vector<2x128xf32> to vector<2x128xbf16>
    %c0_39 = arith.constant 0 : index
    %c0_40 = arith.constant 0 : index
    %c0_41 = arith.constant 0 : index
    %62 = vector.load %arg4[%c0_39, %c0_40, %c0_41] : memref<2x128x512xbf16, #tpu.memory_space<vmem>>, vector<1x128x512xbf16>
    %63 = vector.shape_cast %62 : vector<1x128x512xbf16> to vector<128x512xbf16>
    %cst_42 = arith.constant dense<0.000000e+00> : vector<2x512xf32>
    %64 = tpu.matmul %61, %63, %cst_42 {dimension_numbers = #tpu.dot_dimension_numbers<[1], [0], [0], [1], [0, 0, 1, 1], [], []>} : vector<2x128xbf16>, vector<128x512xbf16>, vector<2x512xf32> -> vector<2x512xf32>
    %65 = arith.addf %60, %64 : vector<2x512xf32>
    %66 = vector.extract_strided_slice %65 {offsets = [0, 0], sizes = [2, 128], strides = [1, 1]} : vector<2x512xf32> to vector<2x128xf32>
    %67 = arith.negf %66 : vector<2x128xf32>
    %68 = math.exp %67 : vector<2x128xf32>
    %cst_43 = arith.constant 1.000000e+00 : f32
    %69 = vector.broadcast %cst_43 : f32 to vector<2x128xf32>
    %70 = arith.addf %69, %68 : vector<2x128xf32>
    %71 = arith.divf %69, %70 : vector<2x128xf32>
    %72 = vector.extract_strided_slice %65 {offsets = [0, 128], sizes = [2, 128], strides = [1, 1]} : vector<2x512xf32> to vector<2x128xf32>
    %73 = arith.negf %72 : vector<2x128xf32>
    %74 = math.exp %73 : vector<2x128xf32>
    %cst_44 = arith.constant 1.000000e+00 : f32
    %75 = vector.broadcast %cst_44 : f32 to vector<2x128xf32>
    %76 = arith.addf %75, %74 : vector<2x128xf32>
    %77 = arith.divf %75, %76 : vector<2x128xf32>
    %78 = vector.extract_strided_slice %65 {offsets = [0, 256], sizes = [2, 128], strides = [1, 1]} : vector<2x512xf32> to vector<2x128xf32>
    %79 = math.tanh %78 : vector<2x128xf32>
    %80 = vector.extract_strided_slice %65 {offsets = [0, 384], sizes = [2, 128], strides = [1, 1]} : vector<2x512xf32> to vector<2x128xf32>
    %81 = arith.negf %80 : vector<2x128xf32>
    %82 = math.exp %81 : vector<2x128xf32>
    %cst_45 = arith.constant 1.000000e+00 : f32
    %83 = vector.broadcast %cst_45 : f32 to vector<2x128xf32>
    %84 = arith.addf %83, %82 : vector<2x128xf32>
    %85 = arith.divf %83, %84 : vector<2x128xf32>
    %86 = arith.mulf %77, %53 : vector<2x128xf32>
    %87 = arith.mulf %71, %79 : vector<2x128xf32>
    %88 = arith.addf %86, %87 : vector<2x128xf32>
    %89 = math.tanh %88 : vector<2x128xf32>
    %90 = arith.mulf %85, %89 : vector<2x128xf32>
    %c0_46 = arith.constant 0 : index
    %c1_47 = arith.constant 1 : index
    %c0_48 = arith.constant 0 : index
    %91 = vector.load %arg13[%c0_46, %c1_47, %c0_48] : memref<2x8x128xf32, #tpu.memory_space<vmem>>, vector<2x1x128xf32>
    %92 = vector.shape_cast %91 : vector<2x1x128xf32> to vector<2x128xf32>
    %93 = vector.shape_cast %90 : vector<2x128xf32> to vector<2x1x128xf32>
    tpu.vector_store %arg13[%c0_46, %c1_47, %c0_48], %93 {strides = array<i32>} : memref<2x8x128xf32, #tpu.memory_space<vmem>>, vector<2x1x128xf32>,
    %c0_49 = arith.constant 0 : index
    %c2 = arith.constant 2 : index
    %c0_50 = arith.constant 0 : index
    %94 = vector.load %arg14[%c0_49, %c2, %c0_50] : memref<2x8x512xf32, #tpu.memory_space<vmem>>, vector<2x1x512xf32>
    %95 = vector.shape_cast %94 : vector<2x1x512xf32> to vector<2x512xf32>
    %96 = arith.truncf %90 : vector<2x128xf32> to vector<2x128xbf16>
    %c0_51 = arith.constant 0 : index
    %c0_52 = arith.constant 0 : index
    %c0_53 = arith.constant 0 : index
    %97 = vector.load %arg4[%c0_51, %c0_52, %c0_53] : memref<2x128x512xbf16, #tpu.memory_space<vmem>>, vector<1x128x512xbf16>
    %98 = vector.shape_cast %97 : vector<1x128x512xbf16> to vector<128x512xbf16>
    %cst_54 = arith.constant dense<0.000000e+00> : vector<2x512xf32>
    %99 = tpu.matmul %96, %98, %cst_54 {dimension_numbers = #tpu.dot_dimension_numbers<[1], [0], [0], [1], [0, 0, 1, 1], [], []>} : vector<2x128xbf16>, vector<128x512xbf16>, vector<2x512xf32> -> vector<2x512xf32>
    %100 = arith.addf %95, %99 : vector<2x512xf32>
    %101 = vector.extract_strided_slice %100 {offsets = [0, 0], sizes = [2, 128], strides = [1, 1]} : vector<2x512xf32> to vector<2x128xf32>
    %102 = arith.negf %101 : vector<2x128xf32>
    %103 = math.exp %102 : vector<2x128xf32>
    %cst_55 = arith.constant 1.000000e+00 : f32
    %104 = vector.broadcast %cst_55 : f32 to vector<2x128xf32>
    %105 = arith.addf %104, %103 : vector<2x128xf32>
    %106 = arith.divf %104, %105 : vector<2x128xf32>
    %107 = vector.extract_strided_slice %100 {offsets = [0, 128], sizes = [2, 128], strides = [1, 1]} : vector<2x512xf32> to vector<2x128xf32>
    %108 = arith.negf %107 : vector<2x128xf32>
    %109 = math.exp %108 : vector<2x128xf32>
    %cst_56 = arith.constant 1.000000e+00 : f32
    %110 = vector.broadcast %cst_56 : f32 to vector<2x128xf32>
    %111 = arith.addf %110, %109 : vector<2x128xf32>
    %112 = arith.divf %110, %111 : vector<2x128xf32>
    %113 = vector.extract_strided_slice %100 {offsets = [0, 256], sizes = [2, 128], strides = [1, 1]} : vector<2x512xf32> to vector<2x128xf32>
    %114 = math.tanh %113 : vector<2x128xf32>
    %115 = vector.extract_strided_slice %100 {offsets = [0, 384], sizes = [2, 128], strides = [1, 1]} : vector<2x512xf32> to vector<2x128xf32>
    %116 = arith.negf %115 : vector<2x128xf32>
    %117 = math.exp %116 : vector<2x128xf32>
    %cst_57 = arith.constant 1.000000e+00 : f32
    %118 = vector.broadcast %cst_57 : f32 to vector<2x128xf32>
    %119 = arith.addf %118, %117 : vector<2x128xf32>
    %120 = arith.divf %118, %119 : vector<2x128xf32>
    %121 = arith.mulf %112, %88 : vector<2x128xf32>
    %122 = arith.mulf %106, %114 : vector<2x128xf32>
    %123 = arith.addf %121, %122 : vector<2x128xf32>
    %124 = math.tanh %123 : vector<2x128xf32>
    %125 = arith.mulf %120, %124 : vector<2x128xf32>
    %c0_58 = arith.constant 0 : index
    %c2_59 = arith.constant 2 : index
    %c0_60 = arith.constant 0 : index
    %126 = vector.load %arg13[%c0_58, %c2_59, %c0_60] : memref<2x8x128xf32, #tpu.memory_space<vmem>>, vector<2x1x128xf32>
    %127 = vector.shape_cast %126 : vector<2x1x128xf32> to vector<2x128xf32>
    %128 = vector.shape_cast %125 : vector<2x128xf32> to vector<2x1x128xf32>
    tpu.vector_store %arg13[%c0_58, %c2_59, %c0_60], %128 {strides = array<i32>} : memref<2x8x128xf32, #tpu.memory_space<vmem>>, vector<2x1x128xf32>,
    %c0_61 = arith.constant 0 : index
    %c3 = arith.constant 3 : index
    %c0_62 = arith.constant 0 : index
    %129 = vector.load %arg14[%c0_61, %c3, %c0_62] : memref<2x8x512xf32, #tpu.memory_space<vmem>>, vector<2x1x512xf32>
    %130 = vector.shape_cast %129 : vector<2x1x512xf32> to vector<2x512xf32>
    %131 = arith.truncf %125 : vector<2x128xf32> to vector<2x128xbf16>
    %c0_63 = arith.constant 0 : index
    %c0_64 = arith.constant 0 : index
    %c0_65 = arith.constant 0 : index
    %132 = vector.load %arg4[%c0_63, %c0_64, %c0_65] : memref<2x128x512xbf16, #tpu.memory_space<vmem>>, vector<1x128x512xbf16>
    %133 = vector.shape_cast %132 : vector<1x128x512xbf16> to vector<128x512xbf16>
    %cst_66 = arith.constant dense<0.000000e+00> : vector<2x512xf32>
    %134 = tpu.matmul %131, %133, %cst_66 {dimension_numbers = #tpu.dot_dimension_numbers<[1], [0], [0], [1], [0, 0, 1, 1], [], []>} : vector<2x128xbf16>, vector<128x512xbf16>, vector<2x512xf32> -> vector<2x512xf32>
    %135 = arith.addf %130, %134 : vector<2x512xf32>
    %136 = vector.extract_strided_slice %135 {offsets = [0, 0], sizes = [2, 128], strides = [1, 1]} : vector<2x512xf32> to vector<2x128xf32>
    %137 = arith.negf %136 : vector<2x128xf32>
    %138 = math.exp %137 : vector<2x128xf32>
    %cst_67 = arith.constant 1.000000e+00 : f32
    %139 = vector.broadcast %cst_67 : f32 to vector<2x128xf32>
    %140 = arith.addf %139, %138 : vector<2x128xf32>
    %141 = arith.divf %139, %140 : vector<2x128xf32>
    %142 = vector.extract_strided_slice %135 {offsets = [0, 128], sizes = [2, 128], strides = [1, 1]} : vector<2x512xf32> to vector<2x128xf32>
    %143 = arith.negf %142 : vector<2x128xf32>
    %144 = math.exp %143 : vector<2x128xf32>
    %cst_68 = arith.constant 1.000000e+00 : f32
    %145 = vector.broadcast %cst_68 : f32 to vector<2x128xf32>
    %146 = arith.addf %145, %144 : vector<2x128xf32>
    %147 = arith.divf %145, %146 : vector<2x128xf32>
    %148 = vector.extract_strided_slice %135 {offsets = [0, 256], sizes = [2, 128], strides = [1, 1]} : vector<2x512xf32> to vector<2x128xf32>
    %149 = math.tanh %148 : vector<2x128xf32>
    %150 = vector.extract_strided_slice %135 {offsets = [0, 384], sizes = [2, 128], strides = [1, 1]} : vector<2x512xf32> to vector<2x128xf32>
    %151 = arith.negf %150 : vector<2x128xf32>
    %152 = math.exp %151 : vector<2x128xf32>
    %cst_69 = arith.constant 1.000000e+00 : f32
    %153 = vector.broadcast %cst_69 : f32 to vector<2x128xf32>
    %154 = arith.addf %153, %152 : vector<2x128xf32>
    %155 = arith.divf %153, %154 : vector<2x128xf32>
    %156 = arith.mulf %147, %123 : vector<2x128xf32>
    %157 = arith.mulf %141, %149 : vector<2x128xf32>
    %158 = arith.addf %156, %157 : vector<2x128xf32>
    %159 = math.tanh %158 : vector<2x128xf32>
    %160 = arith.mulf %155, %159 : vector<2x128xf32>
    %c0_70 = arith.constant 0 : index
    %c3_71 = arith.constant 3 : index
    %c0_72 = arith.constant 0 : index
    %161 = vector.load %arg13[%c0_70, %c3_71, %c0_72] : memref<2x8x128xf32, #tpu.memory_space<vmem>>, vector<2x1x128xf32>
    %162 = vector.shape_cast %161 : vector<2x1x128xf32> to vector<2x128xf32>
    %163 = vector.shape_cast %160 : vector<2x128xf32> to vector<2x1x128xf32>
    tpu.vector_store %arg13[%c0_70, %c3_71, %c0_72], %163 {strides = array<i32>} : memref<2x8x128xf32, #tpu.memory_space<vmem>>, vector<2x1x128xf32>,
    %c0_73 = arith.constant 0 : index
    %c4 = arith.constant 4 : index
    %c0_74 = arith.constant 0 : index
    %164 = vector.load %arg14[%c0_73, %c4, %c0_74] : memref<2x8x512xf32, #tpu.memory_space<vmem>>, vector<2x1x512xf32>
    %165 = vector.shape_cast %164 : vector<2x1x512xf32> to vector<2x512xf32>
    %166 = arith.truncf %160 : vector<2x128xf32> to vector<2x128xbf16>
    %c0_75 = arith.constant 0 : index
    %c0_76 = arith.constant 0 : index
    %c0_77 = arith.constant 0 : index
    %167 = vector.load %arg4[%c0_75, %c0_76, %c0_77] : memref<2x128x512xbf16, #tpu.memory_space<vmem>>, vector<1x128x512xbf16>
    %168 = vector.shape_cast %167 : vector<1x128x512xbf16> to vector<128x512xbf16>
    %cst_78 = arith.constant dense<0.000000e+00> : vector<2x512xf32>
    %169 = tpu.matmul %166, %168, %cst_78 {dimension_numbers = #tpu.dot_dimension_numbers<[1], [0], [0], [1], [0, 0, 1, 1], [], []>} : vector<2x128xbf16>, vector<128x512xbf16>, vector<2x512xf32> -> vector<2x512xf32>
    %170 = arith.addf %165, %169 : vector<2x512xf32>
    %171 = vector.extract_strided_slice %170 {offsets = [0, 0], sizes = [2, 128], strides = [1, 1]} : vector<2x512xf32> to vector<2x128xf32>
    %172 = arith.negf %171 : vector<2x128xf32>
    %173 = math.exp %172 : vector<2x128xf32>
    %cst_79 = arith.constant 1.000000e+00 : f32
    %174 = vector.broadcast %cst_79 : f32 to vector<2x128xf32>
    %175 = arith.addf %174, %173 : vector<2x128xf32>
    %176 = arith.divf %174, %175 : vector<2x128xf32>
    %177 = vector.extract_strided_slice %170 {offsets = [0, 128], sizes = [2, 128], strides = [1, 1]} : vector<2x512xf32> to vector<2x128xf32>
    %178 = arith.negf %177 : vector<2x128xf32>
    %179 = math.exp %178 : vector<2x128xf32>
    %cst_80 = arith.constant 1.000000e+00 : f32
    %180 = vector.broadcast %cst_80 : f32 to vector<2x128xf32>
    %181 = arith.addf %180, %179 : vector<2x128xf32>
    %182 = arith.divf %180, %181 : vector<2x128xf32>
    %183 = vector.extract_strided_slice %170 {offsets = [0, 256], sizes = [2, 128], strides = [1, 1]} : vector<2x512xf32> to vector<2x128xf32>
    %184 = math.tanh %183 : vector<2x128xf32>
    %185 = vector.extract_strided_slice %170 {offsets = [0, 384], sizes = [2, 128], strides = [1, 1]} : vector<2x512xf32> to vector<2x128xf32>
    %186 = arith.negf %185 : vector<2x128xf32>
    %187 = math.exp %186 : vector<2x128xf32>
    %cst_81 = arith.constant 1.000000e+00 : f32
    %188 = vector.broadcast %cst_81 : f32 to vector<2x128xf32>
    %189 = arith.addf %188, %187 : vector<2x128xf32>
    %190 = arith.divf %188, %189 : vector<2x128xf32>
    %191 = arith.mulf %182, %158 : vector<2x128xf32>
    %192 = arith.mulf %176, %184 : vector<2x128xf32>
    %193 = arith.addf %191, %192 : vector<2x128xf32>
    %194 = math.tanh %193 : vector<2x128xf32>
    %195 = arith.mulf %190, %194 : vector<2x128xf32>
    %c0_82 = arith.constant 0 : index
    %c4_83 = arith.constant 4 : index
    %c0_84 = arith.constant 0 : index
    %196 = vector.load %arg13[%c0_82, %c4_83, %c0_84] : memref<2x8x128xf32, #tpu.memory_space<vmem>>, vector<2x1x128xf32>
    %197 = vector.shape_cast %196 : vector<2x1x128xf32> to vector<2x128xf32>
    %198 = vector.shape_cast %195 : vector<2x128xf32> to vector<2x1x128xf32>
    tpu.vector_store %arg13[%c0_82, %c4_83, %c0_84], %198 {strides = array<i32>} : memref<2x8x128xf32, #tpu.memory_space<vmem>>, vector<2x1x128xf32>,
    %c0_85 = arith.constant 0 : index
    %c5 = arith.constant 5 : index
    %c0_86 = arith.constant 0 : index
    %199 = vector.load %arg14[%c0_85, %c5, %c0_86] : memref<2x8x512xf32, #tpu.memory_space<vmem>>, vector<2x1x512xf32>
    %200 = vector.shape_cast %199 : vector<2x1x512xf32> to vector<2x512xf32>
    %201 = arith.truncf %195 : vector<2x128xf32> to vector<2x128xbf16>
    %c0_87 = arith.constant 0 : index
    %c0_88 = arith.constant 0 : index
    %c0_89 = arith.constant 0 : index
    %202 = vector.load %arg4[%c0_87, %c0_88, %c0_89] : memref<2x128x512xbf16, #tpu.memory_space<vmem>>, vector<1x128x512xbf16>
    %203 = vector.shape_cast %202 : vector<1x128x512xbf16> to vector<128x512xbf16>
    %cst_90 = arith.constant dense<0.000000e+00> : vector<2x512xf32>
    %204 = tpu.matmul %201, %203, %cst_90 {dimension_numbers = #tpu.dot_dimension_numbers<[1], [0], [0], [1], [0, 0, 1, 1], [], []>} : vector<2x128xbf16>, vector<128x512xbf16>, vector<2x512xf32> -> vector<2x512xf32>
    %205 = arith.addf %200, %204 : vector<2x512xf32>
    %206 = vector.extract_strided_slice %205 {offsets = [0, 0], sizes = [2, 128], strides = [1, 1]} : vector<2x512xf32> to vector<2x128xf32>
    %207 = arith.negf %206 : vector<2x128xf32>
    %208 = math.exp %207 : vector<2x128xf32>
    %cst_91 = arith.constant 1.000000e+00 : f32
    %209 = vector.broadcast %cst_91 : f32 to vector<2x128xf32>
    %210 = arith.addf %209, %208 : vector<2x128xf32>
    %211 = arith.divf %209, %210 : vector<2x128xf32>
    %212 = vector.extract_strided_slice %205 {offsets = [0, 128], sizes = [2, 128], strides = [1, 1]} : vector<2x512xf32> to vector<2x128xf32>
    %213 = arith.negf %212 : vector<2x128xf32>
    %214 = math.exp %213 : vector<2x128xf32>
    %cst_92 = arith.constant 1.000000e+00 : f32
    %215 = vector.broadcast %cst_92 : f32 to vector<2x128xf32>
    %216 = arith.addf %215, %214 : vector<2x128xf32>
    %217 = arith.divf %215, %216 : vector<2x128xf32>
    %218 = vector.extract_strided_slice %205 {offsets = [0, 256], sizes = [2, 128], strides = [1, 1]} : vector<2x512xf32> to vector<2x128xf32>
    %219 = math.tanh %218 : vector<2x128xf32>
    %220 = vector.extract_strided_slice %205 {offsets = [0, 384], sizes = [2, 128], strides = [1, 1]} : vector<2x512xf32> to vector<2x128xf32>
    %221 = arith.negf %220 : vector<2x128xf32>
    %222 = math.exp %221 : vector<2x128xf32>
    %cst_93 = arith.constant 1.000000e+00 : f32
    %223 = vector.broadcast %cst_93 : f32 to vector<2x128xf32>
    %224 = arith.addf %223, %222 : vector<2x128xf32>
    %225 = arith.divf %223, %224 : vector<2x128xf32>
    %226 = arith.mulf %217, %193 : vector<2x128xf32>
    %227 = arith.mulf %211, %219 : vector<2x128xf32>
    %228 = arith.addf %226, %227 : vector<2x128xf32>
    %229 = math.tanh %228 : vector<2x128xf32>
    %230 = arith.mulf %225, %229 : vector<2x128xf32>
    %c0_94 = arith.constant 0 : index
    %c5_95 = arith.constant 5 : index
    %c0_96 = arith.constant 0 : index
    %231 = vector.load %arg13[%c0_94, %c5_95, %c0_96] : memref<2x8x128xf32, #tpu.memory_space<vmem>>, vector<2x1x128xf32>
    %232 = vector.shape_cast %231 : vector<2x1x128xf32> to vector<2x128xf32>
    %233 = vector.shape_cast %230 : vector<2x128xf32> to vector<2x1x128xf32>
    tpu.vector_store %arg13[%c0_94, %c5_95, %c0_96], %233 {strides = array<i32>} : memref<2x8x128xf32, #tpu.memory_space<vmem>>, vector<2x1x128xf32>,
    %c0_97 = arith.constant 0 : index
    %c6 = arith.constant 6 : index
    %c0_98 = arith.constant 0 : index
    %234 = vector.load %arg14[%c0_97, %c6, %c0_98] : memref<2x8x512xf32, #tpu.memory_space<vmem>>, vector<2x1x512xf32>
    %235 = vector.shape_cast %234 : vector<2x1x512xf32> to vector<2x512xf32>
    %236 = arith.truncf %230 : vector<2x128xf32> to vector<2x128xbf16>
    %c0_99 = arith.constant 0 : index
    %c0_100 = arith.constant 0 : index
    %c0_101 = arith.constant 0 : index
    %237 = vector.load %arg4[%c0_99, %c0_100, %c0_101] : memref<2x128x512xbf16, #tpu.memory_space<vmem>>, vector<1x128x512xbf16>
    %238 = vector.shape_cast %237 : vector<1x128x512xbf16> to vector<128x512xbf16>
    %cst_102 = arith.constant dense<0.000000e+00> : vector<2x512xf32>
    %239 = tpu.matmul %236, %238, %cst_102 {dimension_numbers = #tpu.dot_dimension_numbers<[1], [0], [0], [1], [0, 0, 1, 1], [], []>} : vector<2x128xbf16>, vector<128x512xbf16>, vector<2x512xf32> -> vector<2x512xf32>
    %240 = arith.addf %235, %239 : vector<2x512xf32>
    %241 = vector.extract_strided_slice %240 {offsets = [0, 0], sizes = [2, 128], strides = [1, 1]} : vector<2x512xf32> to vector<2x128xf32>
    %242 = arith.negf %241 : vector<2x128xf32>
    %243 = math.exp %242 : vector<2x128xf32>
    %cst_103 = arith.constant 1.000000e+00 : f32
    %244 = vector.broadcast %cst_103 : f32 to vector<2x128xf32>
    %245 = arith.addf %244, %243 : vector<2x128xf32>
    %246 = arith.divf %244, %245 : vector<2x128xf32>
    %247 = vector.extract_strided_slice %240 {offsets = [0, 128], sizes = [2, 128], strides = [1, 1]} : vector<2x512xf32> to vector<2x128xf32>
    %248 = arith.negf %247 : vector<2x128xf32>
    %249 = math.exp %248 : vector<2x128xf32>
    %cst_104 = arith.constant 1.000000e+00 : f32
    %250 = vector.broadcast %cst_104 : f32 to vector<2x128xf32>
    %251 = arith.addf %250, %249 : vector<2x128xf32>
    %252 = arith.divf %250, %251 : vector<2x128xf32>
    %253 = vector.extract_strided_slice %240 {offsets = [0, 256], sizes = [2, 128], strides = [1, 1]} : vector<2x512xf32> to vector<2x128xf32>
    %254 = math.tanh %253 : vector<2x128xf32>
    %255 = vector.extract_strided_slice %240 {offsets = [0, 384], sizes = [2, 128], strides = [1, 1]} : vector<2x512xf32> to vector<2x128xf32>
    %256 = arith.negf %255 : vector<2x128xf32>
    %257 = math.exp %256 : vector<2x128xf32>
    %cst_105 = arith.constant 1.000000e+00 : f32
    %258 = vector.broadcast %cst_105 : f32 to vector<2x128xf32>
    %259 = arith.addf %258, %257 : vector<2x128xf32>
    %260 = arith.divf %258, %259 : vector<2x128xf32>
    %261 = arith.mulf %252, %228 : vector<2x128xf32>
    %262 = arith.mulf %246, %254 : vector<2x128xf32>
    %263 = arith.addf %261, %262 : vector<2x128xf32>
    %264 = math.tanh %263 : vector<2x128xf32>
    %265 = arith.mulf %260, %264 : vector<2x128xf32>
    %c0_106 = arith.constant 0 : index
    %c6_107 = arith.constant 6 : index
    %c0_108 = arith.constant 0 : index
    %266 = vector.load %arg13[%c0_106, %c6_107, %c0_108] : memref<2x8x128xf32, #tpu.memory_space<vmem>>, vector<2x1x128xf32>
    %267 = vector.shape_cast %266 : vector<2x1x128xf32> to vector<2x128xf32>
    %268 = vector.shape_cast %265 : vector<2x128xf32> to vector<2x1x128xf32>
    tpu.vector_store %arg13[%c0_106, %c6_107, %c0_108], %268 {strides = array<i32>} : memref<2x8x128xf32, #tpu.memory_space<vmem>>, vector<2x1x128xf32>,
    %c0_109 = arith.constant 0 : index
    %c7 = arith.constant 7 : index
    %c0_110 = arith.constant 0 : index
    %269 = vector.load %arg14[%c0_109, %c7, %c0_110] : memref<2x8x512xf32, #tpu.memory_space<vmem>>, vector<2x1x512xf32>
    %270 = vector.shape_cast %269 : vector<2x1x512xf32> to vector<2x512xf32>
    %271 = arith.truncf %265 : vector<2x128xf32> to vector<2x128xbf16>
    %c0_111 = arith.constant 0 : index
    %c0_112 = arith.constant 0 : index
    %c0_113 = arith.constant 0 : index
    %272 = vector.load %arg4[%c0_111, %c0_112, %c0_113] : memref<2x128x512xbf16, #tpu.memory_space<vmem>>, vector<1x128x512xbf16>
    %273 = vector.shape_cast %272 : vector<1x128x512xbf16> to vector<128x512xbf16>
    %cst_114 = arith.constant dense<0.000000e+00> : vector<2x512xf32>
    %274 = tpu.matmul %271, %273, %cst_114 {dimension_numbers = #tpu.dot_dimension_numbers<[1], [0], [0], [1], [0, 0, 1, 1], [], []>} : vector<2x128xbf16>, vector<128x512xbf16>, vector<2x512xf32> -> vector<2x512xf32>
    %275 = arith.addf %270, %274 : vector<2x512xf32>
    %276 = vector.extract_strided_slice %275 {offsets = [0, 0], sizes = [2, 128], strides = [1, 1]} : vector<2x512xf32> to vector<2x128xf32>
    %277 = arith.negf %276 : vector<2x128xf32>
    %278 = math.exp %277 : vector<2x128xf32>
    %cst_115 = arith.constant 1.000000e+00 : f32
    %279 = vector.broadcast %cst_115 : f32 to vector<2x128xf32>
    %280 = arith.addf %279, %278 : vector<2x128xf32>
    %281 = arith.divf %279, %280 : vector<2x128xf32>
    %282 = vector.extract_strided_slice %275 {offsets = [0, 128], sizes = [2, 128], strides = [1, 1]} : vector<2x512xf32> to vector<2x128xf32>
    %283 = arith.negf %282 : vector<2x128xf32>
    %284 = math.exp %283 : vector<2x128xf32>
    %cst_116 = arith.constant 1.000000e+00 : f32
    %285 = vector.broadcast %cst_116 : f32 to vector<2x128xf32>
    %286 = arith.addf %285, %284 : vector<2x128xf32>
    %287 = arith.divf %285, %286 : vector<2x128xf32>
    %288 = vector.extract_strided_slice %275 {offsets = [0, 256], sizes = [2, 128], strides = [1, 1]} : vector<2x512xf32> to vector<2x128xf32>
    %289 = math.tanh %288 : vector<2x128xf32>
    %290 = vector.extract_strided_slice %275 {offsets = [0, 384], sizes = [2, 128], strides = [1, 1]} : vector<2x512xf32> to vector<2x128xf32>
    %291 = arith.negf %290 : vector<2x128xf32>
    %292 = math.exp %291 : vector<2x128xf32>
    %cst_117 = arith.constant 1.000000e+00 : f32
    %293 = vector.broadcast %cst_117 : f32 to vector<2x128xf32>
    %294 = arith.addf %293, %292 : vector<2x128xf32>
    %295 = arith.divf %293, %294 : vector<2x128xf32>
    %296 = arith.mulf %287, %263 : vector<2x128xf32>
    %297 = arith.mulf %281, %289 : vector<2x128xf32>
    %298 = arith.addf %296, %297 : vector<2x128xf32>
    %299 = math.tanh %298 : vector<2x128xf32>
    %300 = arith.mulf %295, %299 : vector<2x128xf32>
    %c0_118 = arith.constant 0 : index
    %c7_119 = arith.constant 7 : index
    %c0_120 = arith.constant 0 : index
    %301 = vector.load %arg13[%c0_118, %c7_119, %c0_120] : memref<2x8x128xf32, #tpu.memory_space<vmem>>, vector<2x1x128xf32>
    %302 = vector.shape_cast %301 : vector<2x1x128xf32> to vector<2x128xf32>
    %303 = vector.shape_cast %300 : vector<2x128xf32> to vector<2x1x128xf32>
    tpu.vector_store %arg13[%c0_118, %c7_119, %c0_120], %303 {strides = array<i32>} : memref<2x8x128xf32, #tpu.memory_space<vmem>>, vector<2x1x128xf32>,
    %c0_121 = arith.constant 0 : index
    %c0_122 = arith.constant 0 : index
    %c0_123 = arith.constant 0 : index
    %304 = vector.load %arg13[%c0_121, %c0_122, %c0_123] : memref<2x8x128xf32, #tpu.memory_space<vmem>>, vector<2x8x128xf32>
    %305 = vector.shape_cast %304 : vector<2x8x128xf32> to vector<16x128xf32>
    %306 = arith.truncf %305 : vector<16x128xf32> to vector<16x128xbf16>
    %c1_124 = arith.constant 1 : index
    %c0_125 = arith.constant 0 : index
    %c0_126 = arith.constant 0 : index
    %307 = vector.load %arg3[%c1_124, %c0_125, %c0_126] : memref<2x128x512xbf16, #tpu.memory_space<vmem>>, vector<1x128x512xbf16>
    %308 = vector.shape_cast %307 : vector<1x128x512xbf16> to vector<128x512xbf16>
    %cst_127 = arith.constant dense<0.000000e+00> : vector<16x512xf32>
    %309 = tpu.matmul %306, %308, %cst_127 {dimension_numbers = #tpu.dot_dimension_numbers<[1], [0], [0], [1], [0, 0, 1, 1], [], []>} : vector<16x128xbf16>, vector<128x512xbf16>, vector<16x512xf32> -> vector<16x512xf32>
    %c1_128 = arith.constant 1 : index
    %c0_129 = arith.constant 0 : index
    %c0_130 = arith.constant 0 : index
    %310 = vector.load %arg5[%c1_128, %c0_129, %c0_130] : memref<2x1x512xf32, #tpu.memory_space<vmem>>, vector<1x1x512xf32>
    %311 = vector.shape_cast %310 : vector<1x1x512xf32> to vector<1x512xf32>
    %312 = vector.broadcast %311 : vector<1x512xf32> to vector<16x512xf32>
    %313 = arith.addf %309, %312 : vector<16x512xf32>
    %314 = vector.shape_cast %313 : vector<16x512xf32> to vector<2x8x512xf32>
    %c0_131 = arith.constant 0 : index
    %c0_132 = arith.constant 0 : index
    %c0_133 = arith.constant 0 : index
    %315 = vector.load %arg14[%c0_131, %c0_132, %c0_133] : memref<2x8x512xf32, #tpu.memory_space<vmem>>, vector<2x8x512xf32>
    tpu.vector_store %arg14[%c0_131, %c0_132, %c0_133], %314 {strides = array<i32>} : memref<2x8x512xf32, #tpu.memory_space<vmem>>, vector<2x8x512xf32>,
    %cst_134 = arith.constant 0.000000e+00 : f32
    %316 = vector.broadcast %cst_134 : f32 to vector<2x128xf32>
    %cst_135 = arith.constant 0.000000e+00 : f32
    %317 = vector.broadcast %cst_135 : f32 to vector<2x128xf32>
    %c0_136 = arith.constant 0 : index
    %c0_137 = arith.constant 0 : index
    %c0_138 = arith.constant 0 : index
    %318 = vector.load %arg14[%c0_136, %c0_137, %c0_138] : memref<2x8x512xf32, #tpu.memory_space<vmem>>, vector<2x1x512xf32>
    %319 = vector.shape_cast %318 : vector<2x1x512xf32> to vector<2x512xf32>
    %320 = arith.truncf %316 : vector<2x128xf32> to vector<2x128xbf16>
    %c1_139 = arith.constant 1 : index
    %c0_140 = arith.constant 0 : index
    %c0_141 = arith.constant 0 : index
    %321 = vector.load %arg4[%c1_139, %c0_140, %c0_141] : memref<2x128x512xbf16, #tpu.memory_space<vmem>>, vector<1x128x512xbf16>
    %322 = vector.shape_cast %321 : vector<1x128x512xbf16> to vector<128x512xbf16>
    %cst_142 = arith.constant dense<0.000000e+00> : vector<2x512xf32>
    %323 = tpu.matmul %320, %322, %cst_142 {dimension_numbers = #tpu.dot_dimension_numbers<[1], [0], [0], [1], [0, 0, 1, 1], [], []>} : vector<2x128xbf16>, vector<128x512xbf16>, vector<2x512xf32> -> vector<2x512xf32>
    %324 = arith.addf %319, %323 : vector<2x512xf32>
    %325 = vector.extract_strided_slice %324 {offsets = [0, 0], sizes = [2, 128], strides = [1, 1]} : vector<2x512xf32> to vector<2x128xf32>
    %326 = arith.negf %325 : vector<2x128xf32>
    %327 = math.exp %326 : vector<2x128xf32>
    %cst_143 = arith.constant 1.000000e+00 : f32
    %328 = vector.broadcast %cst_143 : f32 to vector<2x128xf32>
    %329 = arith.addf %328, %327 : vector<2x128xf32>
    %330 = arith.divf %328, %329 : vector<2x128xf32>
    %331 = vector.extract_strided_slice %324 {offsets = [0, 128], sizes = [2, 128], strides = [1, 1]} : vector<2x512xf32> to vector<2x128xf32>
    %332 = arith.negf %331 : vector<2x128xf32>
    %333 = math.exp %332 : vector<2x128xf32>
    %cst_144 = arith.constant 1.000000e+00 : f32
    %334 = vector.broadcast %cst_144 : f32 to vector<2x128xf32>
    %335 = arith.addf %334, %333 : vector<2x128xf32>
    %336 = arith.divf %334, %335 : vector<2x128xf32>
    %337 = vector.extract_strided_slice %324 {offsets = [0, 256], sizes = [2, 128], strides = [1, 1]} : vector<2x512xf32> to vector<2x128xf32>
    %338 = math.tanh %337 : vector<2x128xf32>
    %339 = vector.extract_strided_slice %324 {offsets = [0, 384], sizes = [2, 128], strides = [1, 1]} : vector<2x512xf32> to vector<2x128xf32>
    %340 = arith.negf %339 : vector<2x128xf32>
    %341 = math.exp %340 : vector<2x128xf32>
    %cst_145 = arith.constant 1.000000e+00 : f32
    %342 = vector.broadcast %cst_145 : f32 to vector<2x128xf32>
    %343 = arith.addf %342, %341 : vector<2x128xf32>
    %344 = arith.divf %342, %343 : vector<2x128xf32>
    %345 = arith.mulf %336, %317 : vector<2x128xf32>
    %346 = arith.mulf %330, %338 : vector<2x128xf32>
    %347 = arith.addf %345, %346 : vector<2x128xf32>
    %348 = math.tanh %347 : vector<2x128xf32>
    %349 = arith.mulf %344, %348 : vector<2x128xf32>
    %c0_146 = arith.constant 0 : index
    %c0_147 = arith.constant 0 : index
    %c0_148 = arith.constant 0 : index
    %350 = vector.load %arg13[%c0_146, %c0_147, %c0_148] : memref<2x8x128xf32, #tpu.memory_space<vmem>>, vector<2x1x128xf32>
    %351 = vector.shape_cast %350 : vector<2x1x128xf32> to vector<2x128xf32>
    %352 = vector.shape_cast %349 : vector<2x128xf32> to vector<2x1x128xf32>
    tpu.vector_store %arg13[%c0_146, %c0_147, %c0_148], %352 {strides = array<i32>} : memref<2x8x128xf32, #tpu.memory_space<vmem>>, vector<2x1x128xf32>,
    %c0_149 = arith.constant 0 : index
    %c1_150 = arith.constant 1 : index
    %c0_151 = arith.constant 0 : index
    %353 = vector.load %arg14[%c0_149, %c1_150, %c0_151] : memref<2x8x512xf32, #tpu.memory_space<vmem>>, vector<2x1x512xf32>
    %354 = vector.shape_cast %353 : vector<2x1x512xf32> to vector<2x512xf32>
    %355 = arith.truncf %349 : vector<2x128xf32> to vector<2x128xbf16>
    %c1_152 = arith.constant 1 : index
    %c0_153 = arith.constant 0 : index
    %c0_154 = arith.constant 0 : index
    %356 = vector.load %arg4[%c1_152, %c0_153, %c0_154] : memref<2x128x512xbf16, #tpu.memory_space<vmem>>, vector<1x128x512xbf16>
    %357 = vector.shape_cast %356 : vector<1x128x512xbf16> to vector<128x512xbf16>
    %cst_155 = arith.constant dense<0.000000e+00> : vector<2x512xf32>
    %358 = tpu.matmul %355, %357, %cst_155 {dimension_numbers = #tpu.dot_dimension_numbers<[1], [0], [0], [1], [0, 0, 1, 1], [], []>} : vector<2x128xbf16>, vector<128x512xbf16>, vector<2x512xf32> -> vector<2x512xf32>
    %359 = arith.addf %354, %358 : vector<2x512xf32>
    %360 = vector.extract_strided_slice %359 {offsets = [0, 0], sizes = [2, 128], strides = [1, 1]} : vector<2x512xf32> to vector<2x128xf32>
    %361 = arith.negf %360 : vector<2x128xf32>
    %362 = math.exp %361 : vector<2x128xf32>
    %cst_156 = arith.constant 1.000000e+00 : f32
    %363 = vector.broadcast %cst_156 : f32 to vector<2x128xf32>
    %364 = arith.addf %363, %362 : vector<2x128xf32>
    %365 = arith.divf %363, %364 : vector<2x128xf32>
    %366 = vector.extract_strided_slice %359 {offsets = [0, 128], sizes = [2, 128], strides = [1, 1]} : vector<2x512xf32> to vector<2x128xf32>
    %367 = arith.negf %366 : vector<2x128xf32>
    %368 = math.exp %367 : vector<2x128xf32>
    %cst_157 = arith.constant 1.000000e+00 : f32
    %369 = vector.broadcast %cst_157 : f32 to vector<2x128xf32>
    %370 = arith.addf %369, %368 : vector<2x128xf32>
    %371 = arith.divf %369, %370 : vector<2x128xf32>
    %372 = vector.extract_strided_slice %359 {offsets = [0, 256], sizes = [2, 128], strides = [1, 1]} : vector<2x512xf32> to vector<2x128xf32>
    %373 = math.tanh %372 : vector<2x128xf32>
    %374 = vector.extract_strided_slice %359 {offsets = [0, 384], sizes = [2, 128], strides = [1, 1]} : vector<2x512xf32> to vector<2x128xf32>
    %375 = arith.negf %374 : vector<2x128xf32>
    %376 = math.exp %375 : vector<2x128xf32>
    %cst_158 = arith.constant 1.000000e+00 : f32
    %377 = vector.broadcast %cst_158 : f32 to vector<2x128xf32>
    %378 = arith.addf %377, %376 : vector<2x128xf32>
    %379 = arith.divf %377, %378 : vector<2x128xf32>
    %380 = arith.mulf %371, %347 : vector<2x128xf32>
    %381 = arith.mulf %365, %373 : vector<2x128xf32>
    %382 = arith.addf %380, %381 : vector<2x128xf32>
    %383 = math.tanh %382 : vector<2x128xf32>
    %384 = arith.mulf %379, %383 : vector<2x128xf32>
    %c0_159 = arith.constant 0 : index
    %c1_160 = arith.constant 1 : index
    %c0_161 = arith.constant 0 : index
    %385 = vector.load %arg13[%c0_159, %c1_160, %c0_161] : memref<2x8x128xf32, #tpu.memory_space<vmem>>, vector<2x1x128xf32>
    %386 = vector.shape_cast %385 : vector<2x1x128xf32> to vector<2x128xf32>
    %387 = vector.shape_cast %384 : vector<2x128xf32> to vector<2x1x128xf32>
    tpu.vector_store %arg13[%c0_159, %c1_160, %c0_161], %387 {strides = array<i32>} : memref<2x8x128xf32, #tpu.memory_space<vmem>>, vector<2x1x128xf32>,
    %c0_162 = arith.constant 0 : index
    %c2_163 = arith.constant 2 : index
    %c0_164 = arith.constant 0 : index
    %388 = vector.load %arg14[%c0_162, %c2_163, %c0_164] : memref<2x8x512xf32, #tpu.memory_space<vmem>>, vector<2x1x512xf32>
    %389 = vector.shape_cast %388 : vector<2x1x512xf32> to vector<2x512xf32>
    %390 = arith.truncf %384 : vector<2x128xf32> to vector<2x128xbf16>
    %c1_165 = arith.constant 1 : index
    %c0_166 = arith.constant 0 : index
    %c0_167 = arith.constant 0 : index
    %391 = vector.load %arg4[%c1_165, %c0_166, %c0_167] : memref<2x128x512xbf16, #tpu.memory_space<vmem>>, vector<1x128x512xbf16>
    %392 = vector.shape_cast %391 : vector<1x128x512xbf16> to vector<128x512xbf16>
    %cst_168 = arith.constant dense<0.000000e+00> : vector<2x512xf32>
    %393 = tpu.matmul %390, %392, %cst_168 {dimension_numbers = #tpu.dot_dimension_numbers<[1], [0], [0], [1], [0, 0, 1, 1], [], []>} : vector<2x128xbf16>, vector<128x512xbf16>, vector<2x512xf32> -> vector<2x512xf32>
    %394 = arith.addf %389, %393 : vector<2x512xf32>
    %395 = vector.extract_strided_slice %394 {offsets = [0, 0], sizes = [2, 128], strides = [1, 1]} : vector<2x512xf32> to vector<2x128xf32>
    %396 = arith.negf %395 : vector<2x128xf32>
    %397 = math.exp %396 : vector<2x128xf32>
    %cst_169 = arith.constant 1.000000e+00 : f32
    %398 = vector.broadcast %cst_169 : f32 to vector<2x128xf32>
    %399 = arith.addf %398, %397 : vector<2x128xf32>
    %400 = arith.divf %398, %399 : vector<2x128xf32>
    %401 = vector.extract_strided_slice %394 {offsets = [0, 128], sizes = [2, 128], strides = [1, 1]} : vector<2x512xf32> to vector<2x128xf32>
    %402 = arith.negf %401 : vector<2x128xf32>
    %403 = math.exp %402 : vector<2x128xf32>
    %cst_170 = arith.constant 1.000000e+00 : f32
    %404 = vector.broadcast %cst_170 : f32 to vector<2x128xf32>
    %405 = arith.addf %404, %403 : vector<2x128xf32>
    %406 = arith.divf %404, %405 : vector<2x128xf32>
    %407 = vector.extract_strided_slice %394 {offsets = [0, 256], sizes = [2, 128], strides = [1, 1]} : vector<2x512xf32> to vector<2x128xf32>
    %408 = math.tanh %407 : vector<2x128xf32>
    %409 = vector.extract_strided_slice %394 {offsets = [0, 384], sizes = [2, 128], strides = [1, 1]} : vector<2x512xf32> to vector<2x128xf32>
    %410 = arith.negf %409 : vector<2x128xf32>
    %411 = math.exp %410 : vector<2x128xf32>
    %cst_171 = arith.constant 1.000000e+00 : f32
    %412 = vector.broadcast %cst_171 : f32 to vector<2x128xf32>
    %413 = arith.addf %412, %411 : vector<2x128xf32>
    %414 = arith.divf %412, %413 : vector<2x128xf32>
    %415 = arith.mulf %406, %382 : vector<2x128xf32>
    %416 = arith.mulf %400, %408 : vector<2x128xf32>
    %417 = arith.addf %415, %416 : vector<2x128xf32>
    %418 = math.tanh %417 : vector<2x128xf32>
    %419 = arith.mulf %414, %418 : vector<2x128xf32>
    %c0_172 = arith.constant 0 : index
    %c2_173 = arith.constant 2 : index
    %c0_174 = arith.constant 0 : index
    %420 = vector.load %arg13[%c0_172, %c2_173, %c0_174] : memref<2x8x128xf32, #tpu.memory_space<vmem>>, vector<2x1x128xf32>
    %421 = vector.shape_cast %420 : vector<2x1x128xf32> to vector<2x128xf32>
    %422 = vector.shape_cast %419 : vector<2x128xf32> to vector<2x1x128xf32>
    tpu.vector_store %arg13[%c0_172, %c2_173, %c0_174], %422 {strides = array<i32>} : memref<2x8x128xf32, #tpu.memory_space<vmem>>, vector<2x1x128xf32>,
    %c0_175 = arith.constant 0 : index
    %c3_176 = arith.constant 3 : index
    %c0_177 = arith.constant 0 : index
    %423 = vector.load %arg14[%c0_175, %c3_176, %c0_177] : memref<2x8x512xf32, #tpu.memory_space<vmem>>, vector<2x1x512xf32>
    %424 = vector.shape_cast %423 : vector<2x1x512xf32> to vector<2x512xf32>
    %425 = arith.truncf %419 : vector<2x128xf32> to vector<2x128xbf16>
    %c1_178 = arith.constant 1 : index
    %c0_179 = arith.constant 0 : index
    %c0_180 = arith.constant 0 : index
    %426 = vector.load %arg4[%c1_178, %c0_179, %c0_180] : memref<2x128x512xbf16, #tpu.memory_space<vmem>>, vector<1x128x512xbf16>
    %427 = vector.shape_cast %426 : vector<1x128x512xbf16> to vector<128x512xbf16>
    %cst_181 = arith.constant dense<0.000000e+00> : vector<2x512xf32>
    %428 = tpu.matmul %425, %427, %cst_181 {dimension_numbers = #tpu.dot_dimension_numbers<[1], [0], [0], [1], [0, 0, 1, 1], [], []>} : vector<2x128xbf16>, vector<128x512xbf16>, vector<2x512xf32> -> vector<2x512xf32>
    %429 = arith.addf %424, %428 : vector<2x512xf32>
    %430 = vector.extract_strided_slice %429 {offsets = [0, 0], sizes = [2, 128], strides = [1, 1]} : vector<2x512xf32> to vector<2x128xf32>
    %431 = arith.negf %430 : vector<2x128xf32>
    %432 = math.exp %431 : vector<2x128xf32>
    %cst_182 = arith.constant 1.000000e+00 : f32
    %433 = vector.broadcast %cst_182 : f32 to vector<2x128xf32>
    %434 = arith.addf %433, %432 : vector<2x128xf32>
    %435 = arith.divf %433, %434 : vector<2x128xf32>
    %436 = vector.extract_strided_slice %429 {offsets = [0, 128], sizes = [2, 128], strides = [1, 1]} : vector<2x512xf32> to vector<2x128xf32>
    %437 = arith.negf %436 : vector<2x128xf32>
    %438 = math.exp %437 : vector<2x128xf32>
    %cst_183 = arith.constant 1.000000e+00 : f32
    %439 = vector.broadcast %cst_183 : f32 to vector<2x128xf32>
    %440 = arith.addf %439, %438 : vector<2x128xf32>
    %441 = arith.divf %439, %440 : vector<2x128xf32>
    %442 = vector.extract_strided_slice %429 {offsets = [0, 256], sizes = [2, 128], strides = [1, 1]} : vector<2x512xf32> to vector<2x128xf32>
    %443 = math.tanh %442 : vector<2x128xf32>
    %444 = vector.extract_strided_slice %429 {offsets = [0, 384], sizes = [2, 128], strides = [1, 1]} : vector<2x512xf32> to vector<2x128xf32>
    %445 = arith.negf %444 : vector<2x128xf32>
    %446 = math.exp %445 : vector<2x128xf32>
    %cst_184 = arith.constant 1.000000e+00 : f32
    %447 = vector.broadcast %cst_184 : f32 to vector<2x128xf32>
    %448 = arith.addf %447, %446 : vector<2x128xf32>
    %449 = arith.divf %447, %448 : vector<2x128xf32>
    %450 = arith.mulf %441, %417 : vector<2x128xf32>
    %451 = arith.mulf %435, %443 : vector<2x128xf32>
    %452 = arith.addf %450, %451 : vector<2x128xf32>
    %453 = math.tanh %452 : vector<2x128xf32>
    %454 = arith.mulf %449, %453 : vector<2x128xf32>
    %c0_185 = arith.constant 0 : index
    %c3_186 = arith.constant 3 : index
    %c0_187 = arith.constant 0 : index
    %455 = vector.load %arg13[%c0_185, %c3_186, %c0_187] : memref<2x8x128xf32, #tpu.memory_space<vmem>>, vector<2x1x128xf32>
    %456 = vector.shape_cast %455 : vector<2x1x128xf32> to vector<2x128xf32>
    %457 = vector.shape_cast %454 : vector<2x128xf32> to vector<2x1x128xf32>
    tpu.vector_store %arg13[%c0_185, %c3_186, %c0_187], %457 {strides = array<i32>} : memref<2x8x128xf32, #tpu.memory_space<vmem>>, vector<2x1x128xf32>,
    %c0_188 = arith.constant 0 : index
    %c4_189 = arith.constant 4 : index
    %c0_190 = arith.constant 0 : index
    %458 = vector.load %arg14[%c0_188, %c4_189, %c0_190] : memref<2x8x512xf32, #tpu.memory_space<vmem>>, vector<2x1x512xf32>
    %459 = vector.shape_cast %458 : vector<2x1x512xf32> to vector<2x512xf32>
    %460 = arith.truncf %454 : vector<2x128xf32> to vector<2x128xbf16>
    %c1_191 = arith.constant 1 : index
    %c0_192 = arith.constant 0 : index
    %c0_193 = arith.constant 0 : index
    %461 = vector.load %arg4[%c1_191, %c0_192, %c0_193] : memref<2x128x512xbf16, #tpu.memory_space<vmem>>, vector<1x128x512xbf16>
    %462 = vector.shape_cast %461 : vector<1x128x512xbf16> to vector<128x512xbf16>
    %cst_194 = arith.constant dense<0.000000e+00> : vector<2x512xf32>
    %463 = tpu.matmul %460, %462, %cst_194 {dimension_numbers = #tpu.dot_dimension_numbers<[1], [0], [0], [1], [0, 0, 1, 1], [], []>} : vector<2x128xbf16>, vector<128x512xbf16>, vector<2x512xf32> -> vector<2x512xf32>
    %464 = arith.addf %459, %463 : vector<2x512xf32>
    %465 = vector.extract_strided_slice %464 {offsets = [0, 0], sizes = [2, 128], strides = [1, 1]} : vector<2x512xf32> to vector<2x128xf32>
    %466 = arith.negf %465 : vector<2x128xf32>
    %467 = math.exp %466 : vector<2x128xf32>
    %cst_195 = arith.constant 1.000000e+00 : f32
    %468 = vector.broadcast %cst_195 : f32 to vector<2x128xf32>
    %469 = arith.addf %468, %467 : vector<2x128xf32>
    %470 = arith.divf %468, %469 : vector<2x128xf32>
    %471 = vector.extract_strided_slice %464 {offsets = [0, 128], sizes = [2, 128], strides = [1, 1]} : vector<2x512xf32> to vector<2x128xf32>
    %472 = arith.negf %471 : vector<2x128xf32>
    %473 = math.exp %472 : vector<2x128xf32>
    %cst_196 = arith.constant 1.000000e+00 : f32
    %474 = vector.broadcast %cst_196 : f32 to vector<2x128xf32>
    %475 = arith.addf %474, %473 : vector<2x128xf32>
    %476 = arith.divf %474, %475 : vector<2x128xf32>
    %477 = vector.extract_strided_slice %464 {offsets = [0, 256], sizes = [2, 128], strides = [1, 1]} : vector<2x512xf32> to vector<2x128xf32>
    %478 = math.tanh %477 : vector<2x128xf32>
    %479 = vector.extract_strided_slice %464 {offsets = [0, 384], sizes = [2, 128], strides = [1, 1]} : vector<2x512xf32> to vector<2x128xf32>
    %480 = arith.negf %479 : vector<2x128xf32>
    %481 = math.exp %480 : vector<2x128xf32>
    %cst_197 = arith.constant 1.000000e+00 : f32
    %482 = vector.broadcast %cst_197 : f32 to vector<2x128xf32>
    %483 = arith.addf %482, %481 : vector<2x128xf32>
    %484 = arith.divf %482, %483 : vector<2x128xf32>
    %485 = arith.mulf %476, %452 : vector<2x128xf32>
    %486 = arith.mulf %470, %478 : vector<2x128xf32>
    %487 = arith.addf %485, %486 : vector<2x128xf32>
    %488 = math.tanh %487 : vector<2x128xf32>
    %489 = arith.mulf %484, %488 : vector<2x128xf32>
    %c0_198 = arith.constant 0 : index
    %c4_199 = arith.constant 4 : index
    %c0_200 = arith.constant 0 : index
    %490 = vector.load %arg13[%c0_198, %c4_199, %c0_200] : memref<2x8x128xf32, #tpu.memory_space<vmem>>, vector<2x1x128xf32>
    %491 = vector.shape_cast %490 : vector<2x1x128xf32> to vector<2x128xf32>
    %492 = vector.shape_cast %489 : vector<2x128xf32> to vector<2x1x128xf32>
    tpu.vector_store %arg13[%c0_198, %c4_199, %c0_200], %492 {strides = array<i32>} : memref<2x8x128xf32, #tpu.memory_space<vmem>>, vector<2x1x128xf32>,
    %c0_201 = arith.constant 0 : index
    %c5_202 = arith.constant 5 : index
    %c0_203 = arith.constant 0 : index
    %493 = vector.load %arg14[%c0_201, %c5_202, %c0_203] : memref<2x8x512xf32, #tpu.memory_space<vmem>>, vector<2x1x512xf32>
    %494 = vector.shape_cast %493 : vector<2x1x512xf32> to vector<2x512xf32>
    %495 = arith.truncf %489 : vector<2x128xf32> to vector<2x128xbf16>
    %c1_204 = arith.constant 1 : index
    %c0_205 = arith.constant 0 : index
    %c0_206 = arith.constant 0 : index
    %496 = vector.load %arg4[%c1_204, %c0_205, %c0_206] : memref<2x128x512xbf16, #tpu.memory_space<vmem>>, vector<1x128x512xbf16>
    %497 = vector.shape_cast %496 : vector<1x128x512xbf16> to vector<128x512xbf16>
    %cst_207 = arith.constant dense<0.000000e+00> : vector<2x512xf32>
    %498 = tpu.matmul %495, %497, %cst_207 {dimension_numbers = #tpu.dot_dimension_numbers<[1], [0], [0], [1], [0, 0, 1, 1], [], []>} : vector<2x128xbf16>, vector<128x512xbf16>, vector<2x512xf32> -> vector<2x512xf32>
    %499 = arith.addf %494, %498 : vector<2x512xf32>
    %500 = vector.extract_strided_slice %499 {offsets = [0, 0], sizes = [2, 128], strides = [1, 1]} : vector<2x512xf32> to vector<2x128xf32>
    %501 = arith.negf %500 : vector<2x128xf32>
    %502 = math.exp %501 : vector<2x128xf32>
    %cst_208 = arith.constant 1.000000e+00 : f32
    %503 = vector.broadcast %cst_208 : f32 to vector<2x128xf32>
    %504 = arith.addf %503, %502 : vector<2x128xf32>
    %505 = arith.divf %503, %504 : vector<2x128xf32>
    %506 = vector.extract_strided_slice %499 {offsets = [0, 128], sizes = [2, 128], strides = [1, 1]} : vector<2x512xf32> to vector<2x128xf32>
    %507 = arith.negf %506 : vector<2x128xf32>
    %508 = math.exp %507 : vector<2x128xf32>
    %cst_209 = arith.constant 1.000000e+00 : f32
    %509 = vector.broadcast %cst_209 : f32 to vector<2x128xf32>
    %510 = arith.addf %509, %508 : vector<2x128xf32>
    %511 = arith.divf %509, %510 : vector<2x128xf32>
    %512 = vector.extract_strided_slice %499 {offsets = [0, 256], sizes = [2, 128], strides = [1, 1]} : vector<2x512xf32> to vector<2x128xf32>
    %513 = math.tanh %512 : vector<2x128xf32>
    %514 = vector.extract_strided_slice %499 {offsets = [0, 384], sizes = [2, 128], strides = [1, 1]} : vector<2x512xf32> to vector<2x128xf32>
    %515 = arith.negf %514 : vector<2x128xf32>
    %516 = math.exp %515 : vector<2x128xf32>
    %cst_210 = arith.constant 1.000000e+00 : f32
    %517 = vector.broadcast %cst_210 : f32 to vector<2x128xf32>
    %518 = arith.addf %517, %516 : vector<2x128xf32>
    %519 = arith.divf %517, %518 : vector<2x128xf32>
    %520 = arith.mulf %511, %487 : vector<2x128xf32>
    %521 = arith.mulf %505, %513 : vector<2x128xf32>
    %522 = arith.addf %520, %521 : vector<2x128xf32>
    %523 = math.tanh %522 : vector<2x128xf32>
    %524 = arith.mulf %519, %523 : vector<2x128xf32>
    %c0_211 = arith.constant 0 : index
    %c5_212 = arith.constant 5 : index
    %c0_213 = arith.constant 0 : index
    %525 = vector.load %arg13[%c0_211, %c5_212, %c0_213] : memref<2x8x128xf32, #tpu.memory_space<vmem>>, vector<2x1x128xf32>
    %526 = vector.shape_cast %525 : vector<2x1x128xf32> to vector<2x128xf32>
    %527 = vector.shape_cast %524 : vector<2x128xf32> to vector<2x1x128xf32>
    tpu.vector_store %arg13[%c0_211, %c5_212, %c0_213], %527 {strides = array<i32>} : memref<2x8x128xf32, #tpu.memory_space<vmem>>, vector<2x1x128xf32>,
    %c0_214 = arith.constant 0 : index
    %c6_215 = arith.constant 6 : index
    %c0_216 = arith.constant 0 : index
    %528 = vector.load %arg14[%c0_214, %c6_215, %c0_216] : memref<2x8x512xf32, #tpu.memory_space<vmem>>, vector<2x1x512xf32>
    %529 = vector.shape_cast %528 : vector<2x1x512xf32> to vector<2x512xf32>
    %530 = arith.truncf %524 : vector<2x128xf32> to vector<2x128xbf16>
    %c1_217 = arith.constant 1 : index
    %c0_218 = arith.constant 0 : index
    %c0_219 = arith.constant 0 : index
    %531 = vector.load %arg4[%c1_217, %c0_218, %c0_219] : memref<2x128x512xbf16, #tpu.memory_space<vmem>>, vector<1x128x512xbf16>
    %532 = vector.shape_cast %531 : vector<1x128x512xbf16> to vector<128x512xbf16>
    %cst_220 = arith.constant dense<0.000000e+00> : vector<2x512xf32>
    %533 = tpu.matmul %530, %532, %cst_220 {dimension_numbers = #tpu.dot_dimension_numbers<[1], [0], [0], [1], [0, 0, 1, 1], [], []>} : vector<2x128xbf16>, vector<128x512xbf16>, vector<2x512xf32> -> vector<2x512xf32>
    %534 = arith.addf %529, %533 : vector<2x512xf32>
    %535 = vector.extract_strided_slice %534 {offsets = [0, 0], sizes = [2, 128], strides = [1, 1]} : vector<2x512xf32> to vector<2x128xf32>
    %536 = arith.negf %535 : vector<2x128xf32>
    %537 = math.exp %536 : vector<2x128xf32>
    %cst_221 = arith.constant 1.000000e+00 : f32
    %538 = vector.broadcast %cst_221 : f32 to vector<2x128xf32>
    %539 = arith.addf %538, %537 : vector<2x128xf32>
    %540 = arith.divf %538, %539 : vector<2x128xf32>
    %541 = vector.extract_strided_slice %534 {offsets = [0, 128], sizes = [2, 128], strides = [1, 1]} : vector<2x512xf32> to vector<2x128xf32>
    %542 = arith.negf %541 : vector<2x128xf32>
    %543 = math.exp %542 : vector<2x128xf32>
    %cst_222 = arith.constant 1.000000e+00 : f32
    %544 = vector.broadcast %cst_222 : f32 to vector<2x128xf32>
    %545 = arith.addf %544, %543 : vector<2x128xf32>
    %546 = arith.divf %544, %545 : vector<2x128xf32>
    %547 = vector.extract_strided_slice %534 {offsets = [0, 256], sizes = [2, 128], strides = [1, 1]} : vector<2x512xf32> to vector<2x128xf32>
    %548 = math.tanh %547 : vector<2x128xf32>
    %549 = vector.extract_strided_slice %534 {offsets = [0, 384], sizes = [2, 128], strides = [1, 1]} : vector<2x512xf32> to vector<2x128xf32>
    %550 = arith.negf %549 : vector<2x128xf32>
    %551 = math.exp %550 : vector<2x128xf32>
    %cst_223 = arith.constant 1.000000e+00 : f32
    %552 = vector.broadcast %cst_223 : f32 to vector<2x128xf32>
    %553 = arith.addf %552, %551 : vector<2x128xf32>
    %554 = arith.divf %552, %553 : vector<2x128xf32>
    %555 = arith.mulf %546, %522 : vector<2x128xf32>
    %556 = arith.mulf %540, %548 : vector<2x128xf32>
    %557 = arith.addf %555, %556 : vector<2x128xf32>
    %558 = math.tanh %557 : vector<2x128xf32>
    %559 = arith.mulf %554, %558 : vector<2x128xf32>
    %c0_224 = arith.constant 0 : index
    %c6_225 = arith.constant 6 : index
    %c0_226 = arith.constant 0 : index
    %560 = vector.load %arg13[%c0_224, %c6_225, %c0_226] : memref<2x8x128xf32, #tpu.memory_space<vmem>>, vector<2x1x128xf32>
    %561 = vector.shape_cast %560 : vector<2x1x128xf32> to vector<2x128xf32>
    %562 = vector.shape_cast %559 : vector<2x128xf32> to vector<2x1x128xf32>
    tpu.vector_store %arg13[%c0_224, %c6_225, %c0_226], %562 {strides = array<i32>} : memref<2x8x128xf32, #tpu.memory_space<vmem>>, vector<2x1x128xf32>,
    %c0_227 = arith.constant 0 : index
    %c7_228 = arith.constant 7 : index
    %c0_229 = arith.constant 0 : index
    %563 = vector.load %arg14[%c0_227, %c7_228, %c0_229] : memref<2x8x512xf32, #tpu.memory_space<vmem>>, vector<2x1x512xf32>
    %564 = vector.shape_cast %563 : vector<2x1x512xf32> to vector<2x512xf32>
    %565 = arith.truncf %559 : vector<2x128xf32> to vector<2x128xbf16>
    %c1_230 = arith.constant 1 : index
    %c0_231 = arith.constant 0 : index
    %c0_232 = arith.constant 0 : index
    %566 = vector.load %arg4[%c1_230, %c0_231, %c0_232] : memref<2x128x512xbf16, #tpu.memory_space<vmem>>, vector<1x128x512xbf16>
    %567 = vector.shape_cast %566 : vector<1x128x512xbf16> to vector<128x512xbf16>
    %cst_233 = arith.constant dense<0.000000e+00> : vector<2x512xf32>
    %568 = tpu.matmul %565, %567, %cst_233 {dimension_numbers = #tpu.dot_dimension_numbers<[1], [0], [0], [1], [0, 0, 1, 1], [], []>} : vector<2x128xbf16>, vector<128x512xbf16>, vector<2x512xf32> -> vector<2x512xf32>
    %569 = arith.addf %564, %568 : vector<2x512xf32>
    %570 = vector.extract_strided_slice %569 {offsets = [0, 0], sizes = [2, 128], strides = [1, 1]} : vector<2x512xf32> to vector<2x128xf32>
    %571 = arith.negf %570 : vector<2x128xf32>
    %572 = math.exp %571 : vector<2x128xf32>
    %cst_234 = arith.constant 1.000000e+00 : f32
    %573 = vector.broadcast %cst_234 : f32 to vector<2x128xf32>
    %574 = arith.addf %573, %572 : vector<2x128xf32>
    %575 = arith.divf %573, %574 : vector<2x128xf32>
    %576 = vector.extract_strided_slice %569 {offsets = [0, 128], sizes = [2, 128], strides = [1, 1]} : vector<2x512xf32> to vector<2x128xf32>
    %577 = arith.negf %576 : vector<2x128xf32>
    %578 = math.exp %577 : vector<2x128xf32>
    %cst_235 = arith.constant 1.000000e+00 : f32
    %579 = vector.broadcast %cst_235 : f32 to vector<2x128xf32>
    %580 = arith.addf %579, %578 : vector<2x128xf32>
    %581 = arith.divf %579, %580 : vector<2x128xf32>
    %582 = vector.extract_strided_slice %569 {offsets = [0, 256], sizes = [2, 128], strides = [1, 1]} : vector<2x512xf32> to vector<2x128xf32>
    %583 = math.tanh %582 : vector<2x128xf32>
    %584 = vector.extract_strided_slice %569 {offsets = [0, 384], sizes = [2, 128], strides = [1, 1]} : vector<2x512xf32> to vector<2x128xf32>
    %585 = arith.negf %584 : vector<2x128xf32>
    %586 = math.exp %585 : vector<2x128xf32>
    %cst_236 = arith.constant 1.000000e+00 : f32
    %587 = vector.broadcast %cst_236 : f32 to vector<2x128xf32>
    %588 = arith.addf %587, %586 : vector<2x128xf32>
    %589 = arith.divf %587, %588 : vector<2x128xf32>
    %590 = arith.mulf %581, %557 : vector<2x128xf32>
    %591 = arith.mulf %575, %583 : vector<2x128xf32>
    %592 = arith.addf %590, %591 : vector<2x128xf32>
    %593 = math.tanh %592 : vector<2x128xf32>
    %594 = arith.mulf %589, %593 : vector<2x128xf32>
    %c0_237 = arith.constant 0 : index
    %c7_238 = arith.constant 7 : index
    %c0_239 = arith.constant 0 : index
    %595 = vector.load %arg13[%c0_237, %c7_238, %c0_239] : memref<2x8x128xf32, #tpu.memory_space<vmem>>, vector<2x1x128xf32>
    %596 = vector.shape_cast %595 : vector<2x1x128xf32> to vector<2x128xf32>
    %597 = vector.shape_cast %594 : vector<2x128xf32> to vector<2x1x128xf32>
    tpu.vector_store %arg13[%c0_237, %c7_238, %c0_239], %597 {strides = array<i32>} : memref<2x8x128xf32, #tpu.memory_space<vmem>>, vector<2x1x128xf32>,
    %c0_240 = arith.constant 0 : index
    %c0_241 = arith.constant 0 : index
    %c0_242 = arith.constant 0 : index
    %598 = vector.load %arg13[%c0_240, %c0_241, %c0_242] : memref<2x8x128xf32, #tpu.memory_space<vmem>>, vector<2x8x128xf32>
    %599 = vector.shape_cast %598 : vector<2x8x128xf32> to vector<16x128xf32>
    %600 = arith.truncf %599 : vector<16x128xf32> to vector<16x128xbf16>
    %c0_243 = arith.constant 0 : index
    %c0_244 = arith.constant 0 : index
    %601 = vector.load %arg6[%c0_243, %c0_244] : memref<128x384xbf16, #tpu.memory_space<vmem>>, vector<128x384xbf16>
    %cst_245 = arith.constant dense<0.000000e+00> : vector<16x384xf32>
    %602 = tpu.matmul %600, %601, %cst_245 {dimension_numbers = #tpu.dot_dimension_numbers<[1], [0], [0], [1], [0, 0, 1, 1], [], []>} : vector<16x128xbf16>, vector<128x384xbf16>, vector<16x384xf32> -> vector<16x384xf32>
    %c0_246 = arith.constant 0 : index
    %c0_247 = arith.constant 0 : index
    %603 = vector.load %arg7[%c0_246, %c0_247] : memref<1x384xf32, #tpu.memory_space<vmem>>, vector<1x384xf32>
    %604 = vector.broadcast %603 : vector<1x384xf32> to vector<16x384xf32>
    %605 = arith.addf %602, %604 : vector<16x384xf32>
    %606 = vector.shape_cast %605 : vector<16x384xf32> to vector<2x8x384xf32>
    %607 = vector.extract_strided_slice %606 {offsets = [0, 0, 0], sizes = [2, 8, 128], strides = [1, 1, 1]} : vector<2x8x384xf32> to vector<2x8x128xf32>
    %608 = vector.extract_strided_slice %606 {offsets = [0, 0, 128], sizes = [2, 8, 128], strides = [1, 1, 1]} : vector<2x8x384xf32> to vector<2x8x128xf32>
    %609 = vector.extract_strided_slice %606 {offsets = [0, 0, 256], sizes = [2, 8, 128], strides = [1, 1, 1]} : vector<2x8x384xf32> to vector<2x8x128xf32>
    %610 = arith.truncf %607 : vector<2x8x128xf32> to vector<2x8x128xbf16>
    %611 = arith.truncf %608 : vector<2x8x128xf32> to vector<2x8x128xbf16>
    "tpu.trace_start"() <{level = 10 : i32, message = "bsd,btd->bst"}> : () -> ()
    %cst_248 = arith.constant dense<0.000000e+00> : vector<2x8x8xf32>
    %612 = tpu.matmul %610, %611, %cst_248 {dimension_numbers = #tpu.dot_dimension_numbers<[2], [2], [1], [1], [0, 0, 0, 1, 1, 1], [0], [0]>} : vector<2x8x128xbf16>, vector<2x8x128xbf16>, vector<2x8x8xf32> -> vector<2x8x8xf32>
    "tpu.trace_stop"() : () -> ()
    %cst_249 = arith.constant 0.176776692 : f32
    %613 = vector.broadcast %cst_249 : f32 to vector<2x8x8xf32>
    %614 = arith.mulf %612, %613 : vector<2x8x8xf32>
    %cst_250 = arith.constant dense<0xFF800000> : vector<2x8xf32>
    %615 = vector.multi_reduction <maximumf>, %614, %cst_250 [2] : vector<2x8x8xf32> to vector<2x8xf32>
    %616 = vector.shape_cast %615 : vector<2x8xf32> to vector<2x8x1xf32>
    %617 = vector.broadcast %616 : vector<2x8x1xf32> to vector<2x8x8xf32>
    %618 = arith.subf %614, %617 : vector<2x8x8xf32>
    %619 = math.exp %618 : vector<2x8x8xf32>
    %cst_251 = arith.constant dense<0.000000e+00> : vector<2x8xf32>
    %620 = vector.multi_reduction <add>, %619, %cst_251 [2] : vector<2x8x8xf32> to vector<2x8xf32>
    %621 = vector.shape_cast %620 : vector<2x8xf32> to vector<2x8x1xf32>
    %622 = tpu.reciprocal %621 {approx = true} : vector<2x8x1xf32> -> vector<2x8x1xf32>
    %623 = vector.broadcast %622 : vector<2x8x1xf32> to vector<2x8x8xf32>
    %624 = arith.mulf %619, %623 : vector<2x8x8xf32>
    %625 = arith.truncf %624 : vector<2x8x8xf32> to vector<2x8x8xbf16>
    %626 = arith.truncf %609 : vector<2x8x128xf32> to vector<2x8x128xbf16>
    "tpu.trace_start"() <{level = 10 : i32, message = "bst,btd->bsd"}> : () -> ()
    %cst_252 = arith.constant dense<0.000000e+00> : vector<2x8x128xf32>
    %627 = tpu.matmul %625, %626, %cst_252 {dimension_numbers = #tpu.dot_dimension_numbers<[2], [1], [1], [2], [0, 0, 0, 1, 1, 2], [0], [0]>} : vector<2x8x8xbf16>, vector<2x8x128xbf16>, vector<2x8x128xf32> -> vector<2x8x128xf32>
    "tpu.trace_stop"() : () -> ()
    %628 = arith.addf %627, %598 : vector<2x8x128xf32>
    %c0_253 = arith.constant 0 : index
    %c0_254 = arith.constant 0 : index
    %c0_255 = arith.constant 0 : index
    %629 = vector.load %arg13[%c0_253, %c0_254, %c0_255] : memref<2x8x128xf32, #tpu.memory_space<vmem>>, vector<2x8x128xf32>
    tpu.vector_store %arg13[%c0_253, %c0_254, %c0_255], %628 {strides = array<i32>} : memref<2x8x128xf32, #tpu.memory_space<vmem>>, vector<2x8x128xf32>,
    %c0_256 = arith.constant 0 : index
    %c0_257 = arith.constant 0 : index
    %630 = vector.load %arg9[%c0_256, %c0_257] : memref<1x32xf32, #tpu.memory_space<vmem>>, vector<1x32xf32>
    %c0_258 = arith.constant 0 : index
    %c0_259 = arith.constant 0 : index
    %c0_260 = arith.constant 0 : index
    %631 = vector.load %arg13[%c0_258, %c0_259, %c0_260] : memref<2x8x128xf32, #tpu.memory_space<vmem>>, vector<2x1x128xf32>
    %632 = vector.shape_cast %631 : vector<2x1x128xf32> to vector<2x128xf32>
    %633 = arith.truncf %632 : vector<2x128xf32> to vector<2x128xbf16>
    %c0_261 = arith.constant 0 : index
    %c0_262 = arith.constant 0 : index
    %c0_263 = arith.constant 0 : index
    %634 = vector.load %arg8[%c0_261, %c0_262, %c0_263] : memref<8x128x32xbf16, #tpu.memory_space<vmem>>, vector<1x128x32xbf16>
    %635 = vector.shape_cast %634 : vector<1x128x32xbf16> to vector<128x32xbf16>
    %cst_264 = arith.constant dense<0.000000e+00> : vector<2x32xf32>
    %636 = tpu.matmul %633, %635, %cst_264 {dimension_numbers = #tpu.dot_dimension_numbers<[1], [0], [0], [1], [0, 0, 1, 1], [], []>} : vector<2x128xbf16>, vector<128x32xbf16>, vector<2x32xf32> -> vector<2x32xf32>
    %637 = vector.broadcast %630 : vector<1x32xf32> to vector<2x32xf32>
    %638 = arith.addf %637, %636 : vector<2x32xf32>
    %c0_265 = arith.constant 0 : index
    %c1_266 = arith.constant 1 : index
    %c0_267 = arith.constant 0 : index
    %639 = vector.load %arg13[%c0_265, %c1_266, %c0_267] : memref<2x8x128xf32, #tpu.memory_space<vmem>>, vector<2x1x128xf32>
    %640 = vector.shape_cast %639 : vector<2x1x128xf32> to vector<2x128xf32>
    %641 = arith.truncf %640 : vector<2x128xf32> to vector<2x128xbf16>
    %c1_268 = arith.constant 1 : index
    %c0_269 = arith.constant 0 : index
    %c0_270 = arith.constant 0 : index
    %642 = vector.load %arg8[%c1_268, %c0_269, %c0_270] : memref<8x128x32xbf16, #tpu.memory_space<vmem>>, vector<1x128x32xbf16>
    %643 = vector.shape_cast %642 : vector<1x128x32xbf16> to vector<128x32xbf16>
    %cst_271 = arith.constant dense<0.000000e+00> : vector<2x32xf32>
    %644 = tpu.matmul %641, %643, %cst_271 {dimension_numbers = #tpu.dot_dimension_numbers<[1], [0], [0], [1], [0, 0, 1, 1], [], []>} : vector<2x128xbf16>, vector<128x32xbf16>, vector<2x32xf32> -> vector<2x32xf32>
    %645 = arith.addf %638, %644 : vector<2x32xf32>
    %c0_272 = arith.constant 0 : index
    %c2_273 = arith.constant 2 : index
    %c0_274 = arith.constant 0 : index
    %646 = vector.load %arg13[%c0_272, %c2_273, %c0_274] : memref<2x8x128xf32, #tpu.memory_space<vmem>>, vector<2x1x128xf32>
    %647 = vector.shape_cast %646 : vector<2x1x128xf32> to vector<2x128xf32>
    %648 = arith.truncf %647 : vector<2x128xf32> to vector<2x128xbf16>
    %c2_275 = arith.constant 2 : index
    %c0_276 = arith.constant 0 : index
    %c0_277 = arith.constant 0 : index
    %649 = vector.load %arg8[%c2_275, %c0_276, %c0_277] : memref<8x128x32xbf16, #tpu.memory_space<vmem>>, vector<1x128x32xbf16>
    %650 = vector.shape_cast %649 : vector<1x128x32xbf16> to vector<128x32xbf16>
    %cst_278 = arith.constant dense<0.000000e+00> : vector<2x32xf32>
    %651 = tpu.matmul %648, %650, %cst_278 {dimension_numbers = #tpu.dot_dimension_numbers<[1], [0], [0], [1], [0, 0, 1, 1], [], []>} : vector<2x128xbf16>, vector<128x32xbf16>, vector<2x32xf32> -> vector<2x32xf32>
    %652 = arith.addf %645, %651 : vector<2x32xf32>
    %c0_279 = arith.constant 0 : index
    %c3_280 = arith.constant 3 : index
    %c0_281 = arith.constant 0 : index
    %653 = vector.load %arg13[%c0_279, %c3_280, %c0_281] : memref<2x8x128xf32, #tpu.memory_space<vmem>>, vector<2x1x128xf32>
    %654 = vector.shape_cast %653 : vector<2x1x128xf32> to vector<2x128xf32>
    %655 = arith.truncf %654 : vector<2x128xf32> to vector<2x128xbf16>
    %c3_282 = arith.constant 3 : index
    %c0_283 = arith.constant 0 : index
    %c0_284 = arith.constant 0 : index
    %656 = vector.load %arg8[%c3_282, %c0_283, %c0_284] : memref<8x128x32xbf16, #tpu.memory_space<vmem>>, vector<1x128x32xbf16>
    %657 = vector.shape_cast %656 : vector<1x128x32xbf16> to vector<128x32xbf16>
    %cst_285 = arith.constant dense<0.000000e+00> : vector<2x32xf32>
    %658 = tpu.matmul %655, %657, %cst_285 {dimension_numbers = #tpu.dot_dimension_numbers<[1], [0], [0], [1], [0, 0, 1, 1], [], []>} : vector<2x128xbf16>, vector<128x32xbf16>, vector<2x32xf32> -> vector<2x32xf32>
    %659 = arith.addf %652, %658 : vector<2x32xf32>
    %c0_286 = arith.constant 0 : index
    %c4_287 = arith.constant 4 : index
    %c0_288 = arith.constant 0 : index
    %660 = vector.load %arg13[%c0_286, %c4_287, %c0_288] : memref<2x8x128xf32, #tpu.memory_space<vmem>>, vector<2x1x128xf32>
    %661 = vector.shape_cast %660 : vector<2x1x128xf32> to vector<2x128xf32>
    %662 = arith.truncf %661 : vector<2x128xf32> to vector<2x128xbf16>
    %c4_289 = arith.constant 4 : index
    %c0_290 = arith.constant 0 : index
    %c0_291 = arith.constant 0 : index
    %663 = vector.load %arg8[%c4_289, %c0_290, %c0_291] : memref<8x128x32xbf16, #tpu.memory_space<vmem>>, vector<1x128x32xbf16>
    %664 = vector.shape_cast %663 : vector<1x128x32xbf16> to vector<128x32xbf16>
    %cst_292 = arith.constant dense<0.000000e+00> : vector<2x32xf32>
    %665 = tpu.matmul %662, %664, %cst_292 {dimension_numbers = #tpu.dot_dimension_numbers<[1], [0], [0], [1], [0, 0, 1, 1], [], []>} : vector<2x128xbf16>, vector<128x32xbf16>, vector<2x32xf32> -> vector<2x32xf32>
    %666 = arith.addf %659, %665 : vector<2x32xf32>
    %c0_293 = arith.constant 0 : index
    %c5_294 = arith.constant 5 : index
    %c0_295 = arith.constant 0 : index
    %667 = vector.load %arg13[%c0_293, %c5_294, %c0_295] : memref<2x8x128xf32, #tpu.memory_space<vmem>>, vector<2x1x128xf32>
    %668 = vector.shape_cast %667 : vector<2x1x128xf32> to vector<2x128xf32>
    %669 = arith.truncf %668 : vector<2x128xf32> to vector<2x128xbf16>
    %c5_296 = arith.constant 5 : index
    %c0_297 = arith.constant 0 : index
    %c0_298 = arith.constant 0 : index
    %670 = vector.load %arg8[%c5_296, %c0_297, %c0_298] : memref<8x128x32xbf16, #tpu.memory_space<vmem>>, vector<1x128x32xbf16>
    %671 = vector.shape_cast %670 : vector<1x128x32xbf16> to vector<128x32xbf16>
    %cst_299 = arith.constant dense<0.000000e+00> : vector<2x32xf32>
    %672 = tpu.matmul %669, %671, %cst_299 {dimension_numbers = #tpu.dot_dimension_numbers<[1], [0], [0], [1], [0, 0, 1, 1], [], []>} : vector<2x128xbf16>, vector<128x32xbf16>, vector<2x32xf32> -> vector<2x32xf32>
    %673 = arith.addf %666, %672 : vector<2x32xf32>
    %c0_300 = arith.constant 0 : index
    %c6_301 = arith.constant 6 : index
    %c0_302 = arith.constant 0 : index
    %674 = vector.load %arg13[%c0_300, %c6_301, %c0_302] : memref<2x8x128xf32, #tpu.memory_space<vmem>>, vector<2x1x128xf32>
    %675 = vector.shape_cast %674 : vector<2x1x128xf32> to vector<2x128xf32>
    %676 = arith.truncf %675 : vector<2x128xf32> to vector<2x128xbf16>
    %c6_303 = arith.constant 6 : index
    %c0_304 = arith.constant 0 : index
    %c0_305 = arith.constant 0 : index
    %677 = vector.load %arg8[%c6_303, %c0_304, %c0_305] : memref<8x128x32xbf16, #tpu.memory_space<vmem>>, vector<1x128x32xbf16>
    %678 = vector.shape_cast %677 : vector<1x128x32xbf16> to vector<128x32xbf16>
    %cst_306 = arith.constant dense<0.000000e+00> : vector<2x32xf32>
    %679 = tpu.matmul %676, %678, %cst_306 {dimension_numbers = #tpu.dot_dimension_numbers<[1], [0], [0], [1], [0, 0, 1, 1], [], []>} : vector<2x128xbf16>, vector<128x32xbf16>, vector<2x32xf32> -> vector<2x32xf32>
    %680 = arith.addf %673, %679 : vector<2x32xf32>
    %c0_307 = arith.constant 0 : index
    %c7_308 = arith.constant 7 : index
    %c0_309 = arith.constant 0 : index
    %681 = vector.load %arg13[%c0_307, %c7_308, %c0_309] : memref<2x8x128xf32, #tpu.memory_space<vmem>>, vector<2x1x128xf32>
    %682 = vector.shape_cast %681 : vector<2x1x128xf32> to vector<2x128xf32>
    %683 = arith.truncf %682 : vector<2x128xf32> to vector<2x128xbf16>
    %c7_310 = arith.constant 7 : index
    %c0_311 = arith.constant 0 : index
    %c0_312 = arith.constant 0 : index
    %684 = vector.load %arg8[%c7_310, %c0_311, %c0_312] : memref<8x128x32xbf16, #tpu.memory_space<vmem>>, vector<1x128x32xbf16>
    %685 = vector.shape_cast %684 : vector<1x128x32xbf16> to vector<128x32xbf16>
    %cst_313 = arith.constant dense<0.000000e+00> : vector<2x32xf32>
    %686 = tpu.matmul %683, %685, %cst_313 {dimension_numbers = #tpu.dot_dimension_numbers<[1], [0], [0], [1], [0, 0, 1, 1], [], []>} : vector<2x128xbf16>, vector<128x32xbf16>, vector<2x32xf32> -> vector<2x32xf32>
    %687 = arith.addf %680, %686 : vector<2x32xf32>
    %cst_314 = arith.constant 0.000000e+00 : f32
    %688 = vector.broadcast %cst_314 : f32 to vector<2x32xf32>
    %689 = arith.maximumf %687, %688 : vector<2x32xf32>
    %690 = arith.truncf %689 : vector<2x32xf32> to vector<2x32xbf16>
    %c0_315 = arith.constant 0 : index
    %c0_316 = arith.constant 0 : index
    %691 = vector.load %arg10[%c0_315, %c0_316] : memref<32x128xbf16, #tpu.memory_space<vmem>>, vector<32x128xbf16>
    %cst_317 = arith.constant dense<0.000000e+00> : vector<2x128xf32>
    %692 = tpu.matmul %690, %691, %cst_317 {dimension_numbers = #tpu.dot_dimension_numbers<[1], [0], [0], [1], [0, 0, 1, 1], [], []>} : vector<2x32xbf16>, vector<32x128xbf16>, vector<2x128xf32> -> vector<2x128xf32>
    %c0_318 = arith.constant 0 : index
    %c0_319 = arith.constant 0 : index
    %693 = vector.load %arg11[%c0_318, %c0_319] : memref<1x128xf32, #tpu.memory_space<vmem>>, vector<1x128xf32>
    %694 = vector.broadcast %693 : vector<1x128xf32> to vector<2x128xf32>
    %695 = arith.addf %692, %694 : vector<2x128xf32>
    %c0_320 = arith.constant 0 : index
    %c0_321 = arith.constant 0 : index
    %696 = vector.load %arg12[%c0_320, %c0_321] : memref<2x128xf32, #tpu.memory_space<vmem>>, vector<2x128xf32>
    tpu.vector_store %arg12[%c0_320, %c0_321], %695 {strides = array<i32>} : memref<2x128xf32, #tpu.memory_space<vmem>>, vector<2x128xf32>,
    return
  }
}

</mosaic_0001>

<llo_original>
// kernel: sissa_lstm_forward.1
$region0: #{sissa_lstm_forward.1}
  #allocation0 [shape = 'u32[]', space=smem, size = 0x4, offset = 0x4, fixed_abs, tag = 'smem constant byte address 0x4 - core index']
  #allocation1 [shape = 'u32[144,128]{1,0:T(1,128)}', space=vmem, size = 0x12000, scoped, tag = 'internal scratch']
  #allocation2 [shape = 'f32[2,8,128]{2,1,0:T(8,128)}', space=vmem, size = 0x2000, scoped, tag = 'scratch operand']
  #allocation3 [shape = 'f32[2,8,512]{2,1,0:T(8,128)}', space=vmem, size = 0x8000, scoped, tag = 'scratch operand']
  %s0 = inlined_call_operand.hbm [shape: bf16[16,16], index: 0, kind: input, shape index: {}]
  %s1 = inlined_call_operand.hbm [shape: bf16[16,128], index: 1, kind: input, shape index: {}]
  %s2 = inlined_call_operand.hbm [shape: f32[1,128], index: 2, kind: input, shape index: {}]
  %s3 = inlined_call_operand.hbm [shape: bf16[2,128,512], index: 3, kind: input, shape index: {}]
  %s4 = inlined_call_operand.hbm [shape: bf16[2,128,512], index: 4, kind: input, shape index: {}]
  %s5 = inlined_call_operand.hbm [shape: f32[2,1,512], index: 5, kind: input, shape index: {}]
  %s6 = inlined_call_operand.hbm [shape: bf16[128,384], index: 6, kind: input, shape index: {}]
  %s7 = inlined_call_operand.hbm [shape: f32[1,384], index: 7, kind: input, shape index: {}]
  %s8 = inlined_call_operand.hbm [shape: bf16[8,128,32], index: 8, kind: input, shape index: {}]
  %s9 = inlined_call_operand.hbm [shape: f32[1,32], index: 9, kind: input, shape index: {}]
  %s10 = inlined_call_operand.hbm [shape: bf16[32,128], index: 10, kind: input, shape index: {}]
  %s11 = inlined_call_operand.hbm [shape: f32[1,128], index: 11, kind: input, shape index: {}]
  %s12 = inlined_call_operand.hbm [shape: f32[2,128], index: 12, kind: output, shape index: {}]
  %s13 = sld [smem:[#allocation0]]
  $region106: #{sissa_lstm_forward.1} parent=0
    _
  %s15 = ssub.s32 1, %s13
  %s16 = scalar_select 0, %s15, %s13
  $region1: #{sissa_lstm_forward.1} parent=0
    #allocation4 [shape = 'u8[4096]{0}', space=vmem, size = 0x1000, scoped, tag = 'input window, operand 0, single buffered']
    #allocation5 [shape = 's32[1]{0}', space=sflag, size = 0x4, scoped, tag = 'scoped memory for sissa_lstm_forward.1']
    #allocation6 [shape = 's32[1]{0}', space=sflag, size = 0x4, scoped, tag = 'scoped memory for sissa_lstm_forward.1']
    #allocation7 [shape = 'u8[4096]{0}', space=vmem, size = 0x1000, scoped, tag = 'input window, operand 1, single buffered']
    #allocation8 [shape = 's32[1]{0}', space=sflag, size = 0x4, scoped, tag = 'scoped memory for sissa_lstm_forward.1']
    #allocation9 [shape = 'u8[512]{0}', space=vmem, size = 0x400, scoped, tag = 'input window, operand 2, single buffered']
    #allocation10 [shape = 'u8[262144]{0}', space=vmem, size = 0x40000, scoped, tag = 'input window, operand 3, single buffered']
    #allocation11 [shape = 's32[1]{0}', space=sflag, size = 0x4, scoped, tag = 'scoped memory for sissa_lstm_forward.1']
    #allocation12 [shape = 'u8[262144]{0}', space=vmem, size = 0x40000, scoped, tag = 'input window, operand 4, single buffered']
    #allocation13 [shape = 'u8[4096]{0}', space=vmem, size = 0x1000, scoped, tag = 'input window, operand 5, single buffered']
    #allocation14 [shape = 's32[1]{0}', space=sflag, size = 0x4, scoped, tag = 'scoped memory for sissa_lstm_forward.1']
    #allocation15 [shape = 'u8[98304]{0}', space=vmem, size = 0x18000, scoped, tag = 'input window, operand 6, single buffered']
    #allocation16 [shape = 'u8[1536]{0}', space=vmem, size = 0x800, scoped, tag = 'input window, operand 7, single buffered']
    #allocation17 [shape = 's32[1]{0}', space=sflag, size = 0x4, scoped, tag = 'scoped memory for sissa_lstm_forward.1']
    #allocation18 [shape = 'u8[262144]{0}', space=vmem, size = 0x40000, scoped, tag = 'input window, operand 8, single buffered']
    #allocation19 [shape = 'u8[512]{0}', space=vmem, size = 0x400, scoped, tag = 'input window, operand 9, single buffered']
    #allocation20 [shape = 's32[1]{0}', space=sflag, size = 0x4, scoped, tag = 'scoped memory for sissa_lstm_forward.1']
    #allocation21 [shape = 'u8[8192]{0}', space=vmem, size = 0x2000, scoped, tag = 'input window, operand 10, single buffered']
    #allocation22 [shape = 'u8[512]{0}', space=vmem, size = 0x400, scoped, tag = 'input window, operand 11, single buffered']
    #allocation23 [shape = 's32[1]{0}', space=sflag, size = 0x4, scoped, tag = 'scoped memory for sissa_lstm_forward.1']
    #allocation24 [shape = 'u8[1024]{0}', space=vmem, size = 0x400, scoped, tag = 'output window, operand 0, single buffered']
    %17 = vsyncpa [#allocation5], 0
    %18 = vsyncpa [#allocation8], 0
    %19 = vsyncpa [#allocation11], 0
    %20 = vsyncpa [#allocation14], 0
    %21 = vsyncpa [#allocation17], 0
    %22 = vsyncpa [#allocation20], 0
    %23 = vsyncpa [#allocation23], 0
    %24 = vsyncpa [#allocation6], 0
    // Predicated region
    $region2: #{sissa_lstm_forward.1} parent=1 // pred_check
      _
    $region3: #{sissa_lstm_forward.1} parent=1 // pred_check_branch
      %26 = sbr.rel (0) target = $region5
    $region4: #{sissa_lstm_forward.1} parent=1 // pred_region
      %s28 = ssub.s32 128, 128
      %29 = vsyncadd [#allocation5], %s28
      %s30 = sshll.u32 [#allocation4], 4
      %s31 = int_to_ptr.vmem [resolvable:$true] %s30
      %36 = dma.hbm_to_vmem [thread:$0]  %s0, 128, %s31, [#allocation5], 64, 64, 4
    $region5: #{sissa_lstm_forward.1} parent=1 // pred_fallthru
      _
    // Predicated region
    $region6: #{sissa_lstm_forward.1} parent=1 // pred_check
      _
    $region7: #{sissa_lstm_forward.1} parent=1 // pred_check_branch
      %38 = sbr.rel (0) target = $region9
    $region8: #{sissa_lstm_forward.1} parent=1 // pred_region
      %s40 = ssub.s32 128, 128
      %41 = vsyncadd [#allocation8], %s40
      %s42 = sshll.u32 [#allocation7], 4
      %s43 = int_to_ptr.vmem [resolvable:$true] %s42
      %48 = dma.hbm_to_vmem [thread:$0]  %s1, 128, %s43, [#allocation8], 64, 64, 4
    $region9: #{sissa_lstm_forward.1} parent=1 // pred_fallthru
      _
    // Predicated region
    $region10: #{sissa_lstm_forward.1} parent=1 // pred_check
      _
    $region11: #{sissa_lstm_forward.1} parent=1 // pred_check_branch
      %50 = sbr.rel (0) target = $region13
    $region12: #{sissa_lstm_forward.1} parent=1 // pred_region
      %s52 = ssub.s32 16, 16
      %53 = vsyncadd [#allocation8], %s52
      %s55 = sshll.u32 [#allocation9], 4
      %s56 = int_to_ptr.vmem [resolvable:$true] %s55
      %58 = dma.hbm_to_vmem [thread:$0]  %s2, 16, %s56, [#allocation8]
    $region13: #{sissa_lstm_forward.1} parent=1 // pred_fallthru
      _
    // Predicated region
    $region14: #{sissa_lstm_forward.1} parent=1 // pred_check
      _
    $region15: #{sissa_lstm_forward.1} parent=1 // pred_check_branch
      %60 = sbr.rel (0) target = $region17
    $region16: #{sissa_lstm_forward.1} parent=1 // pred_region
      %s62 = ssub.s32 8192, 8192
      %63 = vsyncadd [#allocation11], %s62
      %s64 = sshll.u32 [#allocation10], 4
      %s65 = int_to_ptr.vmem [resolvable:$true] %s64
      %70 = dma.hbm_to_vmem [thread:$0]  %s3, 8192, %s65, [#allocation11], 256, 256, 16
    $region17: #{sissa_lstm_forward.1} parent=1 // pred_fallthru
      _
    // Predicated region
    $region18: #{sissa_lstm_forward.1} parent=1 // pred_check
      _
    $region19: #{sissa_lstm_forward.1} parent=1 // pred_check_branch
      %72 = sbr.rel (0) target = $region21
    $region20: #{sissa_lstm_forward.1} parent=1 // pred_region
      %s74 = ssub.s32 8192, 8192
      %75 = vsyncadd [#allocation11], %s74
      %s76 = sshll.u32 [#allocation12], 4
      %s77 = int_to_ptr.vmem [resolvable:$true] %s76
      %82 = dma.hbm_to_vmem [thread:$0]  %s4, 8192, %s77, [#allocation11], 256, 256, 16
    $region21: #{sissa_lstm_forward.1} parent=1 // pred_fallthru
      _
    // Predicated region
    $region22: #{sissa_lstm_forward.1} parent=1 // pred_check
      _
    $region23: #{sissa_lstm_forward.1} parent=1 // pred_check_branch
      %84 = sbr.rel (0) target = $region25
    $region24: #{sissa_lstm_forward.1} parent=1 // pred_region
      %s86 = ssub.s32 128, 128
      %87 = vsyncadd [#allocation14], %s86
      %s88 = sshll.u32 [#allocation13], 4
      %s89 = int_to_ptr.vmem [resolvable:$true] %s88
      %94 = dma.hbm_to_vmem [thread:$0]  %s5, 128, %s89, [#allocation14], 64, 64, 4
    $region25: #{sissa_lstm_forward.1} parent=1 // pred_fallthru
      _
    // Predicated region
    $region26: #{sissa_lstm_forward.1} parent=1 // pred_check
      _
    $region27: #{sissa_lstm_forward.1} parent=1 // pred_check_branch
      %96 = sbr.rel (0) target = $region29
    $region28: #{sissa_lstm_forward.1} parent=1 // pred_region
      %s98 = ssub.s32 3072, 3072
      %99 = vsyncadd [#allocation14], %s98
      %s100 = sshll.u32 [#allocation15], 4
      %s101 = int_to_ptr.vmem [resolvable:$true] %s100
      %106 = dma.hbm_to_vmem [thread:$0]  %s6, 3072, %s101, [#allocation14], 192, 192, 12
    $region29: #{sissa_lstm_forward.1} parent=1 // pred_fallthru
      _
    // Predicated region
    $region30: #{sissa_lstm_forward.1} parent=1 // pred_check
      _
    $region31: #{sissa_lstm_forward.1} parent=1 // pred_check_branch
      %108 = sbr.rel (0) target = $region33
    $region32: #{sissa_lstm_forward.1} parent=1 // pred_region
      %s110 = ssub.s32 48, 48
      %111 = vsyncadd [#allocation17], %s110
      %s113 = sshll.u32 [#allocation16], 4
      %s114 = int_to_ptr.vmem [resolvable:$true] %s113
      %116 = dma.hbm_to_vmem [thread:$0]  %s7, 48, %s114, [#allocation17]
    $region33: #{sissa_lstm_forward.1} parent=1 // pred_fallthru
      _
    // Predicated region
    $region34: #{sissa_lstm_forward.1} parent=1 // pred_check
      _
    $region35: #{sissa_lstm_forward.1} parent=1 // pred_check_branch
      %118 = sbr.rel (0) target = $region37
    $region36: #{sissa_lstm_forward.1} parent=1 // pred_region
      %s120 = ssub.s32 8192, 8192
      %121 = vsyncadd [#allocation17], %s120
      %s122 = sshll.u32 [#allocation18], 4
      %s123 = int_to_ptr.vmem [resolvable:$true] %s122
      %128 = dma.hbm_to_vmem [thread:$0]  %s8, 8192, %s123, [#allocation17], 64, 64, 4
    $region37: #{sissa_lstm_forward.1} parent=1 // pred_fallthru
      _
    // Predicated region
    $region38: #{sissa_lstm_forward.1} parent=1 // pred_check
      _
    $region39: #{sissa_lstm_forward.1} parent=1 // pred_check_branch
      %130 = sbr.rel (0) target = $region41
    $region40: #{sissa_lstm_forward.1} parent=1 // pred_region
      %s132 = ssub.s32 16, 16
      %133 = vsyncadd [#allocation20], %s132
      %s135 = sshll.u32 [#allocation19], 4
      %s136 = int_to_ptr.vmem [resolvable:$true] %s135
      %138 = dma.hbm_to_vmem [thread:$0]  %s9, 16, %s136, [#allocation20]
    $region41: #{sissa_lstm_forward.1} parent=1 // pred_fallthru
      _
    // Predicated region
    $region42: #{sissa_lstm_forward.1} parent=1 // pred_check
      _
    $region43: #{sissa_lstm_forward.1} parent=1 // pred_check_branch
      %140 = sbr.rel (0) target = $region45
    $region44: #{sissa_lstm_forward.1} parent=1 // pred_region
      %s142 = ssub.s32 256, 256
      %143 = vsyncadd [#allocation20], %s142
      %s144 = sshll.u32 [#allocation21], 4
      %s145 = int_to_ptr.vmem [resolvable:$true] %s144
      %150 = dma.hbm_to_vmem [thread:$0]  %s10, 256, %s145, [#allocation20], 64, 64, 4
    $region45: #{sissa_lstm_forward.1} parent=1 // pred_fallthru
      _
    // Predicated region
    $region46: #{sissa_lstm_forward.1} parent=1 // pred_check
      _
    $region47: #{sissa_lstm_forward.1} parent=1 // pred_check_branch
      %152 = sbr.rel (0) target = $region49
    $region48: #{sissa_lstm_forward.1} parent=1 // pred_region
      %s154 = ssub.s32 16, 16
      %155 = vsyncadd [#allocation23], %s154
      %s157 = sshll.u32 [#allocation22], 4
      %s158 = int_to_ptr.vmem [resolvable:$true] %s157
      %160 = dma.hbm_to_vmem [thread:$0]  %s11, 16, %s158, [#allocation23]
    $region49: #{sissa_lstm_forward.1} parent=1 // pred_fallthru
      _
    // Predicated region
    $region50: #{sissa_lstm_forward.1} parent=1 // pred_check
      _
    $region51: #{sissa_lstm_forward.1} parent=1 // pred_check_branch
      %162 = sbr.rel (0) target = $region53
    $region52: #{sissa_lstm_forward.1} parent=1 // pred_region
      %163 = dma.done [#allocation5], 128
    $region53: #{sissa_lstm_forward.1} parent=1 // pred_fallthru
      _
    // Predicated region
    $region54: #{sissa_lstm_forward.1} parent=1 // pred_check
      _
    $region55: #{sissa_lstm_forward.1} parent=1 // pred_check_branch
      %165 = sbr.rel (0) target = $region57
    $region56: #{sissa_lstm_forward.1} parent=1 // pred_region
      %166 = dma.done [#allocation8], 128
    $region57: #{sissa_lstm_forward.1} parent=1 // pred_fallthru
      _
    // Predicated region
    $region58: #{sissa_lstm_forward.1} parent=1 // pred_check
      _
    $region59: #{sissa_lstm_forward.1} parent=1 // pred_check_branch
      %168 = sbr.rel (0) target = $region61
    $region60: #{sissa_lstm_forward.1} parent=1 // pred_region
      %169 = dma.done [#allocation8], 16
    $region61: #{sissa_lstm_forward.1} parent=1 // pred_fallthru
      _
    // Predicated region
    $region62: #{sissa_lstm_forward.1} parent=1 // pred_check
      _
    $region63: #{sissa_lstm_forward.1} parent=1 // pred_check_branch
      %171 = sbr.rel (0) target = $region65
    $region64: #{sissa_lstm_forward.1} parent=1 // pred_region
      %172 = dma.done [#allocation11], 8192
    $region65: #{sissa_lstm_forward.1} parent=1 // pred_fallthru
      _
    // Predicated region
    $region66: #{sissa_lstm_forward.1} parent=1 // pred_check
      _
    $region67: #{sissa_lstm_forward.1} parent=1 // pred_check_branch
      %174 = sbr.rel (0) target = $region69
    $region68: #{sissa_lstm_forward.1} parent=1 // pred_region
      %175 = dma.done [#allocation11], 8192
    $region69: #{sissa_lstm_forward.1} parent=1 // pred_fallthru
      _
    // Predicated region
    $region70: #{sissa_lstm_forward.1} parent=1 // pred_check
      _
    $region71: #{sissa_lstm_forward.1} parent=1 // pred_check_branch
      %177 = sbr.rel (0) target = $region73
    $region72: #{sissa_lstm_forward.1} parent=1 // pred_region
      %178 = dma.done [#allocation14], 128
    $region73: #{sissa_lstm_forward.1} parent=1 // pred_fallthru
      _
    // Predicated region
    $region74: #{sissa_lstm_forward.1} parent=1 // pred_check
      _
    $region75: #{sissa_lstm_forward.1} parent=1 // pred_check_branch
      %180 = sbr.rel (0) target = $region77
    $region76: #{sissa_lstm_forward.1} parent=1 // pred_region
      %181 = dma.done [#allocation14], 3072
    $region77: #{sissa_lstm_forward.1} parent=1 // pred_fallthru
      _
    // Predicated region
    $region78: #{sissa_lstm_forward.1} parent=1 // pred_check
      _
    $region79: #{sissa_lstm_forward.1} parent=1 // pred_check_branch
      %183 = sbr.rel (0) target = $region81
    $region80: #{sissa_lstm_forward.1} parent=1 // pred_region
      %184 = dma.done [#allocation17], 48
    $region81: #{sissa_lstm_forward.1} parent=1 // pred_fallthru
      _
    // Predicated region
    $region82: #{sissa_lstm_forward.1} parent=1 // pred_check
      _
    $region83: #{sissa_lstm_forward.1} parent=1 // pred_check_branch
      %186 = sbr.rel (0) target = $region85
    $region84: #{sissa_lstm_forward.1} parent=1 // pred_region
      %187 = dma.done [#allocation17], 8192
    $region85: #{sissa_lstm_forward.1} parent=1 // pred_fallthru
      _
    // Predicated region
    $region86: #{sissa_lstm_forward.1} parent=1 // pred_check
      _
    $region87: #{sissa_lstm_forward.1} parent=1 // pred_check_branch
      %189 = sbr.rel (0) target = $region89
    $region88: #{sissa_lstm_forward.1} parent=1 // pred_region
      %190 = dma.done [#allocation20], 16
    $region89: #{sissa_lstm_forward.1} parent=1 // pred_fallthru
      _
    // Predicated region
    $region90: #{sissa_lstm_forward.1} parent=1 // pred_check
      _
    $region91: #{sissa_lstm_forward.1} parent=1 // pred_check_branch
      %192 = sbr.rel (0) target = $region93
    $region92: #{sissa_lstm_forward.1} parent=1 // pred_region
      %193 = dma.done [#allocation20], 256
    $region93: #{sissa_lstm_forward.1} parent=1 // pred_fallthru
      _
    // Predicated region
    $region94: #{sissa_lstm_forward.1} parent=1 // pred_check
      _
    $region95: #{sissa_lstm_forward.1} parent=1 // pred_check_branch
      %195 = sbr.rel (0) target = $region97
    $region96: #{sissa_lstm_forward.1} parent=1 // pred_region
      %196 = dma.done [#allocation23], 16
    $region97: #{sissa_lstm_forward.1} parent=1 // pred_fallthru
      _
    %v198 = vld [vmem:[#allocation4] sm:$0xf]
    %v199 = vld [vmem:[#allocation4 + $0x4] sm:$0xf]
    %v200 = vld [vmem:[#allocation7] sm:$0xf]
    %v201 = vld [vmem:[#allocation7 + $0x4] sm:$0xf]
    %v202 = vld [vmem:[#allocation9] sm:$0x1]
    %v204 = vlaneseq
    %v205 = vshrl.u32 %v204, 7
    %v206 = vsub.s32 0, %v205
    %v207 = vrot.slane %v202, %v206
    %v211 = vunpack.c.l.b16 %v198
    %v212 = vunpack.c.l.b16 %v199
    %v213 = vpack.c.b16 %v212, %v211
    %v216 = vunpack.c.l.b16 %v200
    %v217 = vunpack.c.l.b16 %v201
    %v218 = vpack.c.b16 %v217, %v216
    %vm220 = vcmask 130048
    %v222 = vsel %vm220, %v213, 0
    %224 = vmatprep.subr.bf16.mxu0 0
    %225 = vmatpush1.bf16.msra.mxu0 %v218
    %226 = vmatprep.subr.bf16.mxu0 0
    %227 = vmatpush1.bf16.msra.mxu0 0
    %228 = vmatprep.subr.bf16.mxu0 0
    %229 = vmatpush1.bf16.msra.mxu0 0
    %230 = vmatprep.subr.bf16.mxu0 0
    %231 = vmatpush1.bf16.msra.mxu0 0
    %232 = vmatprep.subr.bf16.mxu0 0
    %233 = vmatpush1.bf16.msra.mxu0 0
    %234 = vmatprep.subr.bf16.mxu0 0
    %235 = vmatpush1.bf16.msra.mxu0 0
    %236 = vmatprep.subr.bf16.mxu0 0
    %237 = vmatpush1.bf16.msra.mxu0 0
    %238 = vmatprep.subr.bf16.mxu0 0
    %239 = vmatpush1.bf16.msra.mxu0 0
    %240 = vmatprep.subr.bf16.mxu0 0
    %241 = vmatpush1.bf16.msra.mxu0 0
    %242 = vmatprep.subr.bf16.mxu0 0
    %243 = vmatpush1.bf16.msra.mxu0 0
    %244 = vmatprep.subr.bf16.mxu0 0
    %245 = vmatpush1.bf16.msra.mxu0 0
    %246 = vmatprep.subr.bf16.mxu0 0
    %247 = vmatpush1.bf16.msra.mxu0 0
    %248 = vmatprep.subr.bf16.mxu0 0
    %249 = vmatpush1.bf16.msra.mxu0 0
    %250 = vmatprep.subr.bf16.mxu0 0
    %251 = vmatpush1.bf16.msra.mxu0 0
    %252 = vmatprep.subr.bf16.mxu0 0
    %253 = vmatpush1.bf16.msra.mxu0 0
    %254 = vmatprep.subr.bf16.mxu0 0
    %255 = vmatpush1.bf16.msra.mxu0 0
    %256 = vmatprep.mubr.bf16.mxu0 0
    %257 = vmatmul.mubr.bf16.gmra.mrb[0].mxu0 %v222
    %v258 = vpop.f32.mrb[0].mxu0
    %v259 = vadd.f32 %v207, %v258
    %v260 = vpop.f32.mrb[0].mxu0
    %v261 = vpop.f32.mrb[0].mxu0
    %v262 = vadd.f32 %v207, %v261
    %v263 = vpop.f32.mrb[0].mxu0
    %264 = vdwg.mxu0
    %v265 = vmax.f32 %v259, 0.0
    %v266 = vmax.f32 %v262, 0.0
    %267 = vst [vmem:[#allocation2] sm:$0xff] %v265
    %268 = vst [vmem:[#allocation2 + $0x8] sm:$0xff] %v266
    %v269 = vld [vmem:[#allocation2] sm:$0xff]
    %v270 = vld [vmem:[#allocation2 + $0x8] sm:$0xff]
    %v271 = vpack.c.bf16 %v270, %v269
    %v272 = vld [vmem:[#allocation10] sm:$0xff]
    %v273 = vld [vmem:[#allocation10 + $0x8] sm:$0xff]
    %v274 = vld [vmem:[#allocation10 + $0x10] sm:$0xff]
    %v275 = vld [vmem:[#allocation10 + $0x18] sm:$0xff]
    %v276 = vld [vmem:[#allocation10 + $0x20] sm:$0xff]
    %v277 = vld [vmem:[#allocation10 + $0x28] sm:$0xff]
    %v278 = vld [vmem:[#allocation10 + $0x30] sm:$0xff]
    %v279 = vld [vmem:[#allocation10 + $0x38] sm:$0xff]
    %v280 = vld [vmem:[#allocation10 + $0x40] sm:$0xff]
    %v281 = vld [vmem:[#allocation10 + $0x48] sm:$0xff]
    %v282 = vld [vmem:[#allocation10 + $0x50] sm:$0xff]
    %v283 = vld [vmem:[#allocation10 + $0x58] sm:$0xff]
    %v284 = vld [vmem:[#allocation10 + $0x60] sm:$0xff]
    %v285 = vld [vmem:[#allocation10 + $0x68] sm:$0xff]
    %v286 = vld [vmem:[#allocation10 + $0x70] sm:$0xff]
    %v287 = vld [vmem:[#allocation10 + $0x78] sm:$0xff]
    %v288 = vld [vmem:[#allocation10 + $0x80] sm:$0xff]
    %v289 = vld [vmem:[#allocation10 + $0x88] sm:$0xff]
    %v290 = vld [vmem:[#allocation10 + $0x90] sm:$0xff]
    %v291 = vld [vmem:[#allocation10 + $0x98] sm:$0xff]
    %v292 = vld [vmem:[#allocation10 + $0xa0] sm:$0xff]
    %v293 = vld [vmem:[#allocation10 + $0xa8] sm:$0xff]
    %v294 = vld [vmem:[#allocation10 + $0xb0] sm:$0xff]
    %v295 = vld [vmem:[#allocation10 + $0xb8] sm:$0xff]
    %v296 = vld [vmem:[#allocation10 + $0xc0] sm:$0xff]
    %v297 = vld [vmem:[#allocation10 + $0xc8] sm:$0xff]
    %v298 = vld [vmem:[#allocation10 + $0xd0] sm:$0xff]
    %v299 = vld [vmem:[#allocation10 + $0xd8] sm:$0xff]
    %v300 = vld [vmem:[#allocation10 + $0xe0] sm:$0xff]
    %v301 = vld [vmem:[#allocation10 + $0xe8] sm:$0xff]
    %v302 = vld [vmem:[#allocation10 + $0xf0] sm:$0xff]
    %v303 = vld [vmem:[#allocation10 + $0xf8] sm:$0xff]
    %v304 = vld [vmem:[#allocation13] sm:$0xf]
    %v306 = vlaneseq
    %v307 = vshrl.u32 %v306, 7
    %v308 = vsub.s32 0, %v307
    %v309 = vrot.slane %v304, %v308
    %v310 = vlaneseq
    %v311 = vshrl.u32 %v310, 7
    %v312 = vsub.s32 1, %v311
    %v313 = vrot.slane %v304, %v312
    %v314 = vlaneseq
    %v315 = vshrl.u32 %v314, 7
    %v316 = vsub.s32 2, %v315
    %v317 = vrot.slane %v304, %v316
    %v318 = vlaneseq
    %v319 = vshrl.u32 %v318, 7
    %v320 = vsub.s32 3, %v319
    %v321 = vrot.slane %v304, %v320
    %v358 = vunpack.c.l.b16 %v272
    %v359 = vunpack.c.h.b16 %v272
    %v360 = vunpack.c.l.b16 %v273
    %v361 = vunpack.c.h.b16 %v273
    %v362 = vunpack.c.l.b16 %v274
    %v363 = vunpack.c.h.b16 %v274
    %v364 = vunpack.c.l.b16 %v275
    %v365 = vunpack.c.h.b16 %v275
    %v366 = vunpack.c.l.b16 %v276
    %v367 = vunpack.c.h.b16 %v276
    %v368 = vunpack.c.l.b16 %v277
    %v369 = vunpack.c.h.b16 %v277
    %v370 = vunpack.c.l.b16 %v278
    %v371 = vunpack.c.h.b16 %v278
    %v372 = vunpack.c.l.b16 %v279
    %v373 = vunpack.c.h.b16 %v279
    %v374 = vunpack.c.l.b16 %v280
    %v375 = vunpack.c.h.b16 %v280
    %v376 = vunpack.c.l.b16 %v281
    %v377 = vunpack.c.h.b16 %v281
    %v378 = vunpack.c.l.b16 %v282
    %v379 = vunpack.c.h.b16 %v282
    %v380 = vunpack.c.l.b16 %v283
    %v381 = vunpack.c.h.b16 %v283
    %v382 = vunpack.c.l.b16 %v284
    %v383 = vunpack.c.h.b16 %v284
    %v384 = vunpack.c.l.b16 %v285
    %v385 = vunpack.c.h.b16 %v285
    %v386 = vunpack.c.l.b16 %v286
    %v387 = vunpack.c.h.b16 %v286
    %v388 = vunpack.c.l.b16 %v287
    %v389 = vunpack.c.h.b16 %v287
    %v390 = vunpack.c.l.b16 %v288
    %v391 = vunpack.c.h.b16 %v288
    %v392 = vunpack.c.l.b16 %v289
    %v393 = vunpack.c.h.b16 %v289
    %v394 = vunpack.c.l.b16 %v290
    %v395 = vunpack.c.h.b16 %v290
    %v396 = vunpack.c.l.b16 %v291
    %v397 = vunpack.c.h.b16 %v291
    %v398 = vunpack.c.l.b16 %v292
    %v399 = vunpack.c.h.b16 %v292
    %v400 = vunpack.c.l.b16 %v293
    %v401 = vunpack.c.h.b16 %v293
    %v402 = vunpack.c.l.b16 %v294
    %v403 = vunpack.c.h.b16 %v294
    %v404 = vunpack.c.l.b16 %v295
    %v405 = vunpack.c.h.b16 %v295
    %v406 = vunpack.c.l.b16 %v296
    %v407 = vunpack.c.h.b16 %v296
    %v408 = vunpack.c.l.b16 %v297
    %v409 = vunpack.c.h.b16 %v297
    %v410 = vunpack.c.l.b16 %v298
    %v411 = vunpack.c.h.b16 %v298
    %v412 = vunpack.c.l.b16 %v299
    %v413 = vunpack.c.h.b16 %v299
    %v414 = vunpack.c.l.b16 %v300
    %v415 = vunpack.c.h.b16 %v300
    %v416 = vunpack.c.l.b16 %v301
    %v417 = vunpack.c.h.b16 %v301
    %v418 = vunpack.c.l.b16 %v302
    %v419 = vunpack.c.h.b16 %v302
    %v420 = vunpack.c.l.b16 %v303
    %v421 = vunpack.c.h.b16 %v303
    %v422 = vpack.c.b16 %v362, %v358
    %v423 = vpack.c.b16 %v363, %v359
    %v424 = vpack.c.b16 %v364, %v360
    %v425 = vpack.c.b16 %v365, %v361
    %v426 = vpack.c.b16 %v370, %v366
    %v427 = vpack.c.b16 %v371, %v367
    %v428 = vpack.c.b16 %v372, %v368
    %v429 = vpack.c.b16 %v373, %v369
    %v430 = vpack.c.b16 %v378, %v374
    %v431 = vpack.c.b16 %v379, %v375
    %v432 = vpack.c.b16 %v380, %v376
    %v433 = vpack.c.b16 %v381, %v377
    %v434 = vpack.c.b16 %v386, %v382
    %v435 = vpack.c.b16 %v387, %v383
    %v436 = vpack.c.b16 %v388, %v384
    %v437 = vpack.c.b16 %v389, %v385
    %v438 = vpack.c.b16 %v394, %v390
    %v439 = vpack.c.b16 %v395, %v391
    %v440 = vpack.c.b16 %v396, %v392
    %v441 = vpack.c.b16 %v397, %v393
    %v442 = vpack.c.b16 %v402, %v398
    %v443 = vpack.c.b16 %v403, %v399
    %v444 = vpack.c.b16 %v404, %v400
    %v445 = vpack.c.b16 %v405, %v401
    %v446 = vpack.c.b16 %v410, %v406
    %v447 = vpack.c.b16 %v411, %v407
    %v448 = vpack.c.b16 %v412, %v408
    %v449 = vpack.c.b16 %v413, %v409
    %v450 = vpack.c.b16 %v418, %v414
    %v451 = vpack.c.b16 %v419, %v415
    %v452 = vpack.c.b16 %v420, %v416
    %v453 = vpack.c.b16 %v421, %v417
    %486 = vmatprep.subr.bf16.mxu0 %v423
    %487 = vmatpush1.bf16.msra.mxu0 %v422
    %488 = vmatprep.subr.bf16.mxu0 %v427
    %489 = vmatpush1.bf16.msra.mxu0 %v426
    %490 = vmatprep.subr.bf16.mxu0 %v431
    %491 = vmatpush1.bf16.msra.mxu0 %v430
    %492 = vmatprep.subr.bf16.mxu0 %v435
    %493 = vmatpush1.bf16.msra.mxu0 %v434
    %494 = vmatprep.subr.bf16.mxu0 %v439
    %495 = vmatpush1.bf16.msra.mxu0 %v438
    %496 = vmatprep.subr.bf16.mxu0 %v443
    %497 = vmatpush1.bf16.msra.mxu0 %v442
    %498 = vmatprep.subr.bf16.mxu0 %v447
    %499 = vmatpush1.bf16.msra.mxu0 %v446
    %500 = vmatprep.subr.bf16.mxu0 %v451
    %501 = vmatpush1.bf16.msra.mxu0 %v450
    %502 = vmatprep.subr.bf16.mxu0 0
    %503 = vmatpush1.bf16.msra.mxu0 0
    %504 = vmatprep.subr.bf16.mxu0 0
    %505 = vmatpush1.bf16.msra.mxu0 0
    %506 = vmatprep.subr.bf16.mxu0 0
    %507 = vmatpush1.bf16.msra.mxu0 0
    %508 = vmatprep.subr.bf16.mxu0 0
    %509 = vmatpush1.bf16.msra.mxu0 0
    %510 = vmatprep.subr.bf16.mxu0 0
    %511 = vmatpush1.bf16.msra.mxu0 0
    %512 = vmatprep.subr.bf16.mxu0 0
    %513 = vmatpush1.bf16.msra.mxu0 0
    %514 = vmatprep.subr.bf16.mxu0 0
    %515 = vmatpush1.bf16.msra.mxu0 0
    %516 = vmatprep.subr.bf16.mxu0 0
    %517 = vmatpush1.bf16.msra.mxu0 0
    %518 = vmatprep.mubr.bf16.mxu0 0
    %519 = vmatmul.mubr.bf16.gmra.mrb[0].mxu0 %v271
    %v520 = vpop.f32.mrb[0].mxu0
    %v521 = vadd.f32 %v309, %v520
    %v522 = vpop.f32.mrb[0].mxu0
    %v523 = vadd.f32 %v313, %v522
    %v524 = vpop.f32.mrb[0].mxu0
    %v525 = vadd.f32 %v309, %v524
    %v526 = vpop.f32.mrb[0].mxu0
    %v527 = vadd.f32 %v313, %v526
    %528 = vdwg.mxu0
    %529 = vmatprep.subr.bf16.mxu0 %v425
    %530 = vmatpush1.bf16.msra.mxu0 %v424
    %531 = vmatprep.subr.bf16.mxu0 %v429
    %532 = vmatpush1.bf16.msra.mxu0 %v428
    %533 = vmatprep.subr.bf16.mxu0 %v433
    %534 = vmatpush1.bf16.msra.mxu0 %v432
    %535 = vmatprep.subr.bf16.mxu0 %v437
    %536 = vmatpush1.bf16.msra.mxu0 %v436
    %537 = vmatprep.subr.bf16.mxu0 %v441
    %538 = vmatpush1.bf16.msra.mxu0 %v440
    %539 = vmatprep.subr.bf16.mxu0 %v445
    %540 = vmatpush1.bf16.msra.mxu0 %v444
    %541 = vmatprep.subr.bf16.mxu0 %v449
    %542 = vmatpush1.bf16.msra.mxu0 %v448
    %543 = vmatprep.subr.bf16.mxu0 %v453
    %544 = vmatpush1.bf16.msra.mxu0 %v452
    %545 = vmatprep.subr.bf16.mxu0 0
    %546 = vmatpush1.bf16.msra.mxu0 0
    %547 = vmatprep.subr.bf16.mxu0 0
    %548 = vmatpush1.bf16.msra.mxu0 0
    %549 = vmatprep.subr.bf16.mxu0 0
    %550 = vmatpush1.bf16.msra.mxu0 0
    %551 = vmatprep.subr.bf16.mxu0 0
    %552 = vmatpush1.bf16.msra.mxu0 0
    %553 = vmatprep.subr.bf16.mxu0 0
    %554 = vmatpush1.bf16.msra.mxu0 0
    %555 = vmatprep.subr.bf16.mxu0 0
    %556 = vmatpush1.bf16.msra.mxu0 0
    %557 = vmatprep.subr.bf16.mxu0 0
    %558 = vmatpush1.bf16.msra.mxu0 0
    %559 = vmatprep.subr.bf16.mxu0 0
    %560 = vmatpush1.bf16.msra.mxu0 0
    %561 = vmatprep.mubr.bf16.mxu0 0
    %562 = vmatmul.mubr.bf16.gmra.mrb[0].mxu0 %v271
    %v563 = vpop.f32.mrb[0].mxu0
    %v564 = vadd.f32 %v317, %v563
    %v565 = vpop.f32.mrb[0].mxu0
    %v566 = vadd.f32 %v321, %v565
    %v567 = vpop.f32.mrb[0].mxu0
    %v568 = vadd.f32 %v317, %v567
    %v569 = vpop.f32.mrb[0].mxu0
    %v570 = vadd.f32 %v321, %v569
    %571 = vdwg.mxu0
    %572 = vst [vmem:[#allocation3] sm:$0xff] %v521
    %573 = vst [vmem:[#allocation3 + $0x8] sm:$0xff] %v523
    %574 = vst [vmem:[#allocation3 + $0x10] sm:$0xff] %v564
    %575 = vst [vmem:[#allocation3 + $0x18] sm:$0xff] %v566
    %576 = vst [vmem:[#allocation3 + $0x20] sm:$0xff] %v525
    %577 = vst [vmem:[#allocation3 + $0x28] sm:$0xff] %v527
    %578 = vst [vmem:[#allocation3 + $0x30] sm:$0xff] %v568
    %579 = vst [vmem:[#allocation3 + $0x38] sm:$0xff] %v570
    %v580 = vld [vmem:[#allocation3] ss:$8 sm:$0xf]
    %s581 = scalar_lea.vmem [#allocation3], 32
    %v582 = vld [vmem:[%s581] ss:$8 sm:$0xf]
    %v583 = vld [vmem:[#allocation12] sm:$0xff]
    %v584 = vld [vmem:[#allocation12 + $0x8] sm:$0xff]
    %v585 = vld [vmem:[#allocation12 + $0x10] sm:$0xff]
    %v586 = vld [vmem:[#allocation12 + $0x18] sm:$0xff]
    %v587 = vld [vmem:[#allocation12 + $0x20] sm:$0xff]
    %v588 = vld [vmem:[#allocation12 + $0x28] sm:$0xff]
    %v589 = vld [vmem:[#allocation12 + $0x30] sm:$0xff]
    %v590 = vld [vmem:[#allocation12 + $0x38] sm:$0xff]
    %v591 = vld [vmem:[#allocation12 + $0x40] sm:$0xff]
    %v592 = vld [vmem:[#allocation12 + $0x48] sm:$0xff]
    %v593 = vld [vmem:[#allocation12 + $0x50] sm:$0xff]
    %v594 = vld [vmem:[#allocation12 + $0x58] sm:$0xff]
    %v595 = vld [vmem:[#allocation12 + $0x60] sm:$0xff]
    %v596 = vld [vmem:[#allocation12 + $0x68] sm:$0xff]
    %v597 = vld [vmem:[#allocation12 + $0x70] sm:$0xff]
    %v598 = vld [vmem:[#allocation12 + $0x78] sm:$0xff]
    %v599 = vld [vmem:[#allocation12 + $0x80] sm:$0xff]
    %v600 = vld [vmem:[#allocation12 + $0x88] sm:$0xff]
    %v601 = vld [vmem:[#allocation12 + $0x90] sm:$0xff]
    %v602 = vld [vmem:[#allocation12 + $0x98] sm:$0xff]
    %v603 = vld [vmem:[#allocation12 + $0xa0] sm:$0xff]
    %v604 = vld [vmem:[#allocation12 + $0xa8] sm:$0xff]
    %v605 = vld [vmem:[#allocation12 + $0xb0] sm:$0xff]
    %v606 = vld [vmem:[#allocation12 + $0xb8] sm:$0xff]
    %v607 = vld [vmem:[#allocation12 + $0xc0] sm:$0xff]
    %v608 = vld [vmem:[#allocation12 + $0xc8] sm:$0xff]
    %v609 = vld [vmem:[#allocation12 + $0xd0] sm:$0xff]
    %v610 = vld [vmem:[#allocation12 + $0xd8] sm:$0xff]
    %v611 = vld [vmem:[#allocation12 + $0xe0] sm:$0xff]
    %v612 = vld [vmem:[#allocation12 + $0xe8] sm:$0xff]
    %v613 = vld [vmem:[#allocation12 + $0xf0] sm:$0xff]
    %v614 = vld [vmem:[#allocation12 + $0xf8] sm:$0xff]
    %v647 = vunpack.c.l.b16 %v583
    %v648 = vunpack.c.h.b16 %v583
    %v649 = vunpack.c.l.b16 %v584
    %v650 = vunpack.c.h.b16 %v584
    %v651 = vunpack.c.l.b16 %v585
    %v652 = vunpack.c.h.b16 %v585
    %v653 = vunpack.c.l.b16 %v586
    %v654 = vunpack.c.h.b16 %v586
    %v655 = vunpack.c.l.b16 %v587
    %v656 = vunpack.c.h.b16 %v587
    %v657 = vunpack.c.l.b16 %v588
    %v658 = vunpack.c.h.b16 %v588
    %v659 = vunpack.c.l.b16 %v589
    %v660 = vunpack.c.h.b16 %v589
    %v661 = vunpack.c.l.b16 %v590
    %v662 = vunpack.c.h.b16 %v590
    %v663 = vunpack.c.l.b16 %v591
    %v664 = vunpack.c.h.b16 %v591
    %v665 = vunpack.c.l.b16 %v592
    %v666 = vunpack.c.h.b16 %v592
    %v667 = vunpack.c.l.b16 %v593
    %v668 = vunpack.c.h.b16 %v593
    %v669 = vunpack.c.l.b16 %v594
    %v670 = vunpack.c.h.b16 %v594
    %v671 = vunpack.c.l.b16 %v595
    %v672 = vunpack.c.h.b16 %v595
    %v673 = vunpack.c.l.b16 %v596
    %v674 = vunpack.c.h.b16 %v596
    %v675 = vunpack.c.l.b16 %v597
    %v676 = vunpack.c.h.b16 %v597
    %v677 = vunpack.c.l.b16 %v598
    %v678 = vunpack.c.h.b16 %v598
    %v679 = vunpack.c.l.b16 %v599
    %v680 = vunpack.c.h.b16 %v599
    %v681 = vunpack.c.l.b16 %v600
    %v682 = vunpack.c.h.b16 %v600
    %v683 = vunpack.c.l.b16 %v601
    %v684 = vunpack.c.h.b16 %v601
    %v685 = vunpack.c.l.b16 %v602
    %v686 = vunpack.c.h.b16 %v602
    %v687 = vunpack.c.l.b16 %v603
    %v688 = vunpack.c.h.b16 %v603
    %v689 = vunpack.c.l.b16 %v604
    %v690 = vunpack.c.h.b16 %v604
    %v691 = vunpack.c.l.b16 %v605
    %v692 = vunpack.c.h.b16 %v605
    %v693 = vunpack.c.l.b16 %v606
    %v694 = vunpack.c.h.b16 %v606
    %v695 = vunpack.c.l.b16 %v607
    %v696 = vunpack.c.h.b16 %v607
    %v697 = vunpack.c.l.b16 %v608
    %v698 = vunpack.c.h.b16 %v608
    %v699 = vunpack.c.l.b16 %v609
    %v700 = vunpack.c.h.b16 %v609
    %v701 = vunpack.c.l.b16 %v610
    %v702 = vunpack.c.h.b16 %v610
    %v703 = vunpack.c.l.b16 %v611
    %v704 = vunpack.c.h.b16 %v611
    %v705 = vunpack.c.l.b16 %v612
    %v706 = vunpack.c.h.b16 %v612
    %v707 = vunpack.c.l.b16 %v613
    %v708 = vunpack.c.h.b16 %v613
    %v709 = vunpack.c.l.b16 %v614
    %v710 = vunpack.c.h.b16 %v614
    %v711 = vpack.c.b16 %v651, %v647
    %v712 = vpack.c.b16 %v652, %v648
    %v713 = vpack.c.b16 %v653, %v649
    %v714 = vpack.c.b16 %v654, %v650
    %v715 = vpack.c.b16 %v659, %v655
    %v716 = vpack.c.b16 %v660, %v656
    %v717 = vpack.c.b16 %v661, %v657
    %v718 = vpack.c.b16 %v662, %v658
    %v719 = vpack.c.b16 %v667, %v663
    %v720 = vpack.c.b16 %v668, %v664
    %v721 = vpack.c.b16 %v669, %v665
    %v722 = vpack.c.b16 %v670, %v666
    %v723 = vpack.c.b16 %v675, %v671
    %v724 = vpack.c.b16 %v676, %v672
    %v725 = vpack.c.b16 %v677, %v673
    %v726 = vpack.c.b16 %v678, %v674
    %v727 = vpack.c.b16 %v683, %v679
    %v728 = vpack.c.b16 %v684, %v680
    %v729 = vpack.c.b16 %v685, %v681
    %v730 = vpack.c.b16 %v686, %v682
    %v731 = vpack.c.b16 %v691, %v687
    %v732 = vpack.c.b16 %v692, %v688
    %v733 = vpack.c.b16 %v693, %v689
    %v734 = vpack.c.b16 %v694, %v690
    %v735 = vpack.c.b16 %v699, %v695
    %v736 = vpack.c.b16 %v700, %v696
    %v737 = vpack.c.b16 %v701, %v697
    %v738 = vpack.c.b16 %v702, %v698
    %v739 = vpack.c.b16 %v707, %v703
    %v740 = vpack.c.b16 %v708, %v704
    %v741 = vpack.c.b16 %v709, %v705
    %v742 = vpack.c.b16 %v710, %v706
    %775 = vmatprep.subr.bf16.mxu0 %v712
    %776 = vmatpush1.bf16.msra.mxu0 %v711
    %777 = vmatprep.subr.bf16.mxu0 %v716
    %778 = vmatpush1.bf16.msra.mxu0 %v715
    %779 = vmatprep.subr.bf16.mxu0 %v720
    %780 = vmatpush1.bf16.msra.mxu0 %v719
    %781 = vmatprep.subr.bf16.mxu0 %v724
    %782 = vmatpush1.bf16.msra.mxu0 %v723
    %783 = vmatprep.subr.bf16.mxu0 %v728
    %784 = vmatpush1.bf16.msra.mxu0 %v727
    %785 = vmatprep.subr.bf16.mxu0 %v732
    %786 = vmatpush1.bf16.msra.mxu0 %v731
    %787 = vmatprep.subr.bf16.mxu0 %v736
    %788 = vmatpush1.bf16.msra.mxu0 %v735
    %789 = vmatprep.subr.bf16.mxu0 %v740
    %790 = vmatpush1.bf16.msra.mxu0 %v739
    %791 = vmatprep.subr.bf16.mxu0 0
    %792 = vmatpush1.bf16.msra.mxu0 0
    %793 = vmatprep.subr.bf16.mxu0 0
    %794 = vmatpush1.bf16.msra.mxu0 0
    %795 = vmatprep.subr.bf16.mxu0 0
    %796 = vmatpush1.bf16.msra.mxu0 0
    %797 = vmatprep.subr.bf16.mxu0 0
    %798 = vmatpush1.bf16.msra.mxu0 0
    %799 = vmatprep.subr.bf16.mxu0 0
    %800 = vmatpush1.bf16.msra.mxu0 0
    %801 = vmatprep.subr.bf16.mxu0 0
    %802 = vmatpush1.bf16.msra.mxu0 0
    %803 = vmatprep.subr.bf16.mxu0 0
    %804 = vmatpush1.bf16.msra.mxu0 0
    %805 = vmatprep.subr.bf16.mxu0 0
    %806 = vmatpush1.bf16.msra.mxu0 0
    %807 = vmatprep.mubr.bf16.mxu0 0
    %808 = vmatmul.mubr.bf16.gmra.mrb[0].mxu0 0
    %v809 = vpop.f32.mrb[0].mxu0
    %v810 = vadd.f32 0.0, %v809
    %v811 = vpop.f32.mrb[0].mxu0
    %v812 = vadd.f32 0.0, %v811
    %v813 = vpop.f32.mrb[0].mxu0
    %v814 = vpop.f32.mrb[0].mxu0
    %815 = vdwg.mxu0
    %816 = vmatprep.subr.bf16.mxu0 %v714
    %817 = vmatpush1.bf16.msra.mxu0 %v713
    %818 = vmatprep.subr.bf16.mxu0 %v718
    %819 = vmatpush1.bf16.msra.mxu0 %v717
    %820 = vmatprep.subr.bf16.mxu0 %v722
    %821 = vmatpush1.bf16.msra.mxu0 %v721
    %822 = vmatprep.subr.bf16.mxu0 %v726
    %823 = vmatpush1.bf16.msra.mxu0 %v725
    %824 = vmatprep.subr.bf16.mxu0 %v730
    %825 = vmatpush1.bf16.msra.mxu0 %v729
    %826 = vmatprep.subr.bf16.mxu0 %v734
    %827 = vmatpush1.bf16.msra.mxu0 %v733
    %828 = vmatprep.subr.bf16.mxu0 %v738
    %829 = vmatpush1.bf16.msra.mxu0 %v737
    %830 = vmatprep.subr.bf16.mxu0 %v742
    %831 = vmatpush1.bf16.msra.mxu0 %v741
    %832 = vmatprep.subr.bf16.mxu0 0
    %833 = vmatpush1.bf16.msra.mxu0 0
    %834 = vmatprep.subr.bf16.mxu0 0
    %835 = vmatpush1.bf16.msra.mxu0 0
    %836 = vmatprep.subr.bf16.mxu0 0
    %837 = vmatpush1.bf16.msra.mxu0 0
    %838 = vmatprep.subr.bf16.mxu0 0
    %839 = vmatpush1.bf16.msra.mxu0 0
    %840 = vmatprep.subr.bf16.mxu0 0
    %841 = vmatpush1.bf16.msra.mxu0 0
    %842 = vmatprep.subr.bf16.mxu0 0
    %843 = vmatpush1.bf16.msra.mxu0 0
    %844 = vmatprep.subr.bf16.mxu0 0
    %845 = vmatpush1.bf16.msra.mxu0 0
    %846 = vmatprep.subr.bf16.mxu0 0
    %847 = vmatpush1.bf16.msra.mxu0 0
    %848 = vmatprep.mubr.bf16.mxu0 0
    %849 = vmatmul.mubr.bf16.gmra.mrb[0].mxu0 0
    %v850 = vpop.f32.mrb[0].mxu0
    %v851 = vadd.f32 0.0, %v850
    %v852 = vpop.f32.mrb[0].mxu0
    %v853 = vadd.f32 0.0, %v852
    %v854 = vpop.f32.mrb[0].mxu0
    %v855 = vpop.f32.mrb[0].mxu0
    %856 = vdwg.mxu0
    %v861 = vcombine.low %v810, %v812
    %v862 = vcombine.low %v851, %v853
    %v864 = vunpack.c.l.s4 1966171168
    %v865 = vunpack.c.0.s8 %v864
    %v866 = vlaneseq
    %v867 = vshrl.u32 %v866, 7
    %v868 = vsub.s32 %v865, %v867
    %v869 = vrot.slane %v861, %v868
    %v871 = vunpack.c.l.s4 1966171168
    %v872 = vunpack.c.0.s8 %v871
    %v873 = vlaneseq
    %v874 = vshrl.u32 %v873, 7
    %v875 = vsub.s32 %v872, %v874
    %v876 = vrot.slane %v862, %v875
    %v877 = vcombine.low %v869, %v876
    %v878 = vcombine.high %v869, %v876
    %v880 = vunpack.c.l.s4 1966171168
    %v881 = vunpack.c.0.s8 %v880
    %v882 = vlaneseq
    %v883 = vshrl.u32 %v882, 7
    %v884 = vsub.s32 %v881, %v883
    %v885 = vrot.slane %v877, %v884
    %v887 = vunpack.c.l.s4 1966171168
    %v888 = vunpack.c.0.s8 %v887
    %v889 = vlaneseq
    %v890 = vshrl.u32 %v889, 7
    %v891 = vsub.s32 %v888, %v890
    %v892 = vrot.slane %v878, %v891
    %v895 = vadd.f32 %v580, %v885
    %v896 = vadd.f32 %v582, %v892
    %v897 = vxor.u32 %v895, 2147483648
    %v898 = vxor.u32 %v896, 2147483648
    %v899 = vmul.f32 %v897, 1.442695
    %v900 = vpow.pop %v899
    %v901 = vmul.f32 %v898, 1.442695
    %v902 = vpow.pop %v901
    %v903 = vadd.f32 %v900, 1.0
    %v904 = vadd.f32 %v902, 1.0
    %v905 = vrcp.pop %v903
    %v906 = vmul.f32 1.0, %v905
    %v907 = vrcp.pop %v904
    %v908 = vmul.f32 1.0, %v907
    %v911 = vrot.slane %v895, 1
    %v912 = vrot.slane %v896, 1
    %v915 = vxor.u32 %v911, 2147483648
    %v916 = vxor.u32 %v912, 2147483648
    %v917 = vmul.f32 %v915, 1.442695
    %v918 = vpow.pop %v917
    %v919 = vmul.f32 %v916, 1.442695
    %v920 = vpow.pop %v919
    %v921 = vadd.f32 %v918, 1.0
    %v922 = vadd.f32 %v920, 1.0
    %v923 = vrcp.pop %v921
    %v924 = vmul.f32 1.0, %v923
    %v925 = vrcp.pop %v922
    %v926 = vmul.f32 1.0, %v925
    %v927 = vrot.slane %v895, 2
    %v928 = vrot.slane %v896, 2
    %v931 = vtanh.pop %v927
    %v932 = vtanh.pop %v928
    %v933 = vrot.slane %v895, 3
    %v934 = vrot.slane %v896, 3
    %v937 = vxor.u32 %v933, 2147483648
    %v938 = vxor.u32 %v934, 2147483648
    %v939 = vmul.f32 %v937, 1.442695
    %v940 = vpow.pop %v939
    %v941 = vmul.f32 %v938, 1.442695
    %v942 = vpow.pop %v941
    %v943 = vadd.f32 %v940, 1.0
    %v944 = vadd.f32 %v942, 1.0
    %v945 = vrcp.pop %v943
    %v946 = vmul.f32 1.0, %v945
    %v947 = vrcp.pop %v944
    %v948 = vmul.f32 1.0, %v947
    %v949 = vmul.f32 %v924, 0.0
    %v950 = vmul.f32 %v926, 0.0
    %v951 = vmul.f32 %v906, %v931
    %v952 = vmul.f32 %v908, %v932
    %v953 = vadd.f32 %v949, %v951
    %v954 = vadd.f32 %v950, %v952
    %v955 = vtanh.pop %v953
    %v956 = vtanh.pop %v954
    %v957 = vmul.f32 %v946, %v955
    %v958 = vmul.f32 %v948, %v956
    %959 = vst [vmem:[#allocation2] sm:$0x1] %v957
    %960 = vst [vmem:[#allocation2 + $0x8] sm:$0x1] %v958
    %s961 = scalar_lea.vmem [#allocation3], 1
    %v962 = vld [vmem:[%s961] ss:$8 sm:$0xf]
    %s963 = scalar_lea.vmem [#allocation3], 33
    %v964 = vld [vmem:[%s963] ss:$8 sm:$0xf]
    %v965 = vpack.c.bf16 %v957, %v957
    %v966 = vpack.c.bf16 %v958, %v958
    %v967 = vld [vmem:[#allocation12] sm:$0xff]
    %v968 = vld [vmem:[#allocation12 + $0x8] sm:$0xff]
    %v969 = vld [vmem:[#allocation12 + $0x10] sm:$0xff]
    %v970 = vld [vmem:[#allocation12 + $0x18] sm:$0xff]
    %v971 = vld [vmem:[#allocation12 + $0x20] sm:$0xff]
    %v972 = vld [vmem:[#allocation12 + $0x28] sm:$0xff]
    %v973 = vld [vmem:[#allocation12 + $0x30] sm:$0xff]
    %v974 = vld [vmem:[#allocation12 + $0x38] sm:$0xff]
    %v975 = vld [vmem:[#allocation12 + $0x40] sm:$0xff]
    %v976 = vld [vmem:[#allocation12 + $0x48] sm:$0xff]
    %v977 = vld [vmem:[#allocation12 + $0x50] sm:$0xff]
    %v978 = vld [vmem:[#allocation12 + $0x58] sm:$0xff]
    %v979 = vld [vmem:[#allocation12 + $0x60] sm:$0xff]
    %v980 = vld [vmem:[#allocation12 + $0x68] sm:$0xff]
    %v981 = vld [vmem:[#allocation12 + $0x70] sm:$0xff]
    %v982 = vld [vmem:[#allocation12 + $0x78] sm:$0xff]
    %v983 = vld [vmem:[#allocation12 + $0x80] sm:$0xff]
    %v984 = vld [vmem:[#allocation12 + $0x88] sm:$0xff]
    %v985 = vld [vmem:[#allocation12 + $0x90] sm:$0xff]
    %v986 = vld [vmem:[#allocation12 + $0x98] sm:$0xff]
    %v987 = vld [vmem:[#allocation12 + $0xa0] sm:$0xff]
    %v988 = vld [vmem:[#allocation12 + $0xa8] sm:$0xff]
    %v989 = vld [vmem:[#allocation12 + $0xb0] sm:$0xff]
    %v990 = vld [vmem:[#allocation12 + $0xb8] sm:$0xff]
    %v991 = vld [vmem:[#allocation12 + $0xc0] sm:$0xff]
    %v992 = vld [vmem:[#allocation12 + $0xc8] sm:$0xff]
    %v993 = vld [vmem:[#allocation12 + $0xd0] sm:$0xff]
    %v994 = vld [vmem:[#allocation12 + $0xd8] sm:$0xff]
    %v995 = vld [vmem:[#allocation12 + $0xe0] sm:$0xff]
    %v996 = vld [vmem:[#allocation12 + $0xe8] sm:$0xff]
    %v997 = vld [vmem:[#allocation12 + $0xf0] sm:$0xff]
    %v998 = vld [vmem:[#allocation12 + $0xf8] sm:$0xff]
    %v1001 = vunpack.c.l.b16 %v965
    %v1002 = vunpack.c.l.b16 %v966
    %v1003 = vrot.slane %v1002, 7
    %vm1004 = vcmask 1041409
    %v1005 = vsel %vm1004, %v1003, %v1001
    %v1006 = vpack.c.b16 %v1005, %v1005
    %v1040 = vunpack.c.l.b16 %v967
    %v1041 = vunpack.c.h.b16 %v967
    %v1042 = vunpack.c.l.b16 %v968
    %v1043 = vunpack.c.h.b16 %v968
    %v1044 = vunpack.c.l.b16 %v969
    %v1045 = vunpack.c.h.b16 %v969
    %v1046 = vunpack.c.l.b16 %v970
    %v1047 = vunpack.c.h.b16 %v970
    %v1048 = vunpack.c.l.b16 %v971
    %v1049 = vunpack.c.h.b16 %v971
    %v1050 = vunpack.c.l.b16 %v972
    %v1051 = vunpack.c.h.b16 %v972
    %v1052 = vunpack.c.l.b16 %v973
    %v1053 = vunpack.c.h.b16 %v973
    %v1054 = vunpack.c.l.b16 %v974
    %v1055 = vunpack.c.h.b16 %v974
    %v1056 = vunpack.c.l.b16 %v975
    %v1057 = vunpack.c.h.b16 %v975
    %v1058 = vunpack.c.l.b16 %v976
    %v1059 = vunpack.c.h.b16 %v976
    %v1060 = vunpack.c.l.b16 %v977
    %v1061 = vunpack.c.h.b16 %v977
    %v1062 = vunpack.c.l.b16 %v978
    %v1063 = vunpack.c.h.b16 %v978
    %v1064 = vunpack.c.l.b16 %v979
    %v1065 = vunpack.c.h.b16 %v979
    %v1066 = vunpack.c.l.b16 %v980
    %v1067 = vunpack.c.h.b16 %v980
    %v1068 = vunpack.c.l.b16 %v981
    %v1069 = vunpack.c.h.b16 %v981
    %v1070 = vunpack.c.l.b16 %v982
    %v1071 = vunpack.c.h.b16 %v982
    %v1072 = vunpack.c.l.b16 %v983
    %v1073 = vunpack.c.h.b16 %v983
    %v1074 = vunpack.c.l.b16 %v984
    %v1075 = vunpack.c.h.b16 %v984
    %v1076 = vunpack.c.l.b16 %v985
    %v1077 = vunpack.c.h.b16 %v985
    %v1078 = vunpack.c.l.b16 %v986
    %v1079 = vunpack.c.h.b16 %v986
    %v1080 = vunpack.c.l.b16 %v987
    %v1081 = vunpack.c.h.b16 %v987
    %v1082 = vunpack.c.l.b16 %v988
    %v1083 = vunpack.c.h.b16 %v988
    %v1084 = vunpack.c.l.b16 %v989
    %v1085 = vunpack.c.h.b16 %v989
    %v1086 = vunpack.c.l.b16 %v990
    %v1087 = vunpack.c.h.b16 %v990
    %v1088 = vunpack.c.l.b16 %v991
    %v1089 = vunpack.c.h.b16 %v991
    %v1090 = vunpack.c.l.b16 %v992
    %v1091 = vunpack.c.h.b16 %v992
    %v1092 = vunpack.c.l.b16 %v993
    %v1093 = vunpack.c.h.b16 %v993
    %v1094 = vunpack.c.l.b16 %v994
    %v1095 = vunpack.c.h.b16 %v994
    %v1096 = vunpack.c.l.b16 %v995
    %v1097 = vunpack.c.h.b16 %v995
    %v1098 = vunpack.c.l.b16 %v996
    %v1099 = vunpack.c.h.b16 %v996
    %v1100 = vunpack.c.l.b16 %v997
    %v1101 = vunpack.c.h.b16 %v997
    %v1102 = vunpack.c.l.b16 %v998
    %v1103 = vunpack.c.h.b16 %v998
    %v1104 = vpack.c.b16 %v1044, %v1040
    %v1105 = vpack.c.b16 %v1045, %v1041
    %v1106 = vpack.c.b16 %v1046, %v1042
    %v1107 = vpack.c.b16 %v1047, %v1043
    %v1108 = vpack.c.b16 %v1052, %v1048
    %v1109 = vpack.c.b16 %v1053, %v1049
    %v1110 = vpack.c.b16 %v1054, %v1050
    %v1111 = vpack.c.b16 %v1055, %v1051
    %v1112 = vpack.c.b16 %v1060, %v1056
    %v1113 = vpack.c.b16 %v1061, %v1057
    %v1114 = vpack.c.b16 %v1062, %v1058
    %v1115 = vpack.c.b16 %v1063, %v1059
    %v1116 = vpack.c.b16 %v1068, %v1064
    %v1117 = vpack.c.b16 %v1069, %v1065
    %v1118 = vpack.c.b16 %v1070, %v1066
    %v1119 = vpack.c.b16 %v1071, %v1067
    %v1120 = vpack.c.b16 %v1076, %v1072
    %v1121 = vpack.c.b16 %v1077, %v1073
    %v1122 = vpack.c.b16 %v1078, %v1074
    %v1123 = vpack.c.b16 %v1079, %v1075
    %v1124 = vpack.c.b16 %v1084, %v1080
    %v1125 = vpack.c.b16 %v1085, %v1081
    %v1126 = vpack.c.b16 %v1086, %v1082
    %v1127 = vpack.c.b16 %v1087, %v1083
    %v1128 = vpack.c.b16 %v1092, %v1088
    %v1129 = vpack.c.b16 %v1093, %v1089
    %v1130 = vpack.c.b16 %v1094, %v1090
    %v1131 = vpack.c.b16 %v1095, %v1091
    %v1132 = vpack.c.b16 %v1100, %v1096
    %v1133 = vpack.c.b16 %v1101, %v1097
    %v1134 = vpack.c.b16 %v1102, %v1098
    %v1135 = vpack.c.b16 %v1103, %v1099
    %1168 = vmatprep.subr.bf16.mxu0 %v1105
    %1169 = vmatpush1.bf16.msra.mxu0 %v1104
    %1170 = vmatprep.subr.bf16.mxu0 %v1109
    %1171 = vmatpush1.bf16.msra.mxu0 %v1108
    %1172 = vmatprep.subr.bf16.mxu0 %v1113
    %1173 = vmatpush1.bf16.msra.mxu0 %v1112
    %1174 = vmatprep.subr.bf16.mxu0 %v1117
    %1175 = vmatpush1.bf16.msra.mxu0 %v1116
    %1176 = vmatprep.subr.bf16.mxu0 %v1121
    %1177 = vmatpush1.bf16.msra.mxu0 %v1120
    %1178 = vmatprep.subr.bf16.mxu0 %v1125
    %1179 = vmatpush1.bf16.msra.mxu0 %v1124
    %1180 = vmatprep.subr.bf16.mxu0 %v1129
    %1181 = vmatpush1.bf16.msra.mxu0 %v1128
    %1182 = vmatprep.subr.bf16.mxu0 %v1133
    %1183 = vmatpush1.bf16.msra.mxu0 %v1132
    %1184 = vmatprep.subr.bf16.mxu0 0
    %1185 = vmatpush1.bf16.msra.mxu0 0
    %1186 = vmatprep.subr.bf16.mxu0 0
    %1187 = vmatpush1.bf16.msra.mxu0 0
    %1188 = vmatprep.subr.bf16.mxu0 0
    %1189 = vmatpush1.bf16.msra.mxu0 0
    %1190 = vmatprep.subr.bf16.mxu0 0
    %1191 = vmatpush1.bf16.msra.mxu0 0
    %1192 = vmatprep.subr.bf16.mxu0 0
    %1193 = vmatpush1.bf16.msra.mxu0 0
    %1194 = vmatprep.subr.bf16.mxu0 0
    %1195 = vmatpush1.bf16.msra.mxu0 0
    %1196 = vmatprep.subr.bf16.mxu0 0
    %1197 = vmatpush1.bf16.msra.mxu0 0
    %1198 = vmatprep.subr.bf16.mxu0 0
    %1199 = vmatpush1.bf16.msra.mxu0 0
    %1200 = vmatprep.mubr.bf16.mxu0 0
    %1201 = vmatmul.mubr.bf16.gmra.mrb[0].mxu0 %v1006
    %v1202 = vpop.f32.mrb[0].mxu0
    %v1203 = vadd.f32 0.0, %v1202
    %v1204 = vpop.f32.mrb[0].mxu0
    %v1205 = vadd.f32 0.0, %v1204
    %v1206 = vpop.f32.mrb[0].mxu0
    %v1207 = vpop.f32.mrb[0].mxu0
    %1208 = vdwg.mxu0
    %1209 = vmatprep.subr.bf16.mxu0 %v1107
    %1210 = vmatpush1.bf16.msra.mxu0 %v1106
    %1211 = vmatprep.subr.bf16.mxu0 %v1111
    %1212 = vmatpush1.bf16.msra.mxu0 %v1110
    %1213 = vmatprep.subr.bf16.mxu0 %v1115
    %1214 = vmatpush1.bf16.msra.mxu0 %v1114
    %1215 = vmatprep.subr.bf16.mxu0 %v1119
    %1216 = vmatpush1.bf16.msra.mxu0 %v1118
    %1217 = vmatprep.subr.bf16.mxu0 %v1123
    %1218 = vmatpush1.bf16.msra.mxu0 %v1122
    %1219 = vmatprep.subr.bf16.mxu0 %v1127
    %1220 = vmatpush1.bf16.msra.mxu0 %v1126
    %1221 = vmatprep.subr.bf16.mxu0 %v1131
    %1222 = vmatpush1.bf16.msra.mxu0 %v1130
    %1223 = vmatprep.subr.bf16.mxu0 %v1135
    %1224 = vmatpush1.bf16.msra.mxu0 %v1134
    %1225 = vmatprep.subr.bf16.mxu0 0
    %1226 = vmatpush1.bf16.msra.mxu0 0
    %1227 = vmatprep.subr.bf16.mxu0 0
    %1228 = vmatpush1.bf16.msra.mxu0 0
    %1229 = vmatprep.subr.bf16.mxu0 0
    %1230 = vmatpush1.bf16.msra.mxu0 0
    %1231 = vmatprep.subr.bf16.mxu0 0
    %1232 = vmatpush1.bf16.msra.mxu0 0
    %1233 = vmatprep.subr.bf16.mxu0 0
    %1234 = vmatpush1.bf16.msra.mxu0 0
    %1235 = vmatprep.subr.bf16.mxu0 0
    %1236 = vmatpush1.bf16.msra.mxu0 0
    %1237 = vmatprep.subr.bf16.mxu0 0
    %1238 = vmatpush1.bf16.msra.mxu0 0
    %1239 = vmatprep.subr.bf16.mxu0 0
    %1240 = vmatpush1.bf16.msra.mxu0 0
    %1241 = vmatprep.mubr.bf16.mxu0 0
    %1242 = vmatmul.mubr.bf16.gmra.mrb[0].mxu0 %v1006
    %v1243 = vpop.f32.mrb[0].mxu0
    %v1244 = vadd.f32 0.0, %v1243
    %v1245 = vpop.f32.mrb[0].mxu0
    %v1246 = vadd.f32 0.0, %v1245
    %v1247 = vpop.f32.mrb[0].mxu0
    %v1248 = vpop.f32.mrb[0].mxu0
    %1249 = vdwg.mxu0
    %v1254 = vcombine.low %v1203, %v1205
    %v1255 = vcombine.low %v1244, %v1246
    %v1257 = vunpack.c.l.s4 1966171168
    %v1258 = vunpack.c.0.s8 %v1257
    %v1259 = vlaneseq
    %v1260 = vshrl.u32 %v1259, 7
    %v1261 = vsub.s32 %v1258, %v1260
    %v1262 = vrot.slane %v1254, %v1261
    %v1264 = vunpack.c.l.s4 1966171168
    %v1265 = vunpack.c.0.s8 %v1264
    %v1266 = vlaneseq
    %v1267 = vshrl.u32 %v1266, 7
    %v1268 = vsub.s32 %v1265, %v1267
    %v1269 = vrot.slane %v1255, %v1268
    %v1270 = vcombine.low %v1262, %v1269
    %v1271 = vcombine.high %v1262, %v1269
    %v1273 = vunpack.c.l.s4 1966171168
    %v1274 = vunpack.c.0.s8 %v1273
    %v1275 = vlaneseq
    %v1276 = vshrl.u32 %v1275, 7
    %v1277 = vsub.s32 %v1274, %v1276
    %v1278 = vrot.slane %v1270, %v1277
    %v1280 = vunpack.c.l.s4 1966171168
    %v1281 = vunpack.c.0.s8 %v1280
    %v1282 = vlaneseq
    %v1283 = vshrl.u32 %v1282, 7
    %v1284 = vsub.s32 %v1281, %v1283
    %v1285 = vrot.slane %v1271, %v1284
    %v1288 = vadd.f32 %v962, %v1278
    %v1289 = vadd.f32 %v964, %v1285
    %v1290 = vxor.u32 %v1288, 2147483648
    %v1291 = vxor.u32 %v1289, 2147483648
    %v1292 = vmul.f32 %v1290, 1.442695
    %v1293 = vpow.pop %v1292
    %v1294 = vmul.f32 %v1291, 1.442695
    %v1295 = vpow.pop %v1294
    %v1296 = vadd.f32 %v1293, 1.0
    %v1297 = vadd.f32 %v1295, 1.0
    %v1298 = vrcp.pop %v1296
    %v1299 = vmul.f32 1.0, %v1298
    %v1300 = vrcp.pop %v1297
    %v1301 = vmul.f32 1.0, %v1300
    %v1304 = vrot.slane %v1288, 1
    %v1305 = vrot.slane %v1289, 1
    %v1308 = vxor.u32 %v1304, 2147483648
    %v1309 = vxor.u32 %v1305, 2147483648
    %v1310 = vmul.f32 %v1308, 1.442695
    %v1311 = vpow.pop %v1310
    %v1312 = vmul.f32 %v1309, 1.442695
    %v1313 = vpow.pop %v1312
    %v1314 = vadd.f32 %v1311, 1.0
    %v1315 = vadd.f32 %v1313, 1.0
    %v1316 = vrcp.pop %v1314
    %v1317 = vmul.f32 1.0, %v1316
    %v1318 = vrcp.pop %v1315
    %v1319 = vmul.f32 1.0, %v1318
    %v1320 = vrot.slane %v1288, 2
    %v1321 = vrot.slane %v1289, 2
    %v1324 = vtanh.pop %v1320
    %v1325 = vtanh.pop %v1321
    %v1326 = vrot.slane %v1288, 3
    %v1327 = vrot.slane %v1289, 3
    %v1330 = vxor.u32 %v1326, 2147483648
    %v1331 = vxor.u32 %v1327, 2147483648
    %v1332 = vmul.f32 %v1330, 1.442695
    %v1333 = vpow.pop %v1332
    %v1334 = vmul.f32 %v1331, 1.442695
    %v1335 = vpow.pop %v1334
    %v1336 = vadd.f32 %v1333, 1.0
    %v1337 = vadd.f32 %v1335, 1.0
    %v1338 = vrcp.pop %v1336
    %v1339 = vmul.f32 1.0, %v1338
    %v1340 = vrcp.pop %v1337
    %v1341 = vmul.f32 1.0, %v1340
    %v1342 = vmul.f32 %v1317, %v953
    %v1343 = vmul.f32 %v1319, %v954
    %v1344 = vmul.f32 %v1299, %v1324
    %v1345 = vmul.f32 %v1301, %v1325
    %v1346 = vadd.f32 %v1342, %v1344
    %v1347 = vadd.f32 %v1343, %v1345
    %v1348 = vtanh.pop %v1346
    %v1349 = vtanh.pop %v1347
    %v1350 = vmul.f32 %v1339, %v1348
    %v1351 = vmul.f32 %v1341, %v1349
    %1352 = vst [vmem:[#allocation2 + $0x1] sm:$0x1] %v1350
    %1353 = vst [vmem:[#allocation2 + $0x9] sm:$0x1] %v1351
    %s1354 = scalar_lea.vmem [#allocation3], 2
    %v1355 = vld [vmem:[%s1354] ss:$8 sm:$0xf]
    %s1356 = scalar_lea.vmem [#allocation3], 34
    %v1357 = vld [vmem:[%s1356] ss:$8 sm:$0xf]
    %v1358 = vpack.c.bf16 %v1350, %v1350
    %v1359 = vpack.c.bf16 %v1351, %v1351
    %v1360 = vld [vmem:[#allocation12] sm:$0xff]
    %v1361 = vld [vmem:[#allocation12 + $0x8] sm:$0xff]
    %v1362 = vld [vmem:[#allocation12 + $0x10] sm:$0xff]
    %v1363 = vld [vmem:[#allocation12 + $0x18] sm:$0xff]
    %v1364 = vld [vmem:[#allocation12 + $0x20] sm:$0xff]
    %v1365 = vld [vmem:[#allocation12 + $0x28] sm:$0xff]
    %v1366 = vld [vmem:[#allocation12 + $0x30] sm:$0xff]
    %v1367 = vld [vmem:[#allocation12 + $0x38] sm:$0xff]
    %v1368 = vld [vmem:[#allocation12 + $0x40] sm:$0xff]
    %v1369 = vld [vmem:[#allocation12 + $0x48] sm:$0xff]
    %v1370 = vld [vmem:[#allocation12 + $0x50] sm:$0xff]
    %v1371 = vld [vmem:[#allocation12 + $0x58] sm:$0xff]
    %v1372 = vld [vmem:[#allocation12 + $0x60] sm:$0xff]
    %v1373 = vld [vmem:[#allocation12 + $0x68] sm:$0xff]
    %v1374 = vld [vmem:[#allocation12 + $0x70] sm:$0xff]
    %v1375 = vld [vmem:[#allocation12 + $0x78] sm:$0xff]
    %v1376 = vld [vmem:[#allocation12 + $0x80] sm:$0xff]
    %v1377 = vld [vmem:[#allocation12 + $0x88] sm:$0xff]
    %v1378 = vld [vmem:[#allocation12 + $0x90] sm:$0xff]
    %v1379 = vld [vmem:[#allocation12 + $0x98] sm:$0xff]
    %v1380 = vld [vmem:[#allocation12 + $0xa0] sm:$0xff]
    %v1381 = vld [vmem:[#allocation12 + $0xa8] sm:$0xff]
    %v1382 = vld [vmem:[#allocation12 + $0xb0] sm:$0xff]
    %v1383 = vld [vmem:[#allocation12 + $0xb8] sm:$0xff]
    %v1384 = vld [vmem:[#allocation12 + $0xc0] sm:$0xff]
    %v1385 = vld [vmem:[#allocation12 + $0xc8] sm:$0xff]
    %v1386 = vld [vmem:[#allocation12 + $0xd0] sm:$0xff]
    %v1387 = vld [vmem:[#allocation12 + $0xd8] sm:$0xff]
    %v1388 = vld [vmem:[#allocation12 + $0xe0] sm:$0xff]
    %v1389 = vld [vmem:[#allocation12 + $0xe8] sm:$0xff]
    %v1390 = vld [vmem:[#allocation12 + $0xf0] sm:$0xff]
    %v1391 = vld [vmem:[#allocation12 + $0xf8] sm:$0xff]
    %v1394 = vunpack.c.l.b16 %v1358
    %v1395 = vunpack.c.l.b16 %v1359
    %v1396 = vrot.slane %v1395, 7
    %v1397 = vsel %vm1004, %v1396, %v1394
    %v1398 = vpack.c.b16 %v1397, %v1397
    %v1432 = vunpack.c.l.b16 %v1360
    %v1433 = vunpack.c.h.b16 %v1360
    %v1434 = vunpack.c.l.b16 %v1361
    %v1435 = vunpack.c.h.b16 %v1361
    %v1436 = vunpack.c.l.b16 %v1362
    %v1437 = vunpack.c.h.b16 %v1362
    %v1438 = vunpack.c.l.b16 %v1363
    %v1439 = vunpack.c.h.b16 %v1363
    %v1440 = vunpack.c.l.b16 %v1364
    %v1441 = vunpack.c.h.b16 %v1364
    %v1442 = vunpack.c.l.b16 %v1365
    %v1443 = vunpack.c.h.b16 %v1365
    %v1444 = vunpack.c.l.b16 %v1366
    %v1445 = vunpack.c.h.b16 %v1366
    %v1446 = vunpack.c.l.b16 %v1367
    %v1447 = vunpack.c.h.b16 %v1367
    %v1448 = vunpack.c.l.b16 %v1368
    %v1449 = vunpack.c.h.b16 %v1368
    %v1450 = vunpack.c.l.b16 %v1369
    %v1451 = vunpack.c.h.b16 %v1369
    %v1452 = vunpack.c.l.b16 %v1370
    %v1453 = vunpack.c.h.b16 %v1370
    %v1454 = vunpack.c.l.b16 %v1371
    %v1455 = vunpack.c.h.b16 %v1371
    %v1456 = vunpack.c.l.b16 %v1372
    %v1457 = vunpack.c.h.b16 %v1372
    %v1458 = vunpack.c.l.b16 %v1373
    %v1459 = vunpack.c.h.b16 %v1373
    %v1460 = vunpack.c.l.b16 %v1374
    %v1461 = vunpack.c.h.b16 %v1374
    %v1462 = vunpack.c.l.b16 %v1375
    %v1463 = vunpack.c.h.b16 %v1375
    %v1464 = vunpack.c.l.b16 %v1376
    %v1465 = vunpack.c.h.b16 %v1376
    %v1466 = vunpack.c.l.b16 %v1377
    %v1467 = vunpack.c.h.b16 %v1377
    %v1468 = vunpack.c.l.b16 %v1378
    %v1469 = vunpack.c.h.b16 %v1378
    %v1470 = vunpack.c.l.b16 %v1379
    %v1471 = vunpack.c.h.b16 %v1379
    %v1472 = vunpack.c.l.b16 %v1380
    %v1473 = vunpack.c.h.b16 %v1380
    %v1474 = vunpack.c.l.b16 %v1381
    %v1475 = vunpack.c.h.b16 %v1381
    %v1476 = vunpack.c.l.b16 %v1382
    %v1477 = vunpack.c.h.b16 %v1382
    %v1478 = vunpack.c.l.b16 %v1383
    %v1479 = vunpack.c.h.b16 %v1383
    %v1480 = vunpack.c.l.b16 %v1384
    %v1481 = vunpack.c.h.b16 %v1384
    %v1482 = vunpack.c.l.b16 %v1385
    %v1483 = vunpack.c.h.b16 %v1385
    %v1484 = vunpack.c.l.b16 %v1386
    %v1485 = vunpack.c.h.b16 %v1386
    %v1486 = vunpack.c.l.b16 %v1387
    %v1487 = vunpack.c.h.b16 %v1387
    %v1488 = vunpack.c.l.b16 %v1388
    %v1489 = vunpack.c.h.b16 %v1388
    %v1490 = vunpack.c.l.b16 %v1389
    %v1491 = vunpack.c.h.b16 %v1389
    %v1492 = vunpack.c.l.b16 %v1390
    %v1493 = vunpack.c.h.b16 %v1390
    %v1494 = vunpack.c.l.b16 %v1391
    %v1495 = vunpack.c.h.b16 %v1391
    %v1496 = vpack.c.b16 %v1436, %v1432
    %v1497 = vpack.c.b16 %v1437, %v1433
    %v1498 = vpack.c.b16 %v1438, %v1434
    %v1499 = vpack.c.b16 %v1439, %v1435
    %v1500 = vpack.c.b16 %v1444, %v1440
    %v1501 = vpack.c.b16 %v1445, %v1441
    %v1502 = vpack.c.b16 %v1446, %v1442
    %v1503 = vpack.c.b16 %v1447, %v1443
    %v1504 = vpack.c.b16 %v1452, %v1448
    %v1505 = vpack.c.b16 %v1453, %v1449
    %v1506 = vpack.c.b16 %v1454, %v1450
    %v1507 = vpack.c.b16 %v1455, %v1451
    %v1508 = vpack.c.b16 %v1460, %v1456
    %v1509 = vpack.c.b16 %v1461, %v1457
    %v1510 = vpack.c.b16 %v1462, %v1458
    %v1511 = vpack.c.b16 %v1463, %v1459
    %v1512 = vpack.c.b16 %v1468, %v1464
    %v1513 = vpack.c.b16 %v1469, %v1465
    %v1514 = vpack.c.b16 %v1470, %v1466
    %v1515 = vpack.c.b16 %v1471, %v1467
    %v1516 = vpack.c.b16 %v1476, %v1472
    %v1517 = vpack.c.b16 %v1477, %v1473
    %v1518 = vpack.c.b16 %v1478, %v1474
    %v1519 = vpack.c.b16 %v1479, %v1475
    %v1520 = vpack.c.b16 %v1484, %v1480
    %v1521 = vpack.c.b16 %v1485, %v1481
    %v1522 = vpack.c.b16 %v1486, %v1482
    %v1523 = vpack.c.b16 %v1487, %v1483
    %v1524 = vpack.c.b16 %v1492, %v1488
    %v1525 = vpack.c.b16 %v1493, %v1489
    %v1526 = vpack.c.b16 %v1494, %v1490
    %v1527 = vpack.c.b16 %v1495, %v1491
    %1560 = vmatprep.subr.bf16.mxu0 %v1497
    %1561 = vmatpush1.bf16.msra.mxu0 %v1496
    %1562 = vmatprep.subr.bf16.mxu0 %v1501
    %1563 = vmatpush1.bf16.msra.mxu0 %v1500
    %1564 = vmatprep.subr.bf16.mxu0 %v1505
    %1565 = vmatpush1.bf16.msra.mxu0 %v1504
    %1566 = vmatprep.subr.bf16.mxu0 %v1509
    %1567 = vmatpush1.bf16.msra.mxu0 %v1508
    %1568 = vmatprep.subr.bf16.mxu0 %v1513
    %1569 = vmatpush1.bf16.msra.mxu0 %v1512
    %1570 = vmatprep.subr.bf16.mxu0 %v1517
    %1571 = vmatpush1.bf16.msra.mxu0 %v1516
    %1572 = vmatprep.subr.bf16.mxu0 %v1521
    %1573 = vmatpush1.bf16.msra.mxu0 %v1520
    %1574 = vmatprep.subr.bf16.mxu0 %v1525
    %1575 = vmatpush1.bf16.msra.mxu0 %v1524
    %1576 = vmatprep.subr.bf16.mxu0 0
    %1577 = vmatpush1.bf16.msra.mxu0 0
    %1578 = vmatprep.subr.bf16.mxu0 0
    %1579 = vmatpush1.bf16.msra.mxu0 0
    %1580 = vmatprep.subr.bf16.mxu0 0
    %1581 = vmatpush1.bf16.msra.mxu0 0
    %1582 = vmatprep.subr.bf16.mxu0 0
    %1583 = vmatpush1.bf16.msra.mxu0 0
    %1584 = vmatprep.subr.bf16.mxu0 0
    %1585 = vmatpush1.bf16.msra.mxu0 0
    %1586 = vmatprep.subr.bf16.mxu0 0
    %1587 = vmatpush1.bf16.msra.mxu0 0
    %1588 = vmatprep.subr.bf16.mxu0 0
    %1589 = vmatpush1.bf16.msra.mxu0 0
    %1590 = vmatprep.subr.bf16.mxu0 0
    %1591 = vmatpush1.bf16.msra.mxu0 0
    %1592 = vmatprep.mubr.bf16.mxu0 0
    %1593 = vmatmul.mubr.bf16.gmra.mrb[0].mxu0 %v1398
    %v1594 = vpop.f32.mrb[0].mxu0
    %v1595 = vadd.f32 0.0, %v1594
    %v1596 = vpop.f32.mrb[0].mxu0
    %v1597 = vadd.f32 0.0, %v1596
    %v1598 = vpop.f32.mrb[0].mxu0
    %v1599 = vpop.f32.mrb[0].mxu0
    %1600 = vdwg.mxu0
    %1601 = vmatprep.subr.bf16.mxu0 %v1499
    %1602 = vmatpush1.bf16.msra.mxu0 %v1498
    %1603 = vmatprep.subr.bf16.mxu0 %v1503
    %1604 = vmatpush1.bf16.msra.mxu0 %v1502
    %1605 = vmatprep.subr.bf16.mxu0 %v1507
    %1606 = vmatpush1.bf16.msra.mxu0 %v1506
    %1607 = vmatprep.subr.bf16.mxu0 %v1511
    %1608 = vmatpush1.bf16.msra.mxu0 %v1510
    %1609 = vmatprep.subr.bf16.mxu0 %v1515
    %1610 = vmatpush1.bf16.msra.mxu0 %v1514
    %1611 = vmatprep.subr.bf16.mxu0 %v1519
    %1612 = vmatpush1.bf16.msra.mxu0 %v1518
    %1613 = vmatprep.subr.bf16.mxu0 %v1523
    %1614 = vmatpush1.bf16.msra.mxu0 %v1522
    %1615 = vmatprep.subr.bf16.mxu0 %v1527
    %1616 = vmatpush1.bf16.msra.mxu0 %v1526
    %1617 = vmatprep.subr.bf16.mxu0 0
    %1618 = vmatpush1.bf16.msra.mxu0 0
    %1619 = vmatprep.subr.bf16.mxu0 0
    %1620 = vmatpush1.bf16.msra.mxu0 0
    %1621 = vmatprep.subr.bf16.mxu0 0
    %1622 = vmatpush1.bf16.msra.mxu0 0
    %1623 = vmatprep.subr.bf16.mxu0 0
    %1624 = vmatpush1.bf16.msra.mxu0 0
    %1625 = vmatprep.subr.bf16.mxu0 0
    %1626 = vmatpush1.bf16.msra.mxu0 0
    %1627 = vmatprep.subr.bf16.mxu0 0
    %1628 = vmatpush1.bf16.msra.mxu0 0
    %1629 = vmatprep.subr.bf16.mxu0 0
    %1630 = vmatpush1.bf16.msra.mxu0 0
    %1631 = vmatprep.subr.bf16.mxu0 0
    %1632 = vmatpush1.bf16.msra.mxu0 0
    %1633 = vmatprep.mubr.bf16.mxu0 0
    %1634 = vmatmul.mubr.bf16.gmra.mrb[0].mxu0 %v1398
    %v1635 = vpop.f32.mrb[0].mxu0
    %v1636 = vadd.f32 0.0, %v1635
    %v1637 = vpop.f32.mrb[0].mxu0
    %v1638 = vadd.f32 0.0, %v1637
    %v1639 = vpop.f32.mrb[0].mxu0
    %v1640 = vpop.f32.mrb[0].mxu0
    %1641 = vdwg.mxu0
    %v1646 = vcombine.low %v1595, %v1597
    %v1647 = vcombine.low %v1636, %v1638
    %v1649 = vunpack.c.l.s4 1966171168
    %v1650 = vunpack.c.0.s8 %v1649
    %v1651 = vlaneseq
    %v1652 = vshrl.u32 %v1651, 7
    %v1653 = vsub.s32 %v1650, %v1652
    %v1654 = vrot.slane %v1646, %v1653
    %v1656 = vunpack.c.l.s4 1966171168
    %v1657 = vunpack.c.0.s8 %v1656
    %v1658 = vlaneseq
    %v1659 = vshrl.u32 %v1658, 7
    %v1660 = vsub.s32 %v1657, %v1659
    %v1661 = vrot.slane %v1647, %v1660
    %v1662 = vcombine.low %v1654, %v1661
    %v1663 = vcombine.high %v1654, %v1661
    %v1665 = vunpack.c.l.s4 1966171168
    %v1666 = vunpack.c.0.s8 %v1665
    %v1667 = vlaneseq
    %v1668 = vshrl.u32 %v1667, 7
    %v1669 = vsub.s32 %v1666, %v1668
    %v1670 = vrot.slane %v1662, %v1669
    %v1672 = vunpack.c.l.s4 1966171168
    %v1673 = vunpack.c.0.s8 %v1672
    %v1674 = vlaneseq
    %v1675 = vshrl.u32 %v1674, 7
    %v1676 = vsub.s32 %v1673, %v1675
    %v1677 = vrot.slane %v1663, %v1676
    %v1680 = vadd.f32 %v1355, %v1670
    %v1681 = vadd.f32 %v1357, %v1677
    %v1682 = vxor.u32 %v1680, 2147483648
    %v1683 = vxor.u32 %v1681, 2147483648
    %v1684 = vmul.f32 %v1682, 1.442695
    %v1685 = vpow.pop %v1684
    %v1686 = vmul.f32 %v1683, 1.442695
    %v1687 = vpow.pop %v1686
    %v1688 = vadd.f32 %v1685, 1.0
    %v1689 = vadd.f32 %v1687, 1.0
    %v1690 = vrcp.pop %v1688
    %v1691 = vmul.f32 1.0, %v1690
    %v1692 = vrcp.pop %v1689
    %v1693 = vmul.f32 1.0, %v1692
    %v1696 = vrot.slane %v1680, 1
    %v1697 = vrot.slane %v1681, 1
    %v1700 = vxor.u32 %v1696, 2147483648
    %v1701 = vxor.u32 %v1697, 2147483648
    %v1702 = vmul.f32 %v1700, 1.442695
    %v1703 = vpow.pop %v1702
    %v1704 = vmul.f32 %v1701, 1.442695
    %v1705 = vpow.pop %v1704
    %v1706 = vadd.f32 %v1703, 1.0
    %v1707 = vadd.f32 %v1705, 1.0
    %v1708 = vrcp.pop %v1706
    %v1709 = vmul.f32 1.0, %v1708
    %v1710 = vrcp.pop %v1707
    %v1711 = vmul.f32 1.0, %v1710
    %v1712 = vrot.slane %v1680, 2
    %v1713 = vrot.slane %v1681, 2
    %v1716 = vtanh.pop %v1712
    %v1717 = vtanh.pop %v1713
    %v1718 = vrot.slane %v1680, 3
    %v1719 = vrot.slane %v1681, 3
    %v1722 = vxor.u32 %v1718, 2147483648
    %v1723 = vxor.u32 %v1719, 2147483648
    %v1724 = vmul.f32 %v1722, 1.442695
    %v1725 = vpow.pop %v1724
    %v1726 = vmul.f32 %v1723, 1.442695
    %v1727 = vpow.pop %v1726
    %v1728 = vadd.f32 %v1725, 1.0
    %v1729 = vadd.f32 %v1727, 1.0
    %v1730 = vrcp.pop %v1728
    %v1731 = vmul.f32 1.0, %v1730
    %v1732 = vrcp.pop %v1729
    %v1733 = vmul.f32 1.0, %v1732
    %v1734 = vmul.f32 %v1709, %v1346
    %v1735 = vmul.f32 %v1711, %v1347
    %v1736 = vmul.f32 %v1691, %v1716
    %v1737 = vmul.f32 %v1693, %v1717
    %v1738 = vadd.f32 %v1734, %v1736
    %v1739 = vadd.f32 %v1735, %v1737
    %v1740 = vtanh.pop %v1738
    %v1741 = vtanh.pop %v1739
    %v1742 = vmul.f32 %v1731, %v1740
    %v1743 = vmul.f32 %v1733, %v1741
    %1744 = vst [vmem:[#allocation2 + $0x2] sm:$0x1] %v1742
    %1745 = vst [vmem:[#allocation2 + $0xa] sm:$0x1] %v1743
    %s1746 = scalar_lea.vmem [#allocation3], 3
    %v1747 = vld [vmem:[%s1746] ss:$8 sm:$0xf]
    %s1748 = scalar_lea.vmem [#allocation3], 35
    %v1749 = vld [vmem:[%s1748] ss:$8 sm:$0xf]
    %v1750 = vpack.c.bf16 %v1742, %v1742
    %v1751 = vpack.c.bf16 %v1743, %v1743
    %v1752 = vld [vmem:[#allocation12] sm:$0xff]
    %v1753 = vld [vmem:[#allocation12 + $0x8] sm:$0xff]
    %v1754 = vld [vmem:[#allocation12 + $0x10] sm:$0xff]
    %v1755 = vld [vmem:[#allocation12 + $0x18] sm:$0xff]
    %v1756 = vld [vmem:[#allocation12 + $0x20] sm:$0xff]
    %v1757 = vld [vmem:[#allocation12 + $0x28] sm:$0xff]
    %v1758 = vld [vmem:[#allocation12 + $0x30] sm:$0xff]
    %v1759 = vld [vmem:[#allocation12 + $0x38] sm:$0xff]
    %v1760 = vld [vmem:[#allocation12 + $0x40] sm:$0xff]
    %v1761 = vld [vmem:[#allocation12 + $0x48] sm:$0xff]
    %v1762 = vld [vmem:[#allocation12 + $0x50] sm:$0xff]
    %v1763 = vld [vmem:[#allocation12 + $0x58] sm:$0xff]
    %v1764 = vld [vmem:[#allocation12 + $0x60] sm:$0xff]
    %v1765 = vld [vmem:[#allocation12 + $0x68] sm:$0xff]
    %v1766 = vld [vmem:[#allocation12 + $0x70] sm:$0xff]
    %v1767 = vld [vmem:[#allocation12 + $0x78] sm:$0xff]
    %v1768 = vld [vmem:[#allocation12 + $0x80] sm:$0xff]
    %v1769 = vld [vmem:[#allocation12 + $0x88] sm:$0xff]
    %v1770 = vld [vmem:[#allocation12 + $0x90] sm:$0xff]
    %v1771 = vld [vmem:[#allocation12 + $0x98] sm:$0xff]
    %v1772 = vld [vmem:[#allocation12 + $0xa0] sm:$0xff]
    %v1773 = vld [vmem:[#allocation12 + $0xa8] sm:$0xff]
    %v1774 = vld [vmem:[#allocation12 + $0xb0] sm:$0xff]
    %v1775 = vld [vmem:[#allocation12 + $0xb8] sm:$0xff]
    %v1776 = vld [vmem:[#allocation12 + $0xc0] sm:$0xff]
    %v1777 = vld [vmem:[#allocation12 + $0xc8] sm:$0xff]
    %v1778 = vld [vmem:[#allocation12 + $0xd0] sm:$0xff]
    %v1779 = vld [vmem:[#allocation12 + $0xd8] sm:$0xff]
    %v1780 = vld [vmem:[#allocation12 + $0xe0] sm:$0xff]
    %v1781 = vld [vmem:[#allocation12 + $0xe8] sm:$0xff]
    %v1782 = vld [vmem:[#allocation12 + $0xf0] sm:$0xff]
    %v1783 = vld [vmem:[#allocation12 + $0xf8] sm:$0xff]
    %v1786 = vunpack.c.l.b16 %v1750
    %v1787 = vunpack.c.l.b16 %v1751
    %v1788 = vrot.slane %v1787, 7
    %v1789 = vsel %vm1004, %v1788, %v1786
    %v1790 = vpack.c.b16 %v1789, %v1789
    %v1824 = vunpack.c.l.b16 %v1752
    %v1825 = vunpack.c.h.b16 %v1752
    %v1826 = vunpack.c.l.b16 %v1753
    %v1827 = vunpack.c.h.b16 %v1753
    %v1828 = vunpack.c.l.b16 %v1754
    %v1829 = vunpack.c.h.b16 %v1754
    %v1830 = vunpack.c.l.b16 %v1755
    %v1831 = vunpack.c.h.b16 %v1755
    %v1832 = vunpack.c.l.b16 %v1756
    %v1833 = vunpack.c.h.b16 %v1756
    %v1834 = vunpack.c.l.b16 %v1757
    %v1835 = vunpack.c.h.b16 %v1757
    %v1836 = vunpack.c.l.b16 %v1758
    %v1837 = vunpack.c.h.b16 %v1758
    %v1838 = vunpack.c.l.b16 %v1759
    %v1839 = vunpack.c.h.b16 %v1759
    %v1840 = vunpack.c.l.b16 %v1760
    %v1841 = vunpack.c.h.b16 %v1760
    %v1842 = vunpack.c.l.b16 %v1761
    %v1843 = vunpack.c.h.b16 %v1761
    %v1844 = vunpack.c.l.b16 %v1762
    %v1845 = vunpack.c.h.b16 %v1762
    %v1846 = vunpack.c.l.b16 %v1763
    %v1847 = vunpack.c.h.b16 %v1763
    %v1848 = vunpack.c.l.b16 %v1764
    %v1849 = vunpack.c.h.b16 %v1764
    %v1850 = vunpack.c.l.b16 %v1765
    %v1851 = vunpack.c.h.b16 %v1765
    %v1852 = vunpack.c.l.b16 %v1766
    %v1853 = vunpack.c.h.b16 %v1766
    %v1854 = vunpack.c.l.b16 %v1767
    %v1855 = vunpack.c.h.b16 %v1767
    %v1856 = vunpack.c.l.b16 %v1768
    %v1857 = vunpack.c.h.b16 %v1768
    %v1858 = vunpack.c.l.b16 %v1769
    %v1859 = vunpack.c.h.b16 %v1769
    %v1860 = vunpack.c.l.b16 %v1770
    %v1861 = vunpack.c.h.b16 %v1770
    %v1862 = vunpack.c.l.b16 %v1771
    %v1863 = vunpack.c.h.b16 %v1771
    %v1864 = vunpack.c.l.b16 %v1772
    %v1865 = vunpack.c.h.b16 %v1772
    %v1866 = vunpack.c.l.b16 %v1773
    %v1867 = vunpack.c.h.b16 %v1773
    %v1868 = vunpack.c.l.b16 %v1774
    %v1869 = vunpack.c.h.b16 %v1774
    %v1870 = vunpack.c.l.b16 %v1775
    %v1871 = vunpack.c.h.b16 %v1775
    %v1872 = vunpack.c.l.b16 %v1776
    %v1873 = vunpack.c.h.b16 %v1776
    %v1874 = vunpack.c.l.b16 %v1777
    %v1875 = vunpack.c.h.b16 %v1777
    %v1876 = vunpack.c.l.b16 %v1778
    %v1877 = vunpack.c.h.b16 %v1778
    %v1878 = vunpack.c.l.b16 %v1779
    %v1879 = vunpack.c.h.b16 %v1779
    %v1880 = vunpack.c.l.b16 %v1780
    %v1881 = vunpack.c.h.b16 %v1780
    %v1882 = vunpack.c.l.b16 %v1781
    %v1883 = vunpack.c.h.b16 %v1781
    %v1884 = vunpack.c.l.b16 %v1782
    %v1885 = vunpack.c.h.b16 %v1782
    %v1886 = vunpack.c.l.b16 %v1783
    %v1887 = vunpack.c.h.b16 %v1783
    %v1888 = vpack.c.b16 %v1828, %v1824
    %v1889 = vpack.c.b16 %v1829, %v1825
    %v1890 = vpack.c.b16 %v1830, %v1826
    %v1891 = vpack.c.b16 %v1831, %v1827
    %v1892 = vpack.c.b16 %v1836, %v1832
    %v1893 = vpack.c.b16 %v1837, %v1833
    %v1894 = vpack.c.b16 %v1838, %v1834
    %v1895 = vpack.c.b16 %v1839, %v1835
    %v1896 = vpack.c.b16 %v1844, %v1840
    %v1897 = vpack.c.b16 %v1845, %v1841
    %v1898 = vpack.c.b16 %v1846, %v1842
    %v1899 = vpack.c.b16 %v1847, %v1843
    %v1900 = vpack.c.b16 %v1852, %v1848
    %v1901 = vpack.c.b16 %v1853, %v1849
    %v1902 = vpack.c.b16 %v1854, %v1850
    %v1903 = vpack.c.b16 %v1855, %v1851
    %v1904 = vpack.c.b16 %v1860, %v1856
    %v1905 = vpack.c.b16 %v1861, %v1857
    %v1906 = vpack.c.b16 %v1862, %v1858
    %v1907 = vpack.c.b16 %v1863, %v1859
    %v1908 = vpack.c.b16 %v1868, %v1864
    %v1909 = vpack.c.b16 %v1869, %v1865
    %v1910 = vpack.c.b16 %v1870, %v1866
    %v1911 = vpack.c.b16 %v1871, %v1867
    %v1912 = vpack.c.b16 %v1876, %v1872
    %v1913 = vpack.c.b16 %v1877, %v1873
    %v1914 = vpack.c.b16 %v1878, %v1874
    %v1915 = vpack.c.b16 %v1879, %v1875
    %v1916 = vpack.c.b16 %v1884, %v1880
    %v1917 = vpack.c.b16 %v1885, %v1881
    %v1918 = vpack.c.b16 %v1886, %v1882
    %v1919 = vpack.c.b16 %v1887, %v1883
    %1952 = vmatprep.subr.bf16.mxu0 %v1889
    %1953 = vmatpush1.bf16.msra.mxu0 %v1888
    %1954 = vmatprep.subr.bf16.mxu0 %v1893
    %1955 = vmatpush1.bf16.msra.mxu0 %v1892
    %1956 = vmatprep.subr.bf16.mxu0 %v1897
    %1957 = vmatpush1.bf16.msra.mxu0 %v1896
    %1958 = vmatprep.subr.bf16.mxu0 %v1901
    %1959 = vmatpush1.bf16.msra.mxu0 %v1900
    %1960 = vmatprep.subr.bf16.mxu0 %v1905
    %1961 = vmatpush1.bf16.msra.mxu0 %v1904
    %1962 = vmatprep.subr.bf16.mxu0 %v1909
    %1963 = vmatpush1.bf16.msra.mxu0 %v1908
    %1964 = vmatprep.subr.bf16.mxu0 %v1913
    %1965 = vmatpush1.bf16.msra.mxu0 %v1912
    %1966 = vmatprep.subr.bf16.mxu0 %v1917
    %1967 = vmatpush1.bf16.msra.mxu0 %v1916
    %1968 = vmatprep.subr.bf16.mxu0 0
    %1969 = vmatpush1.bf16.msra.mxu0 0
    %1970 = vmatprep.subr.bf16.mxu0 0
    %1971 = vmatpush1.bf16.msra.mxu0 0
    %1972 = vmatprep.subr.bf16.mxu0 0
    %1973 = vmatpush1.bf16.msra.mxu0 0
    %1974 = vmatprep.subr.bf16.mxu0 0
    %1975 = vmatpush1.bf16.msra.mxu0 0
    %1976 = vmatprep.subr.bf16.mxu0 0
    %1977 = vmatpush1.bf16.msra.mxu0 0
    %1978 = vmatprep.subr.bf16.mxu0 0
    %1979 = vmatpush1.bf16.msra.mxu0 0
    %1980 = vmatprep.subr.bf16.mxu0 0
    %1981 = vmatpush1.bf16.msra.mxu0 0
    %1982 = vmatprep.subr.bf16.mxu0 0
    %1983 = vmatpush1.bf16.msra.mxu0 0
    %1984 = vmatprep.mubr.bf16.mxu0 0
    %1985 = vmatmul.mubr.bf16.gmra.mrb[0].mxu0 %v1790
    %v1986 = vpop.f32.mrb[0].mxu0
    %v1987 = vadd.f32 0.0, %v1986
    %v1988 = vpop.f32.mrb[0].mxu0
    %v1989 = vadd.f32 0.0, %v1988
    %v1990 = vpop.f32.mrb[0].mxu0
    %v1991 = vpop.f32.mrb[0].mxu0
    %1992 = vdwg.mxu0
    %1993 = vmatprep.subr.bf16.mxu0 %v1891
    %1994 = vmatpush1.bf16.msra.mxu0 %v1890
    %1995 = vmatprep.subr.bf16.mxu0 %v1895
    %1996 = vmatpush1.bf16.msra.mxu0 %v1894
    %1997 = vmatprep.subr.bf16.mxu0 %v1899
    %1998 = vmatpush1.bf16.msra.mxu0 %v1898
    %1999 = vmatprep.subr.bf16.mxu0 %v1903
    %2000 = vmatpush1.bf16.msra.mxu0 %v1902
    %2001 = vmatprep.subr.bf16.mxu0 %v1907
    %2002 = vmatpush1.bf16.msra.mxu0 %v1906
    %2003 = vmatprep.subr.bf16.mxu0 %v1911
    %2004 = vmatpush1.bf16.msra.mxu0 %v1910
    %2005 = vmatprep.subr.bf16.mxu0 %v1915
    %2006 = vmatpush1.bf16.msra.mxu0 %v1914
    %2007 = vmatprep.subr.bf16.mxu0 %v1919
    %2008 = vmatpush1.bf16.msra.mxu0 %v1918
    %2009 = vmatprep.subr.bf16.mxu0 0
    %2010 = vmatpush1.bf16.msra.mxu0 0
    %2011 = vmatprep.subr.bf16.mxu0 0
    %2012 = vmatpush1.bf16.msra.mxu0 0
    %2013 = vmatprep.subr.bf16.mxu0 0
    %2014 = vmatpush1.bf16.msra.mxu0 0
    %2015 = vmatprep.subr.bf16.mxu0 0
    %2016 = vmatpush1.bf16.msra.mxu0 0
    %2017 = vmatprep.subr.bf16.mxu0 0
    %2018 = vmatpush1.bf16.msra.mxu0 0
    %2019 = vmatprep.subr.bf16.mxu0 0
    %2020 = vmatpush1.bf16.msra.mxu0 0
    %2021 = vmatprep.subr.bf16.mxu0 0
    %2022 = vmatpush1.bf16.msra.mxu0 0
    %2023 = vmatprep.subr.bf16.mxu0 0
    %2024 = vmatpush1.bf16.msra.mxu0 0
    %2025 = vmatprep.mubr.bf16.mxu0 0
    %2026 = vmatmul.mubr.bf16.gmra.mrb[0].mxu0 %v1790
    %v2027 = vpop.f32.mrb[0].mxu0
    %v2028 = vadd.f32 0.0, %v2027
    %v2029 = vpop.f32.mrb[0].mxu0
    %v2030 = vadd.f32 0.0, %v2029
    %v2031 = vpop.f32.mrb[0].mxu0
    %v2032 = vpop.f32.mrb[0].mxu0
    %2033 = vdwg.mxu0
    %v2038 = vcombine.low %v1987, %v1989
    %v2039 = vcombine.low %v2028, %v2030
    %v2041 = vunpack.c.l.s4 1966171168
    %v2042 = vunpack.c.0.s8 %v2041
    %v2043 = vlaneseq
    %v2044 = vshrl.u32 %v2043, 7
    %v2045 = vsub.s32 %v2042, %v2044
    %v2046 = vrot.slane %v2038, %v2045
    %v2048 = vunpack.c.l.s4 1966171168
    %v2049 = vunpack.c.0.s8 %v2048
    %v2050 = vlaneseq
    %v2051 = vshrl.u32 %v2050, 7
    %v2052 = vsub.s32 %v2049, %v2051
    %v2053 = vrot.slane %v2039, %v2052
    %v2054 = vcombine.low %v2046, %v2053
    %v2055 = vcombine.high %v2046, %v2053
    %v2057 = vunpack.c.l.s4 1966171168
    %v2058 = vunpack.c.0.s8 %v2057
    %v2059 = vlaneseq
    %v2060 = vshrl.u32 %v2059, 7
    %v2061 = vsub.s32 %v2058, %v2060
    %v2062 = vrot.slane %v2054, %v2061
    %v2064 = vunpack.c.l.s4 1966171168
    %v2065 = vunpack.c.0.s8 %v2064
    %v2066 = vlaneseq
    %v2067 = vshrl.u32 %v2066, 7
    %v2068 = vsub.s32 %v2065, %v2067
    %v2069 = vrot.slane %v2055, %v2068
    %v2072 = vadd.f32 %v1747, %v2062
    %v2073 = vadd.f32 %v1749, %v2069
    %v2074 = vxor.u32 %v2072, 2147483648
    %v2075 = vxor.u32 %v2073, 2147483648
    %v2076 = vmul.f32 %v2074, 1.442695
    %v2077 = vpow.pop %v2076
    %v2078 = vmul.f32 %v2075, 1.442695
    %v2079 = vpow.pop %v2078
    %v2080 = vadd.f32 %v2077, 1.0
    %v2081 = vadd.f32 %v2079, 1.0
    %v2082 = vrcp.pop %v2080
    %v2083 = vmul.f32 1.0, %v2082
    %v2084 = vrcp.pop %v2081
    %v2085 = vmul.f32 1.0, %v2084
    %v2088 = vrot.slane %v2072, 1
    %v2089 = vrot.slane %v2073, 1
    %v2092 = vxor.u32 %v2088, 2147483648
    %v2093 = vxor.u32 %v2089, 2147483648
    %v2094 = vmul.f32 %v2092, 1.442695
    %v2095 = vpow.pop %v2094
    %v2096 = vmul.f32 %v2093, 1.442695
    %v2097 = vpow.pop %v2096
    %v2098 = vadd.f32 %v2095, 1.0
    %v2099 = vadd.f32 %v2097, 1.0
    %v2100 = vrcp.pop %v2098
    %v2101 = vmul.f32 1.0, %v2100
    %v2102 = vrcp.pop %v2099
    %v2103 = vmul.f32 1.0, %v2102
    %v2104 = vrot.slane %v2072, 2
    %v2105 = vrot.slane %v2073, 2
    %v2108 = vtanh.pop %v2104
    %v2109 = vtanh.pop %v2105
    %v2110 = vrot.slane %v2072, 3
    %v2111 = vrot.slane %v2073, 3
    %v2114 = vxor.u32 %v2110, 2147483648
    %v2115 = vxor.u32 %v2111, 2147483648
    %v2116 = vmul.f32 %v2114, 1.442695
    %v2117 = vpow.pop %v2116
    %v2118 = vmul.f32 %v2115, 1.442695
    %v2119 = vpow.pop %v2118
    %v2120 = vadd.f32 %v2117, 1.0
    %v2121 = vadd.f32 %v2119, 1.0
    %v2122 = vrcp.pop %v2120
    %v2123 = vmul.f32 1.0, %v2122
    %v2124 = vrcp.pop %v2121
    %v2125 = vmul.f32 1.0, %v2124
    %v2126 = vmul.f32 %v2101, %v1738
    %v2127 = vmul.f32 %v2103, %v1739
    %v2128 = vmul.f32 %v2083, %v2108
    %v2129 = vmul.f32 %v2085, %v2109
    %v2130 = vadd.f32 %v2126, %v2128
    %v2131 = vadd.f32 %v2127, %v2129
    %v2132 = vtanh.pop %v2130
    %v2133 = vtanh.pop %v2131
    %v2134 = vmul.f32 %v2123, %v2132
    %v2135 = vmul.f32 %v2125, %v2133
    %2136 = vst [vmem:[#allocation2 + $0x3] sm:$0x1] %v2134
    %2137 = vst [vmem:[#allocation2 + $0xb] sm:$0x1] %v2135
    %s2138 = scalar_lea.vmem [#allocation3], 4
    %v2139 = vld [vmem:[%s2138] ss:$8 sm:$0xf]
    %s2140 = scalar_lea.vmem [#allocation3], 36
    %v2141 = vld [vmem:[%s2140] ss:$8 sm:$0xf]
    %v2142 = vpack.c.bf16 %v2134, %v2134
    %v2143 = vpack.c.bf16 %v2135, %v2135
    %v2144 = vld [vmem:[#allocation12] sm:$0xff]
    %v2145 = vld [vmem:[#allocation12 + $0x8] sm:$0xff]
    %v2146 = vld [vmem:[#allocation12 + $0x10] sm:$0xff]
    %v2147 = vld [vmem:[#allocation12 + $0x18] sm:$0xff]
    %v2148 = vld [vmem:[#allocation12 + $0x20] sm:$0xff]
    %v2149 = vld [vmem:[#allocation12 + $0x28] sm:$0xff]
    %v2150 = vld [vmem:[#allocation12 + $0x30] sm:$0xff]
    %v2151 = vld [vmem:[#allocation12 + $0x38] sm:$0xff]
    %v2152 = vld [vmem:[#allocation12 + $0x40] sm:$0xff]
    %v2153 = vld [vmem:[#allocation12 + $0x48] sm:$0xff]
    %v2154 = vld [vmem:[#allocation12 + $0x50] sm:$0xff]
    %v2155 = vld [vmem:[#allocation12 + $0x58] sm:$0xff]
    %v2156 = vld [vmem:[#allocation12 + $0x60] sm:$0xff]
    %v2157 = vld [vmem:[#allocation12 + $0x68] sm:$0xff]
    %v2158 = vld [vmem:[#allocation12 + $0x70] sm:$0xff]
    %v2159 = vld [vmem:[#allocation12 + $0x78] sm:$0xff]
    %v2160 = vld [vmem:[#allocation12 + $0x80] sm:$0xff]
    %v2161 = vld [vmem:[#allocation12 + $0x88] sm:$0xff]
    %v2162 = vld [vmem:[#allocation12 + $0x90] sm:$0xff]
    %v2163 = vld [vmem:[#allocation12 + $0x98] sm:$0xff]
    %v2164 = vld [vmem:[#allocation12 + $0xa0] sm:$0xff]
    %v2165 = vld [vmem:[#allocation12 + $0xa8] sm:$0xff]
    %v2166 = vld [vmem:[#allocation12 + $0xb0] sm:$0xff]
    %v2167 = vld [vmem:[#allocation12 + $0xb8] sm:$0xff]
    %v2168 = vld [vmem:[#allocation12 + $0xc0] sm:$0xff]
    %v2169 = vld [vmem:[#allocation12 + $0xc8] sm:$0xff]
    %v2170 = vld [vmem:[#allocation12 + $0xd0] sm:$0xff]
    %v2171 = vld [vmem:[#allocation12 + $0xd8] sm:$0xff]
    %v2172 = vld [vmem:[#allocation12 + $0xe0] sm:$0xff]
    %v2173 = vld [vmem:[#allocation12 + $0xe8] sm:$0xff]
    %v2174 = vld [vmem:[#allocation12 + $0xf0] sm:$0xff]
    %v2175 = vld [vmem:[#allocation12 + $0xf8] sm:$0xff]
    %v2178 = vunpack.c.l.b16 %v2142
    %v2179 = vunpack.c.l.b16 %v2143
    %v2180 = vrot.slane %v2179, 7
    %v2181 = vsel %vm1004, %v2180, %v2178
    %v2182 = vpack.c.b16 %v2181, %v2181
    %v2216 = vunpack.c.l.b16 %v2144
    %v2217 = vunpack.c.h.b16 %v2144
    %v2218 = vunpack.c.l.b16 %v2145
    %v2219 = vunpack.c.h.b16 %v2145
    %v2220 = vunpack.c.l.b16 %v2146
    %v2221 = vunpack.c.h.b16 %v2146
    %v2222 = vunpack.c.l.b16 %v2147
    %v2223 = vunpack.c.h.b16 %v2147
    %v2224 = vunpack.c.l.b16 %v2148
    %v2225 = vunpack.c.h.b16 %v2148
    %v2226 = vunpack.c.l.b16 %v2149
    %v2227 = vunpack.c.h.b16 %v2149
    %v2228 = vunpack.c.l.b16 %v2150
    %v2229 = vunpack.c.h.b16 %v2150
    %v2230 = vunpack.c.l.b16 %v2151
    %v2231 = vunpack.c.h.b16 %v2151
    %v2232 = vunpack.c.l.b16 %v2152
    %v2233 = vunpack.c.h.b16 %v2152
    %v2234 = vunpack.c.l.b16 %v2153
    %v2235 = vunpack.c.h.b16 %v2153
    %v2236 = vunpack.c.l.b16 %v2154
    %v2237 = vunpack.c.h.b16 %v2154
    %v2238 = vunpack.c.l.b16 %v2155
    %v2239 = vunpack.c.h.b16 %v2155
    %v2240 = vunpack.c.l.b16 %v2156
    %v2241 = vunpack.c.h.b16 %v2156
    %v2242 = vunpack.c.l.b16 %v2157
    %v2243 = vunpack.c.h.b16 %v2157
    %v2244 = vunpack.c.l.b16 %v2158
    %v2245 = vunpack.c.h.b16 %v2158
    %v2246 = vunpack.c.l.b16 %v2159
    %v2247 = vunpack.c.h.b16 %v2159
    %v2248 = vunpack.c.l.b16 %v2160
    %v2249 = vunpack.c.h.b16 %v2160
    %v2250 = vunpack.c.l.b16 %v2161
    %v2251 = vunpack.c.h.b16 %v2161
    %v2252 = vunpack.c.l.b16 %v2162
    %v2253 = vunpack.c.h.b16 %v2162
    %v2254 = vunpack.c.l.b16 %v2163
    %v2255 = vunpack.c.h.b16 %v2163
    %v2256 = vunpack.c.l.b16 %v2164
    %v2257 = vunpack.c.h.b16 %v2164
    %v2258 = vunpack.c.l.b16 %v2165
    %v2259 = vunpack.c.h.b16 %v2165
    %v2260 = vunpack.c.l.b16 %v2166
    %v2261 = vunpack.c.h.b16 %v2166
    %v2262 = vunpack.c.l.b16 %v2167
    %v2263 = vunpack.c.h.b16 %v2167
    %v2264 = vunpack.c.l.b16 %v2168
    %v2265 = vunpack.c.h.b16 %v2168
    %v2266 = vunpack.c.l.b16 %v2169
    %v2267 = vunpack.c.h.b16 %v2169
    %v2268 = vunpack.c.l.b16 %v2170
    %v2269 = vunpack.c.h.b16 %v2170
    %v2270 = vunpack.c.l.b16 %v2171
    %v2271 = vunpack.c.h.b16 %v2171
    %v2272 = vunpack.c.l.b16 %v2172
    %v2273 = vunpack.c.h.b16 %v2172
    %v2274 = vunpack.c.l.b16 %v2173
    %v2275 = vunpack.c.h.b16 %v2173
    %v2276 = vunpack.c.l.b16 %v2174
    %v2277 = vunpack.c.h.b16 %v2174
    %v2278 = vunpack.c.l.b16 %v2175
    %v2279 = vunpack.c.h.b16 %v2175
    %v2280 = vpack.c.b16 %v2220, %v2216
    %v2281 = vpack.c.b16 %v2221, %v2217
    %v2282 = vpack.c.b16 %v2222, %v2218
    %v2283 = vpack.c.b16 %v2223, %v2219
    %v2284 = vpack.c.b16 %v2228, %v2224
    %v2285 = vpack.c.b16 %v2229, %v2225
    %v2286 = vpack.c.b16 %v2230, %v2226
    %v2287 = vpack.c.b16 %v2231, %v2227
    %v2288 = vpack.c.b16 %v2236, %v2232
    %v2289 = vpack.c.b16 %v2237, %v2233
    %v2290 = vpack.c.b16 %v2238, %v2234
    %v2291 = vpack.c.b16 %v2239, %v2235
    %v2292 = vpack.c.b16 %v2244, %v2240
    %v2293 = vpack.c.b16 %v2245, %v2241
    %v2294 = vpack.c.b16 %v2246, %v2242
    %v2295 = vpack.c.b16 %v2247, %v2243
    %v2296 = vpack.c.b16 %v2252, %v2248
    %v2297 = vpack.c.b16 %v2253, %v2249
    %v2298 = vpack.c.b16 %v2254, %v2250
    %v2299 = vpack.c.b16 %v2255, %v2251
    %v2300 = vpack.c.b16 %v2260, %v2256
    %v2301 = vpack.c.b16 %v2261, %v2257
    %v2302 = vpack.c.b16 %v2262, %v2258
    %v2303 = vpack.c.b16 %v2263, %v2259
    %v2304 = vpack.c.b16 %v2268, %v2264
    %v2305 = vpack.c.b16 %v2269, %v2265
    %v2306 = vpack.c.b16 %v2270, %v2266
    %v2307 = vpack.c.b16 %v2271, %v2267
    %v2308 = vpack.c.b16 %v2276, %v2272
    %v2309 = vpack.c.b16 %v2277, %v2273
    %v2310 = vpack.c.b16 %v2278, %v2274
    %v2311 = vpack.c.b16 %v2279, %v2275
    %2344 = vmatprep.subr.bf16.mxu0 %v2281
    %2345 = vmatpush1.bf16.msra.mxu0 %v2280
    %2346 = vmatprep.subr.bf16.mxu0 %v2285
    %2347 = vmatpush1.bf16.msra.mxu0 %v2284
    %2348 = vmatprep.subr.bf16.mxu0 %v2289
    %2349 = vmatpush1.bf16.msra.mxu0 %v2288
    %2350 = vmatprep.subr.bf16.mxu0 %v2293
    %2351 = vmatpush1.bf16.msra.mxu0 %v2292
    %2352 = vmatprep.subr.bf16.mxu0 %v2297
    %2353 = vmatpush1.bf16.msra.mxu0 %v2296
    %2354 = vmatprep.subr.bf16.mxu0 %v2301
    %2355 = vmatpush1.bf16.msra.mxu0 %v2300
    %2356 = vmatprep.subr.bf16.mxu0 %v2305
    %2357 = vmatpush1.bf16.msra.mxu0 %v2304
    %2358 = vmatprep.subr.bf16.mxu0 %v2309
    %2359 = vmatpush1.bf16.msra.mxu0 %v2308
    %2360 = vmatprep.subr.bf16.mxu0 0
    %2361 = vmatpush1.bf16.msra.mxu0 0
    %2362 = vmatprep.subr.bf16.mxu0 0
    %2363 = vmatpush1.bf16.msra.mxu0 0
    %2364 = vmatprep.subr.bf16.mxu0 0
    %2365 = vmatpush1.bf16.msra.mxu0 0
    %2366 = vmatprep.subr.bf16.mxu0 0
    %2367 = vmatpush1.bf16.msra.mxu0 0
    %2368 = vmatprep.subr.bf16.mxu0 0
    %2369 = vmatpush1.bf16.msra.mxu0 0
    %2370 = vmatprep.subr.bf16.mxu0 0
    %2371 = vmatpush1.bf16.msra.mxu0 0
    %2372 = vmatprep.subr.bf16.mxu0 0
    %2373 = vmatpush1.bf16.msra.mxu0 0
    %2374 = vmatprep.subr.bf16.mxu0 0
    %2375 = vmatpush1.bf16.msra.mxu0 0
    %2376 = vmatprep.mubr.bf16.mxu0 0
    %2377 = vmatmul.mubr.bf16.gmra.mrb[0].mxu0 %v2182
    %v2378 = vpop.f32.mrb[0].mxu0
    %v2379 = vadd.f32 0.0, %v2378
    %v2380 = vpop.f32.mrb[0].mxu0
    %v2381 = vadd.f32 0.0, %v2380
    %v2382 = vpop.f32.mrb[0].mxu0
    %v2383 = vpop.f32.mrb[0].mxu0
    %2384 = vdwg.mxu0
    %2385 = vmatprep.subr.bf16.mxu0 %v2283
    %2386 = vmatpush1.bf16.msra.mxu0 %v2282
    %2387 = vmatprep.subr.bf16.mxu0 %v2287
    %2388 = vmatpush1.bf16.msra.mxu0 %v2286
    %2389 = vmatprep.subr.bf16.mxu0 %v2291
    %2390 = vmatpush1.bf16.msra.mxu0 %v2290
    %2391 = vmatprep.subr.bf16.mxu0 %v2295
    %2392 = vmatpush1.bf16.msra.mxu0 %v2294
    %2393 = vmatprep.subr.bf16.mxu0 %v2299
    %2394 = vmatpush1.bf16.msra.mxu0 %v2298
    %2395 = vmatprep.subr.bf16.mxu0 %v2303
    %2396 = vmatpush1.bf16.msra.mxu0 %v2302
    %2397 = vmatprep.subr.bf16.mxu0 %v2307
    %2398 = vmatpush1.bf16.msra.mxu0 %v2306
    %2399 = vmatprep.subr.bf16.mxu0 %v2311
    %2400 = vmatpush1.bf16.msra.mxu0 %v2310
    %2401 = vmatprep.subr.bf16.mxu0 0
    %2402 = vmatpush1.bf16.msra.mxu0 0
    %2403 = vmatprep.subr.bf16.mxu0 0
    %2404 = vmatpush1.bf16.msra.mxu0 0
    %2405 = vmatprep.subr.bf16.mxu0 0
    %2406 = vmatpush1.bf16.msra.mxu0 0
    %2407 = vmatprep.subr.bf16.mxu0 0
    %2408 = vmatpush1.bf16.msra.mxu0 0
    %2409 = vmatprep.subr.bf16.mxu0 0
    %2410 = vmatpush1.bf16.msra.mxu0 0
    %2411 = vmatprep.subr.bf16.mxu0 0
    %2412 = vmatpush1.bf16.msra.mxu0 0
    %2413 = vmatprep.subr.bf16.mxu0 0
    %2414 = vmatpush1.bf16.msra.mxu0 0
    %2415 = vmatprep.subr.bf16.mxu0 0
    %2416 = vmatpush1.bf16.msra.mxu0 0
    %2417 = vmatprep.mubr.bf16.mxu0 0
    %2418 = vmatmul.mubr.bf16.gmra.mrb[0].mxu0 %v2182
    %v2419 = vpop.f32.mrb[0].mxu0
    %v2420 = vadd.f32 0.0, %v2419
    %v2421 = vpop.f32.mrb[0].mxu0
    %v2422 = vadd.f32 0.0, %v2421
    %v2423 = vpop.f32.mrb[0].mxu0
    %v2424 = vpop.f32.mrb[0].mxu0
    %2425 = vdwg.mxu0
    %v2430 = vcombine.low %v2379, %v2381
    %v2431 = vcombine.low %v2420, %v2422
    %v2433 = vunpack.c.l.s4 1966171168
    %v2434 = vunpack.c.0.s8 %v2433
    %v2435 = vlaneseq
    %v2436 = vshrl.u32 %v2435, 7
    %v2437 = vsub.s32 %v2434, %v2436
    %v2438 = vrot.slane %v2430, %v2437
    %v2440 = vunpack.c.l.s4 1966171168
    %v2441 = vunpack.c.0.s8 %v2440
    %v2442 = vlaneseq
    %v2443 = vshrl.u32 %v2442, 7
    %v2444 = vsub.s32 %v2441, %v2443
    %v2445 = vrot.slane %v2431, %v2444
    %v2446 = vcombine.low %v2438, %v2445
    %v2447 = vcombine.high %v2438, %v2445
    %v2449 = vunpack.c.l.s4 1966171168
    %v2450 = vunpack.c.0.s8 %v2449
    %v2451 = vlaneseq
    %v2452 = vshrl.u32 %v2451, 7
    %v2453 = vsub.s32 %v2450, %v2452
    %v2454 = vrot.slane %v2446, %v2453
    %v2456 = vunpack.c.l.s4 1966171168
    %v2457 = vunpack.c.0.s8 %v2456
    %v2458 = vlaneseq
    %v2459 = vshrl.u32 %v2458, 7
    %v2460 = vsub.s32 %v2457, %v2459
    %v2461 = vrot.slane %v2447, %v2460
    %v2464 = vadd.f32 %v2139, %v2454
    %v2465 = vadd.f32 %v2141, %v2461
    %v2466 = vxor.u32 %v2464, 2147483648
    %v2467 = vxor.u32 %v2465, 2147483648
    %v2468 = vmul.f32 %v2466, 1.442695
    %v2469 = vpow.pop %v2468
    %v2470 = vmul.f32 %v2467, 1.442695
    %v2471 = vpow.pop %v2470
    %v2472 = vadd.f32 %v2469, 1.0
    %v2473 = vadd.f32 %v2471, 1.0
    %v2474 = vrcp.pop %v2472
    %v2475 = vmul.f32 1.0, %v2474
    %v2476 = vrcp.pop %v2473
    %v2477 = vmul.f32 1.0, %v2476
    %v2480 = vrot.slane %v2464, 1
    %v2481 = vrot.slane %v2465, 1
    %v2484 = vxor.u32 %v2480, 2147483648
    %v2485 = vxor.u32 %v2481, 2147483648
    %v2486 = vmul.f32 %v2484, 1.442695
    %v2487 = vpow.pop %v2486
    %v2488 = vmul.f32 %v2485, 1.442695
    %v2489 = vpow.pop %v2488
    %v2490 = vadd.f32 %v2487, 1.0
    %v2491 = vadd.f32 %v2489, 1.0
    %v2492 = vrcp.pop %v2490
    %v2493 = vmul.f32 1.0, %v2492
    %v2494 = vrcp.pop %v2491
    %v2495 = vmul.f32 1.0, %v2494
    %v2496 = vrot.slane %v2464, 2
    %v2497 = vrot.slane %v2465, 2
    %v2500 = vtanh.pop %v2496
    %v2501 = vtanh.pop %v2497
    %v2502 = vrot.slane %v2464, 3
    %v2503 = vrot.slane %v2465, 3
    %v2506 = vxor.u32 %v2502, 2147483648
    %v2507 = vxor.u32 %v2503, 2147483648
    %v2508 = vmul.f32 %v2506, 1.442695
    %v2509 = vpow.pop %v2508
    %v2510 = vmul.f32 %v2507, 1.442695
    %v2511 = vpow.pop %v2510
    %v2512 = vadd.f32 %v2509, 1.0
    %v2513 = vadd.f32 %v2511, 1.0
    %v2514 = vrcp.pop %v2512
    %v2515 = vmul.f32 1.0, %v2514
    %v2516 = vrcp.pop %v2513
    %v2517 = vmul.f32 1.0, %v2516
    %v2518 = vmul.f32 %v2493, %v2130
    %v2519 = vmul.f32 %v2495, %v2131
    %v2520 = vmul.f32 %v2475, %v2500
    %v2521 = vmul.f32 %v2477, %v2501
    %v2522 = vadd.f32 %v2518, %v2520
    %v2523 = vadd.f32 %v2519, %v2521
    %v2524 = vtanh.pop %v2522
    %v2525 = vtanh.pop %v2523
    %v2526 = vmul.f32 %v2515, %v2524
    %v2527 = vmul.f32 %v2517, %v2525
    %2528 = vst [vmem:[#allocation2 + $0x4] sm:$0x1] %v2526
    %2529 = vst [vmem:[#allocation2 + $0xc] sm:$0x1] %v2527
    %s2530 = scalar_lea.vmem [#allocation3], 5
    %v2531 = vld [vmem:[%s2530] ss:$8 sm:$0xf]
    %s2532 = scalar_lea.vmem [#allocation3], 37
    %v2533 = vld [vmem:[%s2532] ss:$8 sm:$0xf]
    %v2534 = vpack.c.bf16 %v2526, %v2526
    %v2535 = vpack.c.bf16 %v2527, %v2527
    %v2536 = vld [vmem:[#allocation12] sm:$0xff]
    %v2537 = vld [vmem:[#allocation12 + $0x8] sm:$0xff]
    %v2538 = vld [vmem:[#allocation12 + $0x10] sm:$0xff]
    %v2539 = vld [vmem:[#allocation12 + $0x18] sm:$0xff]
    %v2540 = vld [vmem:[#allocation12 + $0x20] sm:$0xff]
    %v2541 = vld [vmem:[#allocation12 + $0x28] sm:$0xff]
    %v2542 = vld [vmem:[#allocation12 + $0x30] sm:$0xff]
    %v2543 = vld [vmem:[#allocation12 + $0x38] sm:$0xff]
    %v2544 = vld [vmem:[#allocation12 + $0x40] sm:$0xff]
    %v2545 = vld [vmem:[#allocation12 + $0x48] sm:$0xff]
    %v2546 = vld [vmem:[#allocation12 + $0x50] sm:$0xff]
    %v2547 = vld [vmem:[#allocation12 + $0x58] sm:$0xff]
    %v2548 = vld [vmem:[#allocation12 + $0x60] sm:$0xff]
    %v2549 = vld [vmem:[#allocation12 + $0x68] sm:$0xff]
    %v2550 = vld [vmem:[#allocation12 + $0x70] sm:$0xff]
    %v2551 = vld [vmem:[#allocation12 + $0x78] sm:$0xff]
    %v2552 = vld [vmem:[#allocation12 + $0x80] sm:$0xff]
    %v2553 = vld [vmem:[#allocation12 + $0x88] sm:$0xff]
    %v2554 = vld [vmem:[#allocation12 + $0x90] sm:$0xff]
    %v2555 = vld [vmem:[#allocation12 + $0x98] sm:$0xff]
    %v2556 = vld [vmem:[#allocation12 + $0xa0] sm:$0xff]
    %v2557 = vld [vmem:[#allocation12 + $0xa8] sm:$0xff]
    %v2558 = vld [vmem:[#allocation12 + $0xb0] sm:$0xff]
    %v2559 = vld [vmem:[#allocation12 + $0xb8] sm:$0xff]
    %v2560 = vld [vmem:[#allocation12 + $0xc0] sm:$0xff]
    %v2561 = vld [vmem:[#allocation12 + $0xc8] sm:$0xff]
    %v2562 = vld [vmem:[#allocation12 + $0xd0] sm:$0xff]
    %v2563 = vld [vmem:[#allocation12 + $0xd8] sm:$0xff]
    %v2564 = vld [vmem:[#allocation12 + $0xe0] sm:$0xff]
    %v2565 = vld [vmem:[#allocation12 + $0xe8] sm:$0xff]
    %v2566 = vld [vmem:[#allocation12 + $0xf0] sm:$0xff]
    %v2567 = vld [vmem:[#allocation12 + $0xf8] sm:$0xff]
    %v2570 = vunpack.c.l.b16 %v2534
    %v2571 = vunpack.c.l.b16 %v2535
    %v2572 = vrot.slane %v2571, 7
    %v2573 = vsel %vm1004, %v2572, %v2570
    %v2574 = vpack.c.b16 %v2573, %v2573
    %v2608 = vunpack.c.l.b16 %v2536
    %v2609 = vunpack.c.h.b16 %v2536
    %v2610 = vunpack.c.l.b16 %v2537
    %v2611 = vunpack.c.h.b16 %v2537
    %v2612 = vunpack.c.l.b16 %v2538
    %v2613 = vunpack.c.h.b16 %v2538
    %v2614 = vunpack.c.l.b16 %v2539
    %v2615 = vunpack.c.h.b16 %v2539
    %v2616 = vunpack.c.l.b16 %v2540
    %v2617 = vunpack.c.h.b16 %v2540
    %v2618 = vunpack.c.l.b16 %v2541
    %v2619 = vunpack.c.h.b16 %v2541
    %v2620 = vunpack.c.l.b16 %v2542
    %v2621 = vunpack.c.h.b16 %v2542
    %v2622 = vunpack.c.l.b16 %v2543
    %v2623 = vunpack.c.h.b16 %v2543
    %v2624 = vunpack.c.l.b16 %v2544
    %v2625 = vunpack.c.h.b16 %v2544
    %v2626 = vunpack.c.l.b16 %v2545
    %v2627 = vunpack.c.h.b16 %v2545
    %v2628 = vunpack.c.l.b16 %v2546
    %v2629 = vunpack.c.h.b16 %v2546
    %v2630 = vunpack.c.l.b16 %v2547
    %v2631 = vunpack.c.h.b16 %v2547
    %v2632 = vunpack.c.l.b16 %v2548
    %v2633 = vunpack.c.h.b16 %v2548
    %v2634 = vunpack.c.l.b16 %v2549
    %v2635 = vunpack.c.h.b16 %v2549
    %v2636 = vunpack.c.l.b16 %v2550
    %v2637 = vunpack.c.h.b16 %v2550
    %v2638 = vunpack.c.l.b16 %v2551
    %v2639 = vunpack.c.h.b16 %v2551
    %v2640 = vunpack.c.l.b16 %v2552
    %v2641 = vunpack.c.h.b16 %v2552
    %v2642 = vunpack.c.l.b16 %v2553
    %v2643 = vunpack.c.h.b16 %v2553
    %v2644 = vunpack.c.l.b16 %v2554
    %v2645 = vunpack.c.h.b16 %v2554
    %v2646 = vunpack.c.l.b16 %v2555
    %v2647 = vunpack.c.h.b16 %v2555
    %v2648 = vunpack.c.l.b16 %v2556
    %v2649 = vunpack.c.h.b16 %v2556
    %v2650 = vunpack.c.l.b16 %v2557
    %v2651 = vunpack.c.h.b16 %v2557
    %v2652 = vunpack.c.l.b16 %v2558
    %v2653 = vunpack.c.h.b16 %v2558
    %v2654 = vunpack.c.l.b16 %v2559
    %v2655 = vunpack.c.h.b16 %v2559
    %v2656 = vunpack.c.l.b16 %v2560
    %v2657 = vunpack.c.h.b16 %v2560
    %v2658 = vunpack.c.l.b16 %v2561
    %v2659 = vunpack.c.h.b16 %v2561
    %v2660 = vunpack.c.l.b16 %v2562
    %v2661 = vunpack.c.h.b16 %v2562
    %v2662 = vunpack.c.l.b16 %v2563
    %v2663 = vunpack.c.h.b16 %v2563
    %v2664 = vunpack.c.l.b16 %v2564
    %v2665 = vunpack.c.h.b16 %v2564
    %v2666 = vunpack.c.l.b16 %v2565
    %v2667 = vunpack.c.h.b16 %v2565
    %v2668 = vunpack.c.l.b16 %v2566
    %v2669 = vunpack.c.h.b16 %v2566
    %v2670 = vunpack.c.l.b16 %v2567
    %v2671 = vunpack.c.h.b16 %v2567
    %v2672 = vpack.c.b16 %v2612, %v2608
    %v2673 = vpack.c.b16 %v2613, %v2609
    %v2674 = vpack.c.b16 %v2614, %v2610
    %v2675 = vpack.c.b16 %v2615, %v2611
    %v2676 = vpack.c.b16 %v2620, %v2616
    %v2677 = vpack.c.b16 %v2621, %v2617
    %v2678 = vpack.c.b16 %v2622, %v2618
    %v2679 = vpack.c.b16 %v2623, %v2619
    %v2680 = vpack.c.b16 %v2628, %v2624
    %v2681 = vpack.c.b16 %v2629, %v2625
    %v2682 = vpack.c.b16 %v2630, %v2626
    %v2683 = vpack.c.b16 %v2631, %v2627
    %v2684 = vpack.c.b16 %v2636, %v2632
    %v2685 = vpack.c.b16 %v2637, %v2633
    %v2686 = vpack.c.b16 %v2638, %v2634
    %v2687 = vpack.c.b16 %v2639, %v2635
    %v2688 = vpack.c.b16 %v2644, %v2640
    %v2689 = vpack.c.b16 %v2645, %v2641
    %v2690 = vpack.c.b16 %v2646, %v2642
    %v2691 = vpack.c.b16 %v2647, %v2643
    %v2692 = vpack.c.b16 %v2652, %v2648
    %v2693 = vpack.c.b16 %v2653, %v2649
    %v2694 = vpack.c.b16 %v2654, %v2650
    %v2695 = vpack.c.b16 %v2655, %v2651
    %v2696 = vpack.c.b16 %v2660, %v2656
    %v2697 = vpack.c.b16 %v2661, %v2657
    %v2698 = vpack.c.b16 %v2662, %v2658
    %v2699 = vpack.c.b16 %v2663, %v2659
    %v2700 = vpack.c.b16 %v2668, %v2664
    %v2701 = vpack.c.b16 %v2669, %v2665
    %v2702 = vpack.c.b16 %v2670, %v2666
    %v2703 = vpack.c.b16 %v2671, %v2667
    %2736 = vmatprep.subr.bf16.mxu0 %v2673
    %2737 = vmatpush1.bf16.msra.mxu0 %v2672
    %2738 = vmatprep.subr.bf16.mxu0 %v2677
    %2739 = vmatpush1.bf16.msra.mxu0 %v2676
    %2740 = vmatprep.subr.bf16.mxu0 %v2681
    %2741 = vmatpush1.bf16.msra.mxu0 %v2680
    %2742 = vmatprep.subr.bf16.mxu0 %v2685
    %2743 = vmatpush1.bf16.msra.mxu0 %v2684
    %2744 = vmatprep.subr.bf16.mxu0 %v2689
    %2745 = vmatpush1.bf16.msra.mxu0 %v2688
    %2746 = vmatprep.subr.bf16.mxu0 %v2693
    %2747 = vmatpush1.bf16.msra.mxu0 %v2692
    %2748 = vmatprep.subr.bf16.mxu0 %v2697
    %2749 = vmatpush1.bf16.msra.mxu0 %v2696
    %2750 = vmatprep.subr.bf16.mxu0 %v2701
    %2751 = vmatpush1.bf16.msra.mxu0 %v2700
    %2752 = vmatprep.subr.bf16.mxu0 0
    %2753 = vmatpush1.bf16.msra.mxu0 0
    %2754 = vmatprep.subr.bf16.mxu0 0
    %2755 = vmatpush1.bf16.msra.mxu0 0
    %2756 = vmatprep.subr.bf16.mxu0 0
    %2757 = vmatpush1.bf16.msra.mxu0 0
    %2758 = vmatprep.subr.bf16.mxu0 0
    %2759 = vmatpush1.bf16.msra.mxu0 0
    %2760 = vmatprep.subr.bf16.mxu0 0
    %2761 = vmatpush1.bf16.msra.mxu0 0
    %2762 = vmatprep.subr.bf16.mxu0 0
    %2763 = vmatpush1.bf16.msra.mxu0 0
    %2764 = vmatprep.subr.bf16.mxu0 0
    %2765 = vmatpush1.bf16.msra.mxu0 0
    %2766 = vmatprep.subr.bf16.mxu0 0
    %2767 = vmatpush1.bf16.msra.mxu0 0
    %2768 = vmatprep.mubr.bf16.mxu0 0
    %2769 = vmatmul.mubr.bf16.gmra.mrb[0].mxu0 %v2574
    %v2770 = vpop.f32.mrb[0].mxu0
    %v2771 = vadd.f32 0.0, %v2770
    %v2772 = vpop.f32.mrb[0].mxu0
    %v2773 = vadd.f32 0.0, %v2772
    %v2774 = vpop.f32.mrb[0].mxu0
    %v2775 = vpop.f32.mrb[0].mxu0
    %2776 = vdwg.mxu0
    %2777 = vmatprep.subr.bf16.mxu0 %v2675
    %2778 = vmatpush1.bf16.msra.mxu0 %v2674
    %2779 = vmatprep.subr.bf16.mxu0 %v2679
    %2780 = vmatpush1.bf16.msra.mxu0 %v2678
    %2781 = vmatprep.subr.bf16.mxu0 %v2683
    %2782 = vmatpush1.bf16.msra.mxu0 %v2682
    %2783 = vmatprep.subr.bf16.mxu0 %v2687
    %2784 = vmatpush1.bf16.msra.mxu0 %v2686
    %2785 = vmatprep.subr.bf16.mxu0 %v2691
    %2786 = vmatpush1.bf16.msra.mxu0 %v2690
    %2787 = vmatprep.subr.bf16.mxu0 %v2695
    %2788 = vmatpush1.bf16.msra.mxu0 %v2694
    %2789 = vmatprep.subr.bf16.mxu0 %v2699
    %2790 = vmatpush1.bf16.msra.mxu0 %v2698
    %2791 = vmatprep.subr.bf16.mxu0 %v2703
    %2792 = vmatpush1.bf16.msra.mxu0 %v2702
    %2793 = vmatprep.subr.bf16.mxu0 0
    %2794 = vmatpush1.bf16.msra.mxu0 0
    %2795 = vmatprep.subr.bf16.mxu0 0
    %2796 = vmatpush1.bf16.msra.mxu0 0
    %2797 = vmatprep.subr.bf16.mxu0 0
    %2798 = vmatpush1.bf16.msra.mxu0 0
    %2799 = vmatprep.subr.bf16.mxu0 0
    %2800 = vmatpush1.bf16.msra.mxu0 0
    %2801 = vmatprep.subr.bf16.mxu0 0
    %2802 = vmatpush1.bf16.msra.mxu0 0
    %2803 = vmatprep.subr.bf16.mxu0 0
    %2804 = vmatpush1.bf16.msra.mxu0 0
    %2805 = vmatprep.subr.bf16.mxu0 0
    %2806 = vmatpush1.bf16.msra.mxu0 0
    %2807 = vmatprep.subr.bf16.mxu0 0
    %2808 = vmatpush1.bf16.msra.mxu0 0
    %2809 = vmatprep.mubr.bf16.mxu0 0
    %2810 = vmatmul.mubr.bf16.gmra.mrb[0].mxu0 %v2574
    %v2811 = vpop.f32.mrb[0].mxu0
    %v2812 = vadd.f32 0.0, %v2811
    %v2813 = vpop.f32.mrb[0].mxu0
    %v2814 = vadd.f32 0.0, %v2813
    %v2815 = vpop.f32.mrb[0].mxu0
    %v2816 = vpop.f32.mrb[0].mxu0
    %2817 = vdwg.mxu0
    %v2822 = vcombine.low %v2771, %v2773
    %v2823 = vcombine.low %v2812, %v2814
    %v2825 = vunpack.c.l.s4 1966171168
    %v2826 = vunpack.c.0.s8 %v2825
    %v2827 = vlaneseq
    %v2828 = vshrl.u32 %v2827, 7
    %v2829 = vsub.s32 %v2826, %v2828
    %v2830 = vrot.slane %v2822, %v2829
    %v2832 = vunpack.c.l.s4 1966171168
    %v2833 = vunpack.c.0.s8 %v2832
    %v2834 = vlaneseq
    %v2835 = vshrl.u32 %v2834, 7
    %v2836 = vsub.s32 %v2833, %v2835
    %v2837 = vrot.slane %v2823, %v2836
    %v2838 = vcombine.low %v2830, %v2837
    %v2839 = vcombine.high %v2830, %v2837
    %v2841 = vunpack.c.l.s4 1966171168
    %v2842 = vunpack.c.0.s8 %v2841
    %v2843 = vlaneseq
    %v2844 = vshrl.u32 %v2843, 7
    %v2845 = vsub.s32 %v2842, %v2844
    %v2846 = vrot.slane %v2838, %v2845
    %v2848 = vunpack.c.l.s4 1966171168
    %v2849 = vunpack.c.0.s8 %v2848
    %v2850 = vlaneseq
    %v2851 = vshrl.u32 %v2850, 7
    %v2852 = vsub.s32 %v2849, %v2851
    %v2853 = vrot.slane %v2839, %v2852
    %v2856 = vadd.f32 %v2531, %v2846
    %v2857 = vadd.f32 %v2533, %v2853
    %v2858 = vxor.u32 %v2856, 2147483648
    %v2859 = vxor.u32 %v2857, 2147483648
    %v2860 = vmul.f32 %v2858, 1.442695
    %v2861 = vpow.pop %v2860
    %v2862 = vmul.f32 %v2859, 1.442695
    %v2863 = vpow.pop %v2862
    %v2864 = vadd.f32 %v2861, 1.0
    %v2865 = vadd.f32 %v2863, 1.0
    %v2866 = vrcp.pop %v2864
    %v2867 = vmul.f32 1.0, %v2866
    %v2868 = vrcp.pop %v2865
    %v2869 = vmul.f32 1.0, %v2868
    %v2872 = vrot.slane %v2856, 1
    %v2873 = vrot.slane %v2857, 1
    %v2876 = vxor.u32 %v2872, 2147483648
    %v2877 = vxor.u32 %v2873, 2147483648
    %v2878 = vmul.f32 %v2876, 1.442695
    %v2879 = vpow.pop %v2878
    %v2880 = vmul.f32 %v2877, 1.442695
    %v2881 = vpow.pop %v2880
    %v2882 = vadd.f32 %v2879, 1.0
    %v2883 = vadd.f32 %v2881, 1.0
    %v2884 = vrcp.pop %v2882
    %v2885 = vmul.f32 1.0, %v2884
    %v2886 = vrcp.pop %v2883
    %v2887 = vmul.f32 1.0, %v2886
    %v2888 = vrot.slane %v2856, 2
    %v2889 = vrot.slane %v2857, 2
    %v2892 = vtanh.pop %v2888
    %v2893 = vtanh.pop %v2889
    %v2894 = vrot.slane %v2856, 3
    %v2895 = vrot.slane %v2857, 3
    %v2898 = vxor.u32 %v2894, 2147483648
    %v2899 = vxor.u32 %v2895, 2147483648
    %v2900 = vmul.f32 %v2898, 1.442695
    %v2901 = vpow.pop %v2900
    %v2902 = vmul.f32 %v2899, 1.442695
    %v2903 = vpow.pop %v2902
    %v2904 = vadd.f32 %v2901, 1.0
    %v2905 = vadd.f32 %v2903, 1.0
    %v2906 = vrcp.pop %v2904
    %v2907 = vmul.f32 1.0, %v2906
    %v2908 = vrcp.pop %v2905
    %v2909 = vmul.f32 1.0, %v2908
    %v2910 = vmul.f32 %v2885, %v2522
    %v2911 = vmul.f32 %v2887, %v2523
    %v2912 = vmul.f32 %v2867, %v2892
    %v2913 = vmul.f32 %v2869, %v2893
    %v2914 = vadd.f32 %v2910, %v2912
    %v2915 = vadd.f32 %v2911, %v2913
    %v2916 = vtanh.pop %v2914
    %v2917 = vtanh.pop %v2915
    %v2918 = vmul.f32 %v2907, %v2916
    %v2919 = vmul.f32 %v2909, %v2917
    %2920 = vst [vmem:[#allocation2 + $0x5] sm:$0x1] %v2918
    %2921 = vst [vmem:[#allocation2 + $0xd] sm:$0x1] %v2919
    %s2922 = scalar_lea.vmem [#allocation3], 6
    %v2923 = vld [vmem:[%s2922] ss:$8 sm:$0xf]
    %s2924 = scalar_lea.vmem [#allocation3], 38
    %v2925 = vld [vmem:[%s2924] ss:$8 sm:$0xf]
    %v2926 = vpack.c.bf16 %v2918, %v2918
    %v2927 = vpack.c.bf16 %v2919, %v2919
    %v2928 = vld [vmem:[#allocation12] sm:$0xff]
    %v2929 = vld [vmem:[#allocation12 + $0x8] sm:$0xff]
    %v2930 = vld [vmem:[#allocation12 + $0x10] sm:$0xff]
    %v2931 = vld [vmem:[#allocation12 + $0x18] sm:$0xff]
    %v2932 = vld [vmem:[#allocation12 + $0x20] sm:$0xff]
    %v2933 = vld [vmem:[#allocation12 + $0x28] sm:$0xff]
    %v2934 = vld [vmem:[#allocation12 + $0x30] sm:$0xff]
    %v2935 = vld [vmem:[#allocation12 + $0x38] sm:$0xff]
    %v2936 = vld [vmem:[#allocation12 + $0x40] sm:$0xff]
    %v2937 = vld [vmem:[#allocation12 + $0x48] sm:$0xff]
    %v2938 = vld [vmem:[#allocation12 + $0x50] sm:$0xff]
    %v2939 = vld [vmem:[#allocation12 + $0x58] sm:$0xff]
    %v2940 = vld [vmem:[#allocation12 + $0x60] sm:$0xff]
    %v2941 = vld [vmem:[#allocation12 + $0x68] sm:$0xff]
    %v2942 = vld [vmem:[#allocation12 + $0x70] sm:$0xff]
    %v2943 = vld [vmem:[#allocation12 + $0x78] sm:$0xff]
    %v2944 = vld [vmem:[#allocation12 + $0x80] sm:$0xff]
    %v2945 = vld [vmem:[#allocation12 + $0x88] sm:$0xff]
    %v2946 = vld [vmem:[#allocation12 + $0x90] sm:$0xff]
    %v2947 = vld [vmem:[#allocation12 + $0x98] sm:$0xff]
    %v2948 = vld [vmem:[#allocation12 + $0xa0] sm:$0xff]
    %v2949 = vld [vmem:[#allocation12 + $0xa8] sm:$0xff]
    %v2950 = vld [vmem:[#allocation12 + $0xb0] sm:$0xff]
    %v2951 = vld [vmem:[#allocation12 + $0xb8] sm:$0xff]
    %v2952 = vld [vmem:[#allocation12 + $0xc0] sm:$0xff]
    %v2953 = vld [vmem:[#allocation12 + $0xc8] sm:$0xff]
    %v2954 = vld [vmem:[#allocation12 + $0xd0] sm:$0xff]
    %v2955 = vld [vmem:[#allocation12 + $0xd8] sm:$0xff]
    %v2956 = vld [vmem:[#allocation12 + $0xe0] sm:$0xff]
    %v2957 = vld [vmem:[#allocation12 + $0xe8] sm:$0xff]
    %v2958 = vld [vmem:[#allocation12 + $0xf0] sm:$0xff]
    %v2959 = vld [vmem:[#allocation12 + $0xf8] sm:$0xff]
    %v2962 = vunpack.c.l.b16 %v2926
    %v2963 = vunpack.c.l.b16 %v2927
    %v2964 = vrot.slane %v2963, 7
    %v2965 = vsel %vm1004, %v2964, %v2962
    %v2966 = vpack.c.b16 %v2965, %v2965
    %v3000 = vunpack.c.l.b16 %v2928
    %v3001 = vunpack.c.h.b16 %v2928
    %v3002 = vunpack.c.l.b16 %v2929
    %v3003 = vunpack.c.h.b16 %v2929
    %v3004 = vunpack.c.l.b16 %v2930
    %v3005 = vunpack.c.h.b16 %v2930
    %v3006 = vunpack.c.l.b16 %v2931
    %v3007 = vunpack.c.h.b16 %v2931
    %v3008 = vunpack.c.l.b16 %v2932
    %v3009 = vunpack.c.h.b16 %v2932
    %v3010 = vunpack.c.l.b16 %v2933
    %v3011 = vunpack.c.h.b16 %v2933
    %v3012 = vunpack.c.l.b16 %v2934
    %v3013 = vunpack.c.h.b16 %v2934
    %v3014 = vunpack.c.l.b16 %v2935
    %v3015 = vunpack.c.h.b16 %v2935
    %v3016 = vunpack.c.l.b16 %v2936
    %v3017 = vunpack.c.h.b16 %v2936
    %v3018 = vunpack.c.l.b16 %v2937
    %v3019 = vunpack.c.h.b16 %v2937
    %v3020 = vunpack.c.l.b16 %v2938
    %v3021 = vunpack.c.h.b16 %v2938
    %v3022 = vunpack.c.l.b16 %v2939
    %v3023 = vunpack.c.h.b16 %v2939
    %v3024 = vunpack.c.l.b16 %v2940
    %v3025 = vunpack.c.h.b16 %v2940
    %v3026 = vunpack.c.l.b16 %v2941
    %v3027 = vunpack.c.h.b16 %v2941
    %v3028 = vunpack.c.l.b16 %v2942
    %v3029 = vunpack.c.h.b16 %v2942
    %v3030 = vunpack.c.l.b16 %v2943
    %v3031 = vunpack.c.h.b16 %v2943
    %v3032 = vunpack.c.l.b16 %v2944
    %v3033 = vunpack.c.h.b16 %v2944
    %v3034 = vunpack.c.l.b16 %v2945
    %v3035 = vunpack.c.h.b16 %v2945
    %v3036 = vunpack.c.l.b16 %v2946
    %v3037 = vunpack.c.h.b16 %v2946
    %v3038 = vunpack.c.l.b16 %v2947
    %v3039 = vunpack.c.h.b16 %v2947
    %v3040 = vunpack.c.l.b16 %v2948
    %v3041 = vunpack.c.h.b16 %v2948
    %v3042 = vunpack.c.l.b16 %v2949
    %v3043 = vunpack.c.h.b16 %v2949
    %v3044 = vunpack.c.l.b16 %v2950
    %v3045 = vunpack.c.h.b16 %v2950
    %v3046 = vunpack.c.l.b16 %v2951
    %v3047 = vunpack.c.h.b16 %v2951
    %v3048 = vunpack.c.l.b16 %v2952
    %v3049 = vunpack.c.h.b16 %v2952
    %v3050 = vunpack.c.l.b16 %v2953
    %v3051 = vunpack.c.h.b16 %v2953
    %v3052 = vunpack.c.l.b16 %v2954
    %v3053 = vunpack.c.h.b16 %v2954
    %v3054 = vunpack.c.l.b16 %v2955
    %v3055 = vunpack.c.h.b16 %v2955
    %v3056 = vunpack.c.l.b16 %v2956
    %v3057 = vunpack.c.h.b16 %v2956
    %v3058 = vunpack.c.l.b16 %v2957
    %v3059 = vunpack.c.h.b16 %v2957
    %v3060 = vunpack.c.l.b16 %v2958
    %v3061 = vunpack.c.h.b16 %v2958
    %v3062 = vunpack.c.l.b16 %v2959
    %v3063 = vunpack.c.h.b16 %v2959
    %v3064 = vpack.c.b16 %v3004, %v3000
    %v3065 = vpack.c.b16 %v3005, %v3001
    %v3066 = vpack.c.b16 %v3006, %v3002
    %v3067 = vpack.c.b16 %v3007, %v3003
    %v3068 = vpack.c.b16 %v3012, %v3008
    %v3069 = vpack.c.b16 %v3013, %v3009
    %v3070 = vpack.c.b16 %v3014, %v3010
    %v3071 = vpack.c.b16 %v3015, %v3011
    %v3072 = vpack.c.b16 %v3020, %v3016
    %v3073 = vpack.c.b16 %v3021, %v3017
    %v3074 = vpack.c.b16 %v3022, %v3018
    %v3075 = vpack.c.b16 %v3023, %v3019
    %v3076 = vpack.c.b16 %v3028, %v3024
    %v3077 = vpack.c.b16 %v3029, %v3025
    %v3078 = vpack.c.b16 %v3030, %v3026
    %v3079 = vpack.c.b16 %v3031, %v3027
    %v3080 = vpack.c.b16 %v3036, %v3032
    %v3081 = vpack.c.b16 %v3037, %v3033
    %v3082 = vpack.c.b16 %v3038, %v3034
    %v3083 = vpack.c.b16 %v3039, %v3035
    %v3084 = vpack.c.b16 %v3044, %v3040
    %v3085 = vpack.c.b16 %v3045, %v3041
    %v3086 = vpack.c.b16 %v3046, %v3042
    %v3087 = vpack.c.b16 %v3047, %v3043
    %v3088 = vpack.c.b16 %v3052, %v3048
    %v3089 = vpack.c.b16 %v3053, %v3049
    %v3090 = vpack.c.b16 %v3054, %v3050
    %v3091 = vpack.c.b16 %v3055, %v3051
    %v3092 = vpack.c.b16 %v3060, %v3056
    %v3093 = vpack.c.b16 %v3061, %v3057
    %v3094 = vpack.c.b16 %v3062, %v3058
    %v3095 = vpack.c.b16 %v3063, %v3059
    %3128 = vmatprep.subr.bf16.mxu0 %v3065
    %3129 = vmatpush1.bf16.msra.mxu0 %v3064
    %3130 = vmatprep.subr.bf16.mxu0 %v3069
    %3131 = vmatpush1.bf16.msra.mxu0 %v3068
    %3132 = vmatprep.subr.bf16.mxu0 %v3073
    %3133 = vmatpush1.bf16.msra.mxu0 %v3072
    %3134 = vmatprep.subr.bf16.mxu0 %v3077
    %3135 = vmatpush1.bf16.msra.mxu0 %v3076
    %3136 = vmatprep.subr.bf16.mxu0 %v3081
    %3137 = vmatpush1.bf16.msra.mxu0 %v3080
    %3138 = vmatprep.subr.bf16.mxu0 %v3085
    %3139 = vmatpush1.bf16.msra.mxu0 %v3084
    %3140 = vmatprep.subr.bf16.mxu0 %v3089
    %3141 = vmatpush1.bf16.msra.mxu0 %v3088
    %3142 = vmatprep.subr.bf16.mxu0 %v3093
    %3143 = vmatpush1.bf16.msra.mxu0 %v3092
    %3144 = vmatprep.subr.bf16.mxu0 0
    %3145 = vmatpush1.bf16.msra.mxu0 0
    %3146 = vmatprep.subr.bf16.mxu0 0
    %3147 = vmatpush1.bf16.msra.mxu0 0
    %3148 = vmatprep.subr.bf16.mxu0 0
    %3149 = vmatpush1.bf16.msra.mxu0 0
    %3150 = vmatprep.subr.bf16.mxu0 0
    %3151 = vmatpush1.bf16.msra.mxu0 0
    %3152 = vmatprep.subr.bf16.mxu0 0
    %3153 = vmatpush1.bf16.msra.mxu0 0
    %3154 = vmatprep.subr.bf16.mxu0 0
    %3155 = vmatpush1.bf16.msra.mxu0 0
    %3156 = vmatprep.subr.bf16.mxu0 0
    %3157 = vmatpush1.bf16.msra.mxu0 0
    %3158 = vmatprep.subr.bf16.mxu0 0
    %3159 = vmatpush1.bf16.msra.mxu0 0
    %3160 = vmatprep.mubr.bf16.mxu0 0
    %3161 = vmatmul.mubr.bf16.gmra.mrb[0].mxu0 %v2966
    %v3162 = vpop.f32.mrb[0].mxu0
    %v3163 = vadd.f32 0.0, %v3162
    %v3164 = vpop.f32.mrb[0].mxu0
    %v3165 = vadd.f32 0.0, %v3164
    %v3166 = vpop.f32.mrb[0].mxu0
    %v3167 = vpop.f32.mrb[0].mxu0
    %3168 = vdwg.mxu0
    %3169 = vmatprep.subr.bf16.mxu0 %v3067
    %3170 = vmatpush1.bf16.msra.mxu0 %v3066
    %3171 = vmatprep.subr.bf16.mxu0 %v3071
    %3172 = vmatpush1.bf16.msra.mxu0 %v3070
    %3173 = vmatprep.subr.bf16.mxu0 %v3075
    %3174 = vmatpush1.bf16.msra.mxu0 %v3074
    %3175 = vmatprep.subr.bf16.mxu0 %v3079
    %3176 = vmatpush1.bf16.msra.mxu0 %v3078
    %3177 = vmatprep.subr.bf16.mxu0 %v3083
    %3178 = vmatpush1.bf16.msra.mxu0 %v3082
    %3179 = vmatprep.subr.bf16.mxu0 %v3087
    %3180 = vmatpush1.bf16.msra.mxu0 %v3086
    %3181 = vmatprep.subr.bf16.mxu0 %v3091
    %3182 = vmatpush1.bf16.msra.mxu0 %v3090
    %3183 = vmatprep.subr.bf16.mxu0 %v3095
    %3184 = vmatpush1.bf16.msra.mxu0 %v3094
    %3185 = vmatprep.subr.bf16.mxu0 0
    %3186 = vmatpush1.bf16.msra.mxu0 0
    %3187 = vmatprep.subr.bf16.mxu0 0
    %3188 = vmatpush1.bf16.msra.mxu0 0
    %3189 = vmatprep.subr.bf16.mxu0 0
    %3190 = vmatpush1.bf16.msra.mxu0 0
    %3191 = vmatprep.subr.bf16.mxu0 0
    %3192 = vmatpush1.bf16.msra.mxu0 0
    %3193 = vmatprep.subr.bf16.mxu0 0
    %3194 = vmatpush1.bf16.msra.mxu0 0
    %3195 = vmatprep.subr.bf16.mxu0 0
    %3196 = vmatpush1.bf16.msra.mxu0 0
    %3197 = vmatprep.subr.bf16.mxu0 0
    %3198 = vmatpush1.bf16.msra.mxu0 0
    %3199 = vmatprep.subr.bf16.mxu0 0
    %3200 = vmatpush1.bf16.msra.mxu0 0
    %3201 = vmatprep.mubr.bf16.mxu0 0
    %3202 = vmatmul.mubr.bf16.gmra.mrb[0].mxu0 %v2966
    %v3203 = vpop.f32.mrb[0].mxu0
    %v3204 = vadd.f32 0.0, %v3203
    %v3205 = vpop.f32.mrb[0].mxu0
    %v3206 = vadd.f32 0.0, %v3205
    %v3207 = vpop.f32.mrb[0].mxu0
    %v3208 = vpop.f32.mrb[0].mxu0
    %3209 = vdwg.mxu0
    %v3214 = vcombine.low %v3163, %v3165
    %v3215 = vcombine.low %v3204, %v3206
    %v3217 = vunpack.c.l.s4 1966171168
    %v3218 = vunpack.c.0.s8 %v3217
    %v3219 = vlaneseq
    %v3220 = vshrl.u32 %v3219, 7
    %v3221 = vsub.s32 %v3218, %v3220
    %v3222 = vrot.slane %v3214, %v3221
    %v3224 = vunpack.c.l.s4 1966171168
    %v3225 = vunpack.c.0.s8 %v3224
    %v3226 = vlaneseq
    %v3227 = vshrl.u32 %v3226, 7
    %v3228 = vsub.s32 %v3225, %v3227
    %v3229 = vrot.slane %v3215, %v3228
    %v3230 = vcombine.low %v3222, %v3229
    %v3231 = vcombine.high %v3222, %v3229
    %v3233 = vunpack.c.l.s4 1966171168
    %v3234 = vunpack.c.0.s8 %v3233
    %v3235 = vlaneseq
    %v3236 = vshrl.u32 %v3235, 7
    %v3237 = vsub.s32 %v3234, %v3236
    %v3238 = vrot.slane %v3230, %v3237
    %v3240 = vunpack.c.l.s4 1966171168
    %v3241 = vunpack.c.0.s8 %v3240
    %v3242 = vlaneseq
    %v3243 = vshrl.u32 %v3242, 7
    %v3244 = vsub.s32 %v3241, %v3243
    %v3245 = vrot.slane %v3231, %v3244
    %v3248 = vadd.f32 %v2923, %v3238
    %v3249 = vadd.f32 %v2925, %v3245
    %v3250 = vxor.u32 %v3248, 2147483648
    %v3251 = vxor.u32 %v3249, 2147483648
    %v3252 = vmul.f32 %v3250, 1.442695
    %v3253 = vpow.pop %v3252
    %v3254 = vmul.f32 %v3251, 1.442695
    %v3255 = vpow.pop %v3254
    %v3256 = vadd.f32 %v3253, 1.0
    %v3257 = vadd.f32 %v3255, 1.0
    %v3258 = vrcp.pop %v3256
    %v3259 = vmul.f32 1.0, %v3258
    %v3260 = vrcp.pop %v3257
    %v3261 = vmul.f32 1.0, %v3260
    %v3264 = vrot.slane %v3248, 1
    %v3265 = vrot.slane %v3249, 1
    %v3268 = vxor.u32 %v3264, 2147483648
    %v3269 = vxor.u32 %v3265, 2147483648
    %v3270 = vmul.f32 %v3268, 1.442695
    %v3271 = vpow.pop %v3270
    %v3272 = vmul.f32 %v3269, 1.442695
    %v3273 = vpow.pop %v3272
    %v3274 = vadd.f32 %v3271, 1.0
    %v3275 = vadd.f32 %v3273, 1.0
    %v3276 = vrcp.pop %v3274
    %v3277 = vmul.f32 1.0, %v3276
    %v3278 = vrcp.pop %v3275
    %v3279 = vmul.f32 1.0, %v3278
    %v3280 = vrot.slane %v3248, 2
    %v3281 = vrot.slane %v3249, 2
    %v3284 = vtanh.pop %v3280
    %v3285 = vtanh.pop %v3281
    %v3286 = vrot.slane %v3248, 3
    %v3287 = vrot.slane %v3249, 3
    %v3290 = vxor.u32 %v3286, 2147483648
    %v3291 = vxor.u32 %v3287, 2147483648
    %v3292 = vmul.f32 %v3290, 1.442695
    %v3293 = vpow.pop %v3292
    %v3294 = vmul.f32 %v3291, 1.442695
    %v3295 = vpow.pop %v3294
    %v3296 = vadd.f32 %v3293, 1.0
    %v3297 = vadd.f32 %v3295, 1.0
    %v3298 = vrcp.pop %v3296
    %v3299 = vmul.f32 1.0, %v3298
    %v3300 = vrcp.pop %v3297
    %v3301 = vmul.f32 1.0, %v3300
    %v3302 = vmul.f32 %v3277, %v2914
    %v3303 = vmul.f32 %v3279, %v2915
    %v3304 = vmul.f32 %v3259, %v3284
    %v3305 = vmul.f32 %v3261, %v3285
    %v3306 = vadd.f32 %v3302, %v3304
    %v3307 = vadd.f32 %v3303, %v3305
    %v3308 = vtanh.pop %v3306
    %v3309 = vtanh.pop %v3307
    %v3310 = vmul.f32 %v3299, %v3308
    %v3311 = vmul.f32 %v3301, %v3309
    %3312 = vst [vmem:[#allocation2 + $0x6] sm:$0x1] %v3310
    %3313 = vst [vmem:[#allocation2 + $0xe] sm:$0x1] %v3311
    %s3314 = scalar_lea.vmem [#allocation3], 7
    %v3315 = vld [vmem:[%s3314] ss:$8 sm:$0xf]
    %s3316 = scalar_lea.vmem [#allocation3], 39
    %v3317 = vld [vmem:[%s3316] ss:$8 sm:$0xf]
    %v3318 = vpack.c.bf16 %v3310, %v3310
    %v3319 = vpack.c.bf16 %v3311, %v3311
    %v3320 = vld [vmem:[#allocation12] sm:$0xff]
    %v3321 = vld [vmem:[#allocation12 + $0x8] sm:$0xff]
    %v3322 = vld [vmem:[#allocation12 + $0x10] sm:$0xff]
    %v3323 = vld [vmem:[#allocation12 + $0x18] sm:$0xff]
    %v3324 = vld [vmem:[#allocation12 + $0x20] sm:$0xff]
    %v3325 = vld [vmem:[#allocation12 + $0x28] sm:$0xff]
    %v3326 = vld [vmem:[#allocation12 + $0x30] sm:$0xff]
    %v3327 = vld [vmem:[#allocation12 + $0x38] sm:$0xff]
    %v3328 = vld [vmem:[#allocation12 + $0x40] sm:$0xff]
    %v3329 = vld [vmem:[#allocation12 + $0x48] sm:$0xff]
    %v3330 = vld [vmem:[#allocation12 + $0x50] sm:$0xff]
    %v3331 = vld [vmem:[#allocation12 + $0x58] sm:$0xff]
    %v3332 = vld [vmem:[#allocation12 + $0x60] sm:$0xff]
    %v3333 = vld [vmem:[#allocation12 + $0x68] sm:$0xff]
    %v3334 = vld [vmem:[#allocation12 + $0x70] sm:$0xff]
    %v3335 = vld [vmem:[#allocation12 + $0x78] sm:$0xff]
    %v3336 = vld [vmem:[#allocation12 + $0x80] sm:$0xff]
    %v3337 = vld [vmem:[#allocation12 + $0x88] sm:$0xff]
    %v3338 = vld [vmem:[#allocation12 + $0x90] sm:$0xff]
    %v3339 = vld [vmem:[#allocation12 + $0x98] sm:$0xff]
    %v3340 = vld [vmem:[#allocation12 + $0xa0] sm:$0xff]
    %v3341 = vld [vmem:[#allocation12 + $0xa8] sm:$0xff]
    %v3342 = vld [vmem:[#allocation12 + $0xb0] sm:$0xff]
    %v3343 = vld [vmem:[#allocation12 + $0xb8] sm:$0xff]
    %v3344 = vld [vmem:[#allocation12 + $0xc0] sm:$0xff]
    %v3345 = vld [vmem:[#allocation12 + $0xc8] sm:$0xff]
    %v3346 = vld [vmem:[#allocation12 + $0xd0] sm:$0xff]
    %v3347 = vld [vmem:[#allocation12 + $0xd8] sm:$0xff]
    %v3348 = vld [vmem:[#allocation12 + $0xe0] sm:$0xff]
    %v3349 = vld [vmem:[#allocation12 + $0xe8] sm:$0xff]
    %v3350 = vld [vmem:[#allocation12 + $0xf0] sm:$0xff]
    %v3351 = vld [vmem:[#allocation12 + $0xf8] sm:$0xff]
    %v3354 = vunpack.c.l.b16 %v3318
    %v3355 = vunpack.c.l.b16 %v3319
    %v3356 = vrot.slane %v3355, 7
    %v3357 = vsel %vm1004, %v3356, %v3354
    %v3358 = vpack.c.b16 %v3357, %v3357
    %v3392 = vunpack.c.l.b16 %v3320
    %v3393 = vunpack.c.h.b16 %v3320
    %v3394 = vunpack.c.l.b16 %v3321
    %v3395 = vunpack.c.h.b16 %v3321
    %v3396 = vunpack.c.l.b16 %v3322
    %v3397 = vunpack.c.h.b16 %v3322
    %v3398 = vunpack.c.l.b16 %v3323
    %v3399 = vunpack.c.h.b16 %v3323
    %v3400 = vunpack.c.l.b16 %v3324
    %v3401 = vunpack.c.h.b16 %v3324
    %v3402 = vunpack.c.l.b16 %v3325
    %v3403 = vunpack.c.h.b16 %v3325
    %v3404 = vunpack.c.l.b16 %v3326
    %v3405 = vunpack.c.h.b16 %v3326
    %v3406 = vunpack.c.l.b16 %v3327
    %v3407 = vunpack.c.h.b16 %v3327
    %v3408 = vunpack.c.l.b16 %v3328
    %v3409 = vunpack.c.h.b16 %v3328
    %v3410 = vunpack.c.l.b16 %v3329
    %v3411 = vunpack.c.h.b16 %v3329
    %v3412 = vunpack.c.l.b16 %v3330
    %v3413 = vunpack.c.h.b16 %v3330
    %v3414 = vunpack.c.l.b16 %v3331
    %v3415 = vunpack.c.h.b16 %v3331
    %v3416 = vunpack.c.l.b16 %v3332
    %v3417 = vunpack.c.h.b16 %v3332
    %v3418 = vunpack.c.l.b16 %v3333
    %v3419 = vunpack.c.h.b16 %v3333
    %v3420 = vunpack.c.l.b16 %v3334
    %v3421 = vunpack.c.h.b16 %v3334
    %v3422 = vunpack.c.l.b16 %v3335
    %v3423 = vunpack.c.h.b16 %v3335
    %v3424 = vunpack.c.l.b16 %v3336
    %v3425 = vunpack.c.h.b16 %v3336
    %v3426 = vunpack.c.l.b16 %v3337
    %v3427 = vunpack.c.h.b16 %v3337
    %v3428 = vunpack.c.l.b16 %v3338
    %v3429 = vunpack.c.h.b16 %v3338
    %v3430 = vunpack.c.l.b16 %v3339
    %v3431 = vunpack.c.h.b16 %v3339
    %v3432 = vunpack.c.l.b16 %v3340
    %v3433 = vunpack.c.h.b16 %v3340
    %v3434 = vunpack.c.l.b16 %v3341
    %v3435 = vunpack.c.h.b16 %v3341
    %v3436 = vunpack.c.l.b16 %v3342
    %v3437 = vunpack.c.h.b16 %v3342
    %v3438 = vunpack.c.l.b16 %v3343
    %v3439 = vunpack.c.h.b16 %v3343
    %v3440 = vunpack.c.l.b16 %v3344
    %v3441 = vunpack.c.h.b16 %v3344
    %v3442 = vunpack.c.l.b16 %v3345
    %v3443 = vunpack.c.h.b16 %v3345
    %v3444 = vunpack.c.l.b16 %v3346
    %v3445 = vunpack.c.h.b16 %v3346
    %v3446 = vunpack.c.l.b16 %v3347
    %v3447 = vunpack.c.h.b16 %v3347
    %v3448 = vunpack.c.l.b16 %v3348
    %v3449 = vunpack.c.h.b16 %v3348
    %v3450 = vunpack.c.l.b16 %v3349
    %v3451 = vunpack.c.h.b16 %v3349
    %v3452 = vunpack.c.l.b16 %v3350
    %v3453 = vunpack.c.h.b16 %v3350
    %v3454 = vunpack.c.l.b16 %v3351
    %v3455 = vunpack.c.h.b16 %v3351
    %v3456 = vpack.c.b16 %v3396, %v3392
    %v3457 = vpack.c.b16 %v3397, %v3393
    %v3458 = vpack.c.b16 %v3398, %v3394
    %v3459 = vpack.c.b16 %v3399, %v3395
    %v3460 = vpack.c.b16 %v3404, %v3400
    %v3461 = vpack.c.b16 %v3405, %v3401
    %v3462 = vpack.c.b16 %v3406, %v3402
    %v3463 = vpack.c.b16 %v3407, %v3403
    %v3464 = vpack.c.b16 %v3412, %v3408
    %v3465 = vpack.c.b16 %v3413, %v3409
    %v3466 = vpack.c.b16 %v3414, %v3410
    %v3467 = vpack.c.b16 %v3415, %v3411
    %v3468 = vpack.c.b16 %v3420, %v3416
    %v3469 = vpack.c.b16 %v3421, %v3417
    %v3470 = vpack.c.b16 %v3422, %v3418
    %v3471 = vpack.c.b16 %v3423, %v3419
    %v3472 = vpack.c.b16 %v3428, %v3424
    %v3473 = vpack.c.b16 %v3429, %v3425
    %v3474 = vpack.c.b16 %v3430, %v3426
    %v3475 = vpack.c.b16 %v3431, %v3427
    %v3476 = vpack.c.b16 %v3436, %v3432
    %v3477 = vpack.c.b16 %v3437, %v3433
    %v3478 = vpack.c.b16 %v3438, %v3434
    %v3479 = vpack.c.b16 %v3439, %v3435
    %v3480 = vpack.c.b16 %v3444, %v3440
    %v3481 = vpack.c.b16 %v3445, %v3441
    %v3482 = vpack.c.b16 %v3446, %v3442
    %v3483 = vpack.c.b16 %v3447, %v3443
    %v3484 = vpack.c.b16 %v3452, %v3448
    %v3485 = vpack.c.b16 %v3453, %v3449
    %v3486 = vpack.c.b16 %v3454, %v3450
    %v3487 = vpack.c.b16 %v3455, %v3451
    %3520 = vmatprep.subr.bf16.mxu0 %v3457
    %3521 = vmatpush1.bf16.msra.mxu0 %v3456
    %3522 = vmatprep.subr.bf16.mxu0 %v3461
    %3523 = vmatpush1.bf16.msra.mxu0 %v3460
    %3524 = vmatprep.subr.bf16.mxu0 %v3465
    %3525 = vmatpush1.bf16.msra.mxu0 %v3464
    %3526 = vmatprep.subr.bf16.mxu0 %v3469
    %3527 = vmatpush1.bf16.msra.mxu0 %v3468
    %3528 = vmatprep.subr.bf16.mxu0 %v3473
    %3529 = vmatpush1.bf16.msra.mxu0 %v3472
    %3530 = vmatprep.subr.bf16.mxu0 %v3477
    %3531 = vmatpush1.bf16.msra.mxu0 %v3476
    %3532 = vmatprep.subr.bf16.mxu0 %v3481
    %3533 = vmatpush1.bf16.msra.mxu0 %v3480
    %3534 = vmatprep.subr.bf16.mxu0 %v3485
    %3535 = vmatpush1.bf16.msra.mxu0 %v3484
    %3536 = vmatprep.subr.bf16.mxu0 0
    %3537 = vmatpush1.bf16.msra.mxu0 0
    %3538 = vmatprep.subr.bf16.mxu0 0
    %3539 = vmatpush1.bf16.msra.mxu0 0
    %3540 = vmatprep.subr.bf16.mxu0 0
    %3541 = vmatpush1.bf16.msra.mxu0 0
    %3542 = vmatprep.subr.bf16.mxu0 0
    %3543 = vmatpush1.bf16.msra.mxu0 0
    %3544 = vmatprep.subr.bf16.mxu0 0
    %3545 = vmatpush1.bf16.msra.mxu0 0
    %3546 = vmatprep.subr.bf16.mxu0 0
    %3547 = vmatpush1.bf16.msra.mxu0 0
    %3548 = vmatprep.subr.bf16.mxu0 0
    %3549 = vmatpush1.bf16.msra.mxu0 0
    %3550 = vmatprep.subr.bf16.mxu0 0
    %3551 = vmatpush1.bf16.msra.mxu0 0
    %3552 = vmatprep.mubr.bf16.mxu0 0
    %3553 = vmatmul.mubr.bf16.gmra.mrb[0].mxu0 %v3358
    %v3554 = vpop.f32.mrb[0].mxu0
    %v3555 = vadd.f32 0.0, %v3554
    %v3556 = vpop.f32.mrb[0].mxu0
    %v3557 = vadd.f32 0.0, %v3556
    %v3558 = vpop.f32.mrb[0].mxu0
    %v3559 = vpop.f32.mrb[0].mxu0
    %3560 = vdwg.mxu0
    %3561 = vmatprep.subr.bf16.mxu0 %v3459
    %3562 = vmatpush1.bf16.msra.mxu0 %v3458
    %3563 = vmatprep.subr.bf16.mxu0 %v3463
    %3564 = vmatpush1.bf16.msra.mxu0 %v3462
    %3565 = vmatprep.subr.bf16.mxu0 %v3467
    %3566 = vmatpush1.bf16.msra.mxu0 %v3466
    %3567 = vmatprep.subr.bf16.mxu0 %v3471
    %3568 = vmatpush1.bf16.msra.mxu0 %v3470
    %3569 = vmatprep.subr.bf16.mxu0 %v3475
    %3570 = vmatpush1.bf16.msra.mxu0 %v3474
    %3571 = vmatprep.subr.bf16.mxu0 %v3479
    %3572 = vmatpush1.bf16.msra.mxu0 %v3478
    %3573 = vmatprep.subr.bf16.mxu0 %v3483
    %3574 = vmatpush1.bf16.msra.mxu0 %v3482
    %3575 = vmatprep.subr.bf16.mxu0 %v3487
    %3576 = vmatpush1.bf16.msra.mxu0 %v3486
    %3577 = vmatprep.subr.bf16.mxu0 0
    %3578 = vmatpush1.bf16.msra.mxu0 0
    %3579 = vmatprep.subr.bf16.mxu0 0
    %3580 = vmatpush1.bf16.msra.mxu0 0
    %3581 = vmatprep.subr.bf16.mxu0 0
    %3582 = vmatpush1.bf16.msra.mxu0 0
    %3583 = vmatprep.subr.bf16.mxu0 0
    %3584 = vmatpush1.bf16.msra.mxu0 0
    %3585 = vmatprep.subr.bf16.mxu0 0
    %3586 = vmatpush1.bf16.msra.mxu0 0
    %3587 = vmatprep.subr.bf16.mxu0 0
    %3588 = vmatpush1.bf16.msra.mxu0 0
    %3589 = vmatprep.subr.bf16.mxu0 0
    %3590 = vmatpush1.bf16.msra.mxu0 0
    %3591 = vmatprep.subr.bf16.mxu0 0
    %3592 = vmatpush1.bf16.msra.mxu0 0
    %3593 = vmatprep.mubr.bf16.mxu0 0
    %3594 = vmatmul.mubr.bf16.gmra.mrb[0].mxu0 %v3358
    %v3595 = vpop.f32.mrb[0].mxu0
    %v3596 = vadd.f32 0.0, %v3595
    %v3597 = vpop.f32.mrb[0].mxu0
    %v3598 = vadd.f32 0.0, %v3597
    %v3599 = vpop.f32.mrb[0].mxu0
    %v3600 = vpop.f32.mrb[0].mxu0
    %3601 = vdwg.mxu0
    %v3606 = vcombine.low %v3555, %v3557
    %v3607 = vcombine.low %v3596, %v3598
    %v3609 = vunpack.c.l.s4 1966171168
    %v3610 = vunpack.c.0.s8 %v3609
    %v3611 = vlaneseq
    %v3612 = vshrl.u32 %v3611, 7
    %v3613 = vsub.s32 %v3610, %v3612
    %v3614 = vrot.slane %v3606, %v3613
    %v3616 = vunpack.c.l.s4 1966171168
    %v3617 = vunpack.c.0.s8 %v3616
    %v3618 = vlaneseq
    %v3619 = vshrl.u32 %v3618, 7
    %v3620 = vsub.s32 %v3617, %v3619
    %v3621 = vrot.slane %v3607, %v3620
    %v3622 = vcombine.low %v3614, %v3621
    %v3623 = vcombine.high %v3614, %v3621
    %v3625 = vunpack.c.l.s4 1966171168
    %v3626 = vunpack.c.0.s8 %v3625
    %v3627 = vlaneseq
    %v3628 = vshrl.u32 %v3627, 7
    %v3629 = vsub.s32 %v3626, %v3628
    %v3630 = vrot.slane %v3622, %v3629
    %v3632 = vunpack.c.l.s4 1966171168
    %v3633 = vunpack.c.0.s8 %v3632
    %v3634 = vlaneseq
    %v3635 = vshrl.u32 %v3634, 7
    %v3636 = vsub.s32 %v3633, %v3635
    %v3637 = vrot.slane %v3623, %v3636
    %v3640 = vadd.f32 %v3315, %v3630
    %v3641 = vadd.f32 %v3317, %v3637
    %v3642 = vxor.u32 %v3640, 2147483648
    %v3643 = vxor.u32 %v3641, 2147483648
    %v3644 = vmul.f32 %v3642, 1.442695
    %v3645 = vpow.pop %v3644
    %v3646 = vmul.f32 %v3643, 1.442695
    %v3647 = vpow.pop %v3646
    %v3648 = vadd.f32 %v3645, 1.0
    %v3649 = vadd.f32 %v3647, 1.0
    %v3650 = vrcp.pop %v3648
    %v3651 = vmul.f32 1.0, %v3650
    %v3652 = vrcp.pop %v3649
    %v3653 = vmul.f32 1.0, %v3652
    %v3656 = vrot.slane %v3640, 1
    %v3657 = vrot.slane %v3641, 1
    %v3660 = vxor.u32 %v3656, 2147483648
    %v3661 = vxor.u32 %v3657, 2147483648
    %v3662 = vmul.f32 %v3660, 1.442695
    %v3663 = vpow.pop %v3662
    %v3664 = vmul.f32 %v3661, 1.442695
    %v3665 = vpow.pop %v3664
    %v3666 = vadd.f32 %v3663, 1.0
    %v3667 = vadd.f32 %v3665, 1.0
    %v3668 = vrcp.pop %v3666
    %v3669 = vmul.f32 1.0, %v3668
    %v3670 = vrcp.pop %v3667
    %v3671 = vmul.f32 1.0, %v3670
    %v3672 = vrot.slane %v3640, 2
    %v3673 = vrot.slane %v3641, 2
    %v3676 = vtanh.pop %v3672
    %v3677 = vtanh.pop %v3673
    %v3678 = vrot.slane %v3640, 3
    %v3679 = vrot.slane %v3641, 3
    %v3682 = vxor.u32 %v3678, 2147483648
    %v3683 = vxor.u32 %v3679, 2147483648
    %v3684 = vmul.f32 %v3682, 1.442695
    %v3685 = vpow.pop %v3684
    %v3686 = vmul.f32 %v3683, 1.442695
    %v3687 = vpow.pop %v3686
    %v3688 = vadd.f32 %v3685, 1.0
    %v3689 = vadd.f32 %v3687, 1.0
    %v3690 = vrcp.pop %v3688
    %v3691 = vmul.f32 1.0, %v3690
    %v3692 = vrcp.pop %v3689
    %v3693 = vmul.f32 1.0, %v3692
    %v3694 = vmul.f32 %v3669, %v3306
    %v3695 = vmul.f32 %v3671, %v3307
    %v3696 = vmul.f32 %v3651, %v3676
    %v3697 = vmul.f32 %v3653, %v3677
    %v3698 = vadd.f32 %v3694, %v3696
    %v3699 = vadd.f32 %v3695, %v3697
    %v3700 = vtanh.pop %v3698
    %v3701 = vtanh.pop %v3699
    %v3702 = vmul.f32 %v3691, %v3700
    %v3703 = vmul.f32 %v3693, %v3701
    %3704 = vst [vmem:[#allocation2 + $0x7] sm:$0x1] %v3702
    %3705 = vst [vmem:[#allocation2 + $0xf] sm:$0x1] %v3703
    %v3706 = vld [vmem:[#allocation2] sm:$0xff]
    %v3707 = vld [vmem:[#allocation2 + $0x8] sm:$0xff]
    %v3708 = vpack.c.bf16 %v3707, %v3706
    %s3709 = scalar_lea.vmem [#allocation10], 256
    %v3710 = vld [vmem:[%s3709] sm:$0xff]
    %v3711 = vld [vmem:[%s3709 + $0x8] sm:$0xff]
    %v3712 = vld [vmem:[%s3709 + $0x10] sm:$0xff]
    %v3713 = vld [vmem:[%s3709 + $0x18] sm:$0xff]
    %v3714 = vld [vmem:[%s3709 + $0x20] sm:$0xff]
    %v3715 = vld [vmem:[%s3709 + $0x28] sm:$0xff]
    %v3716 = vld [vmem:[%s3709 + $0x30] sm:$0xff]
    %v3717 = vld [vmem:[%s3709 + $0x38] sm:$0xff]
    %v3718 = vld [vmem:[%s3709 + $0x40] sm:$0xff]
    %v3719 = vld [vmem:[%s3709 + $0x48] sm:$0xff]
    %v3720 = vld [vmem:[%s3709 + $0x50] sm:$0xff]
    %v3721 = vld [vmem:[%s3709 + $0x58] sm:$0xff]
    %v3722 = vld [vmem:[%s3709 + $0x60] sm:$0xff]
    %v3723 = vld [vmem:[%s3709 + $0x68] sm:$0xff]
    %v3724 = vld [vmem:[%s3709 + $0x70] sm:$0xff]
    %v3725 = vld [vmem:[%s3709 + $0x78] sm:$0xff]
    %v3726 = vld [vmem:[%s3709 + $0x80] sm:$0xff]
    %v3727 = vld [vmem:[%s3709 + $0x88] sm:$0xff]
    %v3728 = vld [vmem:[%s3709 + $0x90] sm:$0xff]
    %v3729 = vld [vmem:[%s3709 + $0x98] sm:$0xff]
    %v3730 = vld [vmem:[%s3709 + $0xa0] sm:$0xff]
    %v3731 = vld [vmem:[%s3709 + $0xa8] sm:$0xff]
    %v3732 = vld [vmem:[%s3709 + $0xb0] sm:$0xff]
    %v3733 = vld [vmem:[%s3709 + $0xb8] sm:$0xff]
    %v3734 = vld [vmem:[%s3709 + $0xc0] sm:$0xff]
    %v3735 = vld [vmem:[%s3709 + $0xc8] sm:$0xff]
    %v3736 = vld [vmem:[%s3709 + $0xd0] sm:$0xff]
    %v3737 = vld [vmem:[%s3709 + $0xd8] sm:$0xff]
    %v3738 = vld [vmem:[%s3709 + $0xe0] sm:$0xff]
    %v3739 = vld [vmem:[%s3709 + $0xe8] sm:$0xff]
    %v3740 = vld [vmem:[%s3709 + $0xf0] sm:$0xff]
    %v3741 = vld [vmem:[%s3709 + $0xf8] sm:$0xff]
    %s3742 = scalar_lea.vmem [#allocation13], 4
    %v3743 = vld [vmem:[%s3742] sm:$0xf]
    %v3745 = vlaneseq
    %v3746 = vshrl.u32 %v3745, 7
    %v3747 = vsub.s32 0, %v3746
    %v3748 = vrot.slane %v3743, %v3747
    %v3749 = vlaneseq
    %v3750 = vshrl.u32 %v3749, 7
    %v3751 = vsub.s32 1, %v3750
    %v3752 = vrot.slane %v3743, %v3751
    %v3753 = vlaneseq
    %v3754 = vshrl.u32 %v3753, 7
    %v3755 = vsub.s32 2, %v3754
    %v3756 = vrot.slane %v3743, %v3755
    %v3757 = vlaneseq
    %v3758 = vshrl.u32 %v3757, 7
    %v3759 = vsub.s32 3, %v3758
    %v3760 = vrot.slane %v3743, %v3759
    %v3797 = vunpack.c.l.b16 %v3710
    %v3798 = vunpack.c.h.b16 %v3710
    %v3799 = vunpack.c.l.b16 %v3711
    %v3800 = vunpack.c.h.b16 %v3711
    %v3801 = vunpack.c.l.b16 %v3712
    %v3802 = vunpack.c.h.b16 %v3712
    %v3803 = vunpack.c.l.b16 %v3713
    %v3804 = vunpack.c.h.b16 %v3713
    %v3805 = vunpack.c.l.b16 %v3714
    %v3806 = vunpack.c.h.b16 %v3714
    %v3807 = vunpack.c.l.b16 %v3715
    %v3808 = vunpack.c.h.b16 %v3715
    %v3809 = vunpack.c.l.b16 %v3716
    %v3810 = vunpack.c.h.b16 %v3716
    %v3811 = vunpack.c.l.b16 %v3717
    %v3812 = vunpack.c.h.b16 %v3717
    %v3813 = vunpack.c.l.b16 %v3718
    %v3814 = vunpack.c.h.b16 %v3718
    %v3815 = vunpack.c.l.b16 %v3719
    %v3816 = vunpack.c.h.b16 %v3719
    %v3817 = vunpack.c.l.b16 %v3720
    %v3818 = vunpack.c.h.b16 %v3720
    %v3819 = vunpack.c.l.b16 %v3721
    %v3820 = vunpack.c.h.b16 %v3721
    %v3821 = vunpack.c.l.b16 %v3722
    %v3822 = vunpack.c.h.b16 %v3722
    %v3823 = vunpack.c.l.b16 %v3723
    %v3824 = vunpack.c.h.b16 %v3723
    %v3825 = vunpack.c.l.b16 %v3724
    %v3826 = vunpack.c.h.b16 %v3724
    %v3827 = vunpack.c.l.b16 %v3725
    %v3828 = vunpack.c.h.b16 %v3725
    %v3829 = vunpack.c.l.b16 %v3726
    %v3830 = vunpack.c.h.b16 %v3726
    %v3831 = vunpack.c.l.b16 %v3727
    %v3832 = vunpack.c.h.b16 %v3727
    %v3833 = vunpack.c.l.b16 %v3728
    %v3834 = vunpack.c.h.b16 %v3728
    %v3835 = vunpack.c.l.b16 %v3729
    %v3836 = vunpack.c.h.b16 %v3729
    %v3837 = vunpack.c.l.b16 %v3730
    %v3838 = vunpack.c.h.b16 %v3730
    %v3839 = vunpack.c.l.b16 %v3731
    %v3840 = vunpack.c.h.b16 %v3731
    %v3841 = vunpack.c.l.b16 %v3732
    %v3842 = vunpack.c.h.b16 %v3732
    %v3843 = vunpack.c.l.b16 %v3733
    %v3844 = vunpack.c.h.b16 %v3733
    %v3845 = vunpack.c.l.b16 %v3734
    %v3846 = vunpack.c.h.b16 %v3734
    %v3847 = vunpack.c.l.b16 %v3735
    %v3848 = vunpack.c.h.b16 %v3735
    %v3849 = vunpack.c.l.b16 %v3736
    %v3850 = vunpack.c.h.b16 %v3736
    %v3851 = vunpack.c.l.b16 %v3737
    %v3852 = vunpack.c.h.b16 %v3737
    %v3853 = vunpack.c.l.b16 %v3738
    %v3854 = vunpack.c.h.b16 %v3738
    %v3855 = vunpack.c.l.b16 %v3739
    %v3856 = vunpack.c.h.b16 %v3739
    %v3857 = vunpack.c.l.b16 %v3740
    %v3858 = vunpack.c.h.b16 %v3740
    %v3859 = vunpack.c.l.b16 %v3741
    %v3860 = vunpack.c.h.b16 %v3741
    %v3861 = vpack.c.b16 %v3801, %v3797
    %v3862 = vpack.c.b16 %v3802, %v3798
    %v3863 = vpack.c.b16 %v3803, %v3799
    %v3864 = vpack.c.b16 %v3804, %v3800
    %v3865 = vpack.c.b16 %v3809, %v3805
    %v3866 = vpack.c.b16 %v3810, %v3806
    %v3867 = vpack.c.b16 %v3811, %v3807
    %v3868 = vpack.c.b16 %v3812, %v3808
    %v3869 = vpack.c.b16 %v3817, %v3813
    %v3870 = vpack.c.b16 %v3818, %v3814
    %v3871 = vpack.c.b16 %v3819, %v3815
    %v3872 = vpack.c.b16 %v3820, %v3816
    %v3873 = vpack.c.b16 %v3825, %v3821
    %v3874 = vpack.c.b16 %v3826, %v3822
    %v3875 = vpack.c.b16 %v3827, %v3823
    %v3876 = vpack.c.b16 %v3828, %v3824
    %v3877 = vpack.c.b16 %v3833, %v3829
    %v3878 = vpack.c.b16 %v3834, %v3830
    %v3879 = vpack.c.b16 %v3835, %v3831
    %v3880 = vpack.c.b16 %v3836, %v3832
    %v3881 = vpack.c.b16 %v3841, %v3837
    %v3882 = vpack.c.b16 %v3842, %v3838
    %v3883 = vpack.c.b16 %v3843, %v3839
    %v3884 = vpack.c.b16 %v3844, %v3840
    %v3885 = vpack.c.b16 %v3849, %v3845
    %v3886 = vpack.c.b16 %v3850, %v3846
    %v3887 = vpack.c.b16 %v3851, %v3847
    %v3888 = vpack.c.b16 %v3852, %v3848
    %v3889 = vpack.c.b16 %v3857, %v3853
    %v3890 = vpack.c.b16 %v3858, %v3854
    %v3891 = vpack.c.b16 %v3859, %v3855
    %v3892 = vpack.c.b16 %v3860, %v3856
    %3925 = vmatprep.subr.bf16.mxu0 %v3862
    %3926 = vmatpush1.bf16.msra.mxu0 %v3861
    %3927 = vmatprep.subr.bf16.mxu0 %v3866
    %3928 = vmatpush1.bf16.msra.mxu0 %v3865
    %3929 = vmatprep.subr.bf16.mxu0 %v3870
    %3930 = vmatpush1.bf16.msra.mxu0 %v3869
    %3931 = vmatprep.subr.bf16.mxu0 %v3874
    %3932 = vmatpush1.bf16.msra.mxu0 %v3873
    %3933 = vmatprep.subr.bf16.mxu0 %v3878
    %3934 = vmatpush1.bf16.msra.mxu0 %v3877
    %3935 = vmatprep.subr.bf16.mxu0 %v3882
    %3936 = vmatpush1.bf16.msra.mxu0 %v3881
    %3937 = vmatprep.subr.bf16.mxu0 %v3886
    %3938 = vmatpush1.bf16.msra.mxu0 %v3885
    %3939 = vmatprep.subr.bf16.mxu0 %v3890
    %3940 = vmatpush1.bf16.msra.mxu0 %v3889
    %3941 = vmatprep.subr.bf16.mxu0 0
    %3942 = vmatpush1.bf16.msra.mxu0 0
    %3943 = vmatprep.subr.bf16.mxu0 0
    %3944 = vmatpush1.bf16.msra.mxu0 0
    %3945 = vmatprep.subr.bf16.mxu0 0
    %3946 = vmatpush1.bf16.msra.mxu0 0
    %3947 = vmatprep.subr.bf16.mxu0 0
    %3948 = vmatpush1.bf16.msra.mxu0 0
    %3949 = vmatprep.subr.bf16.mxu0 0
    %3950 = vmatpush1.bf16.msra.mxu0 0
    %3951 = vmatprep.subr.bf16.mxu0 0
    %3952 = vmatpush1.bf16.msra.mxu0 0
    %3953 = vmatprep.subr.bf16.mxu0 0
    %3954 = vmatpush1.bf16.msra.mxu0 0
    %3955 = vmatprep.subr.bf16.mxu0 0
    %3956 = vmatpush1.bf16.msra.mxu0 0
    %3957 = vmatprep.mubr.bf16.mxu0 0
    %3958 = vmatmul.mubr.bf16.gmra.mrb[0].mxu0 %v3708
    %v3959 = vpop.f32.mrb[0].mxu0
    %v3960 = vadd.f32 %v3748, %v3959
    %v3961 = vpop.f32.mrb[0].mxu0
    %v3962 = vadd.f32 %v3752, %v3961
    %v3963 = vpop.f32.mrb[0].mxu0
    %v3964 = vadd.f32 %v3748, %v3963
    %v3965 = vpop.f32.mrb[0].mxu0
    %v3966 = vadd.f32 %v3752, %v3965
    %3967 = vdwg.mxu0
    %3968 = vmatprep.subr.bf16.mxu0 %v3864
    %3969 = vmatpush1.bf16.msra.mxu0 %v3863
    %3970 = vmatprep.subr.bf16.mxu0 %v3868
    %3971 = vmatpush1.bf16.msra.mxu0 %v3867
    %3972 = vmatprep.subr.bf16.mxu0 %v3872
    %3973 = vmatpush1.bf16.msra.mxu0 %v3871
    %3974 = vmatprep.subr.bf16.mxu0 %v3876
    %3975 = vmatpush1.bf16.msra.mxu0 %v3875
    %3976 = vmatprep.subr.bf16.mxu0 %v3880
    %3977 = vmatpush1.bf16.msra.mxu0 %v3879
    %3978 = vmatprep.subr.bf16.mxu0 %v3884
    %3979 = vmatpush1.bf16.msra.mxu0 %v3883
    %3980 = vmatprep.subr.bf16.mxu0 %v3888
    %3981 = vmatpush1.bf16.msra.mxu0 %v3887
    %3982 = vmatprep.subr.bf16.mxu0 %v3892
    %3983 = vmatpush1.bf16.msra.mxu0 %v3891
    %3984 = vmatprep.subr.bf16.mxu0 0
    %3985 = vmatpush1.bf16.msra.mxu0 0
    %3986 = vmatprep.subr.bf16.mxu0 0
    %3987 = vmatpush1.bf16.msra.mxu0 0
    %3988 = vmatprep.subr.bf16.mxu0 0
    %3989 = vmatpush1.bf16.msra.mxu0 0
    %3990 = vmatprep.subr.bf16.mxu0 0
    %3991 = vmatpush1.bf16.msra.mxu0 0
    %3992 = vmatprep.subr.bf16.mxu0 0
    %3993 = vmatpush1.bf16.msra.mxu0 0
    %3994 = vmatprep.subr.bf16.mxu0 0
    %3995 = vmatpush1.bf16.msra.mxu0 0
    %3996 = vmatprep.subr.bf16.mxu0 0
    %3997 = vmatpush1.bf16.msra.mxu0 0
    %3998 = vmatprep.subr.bf16.mxu0 0
    %3999 = vmatpush1.bf16.msra.mxu0 0
    %4000 = vmatprep.mubr.bf16.mxu0 0
    %4001 = vmatmul.mubr.bf16.gmra.mrb[0].mxu0 %v3708
    %v4002 = vpop.f32.mrb[0].mxu0
    %v4003 = vadd.f32 %v3756, %v4002
    %v4004 = vpop.f32.mrb[0].mxu0
    %v4005 = vadd.f32 %v3760, %v4004
    %v4006 = vpop.f32.mrb[0].mxu0
    %v4007 = vadd.f32 %v3756, %v4006
    %v4008 = vpop.f32.mrb[0].mxu0
    %v4009 = vadd.f32 %v3760, %v4008
    %4010 = vdwg.mxu0
    %4011 = vst [vmem:[#allocation3] sm:$0xff] %v3960
    %4012 = vst [vmem:[#allocation3 + $0x8] sm:$0xff] %v3962
    %4013 = vst [vmem:[#allocation3 + $0x10] sm:$0xff] %v4003
    %4014 = vst [vmem:[#allocation3 + $0x18] sm:$0xff] %v4005
    %4015 = vst [vmem:[#allocation3 + $0x20] sm:$0xff] %v3964
    %4016 = vst [vmem:[#allocation3 + $0x28] sm:$0xff] %v3966
    %4017 = vst [vmem:[#allocation3 + $0x30] sm:$0xff] %v4007
    %4018 = vst [vmem:[#allocation3 + $0x38] sm:$0xff] %v4009
    %v4019 = vld [vmem:[#allocation3] ss:$8 sm:$0xf]
    %v4020 = vld [vmem:[%s581] ss:$8 sm:$0xf]
    %s4021 = scalar_lea.vmem [#allocation12], 256
    %v4022 = vld [vmem:[%s4021] sm:$0xff]
    %v4023 = vld [vmem:[%s4021 + $0x8] sm:$0xff]
    %v4024 = vld [vmem:[%s4021 + $0x10] sm:$0xff]
    %v4025 = vld [vmem:[%s4021 + $0x18] sm:$0xff]
    %v4026 = vld [vmem:[%s4021 + $0x20] sm:$0xff]
    %v4027 = vld [vmem:[%s4021 + $0x28] sm:$0xff]
    %v4028 = vld [vmem:[%s4021 + $0x30] sm:$0xff]
    %v4029 = vld [vmem:[%s4021 + $0x38] sm:$0xff]
    %v4030 = vld [vmem:[%s4021 + $0x40] sm:$0xff]
    %v4031 = vld [vmem:[%s4021 + $0x48] sm:$0xff]
    %v4032 = vld [vmem:[%s4021 + $0x50] sm:$0xff]
    %v4033 = vld [vmem:[%s4021 + $0x58] sm:$0xff]
    %v4034 = vld [vmem:[%s4021 + $0x60] sm:$0xff]
    %v4035 = vld [vmem:[%s4021 + $0x68] sm:$0xff]
    %v4036 = vld [vmem:[%s4021 + $0x70] sm:$0xff]
    %v4037 = vld [vmem:[%s4021 + $0x78] sm:$0xff]
    %v4038 = vld [vmem:[%s4021 + $0x80] sm:$0xff]
    %v4039 = vld [vmem:[%s4021 + $0x88] sm:$0xff]
    %v4040 = vld [vmem:[%s4021 + $0x90] sm:$0xff]
    %v4041 = vld [vmem:[%s4021 + $0x98] sm:$0xff]
    %v4042 = vld [vmem:[%s4021 + $0xa0] sm:$0xff]
    %v4043 = vld [vmem:[%s4021 + $0xa8] sm:$0xff]
    %v4044 = vld [vmem:[%s4021 + $0xb0] sm:$0xff]
    %v4045 = vld [vmem:[%s4021 + $0xb8] sm:$0xff]
    %v4046 = vld [vmem:[%s4021 + $0xc0] sm:$0xff]
    %v4047 = vld [vmem:[%s4021 + $0xc8] sm:$0xff]
    %v4048 = vld [vmem:[%s4021 + $0xd0] sm:$0xff]
    %v4049 = vld [vmem:[%s4021 + $0xd8] sm:$0xff]
    %v4050 = vld [vmem:[%s4021 + $0xe0] sm:$0xff]
    %v4051 = vld [vmem:[%s4021 + $0xe8] sm:$0xff]
    %v4052 = vld [vmem:[%s4021 + $0xf0] sm:$0xff]
    %v4053 = vld [vmem:[%s4021 + $0xf8] sm:$0xff]
    %v4086 = vunpack.c.l.b16 %v4022
    %v4087 = vunpack.c.h.b16 %v4022
    %v4088 = vunpack.c.l.b16 %v4023
    %v4089 = vunpack.c.h.b16 %v4023
    %v4090 = vunpack.c.l.b16 %v4024
    %v4091 = vunpack.c.h.b16 %v4024
    %v4092 = vunpack.c.l.b16 %v4025
    %v4093 = vunpack.c.h.b16 %v4025
    %v4094 = vunpack.c.l.b16 %v4026
    %v4095 = vunpack.c.h.b16 %v4026
    %v4096 = vunpack.c.l.b16 %v4027
    %v4097 = vunpack.c.h.b16 %v4027
    %v4098 = vunpack.c.l.b16 %v4028
    %v4099 = vunpack.c.h.b16 %v4028
    %v4100 = vunpack.c.l.b16 %v4029
    %v4101 = vunpack.c.h.b16 %v4029
    %v4102 = vunpack.c.l.b16 %v4030
    %v4103 = vunpack.c.h.b16 %v4030
    %v4104 = vunpack.c.l.b16 %v4031
    %v4105 = vunpack.c.h.b16 %v4031
    %v4106 = vunpack.c.l.b16 %v4032
    %v4107 = vunpack.c.h.b16 %v4032
    %v4108 = vunpack.c.l.b16 %v4033
    %v4109 = vunpack.c.h.b16 %v4033
    %v4110 = vunpack.c.l.b16 %v4034
    %v4111 = vunpack.c.h.b16 %v4034
    %v4112 = vunpack.c.l.b16 %v4035
    %v4113 = vunpack.c.h.b16 %v4035
    %v4114 = vunpack.c.l.b16 %v4036
    %v4115 = vunpack.c.h.b16 %v4036
    %v4116 = vunpack.c.l.b16 %v4037
    %v4117 = vunpack.c.h.b16 %v4037
    %v4118 = vunpack.c.l.b16 %v4038
    %v4119 = vunpack.c.h.b16 %v4038
    %v4120 = vunpack.c.l.b16 %v4039
    %v4121 = vunpack.c.h.b16 %v4039
    %v4122 = vunpack.c.l.b16 %v4040
    %v4123 = vunpack.c.h.b16 %v4040
    %v4124 = vunpack.c.l.b16 %v4041
    %v4125 = vunpack.c.h.b16 %v4041
    %v4126 = vunpack.c.l.b16 %v4042
    %v4127 = vunpack.c.h.b16 %v4042
    %v4128 = vunpack.c.l.b16 %v4043
    %v4129 = vunpack.c.h.b16 %v4043
    %v4130 = vunpack.c.l.b16 %v4044
    %v4131 = vunpack.c.h.b16 %v4044
    %v4132 = vunpack.c.l.b16 %v4045
    %v4133 = vunpack.c.h.b16 %v4045
    %v4134 = vunpack.c.l.b16 %v4046
    %v4135 = vunpack.c.h.b16 %v4046
    %v4136 = vunpack.c.l.b16 %v4047
    %v4137 = vunpack.c.h.b16 %v4047
    %v4138 = vunpack.c.l.b16 %v4048
    %v4139 = vunpack.c.h.b16 %v4048
    %v4140 = vunpack.c.l.b16 %v4049
    %v4141 = vunpack.c.h.b16 %v4049
    %v4142 = vunpack.c.l.b16 %v4050
    %v4143 = vunpack.c.h.b16 %v4050
    %v4144 = vunpack.c.l.b16 %v4051
    %v4145 = vunpack.c.h.b16 %v4051
    %v4146 = vunpack.c.l.b16 %v4052
    %v4147 = vunpack.c.h.b16 %v4052
    %v4148 = vunpack.c.l.b16 %v4053
    %v4149 = vunpack.c.h.b16 %v4053
    %v4150 = vpack.c.b16 %v4090, %v4086
    %v4151 = vpack.c.b16 %v4091, %v4087
    %v4152 = vpack.c.b16 %v4092, %v4088
    %v4153 = vpack.c.b16 %v4093, %v4089
    %v4154 = vpack.c.b16 %v4098, %v4094
    %v4155 = vpack.c.b16 %v4099, %v4095
    %v4156 = vpack.c.b16 %v4100, %v4096
    %v4157 = vpack.c.b16 %v4101, %v4097
    %v4158 = vpack.c.b16 %v4106, %v4102
    %v4159 = vpack.c.b16 %v4107, %v4103
    %v4160 = vpack.c.b16 %v4108, %v4104
    %v4161 = vpack.c.b16 %v4109, %v4105
    %v4162 = vpack.c.b16 %v4114, %v4110
    %v4163 = vpack.c.b16 %v4115, %v4111
    %v4164 = vpack.c.b16 %v4116, %v4112
    %v4165 = vpack.c.b16 %v4117, %v4113
    %v4166 = vpack.c.b16 %v4122, %v4118
    %v4167 = vpack.c.b16 %v4123, %v4119
    %v4168 = vpack.c.b16 %v4124, %v4120
    %v4169 = vpack.c.b16 %v4125, %v4121
    %v4170 = vpack.c.b16 %v4130, %v4126
    %v4171 = vpack.c.b16 %v4131, %v4127
    %v4172 = vpack.c.b16 %v4132, %v4128
    %v4173 = vpack.c.b16 %v4133, %v4129
    %v4174 = vpack.c.b16 %v4138, %v4134
    %v4175 = vpack.c.b16 %v4139, %v4135
    %v4176 = vpack.c.b16 %v4140, %v4136
    %v4177 = vpack.c.b16 %v4141, %v4137
    %v4178 = vpack.c.b16 %v4146, %v4142
    %v4179 = vpack.c.b16 %v4147, %v4143
    %v4180 = vpack.c.b16 %v4148, %v4144
    %v4181 = vpack.c.b16 %v4149, %v4145
    %4214 = vmatprep.subr.bf16.mxu0 %v4151
    %4215 = vmatpush1.bf16.msra.mxu0 %v4150
    %4216 = vmatprep.subr.bf16.mxu0 %v4155
    %4217 = vmatpush1.bf16.msra.mxu0 %v4154
    %4218 = vmatprep.subr.bf16.mxu0 %v4159
    %4219 = vmatpush1.bf16.msra.mxu0 %v4158
    %4220 = vmatprep.subr.bf16.mxu0 %v4163
    %4221 = vmatpush1.bf16.msra.mxu0 %v4162
    %4222 = vmatprep.subr.bf16.mxu0 %v4167
    %4223 = vmatpush1.bf16.msra.mxu0 %v4166
    %4224 = vmatprep.subr.bf16.mxu0 %v4171
    %4225 = vmatpush1.bf16.msra.mxu0 %v4170
    %4226 = vmatprep.subr.bf16.mxu0 %v4175
    %4227 = vmatpush1.bf16.msra.mxu0 %v4174
    %4228 = vmatprep.subr.bf16.mxu0 %v4179
    %4229 = vmatpush1.bf16.msra.mxu0 %v4178
    %4230 = vmatprep.subr.bf16.mxu0 0
    %4231 = vmatpush1.bf16.msra.mxu0 0
    %4232 = vmatprep.subr.bf16.mxu0 0
    %4233 = vmatpush1.bf16.msra.mxu0 0
    %4234 = vmatprep.subr.bf16.mxu0 0
    %4235 = vmatpush1.bf16.msra.mxu0 0
    %4236 = vmatprep.subr.bf16.mxu0 0
    %4237 = vmatpush1.bf16.msra.mxu0 0
    %4238 = vmatprep.subr.bf16.mxu0 0
    %4239 = vmatpush1.bf16.msra.mxu0 0
    %4240 = vmatprep.subr.bf16.mxu0 0
    %4241 = vmatpush1.bf16.msra.mxu0 0
    %4242 = vmatprep.subr.bf16.mxu0 0
    %4243 = vmatpush1.bf16.msra.mxu0 0
    %4244 = vmatprep.subr.bf16.mxu0 0
    %4245 = vmatpush1.bf16.msra.mxu0 0
    %4246 = vmatprep.mubr.bf16.mxu0 0
    %4247 = vmatmul.mubr.bf16.gmra.mrb[0].mxu0 0
    %v4248 = vpop.f32.mrb[0].mxu0
    %v4249 = vadd.f32 0.0, %v4248
    %v4250 = vpop.f32.mrb[0].mxu0
    %v4251 = vadd.f32 0.0, %v4250
    %v4252 = vpop.f32.mrb[0].mxu0
    %v4253 = vpop.f32.mrb[0].mxu0
    %4254 = vdwg.mxu0
    %4255 = vmatprep.subr.bf16.mxu0 %v4153
    %4256 = vmatpush1.bf16.msra.mxu0 %v4152
    %4257 = vmatprep.subr.bf16.mxu0 %v4157
    %4258 = vmatpush1.bf16.msra.mxu0 %v4156
    %4259 = vmatprep.subr.bf16.mxu0 %v4161
    %4260 = vmatpush1.bf16.msra.mxu0 %v4160
    %4261 = vmatprep.subr.bf16.mxu0 %v4165
    %4262 = vmatpush1.bf16.msra.mxu0 %v4164
    %4263 = vmatprep.subr.bf16.mxu0 %v4169
    %4264 = vmatpush1.bf16.msra.mxu0 %v4168
    %4265 = vmatprep.subr.bf16.mxu0 %v4173
    %4266 = vmatpush1.bf16.msra.mxu0 %v4172
    %4267 = vmatprep.subr.bf16.mxu0 %v4177
    %4268 = vmatpush1.bf16.msra.mxu0 %v4176
    %4269 = vmatprep.subr.bf16.mxu0 %v4181
    %4270 = vmatpush1.bf16.msra.mxu0 %v4180
    %4271 = vmatprep.subr.bf16.mxu0 0
    %4272 = vmatpush1.bf16.msra.mxu0 0
    %4273 = vmatprep.subr.bf16.mxu0 0
    %4274 = vmatpush1.bf16.msra.mxu0 0
    %4275 = vmatprep.subr.bf16.mxu0 0
    %4276 = vmatpush1.bf16.msra.mxu0 0
    %4277 = vmatprep.subr.bf16.mxu0 0
    %4278 = vmatpush1.bf16.msra.mxu0 0
    %4279 = vmatprep.subr.bf16.mxu0 0
    %4280 = vmatpush1.bf16.msra.mxu0 0
    %4281 = vmatprep.subr.bf16.mxu0 0
    %4282 = vmatpush1.bf16.msra.mxu0 0
    %4283 = vmatprep.subr.bf16.mxu0 0
    %4284 = vmatpush1.bf16.msra.mxu0 0
    %4285 = vmatprep.subr.bf16.mxu0 0
    %4286 = vmatpush1.bf16.msra.mxu0 0
    %4287 = vmatprep.mubr.bf16.mxu0 0
    %4288 = vmatmul.mubr.bf16.gmra.mrb[0].mxu0 0
    %v4289 = vpop.f32.mrb[0].mxu0
    %v4290 = vadd.f32 0.0, %v4289
    %v4291 = vpop.f32.mrb[0].mxu0
    %v4292 = vadd.f32 0.0, %v4291
    %v4293 = vpop.f32.mrb[0].mxu0
    %v4294 = vpop.f32.mrb[0].mxu0
    %4295 = vdwg.mxu0
    %v4300 = vcombine.low %v4249, %v4251
    %v4301 = vcombine.low %v4290, %v4292
    %v4303 = vunpack.c.l.s4 1966171168
    %v4304 = vunpack.c.0.s8 %v4303
    %v4305 = vlaneseq
    %v4306 = vshrl.u32 %v4305, 7
    %v4307 = vsub.s32 %v4304, %v4306
    %v4308 = vrot.slane %v4300, %v4307
    %v4310 = vunpack.c.l.s4 1966171168
    %v4311 = vunpack.c.0.s8 %v4310
    %v4312 = vlaneseq
    %v4313 = vshrl.u32 %v4312, 7
    %v4314 = vsub.s32 %v4311, %v4313
    %v4315 = vrot.slane %v4301, %v4314
    %v4316 = vcombine.low %v4308, %v4315
    %v4317 = vcombine.high %v4308, %v4315
    %v4319 = vunpack.c.l.s4 1966171168
    %v4320 = vunpack.c.0.s8 %v4319
    %v4321 = vlaneseq
    %v4322 = vshrl.u32 %v4321, 7
    %v4323 = vsub.s32 %v4320, %v4322
    %v4324 = vrot.slane %v4316, %v4323
    %v4326 = vunpack.c.l.s4 1966171168
    %v4327 = vunpack.c.0.s8 %v4326
    %v4328 = vlaneseq
    %v4329 = vshrl.u32 %v4328, 7
    %v4330 = vsub.s32 %v4327, %v4329
    %v4331 = vrot.slane %v4317, %v4330
    %v4334 = vadd.f32 %v4019, %v4324
    %v4335 = vadd.f32 %v4020, %v4331
    %v4336 = vxor.u32 %v4334, 2147483648
    %v4337 = vxor.u32 %v4335, 2147483648
    %v4338 = vmul.f32 %v4336, 1.442695
    %v4339 = vpow.pop %v4338
    %v4340 = vmul.f32 %v4337, 1.442695
    %v4341 = vpow.pop %v4340
    %v4342 = vadd.f32 %v4339, 1.0
    %v4343 = vadd.f32 %v4341, 1.0
    %v4344 = vrcp.pop %v4342
    %v4345 = vmul.f32 1.0, %v4344
    %v4346 = vrcp.pop %v4343
    %v4347 = vmul.f32 1.0, %v4346
    %v4350 = vrot.slane %v4334, 1
    %v4351 = vrot.slane %v4335, 1
    %v4354 = vxor.u32 %v4350, 2147483648
    %v4355 = vxor.u32 %v4351, 2147483648
    %v4356 = vmul.f32 %v4354, 1.442695
    %v4357 = vpow.pop %v4356
    %v4358 = vmul.f32 %v4355, 1.442695
    %v4359 = vpow.pop %v4358
    %v4360 = vadd.f32 %v4357, 1.0
    %v4361 = vadd.f32 %v4359, 1.0
    %v4362 = vrcp.pop %v4360
    %v4363 = vmul.f32 1.0, %v4362
    %v4364 = vrcp.pop %v4361
    %v4365 = vmul.f32 1.0, %v4364
    %v4366 = vrot.slane %v4334, 2
    %v4367 = vrot.slane %v4335, 2
    %v4370 = vtanh.pop %v4366
    %v4371 = vtanh.pop %v4367
    %v4372 = vrot.slane %v4334, 3
    %v4373 = vrot.slane %v4335, 3
    %v4376 = vxor.u32 %v4372, 2147483648
    %v4377 = vxor.u32 %v4373, 2147483648
    %v4378 = vmul.f32 %v4376, 1.442695
    %v4379 = vpow.pop %v4378
    %v4380 = vmul.f32 %v4377, 1.442695
    %v4381 = vpow.pop %v4380
    %v4382 = vadd.f32 %v4379, 1.0
    %v4383 = vadd.f32 %v4381, 1.0
    %v4384 = vrcp.pop %v4382
    %v4385 = vmul.f32 1.0, %v4384
    %v4386 = vrcp.pop %v4383
    %v4387 = vmul.f32 1.0, %v4386
    %v4388 = vmul.f32 %v4363, 0.0
    %v4389 = vmul.f32 %v4365, 0.0
    %v4390 = vmul.f32 %v4345, %v4370
    %v4391 = vmul.f32 %v4347, %v4371
    %v4392 = vadd.f32 %v4388, %v4390
    %v4393 = vadd.f32 %v4389, %v4391
    %v4394 = vtanh.pop %v4392
    %v4395 = vtanh.pop %v4393
    %v4396 = vmul.f32 %v4385, %v4394
    %v4397 = vmul.f32 %v4387, %v4395
    %4398 = vst [vmem:[#allocation2] sm:$0x1] %v4396
    %4399 = vst [vmem:[#allocation2 + $0x8] sm:$0x1] %v4397
    %v4400 = vld [vmem:[%s961] ss:$8 sm:$0xf]
    %v4401 = vld [vmem:[%s963] ss:$8 sm:$0xf]
    %v4402 = vpack.c.bf16 %v4396, %v4396
    %v4403 = vpack.c.bf16 %v4397, %v4397
    %v4404 = vld [vmem:[%s4021] sm:$0xff]
    %v4405 = vld [vmem:[%s4021 + $0x8] sm:$0xff]
    %v4406 = vld [vmem:[%s4021 + $0x10] sm:$0xff]
    %v4407 = vld [vmem:[%s4021 + $0x18] sm:$0xff]
    %v4408 = vld [vmem:[%s4021 + $0x20] sm:$0xff]
    %v4409 = vld [vmem:[%s4021 + $0x28] sm:$0xff]
    %v4410 = vld [vmem:[%s4021 + $0x30] sm:$0xff]
    %v4411 = vld [vmem:[%s4021 + $0x38] sm:$0xff]
    %v4412 = vld [vmem:[%s4021 + $0x40] sm:$0xff]
    %v4413 = vld [vmem:[%s4021 + $0x48] sm:$0xff]
    %v4414 = vld [vmem:[%s4021 + $0x50] sm:$0xff]
    %v4415 = vld [vmem:[%s4021 + $0x58] sm:$0xff]
    %v4416 = vld [vmem:[%s4021 + $0x60] sm:$0xff]
    %v4417 = vld [vmem:[%s4021 + $0x68] sm:$0xff]
    %v4418 = vld [vmem:[%s4021 + $0x70] sm:$0xff]
    %v4419 = vld [vmem:[%s4021 + $0x78] sm:$0xff]
    %v4420 = vld [vmem:[%s4021 + $0x80] sm:$0xff]
    %v4421 = vld [vmem:[%s4021 + $0x88] sm:$0xff]
    %v4422 = vld [vmem:[%s4021 + $0x90] sm:$0xff]
    %v4423 = vld [vmem:[%s4021 + $0x98] sm:$0xff]
    %v4424 = vld [vmem:[%s4021 + $0xa0] sm:$0xff]
    %v4425 = vld [vmem:[%s4021 + $0xa8] sm:$0xff]
    %v4426 = vld [vmem:[%s4021 + $0xb0] sm:$0xff]
    %v4427 = vld [vmem:[%s4021 + $0xb8] sm:$0xff]
    %v4428 = vld [vmem:[%s4021 + $0xc0] sm:$0xff]
    %v4429 = vld [vmem:[%s4021 + $0xc8] sm:$0xff]
    %v4430 = vld [vmem:[%s4021 + $0xd0] sm:$0xff]
    %v4431 = vld [vmem:[%s4021 + $0xd8] sm:$0xff]
    %v4432 = vld [vmem:[%s4021 + $0xe0] sm:$0xff]
    %v4433 = vld [vmem:[%s4021 + $0xe8] sm:$0xff]
    %v4434 = vld [vmem:[%s4021 + $0xf0] sm:$0xff]
    %v4435 = vld [vmem:[%s4021 + $0xf8] sm:$0xff]
    %v4438 = vunpack.c.l.b16 %v4402
    %v4439 = vunpack.c.l.b16 %v4403
    %v4440 = vrot.slane %v4439, 7
    %v4441 = vsel %vm1004, %v4440, %v4438
    %v4442 = vpack.c.b16 %v4441, %v4441
    %v4476 = vunpack.c.l.b16 %v4404
    %v4477 = vunpack.c.h.b16 %v4404
    %v4478 = vunpack.c.l.b16 %v4405
    %v4479 = vunpack.c.h.b16 %v4405
    %v4480 = vunpack.c.l.b16 %v4406
    %v4481 = vunpack.c.h.b16 %v4406
    %v4482 = vunpack.c.l.b16 %v4407
    %v4483 = vunpack.c.h.b16 %v4407
    %v4484 = vunpack.c.l.b16 %v4408
    %v4485 = vunpack.c.h.b16 %v4408
    %v4486 = vunpack.c.l.b16 %v4409
    %v4487 = vunpack.c.h.b16 %v4409
    %v4488 = vunpack.c.l.b16 %v4410
    %v4489 = vunpack.c.h.b16 %v4410
    %v4490 = vunpack.c.l.b16 %v4411
    %v4491 = vunpack.c.h.b16 %v4411
    %v4492 = vunpack.c.l.b16 %v4412
    %v4493 = vunpack.c.h.b16 %v4412
    %v4494 = vunpack.c.l.b16 %v4413
    %v4495 = vunpack.c.h.b16 %v4413
    %v4496 = vunpack.c.l.b16 %v4414
    %v4497 = vunpack.c.h.b16 %v4414
    %v4498 = vunpack.c.l.b16 %v4415
    %v4499 = vunpack.c.h.b16 %v4415
    %v4500 = vunpack.c.l.b16 %v4416
    %v4501 = vunpack.c.h.b16 %v4416
    %v4502 = vunpack.c.l.b16 %v4417
    %v4503 = vunpack.c.h.b16 %v4417
    %v4504 = vunpack.c.l.b16 %v4418
    %v4505 = vunpack.c.h.b16 %v4418
    %v4506 = vunpack.c.l.b16 %v4419
    %v4507 = vunpack.c.h.b16 %v4419
    %v4508 = vunpack.c.l.b16 %v4420
    %v4509 = vunpack.c.h.b16 %v4420
    %v4510 = vunpack.c.l.b16 %v4421
    %v4511 = vunpack.c.h.b16 %v4421
    %v4512 = vunpack.c.l.b16 %v4422
    %v4513 = vunpack.c.h.b16 %v4422
    %v4514 = vunpack.c.l.b16 %v4423
    %v4515 = vunpack.c.h.b16 %v4423
    %v4516 = vunpack.c.l.b16 %v4424
    %v4517 = vunpack.c.h.b16 %v4424
    %v4518 = vunpack.c.l.b16 %v4425
    %v4519 = vunpack.c.h.b16 %v4425
    %v4520 = vunpack.c.l.b16 %v4426
    %v4521 = vunpack.c.h.b16 %v4426
    %v4522 = vunpack.c.l.b16 %v4427
    %v4523 = vunpack.c.h.b16 %v4427
    %v4524 = vunpack.c.l.b16 %v4428
    %v4525 = vunpack.c.h.b16 %v4428
    %v4526 = vunpack.c.l.b16 %v4429
    %v4527 = vunpack.c.h.b16 %v4429
    %v4528 = vunpack.c.l.b16 %v4430
    %v4529 = vunpack.c.h.b16 %v4430
    %v4530 = vunpack.c.l.b16 %v4431
    %v4531 = vunpack.c.h.b16 %v4431
    %v4532 = vunpack.c.l.b16 %v4432
    %v4533 = vunpack.c.h.b16 %v4432
    %v4534 = vunpack.c.l.b16 %v4433
    %v4535 = vunpack.c.h.b16 %v4433
    %v4536 = vunpack.c.l.b16 %v4434
    %v4537 = vunpack.c.h.b16 %v4434
    %v4538 = vunpack.c.l.b16 %v4435
    %v4539 = vunpack.c.h.b16 %v4435
    %v4540 = vpack.c.b16 %v4480, %v4476
    %v4541 = vpack.c.b16 %v4481, %v4477
    %v4542 = vpack.c.b16 %v4482, %v4478
    %v4543 = vpack.c.b16 %v4483, %v4479
    %v4544 = vpack.c.b16 %v4488, %v4484
    %v4545 = vpack.c.b16 %v4489, %v4485
    %v4546 = vpack.c.b16 %v4490, %v4486
    %v4547 = vpack.c.b16 %v4491, %v4487
    %v4548 = vpack.c.b16 %v4496, %v4492
    %v4549 = vpack.c.b16 %v4497, %v4493
    %v4550 = vpack.c.b16 %v4498, %v4494
    %v4551 = vpack.c.b16 %v4499, %v4495
    %v4552 = vpack.c.b16 %v4504, %v4500
    %v4553 = vpack.c.b16 %v4505, %v4501
    %v4554 = vpack.c.b16 %v4506, %v4502
    %v4555 = vpack.c.b16 %v4507, %v4503
    %v4556 = vpack.c.b16 %v4512, %v4508
    %v4557 = vpack.c.b16 %v4513, %v4509
    %v4558 = vpack.c.b16 %v4514, %v4510
    %v4559 = vpack.c.b16 %v4515, %v4511
    %v4560 = vpack.c.b16 %v4520, %v4516
    %v4561 = vpack.c.b16 %v4521, %v4517
    %v4562 = vpack.c.b16 %v4522, %v4518
    %v4563 = vpack.c.b16 %v4523, %v4519
    %v4564 = vpack.c.b16 %v4528, %v4524
    %v4565 = vpack.c.b16 %v4529, %v4525
    %v4566 = vpack.c.b16 %v4530, %v4526
    %v4567 = vpack.c.b16 %v4531, %v4527
    %v4568 = vpack.c.b16 %v4536, %v4532
    %v4569 = vpack.c.b16 %v4537, %v4533
    %v4570 = vpack.c.b16 %v4538, %v4534
    %v4571 = vpack.c.b16 %v4539, %v4535
    %4604 = vmatprep.subr.bf16.mxu0 %v4541
    %4605 = vmatpush1.bf16.msra.mxu0 %v4540
    %4606 = vmatprep.subr.bf16.mxu0 %v4545
    %4607 = vmatpush1.bf16.msra.mxu0 %v4544
    %4608 = vmatprep.subr.bf16.mxu0 %v4549
    %4609 = vmatpush1.bf16.msra.mxu0 %v4548
    %4610 = vmatprep.subr.bf16.mxu0 %v4553
    %4611 = vmatpush1.bf16.msra.mxu0 %v4552
    %4612 = vmatprep.subr.bf16.mxu0 %v4557
    %4613 = vmatpush1.bf16.msra.mxu0 %v4556
    %4614 = vmatprep.subr.bf16.mxu0 %v4561
    %4615 = vmatpush1.bf16.msra.mxu0 %v4560
    %4616 = vmatprep.subr.bf16.mxu0 %v4565
    %4617 = vmatpush1.bf16.msra.mxu0 %v4564
    %4618 = vmatprep.subr.bf16.mxu0 %v4569
    %4619 = vmatpush1.bf16.msra.mxu0 %v4568
    %4620 = vmatprep.subr.bf16.mxu0 0
    %4621 = vmatpush1.bf16.msra.mxu0 0
    %4622 = vmatprep.subr.bf16.mxu0 0
    %4623 = vmatpush1.bf16.msra.mxu0 0
    %4624 = vmatprep.subr.bf16.mxu0 0
    %4625 = vmatpush1.bf16.msra.mxu0 0
    %4626 = vmatprep.subr.bf16.mxu0 0
    %4627 = vmatpush1.bf16.msra.mxu0 0
    %4628 = vmatprep.subr.bf16.mxu0 0
    %4629 = vmatpush1.bf16.msra.mxu0 0
    %4630 = vmatprep.subr.bf16.mxu0 0
    %4631 = vmatpush1.bf16.msra.mxu0 0
    %4632 = vmatprep.subr.bf16.mxu0 0
    %4633 = vmatpush1.bf16.msra.mxu0 0
    %4634 = vmatprep.subr.bf16.mxu0 0
    %4635 = vmatpush1.bf16.msra.mxu0 0
    %4636 = vmatprep.mubr.bf16.mxu0 0
    %4637 = vmatmul.mubr.bf16.gmra.mrb[0].mxu0 %v4442
    %v4638 = vpop.f32.mrb[0].mxu0
    %v4639 = vadd.f32 0.0, %v4638
    %v4640 = vpop.f32.mrb[0].mxu0
    %v4641 = vadd.f32 0.0, %v4640
    %v4642 = vpop.f32.mrb[0].mxu0
    %v4643 = vpop.f32.mrb[0].mxu0
    %4644 = vdwg.mxu0
    %4645 = vmatprep.subr.bf16.mxu0 %v4543
    %4646 = vmatpush1.bf16.msra.mxu0 %v4542
    %4647 = vmatprep.subr.bf16.mxu0 %v4547
    %4648 = vmatpush1.bf16.msra.mxu0 %v4546
    %4649 = vmatprep.subr.bf16.mxu0 %v4551
    %4650 = vmatpush1.bf16.msra.mxu0 %v4550
    %4651 = vmatprep.subr.bf16.mxu0 %v4555
    %4652 = vmatpush1.bf16.msra.mxu0 %v4554
    %4653 = vmatprep.subr.bf16.mxu0 %v4559
    %4654 = vmatpush1.bf16.msra.mxu0 %v4558
    %4655 = vmatprep.subr.bf16.mxu0 %v4563
    %4656 = vmatpush1.bf16.msra.mxu0 %v4562
    %4657 = vmatprep.subr.bf16.mxu0 %v4567
    %4658 = vmatpush1.bf16.msra.mxu0 %v4566
    %4659 = vmatprep.subr.bf16.mxu0 %v4571
    %4660 = vmatpush1.bf16.msra.mxu0 %v4570
    %4661 = vmatprep.subr.bf16.mxu0 0
    %4662 = vmatpush1.bf16.msra.mxu0 0
    %4663 = vmatprep.subr.bf16.mxu0 0
    %4664 = vmatpush1.bf16.msra.mxu0 0
    %4665 = vmatprep.subr.bf16.mxu0 0
    %4666 = vmatpush1.bf16.msra.mxu0 0
    %4667 = vmatprep.subr.bf16.mxu0 0
    %4668 = vmatpush1.bf16.msra.mxu0 0
    %4669 = vmatprep.subr.bf16.mxu0 0
    %4670 = vmatpush1.bf16.msra.mxu0 0
    %4671 = vmatprep.subr.bf16.mxu0 0
    %4672 = vmatpush1.bf16.msra.mxu0 0
    %4673 = vmatprep.subr.bf16.mxu0 0
    %4674 = vmatpush1.bf16.msra.mxu0 0
    %4675 = vmatprep.subr.bf16.mxu0 0
    %4676 = vmatpush1.bf16.msra.mxu0 0
    %4677 = vmatprep.mubr.bf16.mxu0 0
    %4678 = vmatmul.mubr.bf16.gmra.mrb[0].mxu0 %v4442
    %v4679 = vpop.f32.mrb[0].mxu0
    %v4680 = vadd.f32 0.0, %v4679
    %v4681 = vpop.f32.mrb[0].mxu0
    %v4682 = vadd.f32 0.0, %v4681
    %v4683 = vpop.f32.mrb[0].mxu0
    %v4684 = vpop.f32.mrb[0].mxu0
    %4685 = vdwg.mxu0
    %v4690 = vcombine.low %v4639, %v4641
    %v4691 = vcombine.low %v4680, %v4682
    %v4693 = vunpack.c.l.s4 1966171168
    %v4694 = vunpack.c.0.s8 %v4693
    %v4695 = vlaneseq
    %v4696 = vshrl.u32 %v4695, 7
    %v4697 = vsub.s32 %v4694, %v4696
    %v4698 = vrot.slane %v4690, %v4697
    %v4700 = vunpack.c.l.s4 1966171168
    %v4701 = vunpack.c.0.s8 %v4700
    %v4702 = vlaneseq
    %v4703 = vshrl.u32 %v4702, 7
    %v4704 = vsub.s32 %v4701, %v4703
    %v4705 = vrot.slane %v4691, %v4704
    %v4706 = vcombine.low %v4698, %v4705
    %v4707 = vcombine.high %v4698, %v4705
    %v4709 = vunpack.c.l.s4 1966171168
    %v4710 = vunpack.c.0.s8 %v4709
    %v4711 = vlaneseq
    %v4712 = vshrl.u32 %v4711, 7
    %v4713 = vsub.s32 %v4710, %v4712
    %v4714 = vrot.slane %v4706, %v4713
    %v4716 = vunpack.c.l.s4 1966171168
    %v4717 = vunpack.c.0.s8 %v4716
    %v4718 = vlaneseq
    %v4719 = vshrl.u32 %v4718, 7
    %v4720 = vsub.s32 %v4717, %v4719
    %v4721 = vrot.slane %v4707, %v4720
    %v4724 = vadd.f32 %v4400, %v4714
    %v4725 = vadd.f32 %v4401, %v4721
    %v4726 = vxor.u32 %v4724, 2147483648
    %v4727 = vxor.u32 %v4725, 2147483648
    %v4728 = vmul.f32 %v4726, 1.442695
    %v4729 = vpow.pop %v4728
    %v4730 = vmul.f32 %v4727, 1.442695
    %v4731 = vpow.pop %v4730
    %v4732 = vadd.f32 %v4729, 1.0
    %v4733 = vadd.f32 %v4731, 1.0
    %v4734 = vrcp.pop %v4732
    %v4735 = vmul.f32 1.0, %v4734
    %v4736 = vrcp.pop %v4733
    %v4737 = vmul.f32 1.0, %v4736
    %v4740 = vrot.slane %v4724, 1
    %v4741 = vrot.slane %v4725, 1
    %v4744 = vxor.u32 %v4740, 2147483648
    %v4745 = vxor.u32 %v4741, 2147483648
    %v4746 = vmul.f32 %v4744, 1.442695
    %v4747 = vpow.pop %v4746
    %v4748 = vmul.f32 %v4745, 1.442695
    %v4749 = vpow.pop %v4748
    %v4750 = vadd.f32 %v4747, 1.0
    %v4751 = vadd.f32 %v4749, 1.0
    %v4752 = vrcp.pop %v4750
    %v4753 = vmul.f32 1.0, %v4752
    %v4754 = vrcp.pop %v4751
    %v4755 = vmul.f32 1.0, %v4754
    %v4756 = vrot.slane %v4724, 2
    %v4757 = vrot.slane %v4725, 2
    %v4760 = vtanh.pop %v4756
    %v4761 = vtanh.pop %v4757
    %v4762 = vrot.slane %v4724, 3
    %v4763 = vrot.slane %v4725, 3
    %v4766 = vxor.u32 %v4762, 2147483648
    %v4767 = vxor.u32 %v4763, 2147483648
    %v4768 = vmul.f32 %v4766, 1.442695
    %v4769 = vpow.pop %v4768
    %v4770 = vmul.f32 %v4767, 1.442695
    %v4771 = vpow.pop %v4770
    %v4772 = vadd.f32 %v4769, 1.0
    %v4773 = vadd.f32 %v4771, 1.0
    %v4774 = vrcp.pop %v4772
    %v4775 = vmul.f32 1.0, %v4774
    %v4776 = vrcp.pop %v4773
    %v4777 = vmul.f32 1.0, %v4776
    %v4778 = vmul.f32 %v4753, %v4392
    %v4779 = vmul.f32 %v4755, %v4393
    %v4780 = vmul.f32 %v4735, %v4760
    %v4781 = vmul.f32 %v4737, %v4761
    %v4782 = vadd.f32 %v4778, %v4780
    %v4783 = vadd.f32 %v4779, %v4781
    %v4784 = vtanh.pop %v4782
    %v4785 = vtanh.pop %v4783
    %v4786 = vmul.f32 %v4775, %v4784
    %v4787 = vmul.f32 %v4777, %v4785
    %4788 = vst [vmem:[#allocation2 + $0x1] sm:$0x1] %v4786
    %4789 = vst [vmem:[#allocation2 + $0x9] sm:$0x1] %v4787
    %v4790 = vld [vmem:[%s1354] ss:$8 sm:$0xf]
    %v4791 = vld [vmem:[%s1356] ss:$8 sm:$0xf]
    %v4792 = vpack.c.bf16 %v4786, %v4786
    %v4793 = vpack.c.bf16 %v4787, %v4787
    %v4794 = vld [vmem:[%s4021] sm:$0xff]
    %v4795 = vld [vmem:[%s4021 + $0x8] sm:$0xff]
    %v4796 = vld [vmem:[%s4021 + $0x10] sm:$0xff]
    %v4797 = vld [vmem:[%s4021 + $0x18] sm:$0xff]
    %v4798 = vld [vmem:[%s4021 + $0x20] sm:$0xff]
    %v4799 = vld [vmem:[%s4021 + $0x28] sm:$0xff]
    %v4800 = vld [vmem:[%s4021 + $0x30] sm:$0xff]
    %v4801 = vld [vmem:[%s4021 + $0x38] sm:$0xff]
    %v4802 = vld [vmem:[%s4021 + $0x40] sm:$0xff]
    %v4803 = vld [vmem:[%s4021 + $0x48] sm:$0xff]
    %v4804 = vld [vmem:[%s4021 + $0x50] sm:$0xff]
    %v4805 = vld [vmem:[%s4021 + $0x58] sm:$0xff]
    %v4806 = vld [vmem:[%s4021 + $0x60] sm:$0xff]
    %v4807 = vld [vmem:[%s4021 + $0x68] sm:$0xff]
    %v4808 = vld [vmem:[%s4021 + $0x70] sm:$0xff]
    %v4809 = vld [vmem:[%s4021 + $0x78] sm:$0xff]
    %v4810 = vld [vmem:[%s4021 + $0x80] sm:$0xff]
    %v4811 = vld [vmem:[%s4021 + $0x88] sm:$0xff]
    %v4812 = vld [vmem:[%s4021 + $0x90] sm:$0xff]
    %v4813 = vld [vmem:[%s4021 + $0x98] sm:$0xff]
    %v4814 = vld [vmem:[%s4021 + $0xa0] sm:$0xff]
    %v4815 = vld [vmem:[%s4021 + $0xa8] sm:$0xff]
    %v4816 = vld [vmem:[%s4021 + $0xb0] sm:$0xff]
    %v4817 = vld [vmem:[%s4021 + $0xb8] sm:$0xff]
    %v4818 = vld [vmem:[%s4021 + $0xc0] sm:$0xff]
    %v4819 = vld [vmem:[%s4021 + $0xc8] sm:$0xff]
    %v4820 = vld [vmem:[%s4021 + $0xd0] sm:$0xff]
    %v4821 = vld [vmem:[%s4021 + $0xd8] sm:$0xff]
    %v4822 = vld [vmem:[%s4021 + $0xe0] sm:$0xff]
    %v4823 = vld [vmem:[%s4021 + $0xe8] sm:$0xff]
    %v4824 = vld [vmem:[%s4021 + $0xf0] sm:$0xff]
    %v4825 = vld [vmem:[%s4021 + $0xf8] sm:$0xff]
    %v4828 = vunpack.c.l.b16 %v4792
    %v4829 = vunpack.c.l.b16 %v4793
    %v4830 = vrot.slane %v4829, 7
    %v4831 = vsel %vm1004, %v4830, %v4828
    %v4832 = vpack.c.b16 %v4831, %v4831
    %v4866 = vunpack.c.l.b16 %v4794
    %v4867 = vunpack.c.h.b16 %v4794
    %v4868 = vunpack.c.l.b16 %v4795
    %v4869 = vunpack.c.h.b16 %v4795
    %v4870 = vunpack.c.l.b16 %v4796
    %v4871 = vunpack.c.h.b16 %v4796
    %v4872 = vunpack.c.l.b16 %v4797
    %v4873 = vunpack.c.h.b16 %v4797
    %v4874 = vunpack.c.l.b16 %v4798
    %v4875 = vunpack.c.h.b16 %v4798
    %v4876 = vunpack.c.l.b16 %v4799
    %v4877 = vunpack.c.h.b16 %v4799
    %v4878 = vunpack.c.l.b16 %v4800
    %v4879 = vunpack.c.h.b16 %v4800
    %v4880 = vunpack.c.l.b16 %v4801
    %v4881 = vunpack.c.h.b16 %v4801
    %v4882 = vunpack.c.l.b16 %v4802
    %v4883 = vunpack.c.h.b16 %v4802
    %v4884 = vunpack.c.l.b16 %v4803
    %v4885 = vunpack.c.h.b16 %v4803
    %v4886 = vunpack.c.l.b16 %v4804
    %v4887 = vunpack.c.h.b16 %v4804
    %v4888 = vunpack.c.l.b16 %v4805
    %v4889 = vunpack.c.h.b16 %v4805
    %v4890 = vunpack.c.l.b16 %v4806
    %v4891 = vunpack.c.h.b16 %v4806
    %v4892 = vunpack.c.l.b16 %v4807
    %v4893 = vunpack.c.h.b16 %v4807
    %v4894 = vunpack.c.l.b16 %v4808
    %v4895 = vunpack.c.h.b16 %v4808
    %v4896 = vunpack.c.l.b16 %v4809
    %v4897 = vunpack.c.h.b16 %v4809
    %v4898 = vunpack.c.l.b16 %v4810
    %v4899 = vunpack.c.h.b16 %v4810
    %v4900 = vunpack.c.l.b16 %v4811
    %v4901 = vunpack.c.h.b16 %v4811
    %v4902 = vunpack.c.l.b16 %v4812
    %v4903 = vunpack.c.h.b16 %v4812
    %v4904 = vunpack.c.l.b16 %v4813
    %v4905 = vunpack.c.h.b16 %v4813
    %v4906 = vunpack.c.l.b16 %v4814
    %v4907 = vunpack.c.h.b16 %v4814
    %v4908 = vunpack.c.l.b16 %v4815
    %v4909 = vunpack.c.h.b16 %v4815
    %v4910 = vunpack.c.l.b16 %v4816
    %v4911 = vunpack.c.h.b16 %v4816
    %v4912 = vunpack.c.l.b16 %v4817
    %v4913 = vunpack.c.h.b16 %v4817
    %v4914 = vunpack.c.l.b16 %v4818
    %v4915 = vunpack.c.h.b16 %v4818
    %v4916 = vunpack.c.l.b16 %v4819
    %v4917 = vunpack.c.h.b16 %v4819
    %v4918 = vunpack.c.l.b16 %v4820
    %v4919 = vunpack.c.h.b16 %v4820
    %v4920 = vunpack.c.l.b16 %v4821
    %v4921 = vunpack.c.h.b16 %v4821
    %v4922 = vunpack.c.l.b16 %v4822
    %v4923 = vunpack.c.h.b16 %v4822
    %v4924 = vunpack.c.l.b16 %v4823
    %v4925 = vunpack.c.h.b16 %v4823
    %v4926 = vunpack.c.l.b16 %v4824
    %v4927 = vunpack.c.h.b16 %v4824
    %v4928 = vunpack.c.l.b16 %v4825
    %v4929 = vunpack.c.h.b16 %v4825
    %v4930 = vpack.c.b16 %v4870, %v4866
    %v4931 = vpack.c.b16 %v4871, %v4867
    %v4932 = vpack.c.b16 %v4872, %v4868
    %v4933 = vpack.c.b16 %v4873, %v4869
    %v4934 = vpack.c.b16 %v4878, %v4874
    %v4935 = vpack.c.b16 %v4879, %v4875
    %v4936 = vpack.c.b16 %v4880, %v4876
    %v4937 = vpack.c.b16 %v4881, %v4877
    %v4938 = vpack.c.b16 %v4886, %v4882
    %v4939 = vpack.c.b16 %v4887, %v4883
    %v4940 = vpack.c.b16 %v4888, %v4884
    %v4941 = vpack.c.b16 %v4889, %v4885
    %v4942 = vpack.c.b16 %v4894, %v4890
    %v4943 = vpack.c.b16 %v4895, %v4891
    %v4944 = vpack.c.b16 %v4896, %v4892
    %v4945 = vpack.c.b16 %v4897, %v4893
    %v4946 = vpack.c.b16 %v4902, %v4898
    %v4947 = vpack.c.b16 %v4903, %v4899
    %v4948 = vpack.c.b16 %v4904, %v4900
    %v4949 = vpack.c.b16 %v4905, %v4901
    %v4950 = vpack.c.b16 %v4910, %v4906
    %v4951 = vpack.c.b16 %v4911, %v4907
    %v4952 = vpack.c.b16 %v4912, %v4908
    %v4953 = vpack.c.b16 %v4913, %v4909
    %v4954 = vpack.c.b16 %v4918, %v4914
    %v4955 = vpack.c.b16 %v4919, %v4915
    %v4956 = vpack.c.b16 %v4920, %v4916
    %v4957 = vpack.c.b16 %v4921, %v4917
    %v4958 = vpack.c.b16 %v4926, %v4922
    %v4959 = vpack.c.b16 %v4927, %v4923
    %v4960 = vpack.c.b16 %v4928, %v4924
    %v4961 = vpack.c.b16 %v4929, %v4925
    %4994 = vmatprep.subr.bf16.mxu0 %v4931
    %4995 = vmatpush1.bf16.msra.mxu0 %v4930
    %4996 = vmatprep.subr.bf16.mxu0 %v4935
    %4997 = vmatpush1.bf16.msra.mxu0 %v4934
    %4998 = vmatprep.subr.bf16.mxu0 %v4939
    %4999 = vmatpush1.bf16.msra.mxu0 %v4938
    %5000 = vmatprep.subr.bf16.mxu0 %v4943
    %5001 = vmatpush1.bf16.msra.mxu0 %v4942
    %5002 = vmatprep.subr.bf16.mxu0 %v4947
    %5003 = vmatpush1.bf16.msra.mxu0 %v4946
    %5004 = vmatprep.subr.bf16.mxu0 %v4951
    %5005 = vmatpush1.bf16.msra.mxu0 %v4950
    %5006 = vmatprep.subr.bf16.mxu0 %v4955
    %5007 = vmatpush1.bf16.msra.mxu0 %v4954
    %5008 = vmatprep.subr.bf16.mxu0 %v4959
    %5009 = vmatpush1.bf16.msra.mxu0 %v4958
    %5010 = vmatprep.subr.bf16.mxu0 0
    %5011 = vmatpush1.bf16.msra.mxu0 0
    %5012 = vmatprep.subr.bf16.mxu0 0
    %5013 = vmatpush1.bf16.msra.mxu0 0
    %5014 = vmatprep.subr.bf16.mxu0 0
    %5015 = vmatpush1.bf16.msra.mxu0 0
    %5016 = vmatprep.subr.bf16.mxu0 0
    %5017 = vmatpush1.bf16.msra.mxu0 0
    %5018 = vmatprep.subr.bf16.mxu0 0
    %5019 = vmatpush1.bf16.msra.mxu0 0
    %5020 = vmatprep.subr.bf16.mxu0 0
    %5021 = vmatpush1.bf16.msra.mxu0 0
    %5022 = vmatprep.subr.bf16.mxu0 0
    %5023 = vmatpush1.bf16.msra.mxu0 0
    %5024 = vmatprep.subr.bf16.mxu0 0
    %5025 = vmatpush1.bf16.msra.mxu0 0
    %5026 = vmatprep.mubr.bf16.mxu0 0
    %5027 = vmatmul.mubr.bf16.gmra.mrb[0].mxu0 %v4832
    %v5028 = vpop.f32.mrb[0].mxu0
    %v5029 = vadd.f32 0.0, %v5028
    %v5030 = vpop.f32.mrb[0].mxu0
    %v5031 = vadd.f32 0.0, %v5030
    %v5032 = vpop.f32.mrb[0].mxu0
    %v5033 = vpop.f32.mrb[0].mxu0
    %5034 = vdwg.mxu0
    %5035 = vmatprep.subr.bf16.mxu0 %v4933
    %5036 = vmatpush1.bf16.msra.mxu0 %v4932
    %5037 = vmatprep.subr.bf16.mxu0 %v4937
    %5038 = vmatpush1.bf16.msra.mxu0 %v4936
    %5039 = vmatprep.subr.bf16.mxu0 %v4941
    %5040 = vmatpush1.bf16.msra.mxu0 %v4940
    %5041 = vmatprep.subr.bf16.mxu0 %v4945
    %5042 = vmatpush1.bf16.msra.mxu0 %v4944
    %5043 = vmatprep.subr.bf16.mxu0 %v4949
    %5044 = vmatpush1.bf16.msra.mxu0 %v4948
    %5045 = vmatprep.subr.bf16.mxu0 %v4953
    %5046 = vmatpush1.bf16.msra.mxu0 %v4952
    %5047 = vmatprep.subr.bf16.mxu0 %v4957
    %5048 = vmatpush1.bf16.msra.mxu0 %v4956
    %5049 = vmatprep.subr.bf16.mxu0 %v4961
    %5050 = vmatpush1.bf16.msra.mxu0 %v4960
    %5051 = vmatprep.subr.bf16.mxu0 0
    %5052 = vmatpush1.bf16.msra.mxu0 0
    %5053 = vmatprep.subr.bf16.mxu0 0
    %5054 = vmatpush1.bf16.msra.mxu0 0
    %5055 = vmatprep.subr.bf16.mxu0 0
    %5056 = vmatpush1.bf16.msra.mxu0 0
    %5057 = vmatprep.subr.bf16.mxu0 0
    %5058 = vmatpush1.bf16.msra.mxu0 0
    %5059 = vmatprep.subr.bf16.mxu0 0
    %5060 = vmatpush1.bf16.msra.mxu0 0
    %5061 = vmatprep.subr.bf16.mxu0 0
    %5062 = vmatpush1.bf16.msra.mxu0 0
    %5063 = vmatprep.subr.bf16.mxu0 0
    %5064 = vmatpush1.bf16.msra.mxu0 0
    %5065 = vmatprep.subr.bf16.mxu0 0
    %5066 = vmatpush1.bf16.msra.mxu0 0
    %5067 = vmatprep.mubr.bf16.mxu0 0
    %5068 = vmatmul.mubr.bf16.gmra.mrb[0].mxu0 %v4832
    %v5069 = vpop.f32.mrb[0].mxu0
    %v5070 = vadd.f32 0.0, %v5069
    %v5071 = vpop.f32.mrb[0].mxu0
    %v5072 = vadd.f32 0.0, %v5071
    %v5073 = vpop.f32.mrb[0].mxu0
    %v5074 = vpop.f32.mrb[0].mxu0
    %5075 = vdwg.mxu0
    %v5080 = vcombine.low %v5029, %v5031
    %v5081 = vcombine.low %v5070, %v5072
    %v5083 = vunpack.c.l.s4 1966171168
    %v5084 = vunpack.c.0.s8 %v5083
    %v5085 = vlaneseq
    %v5086 = vshrl.u32 %v5085, 7
    %v5087 = vsub.s32 %v5084, %v5086
    %v5088 = vrot.slane %v5080, %v5087
    %v5090 = vunpack.c.l.s4 1966171168
    %v5091 = vunpack.c.0.s8 %v5090
    %v5092 = vlaneseq
    %v5093 = vshrl.u32 %v5092, 7
    %v5094 = vsub.s32 %v5091, %v5093
    %v5095 = vrot.slane %v5081, %v5094
    %v5096 = vcombine.low %v5088, %v5095
    %v5097 = vcombine.high %v5088, %v5095
    %v5099 = vunpack.c.l.s4 1966171168
    %v5100 = vunpack.c.0.s8 %v5099
    %v5101 = vlaneseq
    %v5102 = vshrl.u32 %v5101, 7
    %v5103 = vsub.s32 %v5100, %v5102
    %v5104 = vrot.slane %v5096, %v5103
    %v5106 = vunpack.c.l.s4 1966171168
    %v5107 = vunpack.c.0.s8 %v5106
    %v5108 = vlaneseq
    %v5109 = vshrl.u32 %v5108, 7
    %v5110 = vsub.s32 %v5107, %v5109
    %v5111 = vrot.slane %v5097, %v5110
    %v5114 = vadd.f32 %v4790, %v5104
    %v5115 = vadd.f32 %v4791, %v5111
    %v5116 = vxor.u32 %v5114, 2147483648
    %v5117 = vxor.u32 %v5115, 2147483648
    %v5118 = vmul.f32 %v5116, 1.442695
    %v5119 = vpow.pop %v5118
    %v5120 = vmul.f32 %v5117, 1.442695
    %v5121 = vpow.pop %v5120
    %v5122 = vadd.f32 %v5119, 1.0
    %v5123 = vadd.f32 %v5121, 1.0
    %v5124 = vrcp.pop %v5122
    %v5125 = vmul.f32 1.0, %v5124
    %v5126 = vrcp.pop %v5123
    %v5127 = vmul.f32 1.0, %v5126
    %v5130 = vrot.slane %v5114, 1
    %v5131 = vrot.slane %v5115, 1
    %v5134 = vxor.u32 %v5130, 2147483648
    %v5135 = vxor.u32 %v5131, 2147483648
    %v5136 = vmul.f32 %v5134, 1.442695
    %v5137 = vpow.pop %v5136
    %v5138 = vmul.f32 %v5135, 1.442695
    %v5139 = vpow.pop %v5138
    %v5140 = vadd.f32 %v5137, 1.0
    %v5141 = vadd.f32 %v5139, 1.0
    %v5142 = vrcp.pop %v5140
    %v5143 = vmul.f32 1.0, %v5142
    %v5144 = vrcp.pop %v5141
    %v5145 = vmul.f32 1.0, %v5144
    %v5146 = vrot.slane %v5114, 2
    %v5147 = vrot.slane %v5115, 2
    %v5150 = vtanh.pop %v5146
    %v5151 = vtanh.pop %v5147
    %v5152 = vrot.slane %v5114, 3
    %v5153 = vrot.slane %v5115, 3
    %v5156 = vxor.u32 %v5152, 2147483648
    %v5157 = vxor.u32 %v5153, 2147483648
    %v5158 = vmul.f32 %v5156, 1.442695
    %v5159 = vpow.pop %v5158
    %v5160 = vmul.f32 %v5157, 1.442695
    %v5161 = vpow.pop %v5160
    %v5162 = vadd.f32 %v5159, 1.0
    %v5163 = vadd.f32 %v5161, 1.0
    %v5164 = vrcp.pop %v5162
    %v5165 = vmul.f32 1.0, %v5164
    %v5166 = vrcp.pop %v5163
    %v5167 = vmul.f32 1.0, %v5166
    %v5168 = vmul.f32 %v5143, %v4782
    %v5169 = vmul.f32 %v5145, %v4783
    %v5170 = vmul.f32 %v5125, %v5150
    %v5171 = vmul.f32 %v5127, %v5151
    %v5172 = vadd.f32 %v5168, %v5170
    %v5173 = vadd.f32 %v5169, %v5171
    %v5174 = vtanh.pop %v5172
    %v5175 = vtanh.pop %v5173
    %v5176 = vmul.f32 %v5165, %v5174
    %v5177 = vmul.f32 %v5167, %v5175
    %5178 = vst [vmem:[#allocation2 + $0x2] sm:$0x1] %v5176
    %5179 = vst [vmem:[#allocation2 + $0xa] sm:$0x1] %v5177
    %v5180 = vld [vmem:[%s1746] ss:$8 sm:$0xf]
    %v5181 = vld [vmem:[%s1748] ss:$8 sm:$0xf]
    %v5182 = vpack.c.bf16 %v5176, %v5176
    %v5183 = vpack.c.bf16 %v5177, %v5177
    %v5184 = vld [vmem:[%s4021] sm:$0xff]
    %v5185 = vld [vmem:[%s4021 + $0x8] sm:$0xff]
    %v5186 = vld [vmem:[%s4021 + $0x10] sm:$0xff]
    %v5187 = vld [vmem:[%s4021 + $0x18] sm:$0xff]
    %v5188 = vld [vmem:[%s4021 + $0x20] sm:$0xff]
    %v5189 = vld [vmem:[%s4021 + $0x28] sm:$0xff]
    %v5190 = vld [vmem:[%s4021 + $0x30] sm:$0xff]
    %v5191 = vld [vmem:[%s4021 + $0x38] sm:$0xff]
    %v5192 = vld [vmem:[%s4021 + $0x40] sm:$0xff]
    %v5193 = vld [vmem:[%s4021 + $0x48] sm:$0xff]
    %v5194 = vld [vmem:[%s4021 + $0x50] sm:$0xff]
    %v5195 = vld [vmem:[%s4021 + $0x58] sm:$0xff]
    %v5196 = vld [vmem:[%s4021 + $0x60] sm:$0xff]
    %v5197 = vld [vmem:[%s4021 + $0x68] sm:$0xff]
    %v5198 = vld [vmem:[%s4021 + $0x70] sm:$0xff]
    %v5199 = vld [vmem:[%s4021 + $0x78] sm:$0xff]
    %v5200 = vld [vmem:[%s4021 + $0x80] sm:$0xff]
    %v5201 = vld [vmem:[%s4021 + $0x88] sm:$0xff]
    %v5202 = vld [vmem:[%s4021 + $0x90] sm:$0xff]
    %v5203 = vld [vmem:[%s4021 + $0x98] sm:$0xff]
    %v5204 = vld [vmem:[%s4021 + $0xa0] sm:$0xff]
    %v5205 = vld [vmem:[%s4021 + $0xa8] sm:$0xff]
    %v5206 = vld [vmem:[%s4021 + $0xb0] sm:$0xff]
    %v5207 = vld [vmem:[%s4021 + $0xb8] sm:$0xff]
    %v5208 = vld [vmem:[%s4021 + $0xc0] sm:$0xff]
    %v5209 = vld [vmem:[%s4021 + $0xc8] sm:$0xff]
    %v5210 = vld [vmem:[%s4021 + $0xd0] sm:$0xff]
    %v5211 = vld [vmem:[%s4021 + $0xd8] sm:$0xff]
    %v5212 = vld [vmem:[%s4021 + $0xe0] sm:$0xff]
    %v5213 = vld [vmem:[%s4021 + $0xe8] sm:$0xff]
    %v5214 = vld [vmem:[%s4021 + $0xf0] sm:$0xff]
    %v5215 = vld [vmem:[%s4021 + $0xf8] sm:$0xff]
    %v5218 = vunpack.c.l.b16 %v5182
    %v5219 = vunpack.c.l.b16 %v5183
    %v5220 = vrot.slane %v5219, 7
    %v5221 = vsel %vm1004, %v5220, %v5218
    %v5222 = vpack.c.b16 %v5221, %v5221
    %v5256 = vunpack.c.l.b16 %v5184
    %v5257 = vunpack.c.h.b16 %v5184
    %v5258 = vunpack.c.l.b16 %v5185
    %v5259 = vunpack.c.h.b16 %v5185
    %v5260 = vunpack.c.l.b16 %v5186
    %v5261 = vunpack.c.h.b16 %v5186
    %v5262 = vunpack.c.l.b16 %v5187
    %v5263 = vunpack.c.h.b16 %v5187
    %v5264 = vunpack.c.l.b16 %v5188
    %v5265 = vunpack.c.h.b16 %v5188
    %v5266 = vunpack.c.l.b16 %v5189
    %v5267 = vunpack.c.h.b16 %v5189
    %v5268 = vunpack.c.l.b16 %v5190
    %v5269 = vunpack.c.h.b16 %v5190
    %v5270 = vunpack.c.l.b16 %v5191
    %v5271 = vunpack.c.h.b16 %v5191
    %v5272 = vunpack.c.l.b16 %v5192
    %v5273 = vunpack.c.h.b16 %v5192
    %v5274 = vunpack.c.l.b16 %v5193
    %v5275 = vunpack.c.h.b16 %v5193
    %v5276 = vunpack.c.l.b16 %v5194
    %v5277 = vunpack.c.h.b16 %v5194
    %v5278 = vunpack.c.l.b16 %v5195
    %v5279 = vunpack.c.h.b16 %v5195
    %v5280 = vunpack.c.l.b16 %v5196
    %v5281 = vunpack.c.h.b16 %v5196
    %v5282 = vunpack.c.l.b16 %v5197
    %v5283 = vunpack.c.h.b16 %v5197
    %v5284 = vunpack.c.l.b16 %v5198
    %v5285 = vunpack.c.h.b16 %v5198
    %v5286 = vunpack.c.l.b16 %v5199
    %v5287 = vunpack.c.h.b16 %v5199
    %v5288 = vunpack.c.l.b16 %v5200
    %v5289 = vunpack.c.h.b16 %v5200
    %v5290 = vunpack.c.l.b16 %v5201
    %v5291 = vunpack.c.h.b16 %v5201
    %v5292 = vunpack.c.l.b16 %v5202
    %v5293 = vunpack.c.h.b16 %v5202
    %v5294 = vunpack.c.l.b16 %v5203
    %v5295 = vunpack.c.h.b16 %v5203
    %v5296 = vunpack.c.l.b16 %v5204
    %v5297 = vunpack.c.h.b16 %v5204
    %v5298 = vunpack.c.l.b16 %v5205
    %v5299 = vunpack.c.h.b16 %v5205
    %v5300 = vunpack.c.l.b16 %v5206
    %v5301 = vunpack.c.h.b16 %v5206
    %v5302 = vunpack.c.l.b16 %v5207
    %v5303 = vunpack.c.h.b16 %v5207
    %v5304 = vunpack.c.l.b16 %v5208
    %v5305 = vunpack.c.h.b16 %v5208
    %v5306 = vunpack.c.l.b16 %v5209
    %v5307 = vunpack.c.h.b16 %v5209
    %v5308 = vunpack.c.l.b16 %v5210
    %v5309 = vunpack.c.h.b16 %v5210
    %v5310 = vunpack.c.l.b16 %v5211
    %v5311 = vunpack.c.h.b16 %v5211
    %v5312 = vunpack.c.l.b16 %v5212
    %v5313 = vunpack.c.h.b16 %v5212
    %v5314 = vunpack.c.l.b16 %v5213
    %v5315 = vunpack.c.h.b16 %v5213
    %v5316 = vunpack.c.l.b16 %v5214
    %v5317 = vunpack.c.h.b16 %v5214
    %v5318 = vunpack.c.l.b16 %v5215
    %v5319 = vunpack.c.h.b16 %v5215
    %v5320 = vpack.c.b16 %v5260, %v5256
    %v5321 = vpack.c.b16 %v5261, %v5257
    %v5322 = vpack.c.b16 %v5262, %v5258
    %v5323 = vpack.c.b16 %v5263, %v5259
    %v5324 = vpack.c.b16 %v5268, %v5264
    %v5325 = vpack.c.b16 %v5269, %v5265
    %v5326 = vpack.c.b16 %v5270, %v5266
    %v5327 = vpack.c.b16 %v5271, %v5267
    %v5328 = vpack.c.b16 %v5276, %v5272
    %v5329 = vpack.c.b16 %v5277, %v5273
    %v5330 = vpack.c.b16 %v5278, %v5274
    %v5331 = vpack.c.b16 %v5279, %v5275
    %v5332 = vpack.c.b16 %v5284, %v5280
    %v5333 = vpack.c.b16 %v5285, %v5281
    %v5334 = vpack.c.b16 %v5286, %v5282
    %v5335 = vpack.c.b16 %v5287, %v5283
    %v5336 = vpack.c.b16 %v5292, %v5288
    %v5337 = vpack.c.b16 %v5293, %v5289
    %v5338 = vpack.c.b16 %v5294, %v5290
    %v5339 = vpack.c.b16 %v5295, %v5291
    %v5340 = vpack.c.b16 %v5300, %v5296
    %v5341 = vpack.c.b16 %v5301, %v5297
    %v5342 = vpack.c.b16 %v5302, %v5298
    %v5343 = vpack.c.b16 %v5303, %v5299
    %v5344 = vpack.c.b16 %v5308, %v5304
    %v5345 = vpack.c.b16 %v5309, %v5305
    %v5346 = vpack.c.b16 %v5310, %v5306
    %v5347 = vpack.c.b16 %v5311, %v5307
    %v5348 = vpack.c.b16 %v5316, %v5312
    %v5349 = vpack.c.b16 %v5317, %v5313
    %v5350 = vpack.c.b16 %v5318, %v5314
    %v5351 = vpack.c.b16 %v5319, %v5315
    %5384 = vmatprep.subr.bf16.mxu0 %v5321
    %5385 = vmatpush1.bf16.msra.mxu0 %v5320
    %5386 = vmatprep.subr.bf16.mxu0 %v5325
    %5387 = vmatpush1.bf16.msra.mxu0 %v5324
    %5388 = vmatprep.subr.bf16.mxu0 %v5329
    %5389 = vmatpush1.bf16.msra.mxu0 %v5328
    %5390 = vmatprep.subr.bf16.mxu0 %v5333
    %5391 = vmatpush1.bf16.msra.mxu0 %v5332
    %5392 = vmatprep.subr.bf16.mxu0 %v5337
    %5393 = vmatpush1.bf16.msra.mxu0 %v5336
    %5394 = vmatprep.subr.bf16.mxu0 %v5341
    %5395 = vmatpush1.bf16.msra.mxu0 %v5340
    %5396 = vmatprep.subr.bf16.mxu0 %v5345
    %5397 = vmatpush1.bf16.msra.mxu0 %v5344
    %5398 = vmatprep.subr.bf16.mxu0 %v5349
    %5399 = vmatpush1.bf16.msra.mxu0 %v5348
    %5400 = vmatprep.subr.bf16.mxu0 0
    %5401 = vmatpush1.bf16.msra.mxu0 0
    %5402 = vmatprep.subr.bf16.mxu0 0
    %5403 = vmatpush1.bf16.msra.mxu0 0
    %5404 = vmatprep.subr.bf16.mxu0 0
    %5405 = vmatpush1.bf16.msra.mxu0 0
    %5406 = vmatprep.subr.bf16.mxu0 0
    %5407 = vmatpush1.bf16.msra.mxu0 0
    %5408 = vmatprep.subr.bf16.mxu0 0
    %5409 = vmatpush1.bf16.msra.mxu0 0
    %5410 = vmatprep.subr.bf16.mxu0 0
    %5411 = vmatpush1.bf16.msra.mxu0 0
    %5412 = vmatprep.subr.bf16.mxu0 0
    %5413 = vmatpush1.bf16.msra.mxu0 0
    %5414 = vmatprep.subr.bf16.mxu0 0
    %5415 = vmatpush1.bf16.msra.mxu0 0
    %5416 = vmatprep.mubr.bf16.mxu0 0
    %5417 = vmatmul.mubr.bf16.gmra.mrb[0].mxu0 %v5222
    %v5418 = vpop.f32.mrb[0].mxu0
    %v5419 = vadd.f32 0.0, %v5418
    %v5420 = vpop.f32.mrb[0].mxu0
    %v5421 = vadd.f32 0.0, %v5420
    %v5422 = vpop.f32.mrb[0].mxu0
    %v5423 = vpop.f32.mrb[0].mxu0
    %5424 = vdwg.mxu0
    %5425 = vmatprep.subr.bf16.mxu0 %v5323
    %5426 = vmatpush1.bf16.msra.mxu0 %v5322
    %5427 = vmatprep.subr.bf16.mxu0 %v5327
    %5428 = vmatpush1.bf16.msra.mxu0 %v5326
    %5429 = vmatprep.subr.bf16.mxu0 %v5331
    %5430 = vmatpush1.bf16.msra.mxu0 %v5330
    %5431 = vmatprep.subr.bf16.mxu0 %v5335
    %5432 = vmatpush1.bf16.msra.mxu0 %v5334
    %5433 = vmatprep.subr.bf16.mxu0 %v5339
    %5434 = vmatpush1.bf16.msra.mxu0 %v5338
    %5435 = vmatprep.subr.bf16.mxu0 %v5343
    %5436 = vmatpush1.bf16.msra.mxu0 %v5342
    %5437 = vmatprep.subr.bf16.mxu0 %v5347
    %5438 = vmatpush1.bf16.msra.mxu0 %v5346
    %5439 = vmatprep.subr.bf16.mxu0 %v5351
    %5440 = vmatpush1.bf16.msra.mxu0 %v5350
    %5441 = vmatprep.subr.bf16.mxu0 0
    %5442 = vmatpush1.bf16.msra.mxu0 0
    %5443 = vmatprep.subr.bf16.mxu0 0
    %5444 = vmatpush1.bf16.msra.mxu0 0
    %5445 = vmatprep.subr.bf16.mxu0 0
    %5446 = vmatpush1.bf16.msra.mxu0 0
    %5447 = vmatprep.subr.bf16.mxu0 0
    %5448 = vmatpush1.bf16.msra.mxu0 0
    %5449 = vmatprep.subr.bf16.mxu0 0
    %5450 = vmatpush1.bf16.msra.mxu0 0
    %5451 = vmatprep.subr.bf16.mxu0 0
    %5452 = vmatpush1.bf16.msra.mxu0 0
    %5453 = vmatprep.subr.bf16.mxu0 0
    %5454 = vmatpush1.bf16.msra.mxu0 0
    %5455 = vmatprep.subr.bf16.mxu0 0
    %5456 = vmatpush1.bf16.msra.mxu0 0
    %5457 = vmatprep.mubr.bf16.mxu0 0
    %5458 = vmatmul.mubr.bf16.gmra.mrb[0].mxu0 %v5222
    %v5459 = vpop.f32.mrb[0].mxu0
    %v5460 = vadd.f32 0.0, %v5459
    %v5461 = vpop.f32.mrb[0].mxu0
    %v5462 = vadd.f32 0.0, %v5461
    %v5463 = vpop.f32.mrb[0].mxu0
    %v5464 = vpop.f32.mrb[0].mxu0
    %5465 = vdwg.mxu0
    %v5470 = vcombine.low %v5419, %v5421
    %v5471 = vcombine.low %v5460, %v5462
    %v5473 = vunpack.c.l.s4 1966171168
    %v5474 = vunpack.c.0.s8 %v5473
    %v5475 = vlaneseq
    %v5476 = vshrl.u32 %v5475, 7
    %v5477 = vsub.s32 %v5474, %v5476
    %v5478 = vrot.slane %v5470, %v5477
    %v5480 = vunpack.c.l.s4 1966171168
    %v5481 = vunpack.c.0.s8 %v5480
    %v5482 = vlaneseq
    %v5483 = vshrl.u32 %v5482, 7
    %v5484 = vsub.s32 %v5481, %v5483
    %v5485 = vrot.slane %v5471, %v5484
    %v5486 = vcombine.low %v5478, %v5485
    %v5487 = vcombine.high %v5478, %v5485
    %v5489 = vunpack.c.l.s4 1966171168
    %v5490 = vunpack.c.0.s8 %v5489
    %v5491 = vlaneseq
    %v5492 = vshrl.u32 %v5491, 7
    %v5493 = vsub.s32 %v5490, %v5492
    %v5494 = vrot.slane %v5486, %v5493
    %v5496 = vunpack.c.l.s4 1966171168
    %v5497 = vunpack.c.0.s8 %v5496
    %v5498 = vlaneseq
    %v5499 = vshrl.u32 %v5498, 7
    %v5500 = vsub.s32 %v5497, %v5499
    %v5501 = vrot.slane %v5487, %v5500
    %v5504 = vadd.f32 %v5180, %v5494
    %v5505 = vadd.f32 %v5181, %v5501
    %v5506 = vxor.u32 %v5504, 2147483648
    %v5507 = vxor.u32 %v5505, 2147483648
    %v5508 = vmul.f32 %v5506, 1.442695
    %v5509 = vpow.pop %v5508
    %v5510 = vmul.f32 %v5507, 1.442695
    %v5511 = vpow.pop %v5510
    %v5512 = vadd.f32 %v5509, 1.0
    %v5513 = vadd.f32 %v5511, 1.0
    %v5514 = vrcp.pop %v5512
    %v5515 = vmul.f32 1.0, %v5514
    %v5516 = vrcp.pop %v5513
    %v5517 = vmul.f32 1.0, %v5516
    %v5520 = vrot.slane %v5504, 1
    %v5521 = vrot.slane %v5505, 1
    %v5524 = vxor.u32 %v5520, 2147483648
    %v5525 = vxor.u32 %v5521, 2147483648
    %v5526 = vmul.f32 %v5524, 1.442695
    %v5527 = vpow.pop %v5526
    %v5528 = vmul.f32 %v5525, 1.442695
    %v5529 = vpow.pop %v5528
    %v5530 = vadd.f32 %v5527, 1.0
    %v5531 = vadd.f32 %v5529, 1.0
    %v5532 = vrcp.pop %v5530
    %v5533 = vmul.f32 1.0, %v5532
    %v5534 = vrcp.pop %v5531
    %v5535 = vmul.f32 1.0, %v5534
    %v5536 = vrot.slane %v5504, 2
    %v5537 = vrot.slane %v5505, 2
    %v5540 = vtanh.pop %v5536
    %v5541 = vtanh.pop %v5537
    %v5542 = vrot.slane %v5504, 3
    %v5543 = vrot.slane %v5505, 3
    %v5546 = vxor.u32 %v5542, 2147483648
    %v5547 = vxor.u32 %v5543, 2147483648
    %v5548 = vmul.f32 %v5546, 1.442695
    %v5549 = vpow.pop %v5548
    %v5550 = vmul.f32 %v5547, 1.442695
    %v5551 = vpow.pop %v5550
    %v5552 = vadd.f32 %v5549, 1.0
    %v5553 = vadd.f32 %v5551, 1.0
    %v5554 = vrcp.pop %v5552
    %v5555 = vmul.f32 1.0, %v5554
    %v5556 = vrcp.pop %v5553
    %v5557 = vmul.f32 1.0, %v5556
    %v5558 = vmul.f32 %v5533, %v5172
    %v5559 = vmul.f32 %v5535, %v5173
    %v5560 = vmul.f32 %v5515, %v5540
    %v5561 = vmul.f32 %v5517, %v5541
    %v5562 = vadd.f32 %v5558, %v5560
    %v5563 = vadd.f32 %v5559, %v5561
    %v5564 = vtanh.pop %v5562
    %v5565 = vtanh.pop %v5563
    %v5566 = vmul.f32 %v5555, %v5564
    %v5567 = vmul.f32 %v5557, %v5565
    %5568 = vst [vmem:[#allocation2 + $0x3] sm:$0x1] %v5566
    %5569 = vst [vmem:[#allocation2 + $0xb] sm:$0x1] %v5567
    %v5570 = vld [vmem:[%s2138] ss:$8 sm:$0xf]
    %v5571 = vld [vmem:[%s2140] ss:$8 sm:$0xf]
    %v5572 = vpack.c.bf16 %v5566, %v5566
    %v5573 = vpack.c.bf16 %v5567, %v5567
    %v5574 = vld [vmem:[%s4021] sm:$0xff]
    %v5575 = vld [vmem:[%s4021 + $0x8] sm:$0xff]
    %v5576 = vld [vmem:[%s4021 + $0x10] sm:$0xff]
    %v5577 = vld [vmem:[%s4021 + $0x18] sm:$0xff]
    %v5578 = vld [vmem:[%s4021 + $0x20] sm:$0xff]
    %v5579 = vld [vmem:[%s4021 + $0x28] sm:$0xff]
    %v5580 = vld [vmem:[%s4021 + $0x30] sm:$0xff]
    %v5581 = vld [vmem:[%s4021 + $0x38] sm:$0xff]
    %v5582 = vld [vmem:[%s4021 + $0x40] sm:$0xff]
    %v5583 = vld [vmem:[%s4021 + $0x48] sm:$0xff]
    %v5584 = vld [vmem:[%s4021 + $0x50] sm:$0xff]
    %v5585 = vld [vmem:[%s4021 + $0x58] sm:$0xff]
    %v5586 = vld [vmem:[%s4021 + $0x60] sm:$0xff]
    %v5587 = vld [vmem:[%s4021 + $0x68] sm:$0xff]
    %v5588 = vld [vmem:[%s4021 + $0x70] sm:$0xff]
    %v5589 = vld [vmem:[%s4021 + $0x78] sm:$0xff]
    %v5590 = vld [vmem:[%s4021 + $0x80] sm:$0xff]
    %v5591 = vld [vmem:[%s4021 + $0x88] sm:$0xff]
    %v5592 = vld [vmem:[%s4021 + $0x90] sm:$0xff]
    %v5593 = vld [vmem:[%s4021 + $0x98] sm:$0xff]
    %v5594 = vld [vmem:[%s4021 + $0xa0] sm:$0xff]
    %v5595 = vld [vmem:[%s4021 + $0xa8] sm:$0xff]
    %v5596 = vld [vmem:[%s4021 + $0xb0] sm:$0xff]
    %v5597 = vld [vmem:[%s4021 + $0xb8] sm:$0xff]
    %v5598 = vld [vmem:[%s4021 + $0xc0] sm:$0xff]
    %v5599 = vld [vmem:[%s4021 + $0xc8] sm:$0xff]
    %v5600 = vld [vmem:[%s4021 + $0xd0] sm:$0xff]
    %v5601 = vld [vmem:[%s4021 + $0xd8] sm:$0xff]
    %v5602 = vld [vmem:[%s4021 + $0xe0] sm:$0xff]
    %v5603 = vld [vmem:[%s4021 + $0xe8] sm:$0xff]
    %v5604 = vld [vmem:[%s4021 + $0xf0] sm:$0xff]
    %v5605 = vld [vmem:[%s4021 + $0xf8] sm:$0xff]
    %v5608 = vunpack.c.l.b16 %v5572
    %v5609 = vunpack.c.l.b16 %v5573
    %v5610 = vrot.slane %v5609, 7
    %v5611 = vsel %vm1004, %v5610, %v5608
    %v5612 = vpack.c.b16 %v5611, %v5611
    %v5646 = vunpack.c.l.b16 %v5574
    %v5647 = vunpack.c.h.b16 %v5574
    %v5648 = vunpack.c.l.b16 %v5575
    %v5649 = vunpack.c.h.b16 %v5575
    %v5650 = vunpack.c.l.b16 %v5576
    %v5651 = vunpack.c.h.b16 %v5576
    %v5652 = vunpack.c.l.b16 %v5577
    %v5653 = vunpack.c.h.b16 %v5577
    %v5654 = vunpack.c.l.b16 %v5578
    %v5655 = vunpack.c.h.b16 %v5578
    %v5656 = vunpack.c.l.b16 %v5579
    %v5657 = vunpack.c.h.b16 %v5579
    %v5658 = vunpack.c.l.b16 %v5580
    %v5659 = vunpack.c.h.b16 %v5580
    %v5660 = vunpack.c.l.b16 %v5581
    %v5661 = vunpack.c.h.b16 %v5581
    %v5662 = vunpack.c.l.b16 %v5582
    %v5663 = vunpack.c.h.b16 %v5582
    %v5664 = vunpack.c.l.b16 %v5583
    %v5665 = vunpack.c.h.b16 %v5583
    %v5666 = vunpack.c.l.b16 %v5584
    %v5667 = vunpack.c.h.b16 %v5584
    %v5668 = vunpack.c.l.b16 %v5585
    %v5669 = vunpack.c.h.b16 %v5585
    %v5670 = vunpack.c.l.b16 %v5586
    %v5671 = vunpack.c.h.b16 %v5586
    %v5672 = vunpack.c.l.b16 %v5587
    %v5673 = vunpack.c.h.b16 %v5587
    %v5674 = vunpack.c.l.b16 %v5588
    %v5675 = vunpack.c.h.b16 %v5588
    %v5676 = vunpack.c.l.b16 %v5589
    %v5677 = vunpack.c.h.b16 %v5589
    %v5678 = vunpack.c.l.b16 %v5590
    %v5679 = vunpack.c.h.b16 %v5590
    %v5680 = vunpack.c.l.b16 %v5591
    %v5681 = vunpack.c.h.b16 %v5591
    %v5682 = vunpack.c.l.b16 %v5592
    %v5683 = vunpack.c.h.b16 %v5592
    %v5684 = vunpack.c.l.b16 %v5593
    %v5685 = vunpack.c.h.b16 %v5593
    %v5686 = vunpack.c.l.b16 %v5594
    %v5687 = vunpack.c.h.b16 %v5594
    %v5688 = vunpack.c.l.b16 %v5595
    %v5689 = vunpack.c.h.b16 %v5595
    %v5690 = vunpack.c.l.b16 %v5596
    %v5691 = vunpack.c.h.b16 %v5596
    %v5692 = vunpack.c.l.b16 %v5597
    %v5693 = vunpack.c.h.b16 %v5597
    %v5694 = vunpack.c.l.b16 %v5598
    %v5695 = vunpack.c.h.b16 %v5598
    %v5696 = vunpack.c.l.b16 %v5599
    %v5697 = vunpack.c.h.b16 %v5599
    %v5698 = vunpack.c.l.b16 %v5600
    %v5699 = vunpack.c.h.b16 %v5600
    %v5700 = vunpack.c.l.b16 %v5601
    %v5701 = vunpack.c.h.b16 %v5601
    %v5702 = vunpack.c.l.b16 %v5602
    %v5703 = vunpack.c.h.b16 %v5602
    %v5704 = vunpack.c.l.b16 %v5603
    %v5705 = vunpack.c.h.b16 %v5603
    %v5706 = vunpack.c.l.b16 %v5604
    %v5707 = vunpack.c.h.b16 %v5604
    %v5708 = vunpack.c.l.b16 %v5605
    %v5709 = vunpack.c.h.b16 %v5605
    %v5710 = vpack.c.b16 %v5650, %v5646
    %v5711 = vpack.c.b16 %v5651, %v5647
    %v5712 = vpack.c.b16 %v5652, %v5648
    %v5713 = vpack.c.b16 %v5653, %v5649
    %v5714 = vpack.c.b16 %v5658, %v5654
    %v5715 = vpack.c.b16 %v5659, %v5655
    %v5716 = vpack.c.b16 %v5660, %v5656
    %v5717 = vpack.c.b16 %v5661, %v5657
    %v5718 = vpack.c.b16 %v5666, %v5662
    %v5719 = vpack.c.b16 %v5667, %v5663
    %v5720 = vpack.c.b16 %v5668, %v5664
    %v5721 = vpack.c.b16 %v5669, %v5665
    %v5722 = vpack.c.b16 %v5674, %v5670
    %v5723 = vpack.c.b16 %v5675, %v5671
    %v5724 = vpack.c.b16 %v5676, %v5672
    %v5725 = vpack.c.b16 %v5677, %v5673
    %v5726 = vpack.c.b16 %v5682, %v5678
    %v5727 = vpack.c.b16 %v5683, %v5679
    %v5728 = vpack.c.b16 %v5684, %v5680
    %v5729 = vpack.c.b16 %v5685, %v5681
    %v5730 = vpack.c.b16 %v5690, %v5686
    %v5731 = vpack.c.b16 %v5691, %v5687
    %v5732 = vpack.c.b16 %v5692, %v5688
    %v5733 = vpack.c.b16 %v5693, %v5689
    %v5734 = vpack.c.b16 %v5698, %v5694
    %v5735 = vpack.c.b16 %v5699, %v5695
    %v5736 = vpack.c.b16 %v5700, %v5696
    %v5737 = vpack.c.b16 %v5701, %v5697
    %v5738 = vpack.c.b16 %v5706, %v5702
    %v5739 = vpack.c.b16 %v5707, %v5703
    %v5740 = vpack.c.b16 %v5708, %v5704
    %v5741 = vpack.c.b16 %v5709, %v5705
    %5774 = vmatprep.subr.bf16.mxu0 %v5711
    %5775 = vmatpush1.bf16.msra.mxu0 %v5710
    %5776 = vmatprep.subr.bf16.mxu0 %v5715
    %5777 = vmatpush1.bf16.msra.mxu0 %v5714
    %5778 = vmatprep.subr.bf16.mxu0 %v5719
    %5779 = vmatpush1.bf16.msra.mxu0 %v5718
    %5780 = vmatprep.subr.bf16.mxu0 %v5723
    %5781 = vmatpush1.bf16.msra.mxu0 %v5722
    %5782 = vmatprep.subr.bf16.mxu0 %v5727
    %5783 = vmatpush1.bf16.msra.mxu0 %v5726
    %5784 = vmatprep.subr.bf16.mxu0 %v5731
    %5785 = vmatpush1.bf16.msra.mxu0 %v5730
    %5786 = vmatprep.subr.bf16.mxu0 %v5735
    %5787 = vmatpush1.bf16.msra.mxu0 %v5734
    %5788 = vmatprep.subr.bf16.mxu0 %v5739
    %5789 = vmatpush1.bf16.msra.mxu0 %v5738
    %5790 = vmatprep.subr.bf16.mxu0 0
    %5791 = vmatpush1.bf16.msra.mxu0 0
    %5792 = vmatprep.subr.bf16.mxu0 0
    %5793 = vmatpush1.bf16.msra.mxu0 0
    %5794 = vmatprep.subr.bf16.mxu0 0
    %5795 = vmatpush1.bf16.msra.mxu0 0
    %5796 = vmatprep.subr.bf16.mxu0 0
    %5797 = vmatpush1.bf16.msra.mxu0 0
    %5798 = vmatprep.subr.bf16.mxu0 0
    %5799 = vmatpush1.bf16.msra.mxu0 0
    %5800 = vmatprep.subr.bf16.mxu0 0
    %5801 = vmatpush1.bf16.msra.mxu0 0
    %5802 = vmatprep.subr.bf16.mxu0 0
    %5803 = vmatpush1.bf16.msra.mxu0 0
    %5804 = vmatprep.subr.bf16.mxu0 0
    %5805 = vmatpush1.bf16.msra.mxu0 0
    %5806 = vmatprep.mubr.bf16.mxu0 0
    %5807 = vmatmul.mubr.bf16.gmra.mrb[0].mxu0 %v5612
    %v5808 = vpop.f32.mrb[0].mxu0
    %v5809 = vadd.f32 0.0, %v5808
    %v5810 = vpop.f32.mrb[0].mxu0
    %v5811 = vadd.f32 0.0, %v5810
    %v5812 = vpop.f32.mrb[0].mxu0
    %v5813 = vpop.f32.mrb[0].mxu0
    %5814 = vdwg.mxu0
    %5815 = vmatprep.subr.bf16.mxu0 %v5713
    %5816 = vmatpush1.bf16.msra.mxu0 %v5712
    %5817 = vmatprep.subr.bf16.mxu0 %v5717
    %5818 = vmatpush1.bf16.msra.mxu0 %v5716
    %5819 = vmatprep.subr.bf16.mxu0 %v5721
    %5820 = vmatpush1.bf16.msra.mxu0 %v5720
    %5821 = vmatprep.subr.bf16.mxu0 %v5725
    %5822 = vmatpush1.bf16.msra.mxu0 %v5724
    %5823 = vmatprep.subr.bf16.mxu0 %v5729
    %5824 = vmatpush1.bf16.msra.mxu0 %v5728
    %5825 = vmatprep.subr.bf16.mxu0 %v5733
    %5826 = vmatpush1.bf16.msra.mxu0 %v5732
    %5827 = vmatprep.subr.bf16.mxu0 %v5737
    %5828 = vmatpush1.bf16.msra.mxu0 %v5736
    %5829 = vmatprep.subr.bf16.mxu0 %v5741
    %5830 = vmatpush1.bf16.msra.mxu0 %v5740
    %5831 = vmatprep.subr.bf16.mxu0 0
    %5832 = vmatpush1.bf16.msra.mxu0 0
    %5833 = vmatprep.subr.bf16.mxu0 0
    %5834 = vmatpush1.bf16.msra.mxu0 0
    %5835 = vmatprep.subr.bf16.mxu0 0
    %5836 = vmatpush1.bf16.msra.mxu0 0
    %5837 = vmatprep.subr.bf16.mxu0 0
    %5838 = vmatpush1.bf16.msra.mxu0 0
    %5839 = vmatprep.subr.bf16.mxu0 0
    %5840 = vmatpush1.bf16.msra.mxu0 0
    %5841 = vmatprep.subr.bf16.mxu0 0
    %5842 = vmatpush1.bf16.msra.mxu0 0
    %5843 = vmatprep.subr.bf16.mxu0 0
    %5844 = vmatpush1.bf16.msra.mxu0 0
    %5845 = vmatprep.subr.bf16.mxu0 0
    %5846 = vmatpush1.bf16.msra.mxu0 0
    %5847 = vmatprep.mubr.bf16.mxu0 0
    %5848 = vmatmul.mubr.bf16.gmra.mrb[0].mxu0 %v5612
    %v5849 = vpop.f32.mrb[0].mxu0
    %v5850 = vadd.f32 0.0, %v5849
    %v5851 = vpop.f32.mrb[0].mxu0
    %v5852 = vadd.f32 0.0, %v5851
    %v5853 = vpop.f32.mrb[0].mxu0
    %v5854 = vpop.f32.mrb[0].mxu0
    %5855 = vdwg.mxu0
    %v5860 = vcombine.low %v5809, %v5811
    %v5861 = vcombine.low %v5850, %v5852
    %v5863 = vunpack.c.l.s4 1966171168
    %v5864 = vunpack.c.0.s8 %v5863
    %v5865 = vlaneseq
    %v5866 = vshrl.u32 %v5865, 7
    %v5867 = vsub.s32 %v5864, %v5866
    %v5868 = vrot.slane %v5860, %v5867
    %v5870 = vunpack.c.l.s4 1966171168
    %v5871 = vunpack.c.0.s8 %v5870
    %v5872 = vlaneseq
    %v5873 = vshrl.u32 %v5872, 7
    %v5874 = vsub.s32 %v5871, %v5873
    %v5875 = vrot.slane %v5861, %v5874
    %v5876 = vcombine.low %v5868, %v5875
    %v5877 = vcombine.high %v5868, %v5875
    %v5879 = vunpack.c.l.s4 1966171168
    %v5880 = vunpack.c.0.s8 %v5879
    %v5881 = vlaneseq
    %v5882 = vshrl.u32 %v5881, 7
    %v5883 = vsub.s32 %v5880, %v5882
    %v5884 = vrot.slane %v5876, %v5883
    %v5886 = vunpack.c.l.s4 1966171168
    %v5887 = vunpack.c.0.s8 %v5886
    %v5888 = vlaneseq
    %v5889 = vshrl.u32 %v5888, 7
    %v5890 = vsub.s32 %v5887, %v5889
    %v5891 = vrot.slane %v5877, %v5890
    %v5894 = vadd.f32 %v5570, %v5884
    %v5895 = vadd.f32 %v5571, %v5891
    %v5896 = vxor.u32 %v5894, 2147483648
    %v5897 = vxor.u32 %v5895, 2147483648
    %v5898 = vmul.f32 %v5896, 1.442695
    %v5899 = vpow.pop %v5898
    %v5900 = vmul.f32 %v5897, 1.442695
    %v5901 = vpow.pop %v5900
    %v5902 = vadd.f32 %v5899, 1.0
    %v5903 = vadd.f32 %v5901, 1.0
    %v5904 = vrcp.pop %v5902
    %v5905 = vmul.f32 1.0, %v5904
    %v5906 = vrcp.pop %v5903
    %v5907 = vmul.f32 1.0, %v5906
    %v5910 = vrot.slane %v5894, 1
    %v5911 = vrot.slane %v5895, 1
    %v5914 = vxor.u32 %v5910, 2147483648
    %v5915 = vxor.u32 %v5911, 2147483648
    %v5916 = vmul.f32 %v5914, 1.442695
    %v5917 = vpow.pop %v5916
    %v5918 = vmul.f32 %v5915, 1.442695
    %v5919 = vpow.pop %v5918
    %v5920 = vadd.f32 %v5917, 1.0
    %v5921 = vadd.f32 %v5919, 1.0
    %v5922 = vrcp.pop %v5920
    %v5923 = vmul.f32 1.0, %v5922
    %v5924 = vrcp.pop %v5921
    %v5925 = vmul.f32 1.0, %v5924
    %v5926 = vrot.slane %v5894, 2
    %v5927 = vrot.slane %v5895, 2
    %v5930 = vtanh.pop %v5926
    %v5931 = vtanh.pop %v5927
    %v5932 = vrot.slane %v5894, 3
    %v5933 = vrot.slane %v5895, 3
    %v5936 = vxor.u32 %v5932, 2147483648
    %v5937 = vxor.u32 %v5933, 2147483648
    %v5938 = vmul.f32 %v5936, 1.442695
    %v5939 = vpow.pop %v5938
    %v5940 = vmul.f32 %v5937, 1.442695
    %v5941 = vpow.pop %v5940
    %v5942 = vadd.f32 %v5939, 1.0
    %v5943 = vadd.f32 %v5941, 1.0
    %v5944 = vrcp.pop %v5942
    %v5945 = vmul.f32 1.0, %v5944
    %v5946 = vrcp.pop %v5943
    %v5947 = vmul.f32 1.0, %v5946
    %v5948 = vmul.f32 %v5923, %v5562
    %v5949 = vmul.f32 %v5925, %v5563
    %v5950 = vmul.f32 %v5905, %v5930
    %v5951 = vmul.f32 %v5907, %v5931
    %v5952 = vadd.f32 %v5948, %v5950
    %v5953 = vadd.f32 %v5949, %v5951
    %v5954 = vtanh.pop %v5952
    %v5955 = vtanh.pop %v5953
    %v5956 = vmul.f32 %v5945, %v5954
    %v5957 = vmul.f32 %v5947, %v5955
    %5958 = vst [vmem:[#allocation2 + $0x4] sm:$0x1] %v5956
    %5959 = vst [vmem:[#allocation2 + $0xc] sm:$0x1] %v5957
    %v5960 = vld [vmem:[%s2530] ss:$8 sm:$0xf]
    %v5961 = vld [vmem:[%s2532] ss:$8 sm:$0xf]
    %v5962 = vpack.c.bf16 %v5956, %v5956
    %v5963 = vpack.c.bf16 %v5957, %v5957
    %v5964 = vld [vmem:[%s4021] sm:$0xff]
    %v5965 = vld [vmem:[%s4021 + $0x8] sm:$0xff]
    %v5966 = vld [vmem:[%s4021 + $0x10] sm:$0xff]
    %v5967 = vld [vmem:[%s4021 + $0x18] sm:$0xff]
    %v5968 = vld [vmem:[%s4021 + $0x20] sm:$0xff]
    %v5969 = vld [vmem:[%s4021 + $0x28] sm:$0xff]
    %v5970 = vld [vmem:[%s4021 + $0x30] sm:$0xff]
    %v5971 = vld [vmem:[%s4021 + $0x38] sm:$0xff]
    %v5972 = vld [vmem:[%s4021 + $0x40] sm:$0xff]
    %v5973 = vld [vmem:[%s4021 + $0x48] sm:$0xff]
    %v5974 = vld [vmem:[%s4021 + $0x50] sm:$0xff]
    %v5975 = vld [vmem:[%s4021 + $0x58] sm:$0xff]
    %v5976 = vld [vmem:[%s4021 + $0x60] sm:$0xff]
    %v5977 = vld [vmem:[%s4021 + $0x68] sm:$0xff]
    %v5978 = vld [vmem:[%s4021 + $0x70] sm:$0xff]
    %v5979 = vld [vmem:[%s4021 + $0x78] sm:$0xff]
    %v5980 = vld [vmem:[%s4021 + $0x80] sm:$0xff]
    %v5981 = vld [vmem:[%s4021 + $0x88] sm:$0xff]
    %v5982 = vld [vmem:[%s4021 + $0x90] sm:$0xff]
    %v5983 = vld [vmem:[%s4021 + $0x98] sm:$0xff]
    %v5984 = vld [vmem:[%s4021 + $0xa0] sm:$0xff]
    %v5985 = vld [vmem:[%s4021 + $0xa8] sm:$0xff]
    %v5986 = vld [vmem:[%s4021 + $0xb0] sm:$0xff]
    %v5987 = vld [vmem:[%s4021 + $0xb8] sm:$0xff]
    %v5988 = vld [vmem:[%s4021 + $0xc0] sm:$0xff]
    %v5989 = vld [vmem:[%s4021 + $0xc8] sm:$0xff]
    %v5990 = vld [vmem:[%s4021 + $0xd0] sm:$0xff]
    %v5991 = vld [vmem:[%s4021 + $0xd8] sm:$0xff]
    %v5992 = vld [vmem:[%s4021 + $0xe0] sm:$0xff]
    %v5993 = vld [vmem:[%s4021 + $0xe8] sm:$0xff]
    %v5994 = vld [vmem:[%s4021 + $0xf0] sm:$0xff]
    %v5995 = vld [vmem:[%s4021 + $0xf8] sm:$0xff]
    %v5998 = vunpack.c.l.b16 %v5962
    %v5999 = vunpack.c.l.b16 %v5963
    %v6000 = vrot.slane %v5999, 7
    %v6001 = vsel %vm1004, %v6000, %v5998
    %v6002 = vpack.c.b16 %v6001, %v6001
    %v6036 = vunpack.c.l.b16 %v5964
    %v6037 = vunpack.c.h.b16 %v5964
    %v6038 = vunpack.c.l.b16 %v5965
    %v6039 = vunpack.c.h.b16 %v5965
    %v6040 = vunpack.c.l.b16 %v5966
    %v6041 = vunpack.c.h.b16 %v5966
    %v6042 = vunpack.c.l.b16 %v5967
    %v6043 = vunpack.c.h.b16 %v5967
    %v6044 = vunpack.c.l.b16 %v5968
    %v6045 = vunpack.c.h.b16 %v5968
    %v6046 = vunpack.c.l.b16 %v5969
    %v6047 = vunpack.c.h.b16 %v5969
    %v6048 = vunpack.c.l.b16 %v5970
    %v6049 = vunpack.c.h.b16 %v5970
    %v6050 = vunpack.c.l.b16 %v5971
    %v6051 = vunpack.c.h.b16 %v5971
    %v6052 = vunpack.c.l.b16 %v5972
    %v6053 = vunpack.c.h.b16 %v5972
    %v6054 = vunpack.c.l.b16 %v5973
    %v6055 = vunpack.c.h.b16 %v5973
    %v6056 = vunpack.c.l.b16 %v5974
    %v6057 = vunpack.c.h.b16 %v5974
    %v6058 = vunpack.c.l.b16 %v5975
    %v6059 = vunpack.c.h.b16 %v5975
    %v6060 = vunpack.c.l.b16 %v5976
    %v6061 = vunpack.c.h.b16 %v5976
    %v6062 = vunpack.c.l.b16 %v5977
    %v6063 = vunpack.c.h.b16 %v5977
    %v6064 = vunpack.c.l.b16 %v5978
    %v6065 = vunpack.c.h.b16 %v5978
    %v6066 = vunpack.c.l.b16 %v5979
    %v6067 = vunpack.c.h.b16 %v5979
    %v6068 = vunpack.c.l.b16 %v5980
    %v6069 = vunpack.c.h.b16 %v5980
    %v6070 = vunpack.c.l.b16 %v5981
    %v6071 = vunpack.c.h.b16 %v5981
    %v6072 = vunpack.c.l.b16 %v5982
    %v6073 = vunpack.c.h.b16 %v5982
    %v6074 = vunpack.c.l.b16 %v5983
    %v6075 = vunpack.c.h.b16 %v5983
    %v6076 = vunpack.c.l.b16 %v5984
    %v6077 = vunpack.c.h.b16 %v5984
    %v6078 = vunpack.c.l.b16 %v5985
    %v6079 = vunpack.c.h.b16 %v5985
    %v6080 = vunpack.c.l.b16 %v5986
    %v6081 = vunpack.c.h.b16 %v5986
    %v6082 = vunpack.c.l.b16 %v5987
    %v6083 = vunpack.c.h.b16 %v5987
    %v6084 = vunpack.c.l.b16 %v5988
    %v6085 = vunpack.c.h.b16 %v5988
    %v6086 = vunpack.c.l.b16 %v5989
    %v6087 = vunpack.c.h.b16 %v5989
    %v6088 = vunpack.c.l.b16 %v5990
    %v6089 = vunpack.c.h.b16 %v5990
    %v6090 = vunpack.c.l.b16 %v5991
    %v6091 = vunpack.c.h.b16 %v5991
    %v6092 = vunpack.c.l.b16 %v5992
    %v6093 = vunpack.c.h.b16 %v5992
    %v6094 = vunpack.c.l.b16 %v5993
    %v6095 = vunpack.c.h.b16 %v5993
    %v6096 = vunpack.c.l.b16 %v5994
    %v6097 = vunpack.c.h.b16 %v5994
    %v6098 = vunpack.c.l.b16 %v5995
    %v6099 = vunpack.c.h.b16 %v5995
    %v6100 = vpack.c.b16 %v6040, %v6036
    %v6101 = vpack.c.b16 %v6041, %v6037
    %v6102 = vpack.c.b16 %v6042, %v6038
    %v6103 = vpack.c.b16 %v6043, %v6039
    %v6104 = vpack.c.b16 %v6048, %v6044
    %v6105 = vpack.c.b16 %v6049, %v6045
    %v6106 = vpack.c.b16 %v6050, %v6046
    %v6107 = vpack.c.b16 %v6051, %v6047
    %v6108 = vpack.c.b16 %v6056, %v6052
    %v6109 = vpack.c.b16 %v6057, %v6053
    %v6110 = vpack.c.b16 %v6058, %v6054
    %v6111 = vpack.c.b16 %v6059, %v6055
    %v6112 = vpack.c.b16 %v6064, %v6060
    %v6113 = vpack.c.b16 %v6065, %v6061
    %v6114 = vpack.c.b16 %v6066, %v6062
    %v6115 = vpack.c.b16 %v6067, %v6063
    %v6116 = vpack.c.b16 %v6072, %v6068
    %v6117 = vpack.c.b16 %v6073, %v6069
    %v6118 = vpack.c.b16 %v6074, %v6070
    %v6119 = vpack.c.b16 %v6075, %v6071
    %v6120 = vpack.c.b16 %v6080, %v6076
    %v6121 = vpack.c.b16 %v6081, %v6077
    %v6122 = vpack.c.b16 %v6082, %v6078
    %v6123 = vpack.c.b16 %v6083, %v6079
    %v6124 = vpack.c.b16 %v6088, %v6084
    %v6125 = vpack.c.b16 %v6089, %v6085
    %v6126 = vpack.c.b16 %v6090, %v6086
    %v6127 = vpack.c.b16 %v6091, %v6087
    %v6128 = vpack.c.b16 %v6096, %v6092
    %v6129 = vpack.c.b16 %v6097, %v6093
    %v6130 = vpack.c.b16 %v6098, %v6094
    %v6131 = vpack.c.b16 %v6099, %v6095
    %6164 = vmatprep.subr.bf16.mxu0 %v6101
    %6165 = vmatpush1.bf16.msra.mxu0 %v6100
    %6166 = vmatprep.subr.bf16.mxu0 %v6105
    %6167 = vmatpush1.bf16.msra.mxu0 %v6104
    %6168 = vmatprep.subr.bf16.mxu0 %v6109
    %6169 = vmatpush1.bf16.msra.mxu0 %v6108
    %6170 = vmatprep.subr.bf16.mxu0 %v6113
    %6171 = vmatpush1.bf16.msra.mxu0 %v6112
    %6172 = vmatprep.subr.bf16.mxu0 %v6117
    %6173 = vmatpush1.bf16.msra.mxu0 %v6116
    %6174 = vmatprep.subr.bf16.mxu0 %v6121
    %6175 = vmatpush1.bf16.msra.mxu0 %v6120
    %6176 = vmatprep.subr.bf16.mxu0 %v6125
    %6177 = vmatpush1.bf16.msra.mxu0 %v6124
    %6178 = vmatprep.subr.bf16.mxu0 %v6129
    %6179 = vmatpush1.bf16.msra.mxu0 %v6128
    %6180 = vmatprep.subr.bf16.mxu0 0
    %6181 = vmatpush1.bf16.msra.mxu0 0
    %6182 = vmatprep.subr.bf16.mxu0 0
    %6183 = vmatpush1.bf16.msra.mxu0 0
    %6184 = vmatprep.subr.bf16.mxu0 0
    %6185 = vmatpush1.bf16.msra.mxu0 0
    %6186 = vmatprep.subr.bf16.mxu0 0
    %6187 = vmatpush1.bf16.msra.mxu0 0
    %6188 = vmatprep.subr.bf16.mxu0 0
    %6189 = vmatpush1.bf16.msra.mxu0 0
    %6190 = vmatprep.subr.bf16.mxu0 0
    %6191 = vmatpush1.bf16.msra.mxu0 0
    %6192 = vmatprep.subr.bf16.mxu0 0
    %6193 = vmatpush1.bf16.msra.mxu0 0
    %6194 = vmatprep.subr.bf16.mxu0 0
    %6195 = vmatpush1.bf16.msra.mxu0 0
    %6196 = vmatprep.mubr.bf16.mxu0 0
    %6197 = vmatmul.mubr.bf16.gmra.mrb[0].mxu0 %v6002
    %v6198 = vpop.f32.mrb[0].mxu0
    %v6199 = vadd.f32 0.0, %v6198
    %v6200 = vpop.f32.mrb[0].mxu0
    %v6201 = vadd.f32 0.0, %v6200
    %v6202 = vpop.f32.mrb[0].mxu0
    %v6203 = vpop.f32.mrb[0].mxu0
    %6204 = vdwg.mxu0
    %6205 = vmatprep.subr.bf16.mxu0 %v6103
    %6206 = vmatpush1.bf16.msra.mxu0 %v6102
    %6207 = vmatprep.subr.bf16.mxu0 %v6107
    %6208 = vmatpush1.bf16.msra.mxu0 %v6106
    %6209 = vmatprep.subr.bf16.mxu0 %v6111
    %6210 = vmatpush1.bf16.msra.mxu0 %v6110
    %6211 = vmatprep.subr.bf16.mxu0 %v6115
    %6212 = vmatpush1.bf16.msra.mxu0 %v6114
    %6213 = vmatprep.subr.bf16.mxu0 %v6119
    %6214 = vmatpush1.bf16.msra.mxu0 %v6118
    %6215 = vmatprep.subr.bf16.mxu0 %v6123
    %6216 = vmatpush1.bf16.msra.mxu0 %v6122
    %6217 = vmatprep.subr.bf16.mxu0 %v6127
    %6218 = vmatpush1.bf16.msra.mxu0 %v6126
    %6219 = vmatprep.subr.bf16.mxu0 %v6131
    %6220 = vmatpush1.bf16.msra.mxu0 %v6130
    %6221 = vmatprep.subr.bf16.mxu0 0
    %6222 = vmatpush1.bf16.msra.mxu0 0
    %6223 = vmatprep.subr.bf16.mxu0 0
    %6224 = vmatpush1.bf16.msra.mxu0 0
    %6225 = vmatprep.subr.bf16.mxu0 0
    %6226 = vmatpush1.bf16.msra.mxu0 0
    %6227 = vmatprep.subr.bf16.mxu0 0
    %6228 = vmatpush1.bf16.msra.mxu0 0
    %6229 = vmatprep.subr.bf16.mxu0 0
    %6230 = vmatpush1.bf16.msra.mxu0 0
    %6231 = vmatprep.subr.bf16.mxu0 0
    %6232 = vmatpush1.bf16.msra.mxu0 0
    %6233 = vmatprep.subr.bf16.mxu0 0
    %6234 = vmatpush1.bf16.msra.mxu0 0
    %6235 = vmatprep.subr.bf16.mxu0 0
    %6236 = vmatpush1.bf16.msra.mxu0 0
    %6237 = vmatprep.mubr.bf16.mxu0 0
    %6238 = vmatmul.mubr.bf16.gmra.mrb[0].mxu0 %v6002
    %v6239 = vpop.f32.mrb[0].mxu0
    %v6240 = vadd.f32 0.0, %v6239
    %v6241 = vpop.f32.mrb[0].mxu0
    %v6242 = vadd.f32 0.0, %v6241
    %v6243 = vpop.f32.mrb[0].mxu0
    %v6244 = vpop.f32.mrb[0].mxu0
    %6245 = vdwg.mxu0
    %v6250 = vcombine.low %v6199, %v6201
    %v6251 = vcombine.low %v6240, %v6242
    %v6253 = vunpack.c.l.s4 1966171168
    %v6254 = vunpack.c.0.s8 %v6253
    %v6255 = vlaneseq
    %v6256 = vshrl.u32 %v6255, 7
    %v6257 = vsub.s32 %v6254, %v6256
    %v6258 = vrot.slane %v6250, %v6257
    %v6260 = vunpack.c.l.s4 1966171168
    %v6261 = vunpack.c.0.s8 %v6260
    %v6262 = vlaneseq
    %v6263 = vshrl.u32 %v6262, 7
    %v6264 = vsub.s32 %v6261, %v6263
    %v6265 = vrot.slane %v6251, %v6264
    %v6266 = vcombine.low %v6258, %v6265
    %v6267 = vcombine.high %v6258, %v6265
    %v6269 = vunpack.c.l.s4 1966171168
    %v6270 = vunpack.c.0.s8 %v6269
    %v6271 = vlaneseq
    %v6272 = vshrl.u32 %v6271, 7
    %v6273 = vsub.s32 %v6270, %v6272
    %v6274 = vrot.slane %v6266, %v6273
    %v6276 = vunpack.c.l.s4 1966171168
    %v6277 = vunpack.c.0.s8 %v6276
    %v6278 = vlaneseq
    %v6279 = vshrl.u32 %v6278, 7
    %v6280 = vsub.s32 %v6277, %v6279
    %v6281 = vrot.slane %v6267, %v6280
    %v6284 = vadd.f32 %v5960, %v6274
    %v6285 = vadd.f32 %v5961, %v6281
    %v6286 = vxor.u32 %v6284, 2147483648
    %v6287 = vxor.u32 %v6285, 2147483648
    %v6288 = vmul.f32 %v6286, 1.442695
    %v6289 = vpow.pop %v6288
    %v6290 = vmul.f32 %v6287, 1.442695
    %v6291 = vpow.pop %v6290
    %v6292 = vadd.f32 %v6289, 1.0
    %v6293 = vadd.f32 %v6291, 1.0
    %v6294 = vrcp.pop %v6292
    %v6295 = vmul.f32 1.0, %v6294
    %v6296 = vrcp.pop %v6293
    %v6297 = vmul.f32 1.0, %v6296
    %v6300 = vrot.slane %v6284, 1
    %v6301 = vrot.slane %v6285, 1
    %v6304 = vxor.u32 %v6300, 2147483648
    %v6305 = vxor.u32 %v6301, 2147483648
    %v6306 = vmul.f32 %v6304, 1.442695
    %v6307 = vpow.pop %v6306
    %v6308 = vmul.f32 %v6305, 1.442695
    %v6309 = vpow.pop %v6308
    %v6310 = vadd.f32 %v6307, 1.0
    %v6311 = vadd.f32 %v6309, 1.0
    %v6312 = vrcp.pop %v6310
    %v6313 = vmul.f32 1.0, %v6312
    %v6314 = vrcp.pop %v6311
    %v6315 = vmul.f32 1.0, %v6314
    %v6316 = vrot.slane %v6284, 2
    %v6317 = vrot.slane %v6285, 2
    %v6320 = vtanh.pop %v6316
    %v6321 = vtanh.pop %v6317
    %v6322 = vrot.slane %v6284, 3
    %v6323 = vrot.slane %v6285, 3
    %v6326 = vxor.u32 %v6322, 2147483648
    %v6327 = vxor.u32 %v6323, 2147483648
    %v6328 = vmul.f32 %v6326, 1.442695
    %v6329 = vpow.pop %v6328
    %v6330 = vmul.f32 %v6327, 1.442695
    %v6331 = vpow.pop %v6330
    %v6332 = vadd.f32 %v6329, 1.0
    %v6333 = vadd.f32 %v6331, 1.0
    %v6334 = vrcp.pop %v6332
    %v6335 = vmul.f32 1.0, %v6334
    %v6336 = vrcp.pop %v6333
    %v6337 = vmul.f32 1.0, %v6336
    %v6338 = vmul.f32 %v6313, %v5952
    %v6339 = vmul.f32 %v6315, %v5953
    %v6340 = vmul.f32 %v6295, %v6320
    %v6341 = vmul.f32 %v6297, %v6321
    %v6342 = vadd.f32 %v6338, %v6340
    %v6343 = vadd.f32 %v6339, %v6341
    %v6344 = vtanh.pop %v6342
    %v6345 = vtanh.pop %v6343
    %v6346 = vmul.f32 %v6335, %v6344
    %v6347 = vmul.f32 %v6337, %v6345
    %6348 = vst [vmem:[#allocation2 + $0x5] sm:$0x1] %v6346
    %6349 = vst [vmem:[#allocation2 + $0xd] sm:$0x1] %v6347
    %v6350 = vld [vmem:[%s2922] ss:$8 sm:$0xf]
    %v6351 = vld [vmem:[%s2924] ss:$8 sm:$0xf]
    %v6352 = vpack.c.bf16 %v6346, %v6346
    %v6353 = vpack.c.bf16 %v6347, %v6347
    %v6354 = vld [vmem:[%s4021] sm:$0xff]
    %v6355 = vld [vmem:[%s4021 + $0x8] sm:$0xff]
    %v6356 = vld [vmem:[%s4021 + $0x10] sm:$0xff]
    %v6357 = vld [vmem:[%s4021 + $0x18] sm:$0xff]
    %v6358 = vld [vmem:[%s4021 + $0x20] sm:$0xff]
    %v6359 = vld [vmem:[%s4021 + $0x28] sm:$0xff]
    %v6360 = vld [vmem:[%s4021 + $0x30] sm:$0xff]
    %v6361 = vld [vmem:[%s4021 + $0x38] sm:$0xff]
    %v6362 = vld [vmem:[%s4021 + $0x40] sm:$0xff]
    %v6363 = vld [vmem:[%s4021 + $0x48] sm:$0xff]
    %v6364 = vld [vmem:[%s4021 + $0x50] sm:$0xff]
    %v6365 = vld [vmem:[%s4021 + $0x58] sm:$0xff]
    %v6366 = vld [vmem:[%s4021 + $0x60] sm:$0xff]
    %v6367 = vld [vmem:[%s4021 + $0x68] sm:$0xff]
    %v6368 = vld [vmem:[%s4021 + $0x70] sm:$0xff]
    %v6369 = vld [vmem:[%s4021 + $0x78] sm:$0xff]
    %v6370 = vld [vmem:[%s4021 + $0x80] sm:$0xff]
    %v6371 = vld [vmem:[%s4021 + $0x88] sm:$0xff]
    %v6372 = vld [vmem:[%s4021 + $0x90] sm:$0xff]
    %v6373 = vld [vmem:[%s4021 + $0x98] sm:$0xff]
    %v6374 = vld [vmem:[%s4021 + $0xa0] sm:$0xff]
    %v6375 = vld [vmem:[%s4021 + $0xa8] sm:$0xff]
    %v6376 = vld [vmem:[%s4021 + $0xb0] sm:$0xff]
    %v6377 = vld [vmem:[%s4021 + $0xb8] sm:$0xff]
    %v6378 = vld [vmem:[%s4021 + $0xc0] sm:$0xff]
    %v6379 = vld [vmem:[%s4021 + $0xc8] sm:$0xff]
    %v6380 = vld [vmem:[%s4021 + $0xd0] sm:$0xff]
    %v6381 = vld [vmem:[%s4021 + $0xd8] sm:$0xff]
    %v6382 = vld [vmem:[%s4021 + $0xe0] sm:$0xff]
    %v6383 = vld [vmem:[%s4021 + $0xe8] sm:$0xff]
    %v6384 = vld [vmem:[%s4021 + $0xf0] sm:$0xff]
    %v6385 = vld [vmem:[%s4021 + $0xf8] sm:$0xff]
    %v6388 = vunpack.c.l.b16 %v6352
    %v6389 = vunpack.c.l.b16 %v6353
    %v6390 = vrot.slane %v6389, 7
    %v6391 = vsel %vm1004, %v6390, %v6388
    %v6392 = vpack.c.b16 %v6391, %v6391
    %v6426 = vunpack.c.l.b16 %v6354
    %v6427 = vunpack.c.h.b16 %v6354
    %v6428 = vunpack.c.l.b16 %v6355
    %v6429 = vunpack.c.h.b16 %v6355
    %v6430 = vunpack.c.l.b16 %v6356
    %v6431 = vunpack.c.h.b16 %v6356
    %v6432 = vunpack.c.l.b16 %v6357
    %v6433 = vunpack.c.h.b16 %v6357
    %v6434 = vunpack.c.l.b16 %v6358
    %v6435 = vunpack.c.h.b16 %v6358
    %v6436 = vunpack.c.l.b16 %v6359
    %v6437 = vunpack.c.h.b16 %v6359
    %v6438 = vunpack.c.l.b16 %v6360
    %v6439 = vunpack.c.h.b16 %v6360
    %v6440 = vunpack.c.l.b16 %v6361
    %v6441 = vunpack.c.h.b16 %v6361
    %v6442 = vunpack.c.l.b16 %v6362
    %v6443 = vunpack.c.h.b16 %v6362
    %v6444 = vunpack.c.l.b16 %v6363
    %v6445 = vunpack.c.h.b16 %v6363
    %v6446 = vunpack.c.l.b16 %v6364
    %v6447 = vunpack.c.h.b16 %v6364
    %v6448 = vunpack.c.l.b16 %v6365
    %v6449 = vunpack.c.h.b16 %v6365
    %v6450 = vunpack.c.l.b16 %v6366
    %v6451 = vunpack.c.h.b16 %v6366
    %v6452 = vunpack.c.l.b16 %v6367
    %v6453 = vunpack.c.h.b16 %v6367
    %v6454 = vunpack.c.l.b16 %v6368
    %v6455 = vunpack.c.h.b16 %v6368
    %v6456 = vunpack.c.l.b16 %v6369
    %v6457 = vunpack.c.h.b16 %v6369
    %v6458 = vunpack.c.l.b16 %v6370
    %v6459 = vunpack.c.h.b16 %v6370
    %v6460 = vunpack.c.l.b16 %v6371
    %v6461 = vunpack.c.h.b16 %v6371
    %v6462 = vunpack.c.l.b16 %v6372
    %v6463 = vunpack.c.h.b16 %v6372
    %v6464 = vunpack.c.l.b16 %v6373
    %v6465 = vunpack.c.h.b16 %v6373
    %v6466 = vunpack.c.l.b16 %v6374
    %v6467 = vunpack.c.h.b16 %v6374
    %v6468 = vunpack.c.l.b16 %v6375
    %v6469 = vunpack.c.h.b16 %v6375
    %v6470 = vunpack.c.l.b16 %v6376
    %v6471 = vunpack.c.h.b16 %v6376
    %v6472 = vunpack.c.l.b16 %v6377
    %v6473 = vunpack.c.h.b16 %v6377
    %v6474 = vunpack.c.l.b16 %v6378
    %v6475 = vunpack.c.h.b16 %v6378
    %v6476 = vunpack.c.l.b16 %v6379
    %v6477 = vunpack.c.h.b16 %v6379
    %v6478 = vunpack.c.l.b16 %v6380
    %v6479 = vunpack.c.h.b16 %v6380
    %v6480 = vunpack.c.l.b16 %v6381
    %v6481 = vunpack.c.h.b16 %v6381
    %v6482 = vunpack.c.l.b16 %v6382
    %v6483 = vunpack.c.h.b16 %v6382
    %v6484 = vunpack.c.l.b16 %v6383
    %v6485 = vunpack.c.h.b16 %v6383
    %v6486 = vunpack.c.l.b16 %v6384
    %v6487 = vunpack.c.h.b16 %v6384
    %v6488 = vunpack.c.l.b16 %v6385
    %v6489 = vunpack.c.h.b16 %v6385
    %v6490 = vpack.c.b16 %v6430, %v6426
    %v6491 = vpack.c.b16 %v6431, %v6427
    %v6492 = vpack.c.b16 %v6432, %v6428
    %v6493 = vpack.c.b16 %v6433, %v6429
    %v6494 = vpack.c.b16 %v6438, %v6434
    %v6495 = vpack.c.b16 %v6439, %v6435
    %v6496 = vpack.c.b16 %v6440, %v6436
    %v6497 = vpack.c.b16 %v6441, %v6437
    %v6498 = vpack.c.b16 %v6446, %v6442
    %v6499 = vpack.c.b16 %v6447, %v6443
    %v6500 = vpack.c.b16 %v6448, %v6444
    %v6501 = vpack.c.b16 %v6449, %v6445
    %v6502 = vpack.c.b16 %v6454, %v6450
    %v6503 = vpack.c.b16 %v6455, %v6451
    %v6504 = vpack.c.b16 %v6456, %v6452
    %v6505 = vpack.c.b16 %v6457, %v6453
    %v6506 = vpack.c.b16 %v6462, %v6458
    %v6507 = vpack.c.b16 %v6463, %v6459
    %v6508 = vpack.c.b16 %v6464, %v6460
    %v6509 = vpack.c.b16 %v6465, %v6461
    %v6510 = vpack.c.b16 %v6470, %v6466
    %v6511 = vpack.c.b16 %v6471, %v6467
    %v6512 = vpack.c.b16 %v6472, %v6468
    %v6513 = vpack.c.b16 %v6473, %v6469
    %v6514 = vpack.c.b16 %v6478, %v6474
    %v6515 = vpack.c.b16 %v6479, %v6475
    %v6516 = vpack.c.b16 %v6480, %v6476
    %v6517 = vpack.c.b16 %v6481, %v6477
    %v6518 = vpack.c.b16 %v6486, %v6482
    %v6519 = vpack.c.b16 %v6487, %v6483
    %v6520 = vpack.c.b16 %v6488, %v6484
    %v6521 = vpack.c.b16 %v6489, %v6485
    %6554 = vmatprep.subr.bf16.mxu0 %v6491
    %6555 = vmatpush1.bf16.msra.mxu0 %v6490
    %6556 = vmatprep.subr.bf16.mxu0 %v6495
    %6557 = vmatpush1.bf16.msra.mxu0 %v6494
    %6558 = vmatprep.subr.bf16.mxu0 %v6499
    %6559 = vmatpush1.bf16.msra.mxu0 %v6498
    %6560 = vmatprep.subr.bf16.mxu0 %v6503
    %6561 = vmatpush1.bf16.msra.mxu0 %v6502
    %6562 = vmatprep.subr.bf16.mxu0 %v6507
    %6563 = vmatpush1.bf16.msra.mxu0 %v6506
    %6564 = vmatprep.subr.bf16.mxu0 %v6511
    %6565 = vmatpush1.bf16.msra.mxu0 %v6510
    %6566 = vmatprep.subr.bf16.mxu0 %v6515
    %6567 = vmatpush1.bf16.msra.mxu0 %v6514
    %6568 = vmatprep.subr.bf16.mxu0 %v6519
    %6569 = vmatpush1.bf16.msra.mxu0 %v6518
    %6570 = vmatprep.subr.bf16.mxu0 0
    %6571 = vmatpush1.bf16.msra.mxu0 0
    %6572 = vmatprep.subr.bf16.mxu0 0
    %6573 = vmatpush1.bf16.msra.mxu0 0
    %6574 = vmatprep.subr.bf16.mxu0 0
    %6575 = vmatpush1.bf16.msra.mxu0 0
    %6576 = vmatprep.subr.bf16.mxu0 0
    %6577 = vmatpush1.bf16.msra.mxu0 0
    %6578 = vmatprep.subr.bf16.mxu0 0
    %6579 = vmatpush1.bf16.msra.mxu0 0
    %6580 = vmatprep.subr.bf16.mxu0 0
    %6581 = vmatpush1.bf16.msra.mxu0 0
    %6582 = vmatprep.subr.bf16.mxu0 0
    %6583 = vmatpush1.bf16.msra.mxu0 0
    %6584 = vmatprep.subr.bf16.mxu0 0
    %6585 = vmatpush1.bf16.msra.mxu0 0
    %6586 = vmatprep.mubr.bf16.mxu0 0
    %6587 = vmatmul.mubr.bf16.gmra.mrb[0].mxu0 %v6392
    %v6588 = vpop.f32.mrb[0].mxu0
    %v6589 = vadd.f32 0.0, %v6588
    %v6590 = vpop.f32.mrb[0].mxu0
    %v6591 = vadd.f32 0.0, %v6590
    %v6592 = vpop.f32.mrb[0].mxu0
    %v6593 = vpop.f32.mrb[0].mxu0
    %6594 = vdwg.mxu0
    %6595 = vmatprep.subr.bf16.mxu0 %v6493
    %6596 = vmatpush1.bf16.msra.mxu0 %v6492
    %6597 = vmatprep.subr.bf16.mxu0 %v6497
    %6598 = vmatpush1.bf16.msra.mxu0 %v6496
    %6599 = vmatprep.subr.bf16.mxu0 %v6501
    %6600 = vmatpush1.bf16.msra.mxu0 %v6500
    %6601 = vmatprep.subr.bf16.mxu0 %v6505
    %6602 = vmatpush1.bf16.msra.mxu0 %v6504
    %6603 = vmatprep.subr.bf16.mxu0 %v6509
    %6604 = vmatpush1.bf16.msra.mxu0 %v6508
    %6605 = vmatprep.subr.bf16.mxu0 %v6513
    %6606 = vmatpush1.bf16.msra.mxu0 %v6512
    %6607 = vmatprep.subr.bf16.mxu0 %v6517
    %6608 = vmatpush1.bf16.msra.mxu0 %v6516
    %6609 = vmatprep.subr.bf16.mxu0 %v6521
    %6610 = vmatpush1.bf16.msra.mxu0 %v6520
    %6611 = vmatprep.subr.bf16.mxu0 0
    %6612 = vmatpush1.bf16.msra.mxu0 0
    %6613 = vmatprep.subr.bf16.mxu0 0
    %6614 = vmatpush1.bf16.msra.mxu0 0
    %6615 = vmatprep.subr.bf16.mxu0 0
    %6616 = vmatpush1.bf16.msra.mxu0 0
    %6617 = vmatprep.subr.bf16.mxu0 0
    %6618 = vmatpush1.bf16.msra.mxu0 0
    %6619 = vmatprep.subr.bf16.mxu0 0
    %6620 = vmatpush1.bf16.msra.mxu0 0
    %6621 = vmatprep.subr.bf16.mxu0 0
    %6622 = vmatpush1.bf16.msra.mxu0 0
    %6623 = vmatprep.subr.bf16.mxu0 0
    %6624 = vmatpush1.bf16.msra.mxu0 0
    %6625 = vmatprep.subr.bf16.mxu0 0
    %6626 = vmatpush1.bf16.msra.mxu0 0
    %6627 = vmatprep.mubr.bf16.mxu0 0
    %6628 = vmatmul.mubr.bf16.gmra.mrb[0].mxu0 %v6392
    %v6629 = vpop.f32.mrb[0].mxu0
    %v6630 = vadd.f32 0.0, %v6629
    %v6631 = vpop.f32.mrb[0].mxu0
    %v6632 = vadd.f32 0.0, %v6631
    %v6633 = vpop.f32.mrb[0].mxu0
    %v6634 = vpop.f32.mrb[0].mxu0
    %6635 = vdwg.mxu0
    %v6640 = vcombine.low %v6589, %v6591
    %v6641 = vcombine.low %v6630, %v6632
    %v6643 = vunpack.c.l.s4 1966171168
    %v6644 = vunpack.c.0.s8 %v6643
    %v6645 = vlaneseq
    %v6646 = vshrl.u32 %v6645, 7
    %v6647 = vsub.s32 %v6644, %v6646
    %v6648 = vrot.slane %v6640, %v6647
    %v6650 = vunpack.c.l.s4 1966171168
    %v6651 = vunpack.c.0.s8 %v6650
    %v6652 = vlaneseq
    %v6653 = vshrl.u32 %v6652, 7
    %v6654 = vsub.s32 %v6651, %v6653
    %v6655 = vrot.slane %v6641, %v6654
    %v6656 = vcombine.low %v6648, %v6655
    %v6657 = vcombine.high %v6648, %v6655
    %v6659 = vunpack.c.l.s4 1966171168
    %v6660 = vunpack.c.0.s8 %v6659
    %v6661 = vlaneseq
    %v6662 = vshrl.u32 %v6661, 7
    %v6663 = vsub.s32 %v6660, %v6662
    %v6664 = vrot.slane %v6656, %v6663
    %v6666 = vunpack.c.l.s4 1966171168
    %v6667 = vunpack.c.0.s8 %v6666
    %v6668 = vlaneseq
    %v6669 = vshrl.u32 %v6668, 7
    %v6670 = vsub.s32 %v6667, %v6669
    %v6671 = vrot.slane %v6657, %v6670
    %v6674 = vadd.f32 %v6350, %v6664
    %v6675 = vadd.f32 %v6351, %v6671
    %v6676 = vxor.u32 %v6674, 2147483648
    %v6677 = vxor.u32 %v6675, 2147483648
    %v6678 = vmul.f32 %v6676, 1.442695
    %v6679 = vpow.pop %v6678
    %v6680 = vmul.f32 %v6677, 1.442695
    %v6681 = vpow.pop %v6680
    %v6682 = vadd.f32 %v6679, 1.0
    %v6683 = vadd.f32 %v6681, 1.0
    %v6684 = vrcp.pop %v6682
    %v6685 = vmul.f32 1.0, %v6684
    %v6686 = vrcp.pop %v6683
    %v6687 = vmul.f32 1.0, %v6686
    %v6690 = vrot.slane %v6674, 1
    %v6691 = vrot.slane %v6675, 1
    %v6694 = vxor.u32 %v6690, 2147483648
    %v6695 = vxor.u32 %v6691, 2147483648
    %v6696 = vmul.f32 %v6694, 1.442695
    %v6697 = vpow.pop %v6696
    %v6698 = vmul.f32 %v6695, 1.442695
    %v6699 = vpow.pop %v6698
    %v6700 = vadd.f32 %v6697, 1.0
    %v6701 = vadd.f32 %v6699, 1.0
    %v6702 = vrcp.pop %v6700
    %v6703 = vmul.f32 1.0, %v6702
    %v6704 = vrcp.pop %v6701
    %v6705 = vmul.f32 1.0, %v6704
    %v6706 = vrot.slane %v6674, 2
    %v6707 = vrot.slane %v6675, 2
    %v6710 = vtanh.pop %v6706
    %v6711 = vtanh.pop %v6707
    %v6712 = vrot.slane %v6674, 3
    %v6713 = vrot.slane %v6675, 3
    %v6716 = vxor.u32 %v6712, 2147483648
    %v6717 = vxor.u32 %v6713, 2147483648
    %v6718 = vmul.f32 %v6716, 1.442695
    %v6719 = vpow.pop %v6718
    %v6720 = vmul.f32 %v6717, 1.442695
    %v6721 = vpow.pop %v6720
    %v6722 = vadd.f32 %v6719, 1.0
    %v6723 = vadd.f32 %v6721, 1.0
    %v6724 = vrcp.pop %v6722
    %v6725 = vmul.f32 1.0, %v6724
    %v6726 = vrcp.pop %v6723
    %v6727 = vmul.f32 1.0, %v6726
    %v6728 = vmul.f32 %v6703, %v6342
    %v6729 = vmul.f32 %v6705, %v6343
    %v6730 = vmul.f32 %v6685, %v6710
    %v6731 = vmul.f32 %v6687, %v6711
    %v6732 = vadd.f32 %v6728, %v6730
    %v6733 = vadd.f32 %v6729, %v6731
    %v6734 = vtanh.pop %v6732
    %v6735 = vtanh.pop %v6733
    %v6736 = vmul.f32 %v6725, %v6734
    %v6737 = vmul.f32 %v6727, %v6735
    %6738 = vst [vmem:[#allocation2 + $0x6] sm:$0x1] %v6736
    %6739 = vst [vmem:[#allocation2 + $0xe] sm:$0x1] %v6737
    %v6740 = vld [vmem:[%s3314] ss:$8 sm:$0xf]
    %v6741 = vld [vmem:[%s3316] ss:$8 sm:$0xf]
    %v6742 = vpack.c.bf16 %v6736, %v6736
    %v6743 = vpack.c.bf16 %v6737, %v6737
    %v6744 = vld [vmem:[%s4021] sm:$0xff]
    %v6745 = vld [vmem:[%s4021 + $0x8] sm:$0xff]
    %v6746 = vld [vmem:[%s4021 + $0x10] sm:$0xff]
    %v6747 = vld [vmem:[%s4021 + $0x18] sm:$0xff]
    %v6748 = vld [vmem:[%s4021 + $0x20] sm:$0xff]
    %v6749 = vld [vmem:[%s4021 + $0x28] sm:$0xff]
    %v6750 = vld [vmem:[%s4021 + $0x30] sm:$0xff]
    %v6751 = vld [vmem:[%s4021 + $0x38] sm:$0xff]
    %v6752 = vld [vmem:[%s4021 + $0x40] sm:$0xff]
    %v6753 = vld [vmem:[%s4021 + $0x48] sm:$0xff]
    %v6754 = vld [vmem:[%s4021 + $0x50] sm:$0xff]
    %v6755 = vld [vmem:[%s4021 + $0x58] sm:$0xff]
    %v6756 = vld [vmem:[%s4021 + $0x60] sm:$0xff]
    %v6757 = vld [vmem:[%s4021 + $0x68] sm:$0xff]
    %v6758 = vld [vmem:[%s4021 + $0x70] sm:$0xff]
    %v6759 = vld [vmem:[%s4021 + $0x78] sm:$0xff]
    %v6760 = vld [vmem:[%s4021 + $0x80] sm:$0xff]
    %v6761 = vld [vmem:[%s4021 + $0x88] sm:$0xff]
    %v6762 = vld [vmem:[%s4021 + $0x90] sm:$0xff]
    %v6763 = vld [vmem:[%s4021 + $0x98] sm:$0xff]
    %v6764 = vld [vmem:[%s4021 + $0xa0] sm:$0xff]
    %v6765 = vld [vmem:[%s4021 + $0xa8] sm:$0xff]
    %v6766 = vld [vmem:[%s4021 + $0xb0] sm:$0xff]
    %v6767 = vld [vmem:[%s4021 + $0xb8] sm:$0xff]
    %v6768 = vld [vmem:[%s4021 + $0xc0] sm:$0xff]
    %v6769 = vld [vmem:[%s4021 + $0xc8] sm:$0xff]
    %v6770 = vld [vmem:[%s4021 + $0xd0] sm:$0xff]
    %v6771 = vld [vmem:[%s4021 + $0xd8] sm:$0xff]
    %v6772 = vld [vmem:[%s4021 + $0xe0] sm:$0xff]
    %v6773 = vld [vmem:[%s4021 + $0xe8] sm:$0xff]
    %v6774 = vld [vmem:[%s4021 + $0xf0] sm:$0xff]
    %v6775 = vld [vmem:[%s4021 + $0xf8] sm:$0xff]
    %v6778 = vunpack.c.l.b16 %v6742
    %v6779 = vunpack.c.l.b16 %v6743
    %v6780 = vrot.slane %v6779, 7
    %v6781 = vsel %vm1004, %v6780, %v6778
    %v6782 = vpack.c.b16 %v6781, %v6781
    %v6816 = vunpack.c.l.b16 %v6744
    %v6817 = vunpack.c.h.b16 %v6744
    %v6818 = vunpack.c.l.b16 %v6745
    %v6819 = vunpack.c.h.b16 %v6745
    %v6820 = vunpack.c.l.b16 %v6746
    %v6821 = vunpack.c.h.b16 %v6746
    %v6822 = vunpack.c.l.b16 %v6747
    %v6823 = vunpack.c.h.b16 %v6747
    %v6824 = vunpack.c.l.b16 %v6748
    %v6825 = vunpack.c.h.b16 %v6748
    %v6826 = vunpack.c.l.b16 %v6749
    %v6827 = vunpack.c.h.b16 %v6749
    %v6828 = vunpack.c.l.b16 %v6750
    %v6829 = vunpack.c.h.b16 %v6750
    %v6830 = vunpack.c.l.b16 %v6751
    %v6831 = vunpack.c.h.b16 %v6751
    %v6832 = vunpack.c.l.b16 %v6752
    %v6833 = vunpack.c.h.b16 %v6752
    %v6834 = vunpack.c.l.b16 %v6753
    %v6835 = vunpack.c.h.b16 %v6753
    %v6836 = vunpack.c.l.b16 %v6754
    %v6837 = vunpack.c.h.b16 %v6754
    %v6838 = vunpack.c.l.b16 %v6755
    %v6839 = vunpack.c.h.b16 %v6755
    %v6840 = vunpack.c.l.b16 %v6756
    %v6841 = vunpack.c.h.b16 %v6756
    %v6842 = vunpack.c.l.b16 %v6757
    %v6843 = vunpack.c.h.b16 %v6757
    %v6844 = vunpack.c.l.b16 %v6758
    %v6845 = vunpack.c.h.b16 %v6758
    %v6846 = vunpack.c.l.b16 %v6759
    %v6847 = vunpack.c.h.b16 %v6759
    %v6848 = vunpack.c.l.b16 %v6760
    %v6849 = vunpack.c.h.b16 %v6760
    %v6850 = vunpack.c.l.b16 %v6761
    %v6851 = vunpack.c.h.b16 %v6761
    %v6852 = vunpack.c.l.b16 %v6762
    %v6853 = vunpack.c.h.b16 %v6762
    %v6854 = vunpack.c.l.b16 %v6763
    %v6855 = vunpack.c.h.b16 %v6763
    %v6856 = vunpack.c.l.b16 %v6764
    %v6857 = vunpack.c.h.b16 %v6764
    %v6858 = vunpack.c.l.b16 %v6765
    %v6859 = vunpack.c.h.b16 %v6765
    %v6860 = vunpack.c.l.b16 %v6766
    %v6861 = vunpack.c.h.b16 %v6766
    %v6862 = vunpack.c.l.b16 %v6767
    %v6863 = vunpack.c.h.b16 %v6767
    %v6864 = vunpack.c.l.b16 %v6768
    %v6865 = vunpack.c.h.b16 %v6768
    %v6866 = vunpack.c.l.b16 %v6769
    %v6867 = vunpack.c.h.b16 %v6769
    %v6868 = vunpack.c.l.b16 %v6770
    %v6869 = vunpack.c.h.b16 %v6770
    %v6870 = vunpack.c.l.b16 %v6771
    %v6871 = vunpack.c.h.b16 %v6771
    %v6872 = vunpack.c.l.b16 %v6772
    %v6873 = vunpack.c.h.b16 %v6772
    %v6874 = vunpack.c.l.b16 %v6773
    %v6875 = vunpack.c.h.b16 %v6773
    %v6876 = vunpack.c.l.b16 %v6774
    %v6877 = vunpack.c.h.b16 %v6774
    %v6878 = vunpack.c.l.b16 %v6775
    %v6879 = vunpack.c.h.b16 %v6775
    %v6880 = vpack.c.b16 %v6820, %v6816
    %v6881 = vpack.c.b16 %v6821, %v6817
    %v6882 = vpack.c.b16 %v6822, %v6818
    %v6883 = vpack.c.b16 %v6823, %v6819
    %v6884 = vpack.c.b16 %v6828, %v6824
    %v6885 = vpack.c.b16 %v6829, %v6825
    %v6886 = vpack.c.b16 %v6830, %v6826
    %v6887 = vpack.c.b16 %v6831, %v6827
    %v6888 = vpack.c.b16 %v6836, %v6832
    %v6889 = vpack.c.b16 %v6837, %v6833
    %v6890 = vpack.c.b16 %v6838, %v6834
    %v6891 = vpack.c.b16 %v6839, %v6835
    %v6892 = vpack.c.b16 %v6844, %v6840
    %v6893 = vpack.c.b16 %v6845, %v6841
    %v6894 = vpack.c.b16 %v6846, %v6842
    %v6895 = vpack.c.b16 %v6847, %v6843
    %v6896 = vpack.c.b16 %v6852, %v6848
    %v6897 = vpack.c.b16 %v6853, %v6849
    %v6898 = vpack.c.b16 %v6854, %v6850
    %v6899 = vpack.c.b16 %v6855, %v6851
    %v6900 = vpack.c.b16 %v6860, %v6856
    %v6901 = vpack.c.b16 %v6861, %v6857
    %v6902 = vpack.c.b16 %v6862, %v6858
    %v6903 = vpack.c.b16 %v6863, %v6859
    %v6904 = vpack.c.b16 %v6868, %v6864
    %v6905 = vpack.c.b16 %v6869, %v6865
    %v6906 = vpack.c.b16 %v6870, %v6866
    %v6907 = vpack.c.b16 %v6871, %v6867
    %v6908 = vpack.c.b16 %v6876, %v6872
    %v6909 = vpack.c.b16 %v6877, %v6873
    %v6910 = vpack.c.b16 %v6878, %v6874
    %v6911 = vpack.c.b16 %v6879, %v6875
    %6944 = vmatprep.subr.bf16.mxu0 %v6881
    %6945 = vmatpush1.bf16.msra.mxu0 %v6880
    %6946 = vmatprep.subr.bf16.mxu0 %v6885
    %6947 = vmatpush1.bf16.msra.mxu0 %v6884
    %6948 = vmatprep.subr.bf16.mxu0 %v6889
    %6949 = vmatpush1.bf16.msra.mxu0 %v6888
    %6950 = vmatprep.subr.bf16.mxu0 %v6893
    %6951 = vmatpush1.bf16.msra.mxu0 %v6892
    %6952 = vmatprep.subr.bf16.mxu0 %v6897
    %6953 = vmatpush1.bf16.msra.mxu0 %v6896
    %6954 = vmatprep.subr.bf16.mxu0 %v6901
    %6955 = vmatpush1.bf16.msra.mxu0 %v6900
    %6956 = vmatprep.subr.bf16.mxu0 %v6905
    %6957 = vmatpush1.bf16.msra.mxu0 %v6904
    %6958 = vmatprep.subr.bf16.mxu0 %v6909
    %6959 = vmatpush1.bf16.msra.mxu0 %v6908
    %6960 = vmatprep.subr.bf16.mxu0 0
    %6961 = vmatpush1.bf16.msra.mxu0 0
    %6962 = vmatprep.subr.bf16.mxu0 0
    %6963 = vmatpush1.bf16.msra.mxu0 0
    %6964 = vmatprep.subr.bf16.mxu0 0
    %6965 = vmatpush1.bf16.msra.mxu0 0
    %6966 = vmatprep.subr.bf16.mxu0 0
    %6967 = vmatpush1.bf16.msra.mxu0 0
    %6968 = vmatprep.subr.bf16.mxu0 0
    %6969 = vmatpush1.bf16.msra.mxu0 0
    %6970 = vmatprep.subr.bf16.mxu0 0
    %6971 = vmatpush1.bf16.msra.mxu0 0
    %6972 = vmatprep.subr.bf16.mxu0 0
    %6973 = vmatpush1.bf16.msra.mxu0 0
    %6974 = vmatprep.subr.bf16.mxu0 0
    %6975 = vmatpush1.bf16.msra.mxu0 0
    %6976 = vmatprep.mubr.bf16.mxu0 0
    %6977 = vmatmul.mubr.bf16.gmra.mrb[0].mxu0 %v6782
    %v6978 = vpop.f32.mrb[0].mxu0
    %v6979 = vadd.f32 0.0, %v6978
    %v6980 = vpop.f32.mrb[0].mxu0
    %v6981 = vadd.f32 0.0, %v6980
    %v6982 = vpop.f32.mrb[0].mxu0
    %v6983 = vpop.f32.mrb[0].mxu0
    %6984 = vdwg.mxu0
    %6985 = vmatprep.subr.bf16.mxu0 %v6883
    %6986 = vmatpush1.bf16.msra.mxu0 %v6882
    %6987 = vmatprep.subr.bf16.mxu0 %v6887
    %6988 = vmatpush1.bf16.msra.mxu0 %v6886
    %6989 = vmatprep.subr.bf16.mxu0 %v6891
    %6990 = vmatpush1.bf16.msra.mxu0 %v6890
    %6991 = vmatprep.subr.bf16.mxu0 %v6895
    %6992 = vmatpush1.bf16.msra.mxu0 %v6894
    %6993 = vmatprep.subr.bf16.mxu0 %v6899
    %6994 = vmatpush1.bf16.msra.mxu0 %v6898
    %6995 = vmatprep.subr.bf16.mxu0 %v6903
    %6996 = vmatpush1.bf16.msra.mxu0 %v6902
    %6997 = vmatprep.subr.bf16.mxu0 %v6907
    %6998 = vmatpush1.bf16.msra.mxu0 %v6906
    %6999 = vmatprep.subr.bf16.mxu0 %v6911
    %7000 = vmatpush1.bf16.msra.mxu0 %v6910
    %7001 = vmatprep.subr.bf16.mxu0 0
    %7002 = vmatpush1.bf16.msra.mxu0 0
    %7003 = vmatprep.subr.bf16.mxu0 0
    %7004 = vmatpush1.bf16.msra.mxu0 0
    %7005 = vmatprep.subr.bf16.mxu0 0
    %7006 = vmatpush1.bf16.msra.mxu0 0
    %7007 = vmatprep.subr.bf16.mxu0 0
    %7008 = vmatpush1.bf16.msra.mxu0 0
    %7009 = vmatprep.subr.bf16.mxu0 0
    %7010 = vmatpush1.bf16.msra.mxu0 0
    %7011 = vmatprep.subr.bf16.mxu0 0
    %7012 = vmatpush1.bf16.msra.mxu0 0
    %7013 = vmatprep.subr.bf16.mxu0 0
    %7014 = vmatpush1.bf16.msra.mxu0 0
    %7015 = vmatprep.subr.bf16.mxu0 0
    %7016 = vmatpush1.bf16.msra.mxu0 0
    %7017 = vmatprep.mubr.bf16.mxu0 0
    %7018 = vmatmul.mubr.bf16.gmra.mrb[0].mxu0 %v6782
    %v7019 = vpop.f32.mrb[0].mxu0
    %v7020 = vadd.f32 0.0, %v7019
    %v7021 = vpop.f32.mrb[0].mxu0
    %v7022 = vadd.f32 0.0, %v7021
    %v7023 = vpop.f32.mrb[0].mxu0
    %v7024 = vpop.f32.mrb[0].mxu0
    %7025 = vdwg.mxu0
    %v7030 = vcombine.low %v6979, %v6981
    %v7031 = vcombine.low %v7020, %v7022
    %v7033 = vunpack.c.l.s4 1966171168
    %v7034 = vunpack.c.0.s8 %v7033
    %v7035 = vlaneseq
    %v7036 = vshrl.u32 %v7035, 7
    %v7037 = vsub.s32 %v7034, %v7036
    %v7038 = vrot.slane %v7030, %v7037
    %v7040 = vunpack.c.l.s4 1966171168
    %v7041 = vunpack.c.0.s8 %v7040
    %v7042 = vlaneseq
    %v7043 = vshrl.u32 %v7042, 7
    %v7044 = vsub.s32 %v7041, %v7043
    %v7045 = vrot.slane %v7031, %v7044
    %v7046 = vcombine.low %v7038, %v7045
    %v7047 = vcombine.high %v7038, %v7045
    %v7049 = vunpack.c.l.s4 1966171168
    %v7050 = vunpack.c.0.s8 %v7049
    %v7051 = vlaneseq
    %v7052 = vshrl.u32 %v7051, 7
    %v7053 = vsub.s32 %v7050, %v7052
    %v7054 = vrot.slane %v7046, %v7053
    %v7056 = vunpack.c.l.s4 1966171168
    %v7057 = vunpack.c.0.s8 %v7056
    %v7058 = vlaneseq
    %v7059 = vshrl.u32 %v7058, 7
    %v7060 = vsub.s32 %v7057, %v7059
    %v7061 = vrot.slane %v7047, %v7060
    %v7064 = vadd.f32 %v6740, %v7054
    %v7065 = vadd.f32 %v6741, %v7061
    %v7066 = vxor.u32 %v7064, 2147483648
    %v7067 = vxor.u32 %v7065, 2147483648
    %v7068 = vmul.f32 %v7066, 1.442695
    %v7069 = vpow.pop %v7068
    %v7070 = vmul.f32 %v7067, 1.442695
    %v7071 = vpow.pop %v7070
    %v7072 = vadd.f32 %v7069, 1.0
    %v7073 = vadd.f32 %v7071, 1.0
    %v7074 = vrcp.pop %v7072
    %v7075 = vmul.f32 1.0, %v7074
    %v7076 = vrcp.pop %v7073
    %v7077 = vmul.f32 1.0, %v7076
    %v7080 = vrot.slane %v7064, 1
    %v7081 = vrot.slane %v7065, 1
    %v7084 = vxor.u32 %v7080, 2147483648
    %v7085 = vxor.u32 %v7081, 2147483648
    %v7086 = vmul.f32 %v7084, 1.442695
    %v7087 = vpow.pop %v7086
    %v7088 = vmul.f32 %v7085, 1.442695
    %v7089 = vpow.pop %v7088
    %v7090 = vadd.f32 %v7087, 1.0
    %v7091 = vadd.f32 %v7089, 1.0
    %v7092 = vrcp.pop %v7090
    %v7093 = vmul.f32 1.0, %v7092
    %v7094 = vrcp.pop %v7091
    %v7095 = vmul.f32 1.0, %v7094
    %v7096 = vrot.slane %v7064, 2
    %v7097 = vrot.slane %v7065, 2
    %v7100 = vtanh.pop %v7096
    %v7101 = vtanh.pop %v7097
    %v7102 = vrot.slane %v7064, 3
    %v7103 = vrot.slane %v7065, 3
    %v7106 = vxor.u32 %v7102, 2147483648
    %v7107 = vxor.u32 %v7103, 2147483648
    %v7108 = vmul.f32 %v7106, 1.442695
    %v7109 = vpow.pop %v7108
    %v7110 = vmul.f32 %v7107, 1.442695
    %v7111 = vpow.pop %v7110
    %v7112 = vadd.f32 %v7109, 1.0
    %v7113 = vadd.f32 %v7111, 1.0
    %v7114 = vrcp.pop %v7112
    %v7115 = vmul.f32 1.0, %v7114
    %v7116 = vrcp.pop %v7113
    %v7117 = vmul.f32 1.0, %v7116
    %v7118 = vmul.f32 %v7093, %v6732
    %v7119 = vmul.f32 %v7095, %v6733
    %v7120 = vmul.f32 %v7075, %v7100
    %v7121 = vmul.f32 %v7077, %v7101
    %v7122 = vadd.f32 %v7118, %v7120
    %v7123 = vadd.f32 %v7119, %v7121
    %v7124 = vtanh.pop %v7122
    %v7125 = vtanh.pop %v7123
    %v7126 = vmul.f32 %v7115, %v7124
    %v7127 = vmul.f32 %v7117, %v7125
    %7128 = vst [vmem:[#allocation2 + $0x7] sm:$0x1] %v7126
    %7129 = vst [vmem:[#allocation2 + $0xf] sm:$0x1] %v7127
    %v7130 = vld [vmem:[#allocation2] sm:$0xff]
    %v7131 = vld [vmem:[#allocation2 + $0x8] sm:$0xff]
    %v7132 = vpack.c.bf16 %v7131, %v7130
    %v7133 = vld [vmem:[#allocation15] sm:$0xff]
    %v7134 = vld [vmem:[#allocation15 + $0x8] sm:$0xf]
    %v7135 = vld [vmem:[#allocation15 + $0xc] sm:$0xff]
    %v7136 = vld [vmem:[#allocation15 + $0x14] sm:$0xf]
    %v7137 = vld [vmem:[#allocation15 + $0x18] sm:$0xff]
    %v7138 = vld [vmem:[#allocation15 + $0x20] sm:$0xf]
    %v7139 = vld [vmem:[#allocation15 + $0x24] sm:$0xff]
    %v7140 = vld [vmem:[#allocation15 + $0x2c] sm:$0xf]
    %v7141 = vld [vmem:[#allocation15 + $0x30] sm:$0xff]
    %v7142 = vld [vmem:[#allocation15 + $0x38] sm:$0xf]
    %v7143 = vld [vmem:[#allocation15 + $0x3c] sm:$0xff]
    %v7144 = vld [vmem:[#allocation15 + $0x44] sm:$0xf]
    %v7145 = vld [vmem:[#allocation15 + $0x48] sm:$0xff]
    %v7146 = vld [vmem:[#allocation15 + $0x50] sm:$0xf]
    %v7147 = vld [vmem:[#allocation15 + $0x54] sm:$0xff]
    %v7148 = vld [vmem:[#allocation15 + $0x5c] sm:$0xf]
    %v7149 = vld [vmem:[#allocation15 + $0x60] sm:$0xff]
    %v7150 = vld [vmem:[#allocation15 + $0x68] sm:$0xf]
    %v7151 = vld [vmem:[#allocation15 + $0x6c] sm:$0xff]
    %v7152 = vld [vmem:[#allocation15 + $0x74] sm:$0xf]
    %v7153 = vld [vmem:[#allocation15 + $0x78] sm:$0xff]
    %v7154 = vld [vmem:[#allocation15 + $0x80] sm:$0xf]
    %v7155 = vld [vmem:[#allocation15 + $0x84] sm:$0xff]
    %v7156 = vld [vmem:[#allocation15 + $0x8c] sm:$0xf]
    %v7157 = vld [vmem:[#allocation15 + $0x90] sm:$0xff]
    %v7158 = vld [vmem:[#allocation15 + $0x98] sm:$0xf]
    %v7159 = vld [vmem:[#allocation15 + $0x9c] sm:$0xff]
    %v7160 = vld [vmem:[#allocation15 + $0xa4] sm:$0xf]
    %v7161 = vld [vmem:[#allocation15 + $0xa8] sm:$0xff]
    %v7162 = vld [vmem:[#allocation15 + $0xb0] sm:$0xf]
    %v7163 = vld [vmem:[#allocation15 + $0xb4] sm:$0xff]
    %v7164 = vld [vmem:[#allocation15 + $0xbc] sm:$0xf]
    %v7165 = vld [vmem:[#allocation16] sm:$0x7]
    %v7167 = vlaneseq
    %v7168 = vshrl.u32 %v7167, 7
    %v7169 = vsub.s32 0, %v7168
    %v7170 = vrot.slane %v7165, %v7169
    %v7171 = vlaneseq
    %v7172 = vshrl.u32 %v7171, 7
    %v7173 = vsub.s32 1, %v7172
    %v7174 = vrot.slane %v7165, %v7173
    %v7175 = vlaneseq
    %v7176 = vshrl.u32 %v7175, 7
    %v7177 = vsub.s32 2, %v7176
    %v7178 = vrot.slane %v7165, %v7177
    %v7214 = vunpack.c.l.b16 %v7133
    %v7215 = vunpack.c.h.b16 %v7133
    %v7216 = vunpack.c.l.b16 %v7134
    %v7217 = vunpack.c.l.b16 %v7135
    %v7218 = vunpack.c.h.b16 %v7135
    %v7219 = vunpack.c.l.b16 %v7136
    %v7220 = vunpack.c.l.b16 %v7137
    %v7221 = vunpack.c.h.b16 %v7137
    %v7222 = vunpack.c.l.b16 %v7138
    %v7223 = vunpack.c.l.b16 %v7139
    %v7224 = vunpack.c.h.b16 %v7139
    %v7225 = vunpack.c.l.b16 %v7140
    %v7226 = vunpack.c.l.b16 %v7141
    %v7227 = vunpack.c.h.b16 %v7141
    %v7228 = vunpack.c.l.b16 %v7142
    %v7229 = vunpack.c.l.b16 %v7143
    %v7230 = vunpack.c.h.b16 %v7143
    %v7231 = vunpack.c.l.b16 %v7144
    %v7232 = vunpack.c.l.b16 %v7145
    %v7233 = vunpack.c.h.b16 %v7145
    %v7234 = vunpack.c.l.b16 %v7146
    %v7235 = vunpack.c.l.b16 %v7147
    %v7236 = vunpack.c.h.b16 %v7147
    %v7237 = vunpack.c.l.b16 %v7148
    %v7238 = vunpack.c.l.b16 %v7149
    %v7239 = vunpack.c.h.b16 %v7149
    %v7240 = vunpack.c.l.b16 %v7150
    %v7241 = vunpack.c.l.b16 %v7151
    %v7242 = vunpack.c.h.b16 %v7151
    %v7243 = vunpack.c.l.b16 %v7152
    %v7244 = vunpack.c.l.b16 %v7153
    %v7245 = vunpack.c.h.b16 %v7153
    %v7246 = vunpack.c.l.b16 %v7154
    %v7247 = vunpack.c.l.b16 %v7155
    %v7248 = vunpack.c.h.b16 %v7155
    %v7249 = vunpack.c.l.b16 %v7156
    %v7250 = vunpack.c.l.b16 %v7157
    %v7251 = vunpack.c.h.b16 %v7157
    %v7252 = vunpack.c.l.b16 %v7158
    %v7253 = vunpack.c.l.b16 %v7159
    %v7254 = vunpack.c.h.b16 %v7159
    %v7255 = vunpack.c.l.b16 %v7160
    %v7256 = vunpack.c.l.b16 %v7161
    %v7257 = vunpack.c.h.b16 %v7161
    %v7258 = vunpack.c.l.b16 %v7162
    %v7259 = vunpack.c.l.b16 %v7163
    %v7260 = vunpack.c.h.b16 %v7163
    %v7261 = vunpack.c.l.b16 %v7164
    %v7262 = vpack.c.b16 %v7217, %v7214
    %v7263 = vpack.c.b16 %v7218, %v7215
    %v7264 = vpack.c.b16 %v7219, %v7216
    %v7265 = vpack.c.b16 %v7223, %v7220
    %v7266 = vpack.c.b16 %v7224, %v7221
    %v7267 = vpack.c.b16 %v7225, %v7222
    %v7268 = vpack.c.b16 %v7229, %v7226
    %v7269 = vpack.c.b16 %v7230, %v7227
    %v7270 = vpack.c.b16 %v7231, %v7228
    %v7271 = vpack.c.b16 %v7235, %v7232
    %v7272 = vpack.c.b16 %v7236, %v7233
    %v7273 = vpack.c.b16 %v7237, %v7234
    %v7274 = vpack.c.b16 %v7241, %v7238
    %v7275 = vpack.c.b16 %v7242, %v7239
    %v7276 = vpack.c.b16 %v7243, %v7240
    %v7277 = vpack.c.b16 %v7247, %v7244
    %v7278 = vpack.c.b16 %v7248, %v7245
    %v7279 = vpack.c.b16 %v7249, %v7246
    %v7280 = vpack.c.b16 %v7253, %v7250
    %v7281 = vpack.c.b16 %v7254, %v7251
    %v7282 = vpack.c.b16 %v7255, %v7252
    %v7283 = vpack.c.b16 %v7259, %v7256
    %v7284 = vpack.c.b16 %v7260, %v7257
    %v7285 = vpack.c.b16 %v7261, %v7258
    %7310 = vmatprep.subr.bf16.mxu0 %v7263
    %7311 = vmatpush1.bf16.msra.mxu0 %v7262
    %7312 = vmatprep.subr.bf16.mxu0 %v7266
    %7313 = vmatpush1.bf16.msra.mxu0 %v7265
    %7314 = vmatprep.subr.bf16.mxu0 %v7269
    %7315 = vmatpush1.bf16.msra.mxu0 %v7268
    %7316 = vmatprep.subr.bf16.mxu0 %v7272
    %7317 = vmatpush1.bf16.msra.mxu0 %v7271
    %7318 = vmatprep.subr.bf16.mxu0 %v7275
    %7319 = vmatpush1.bf16.msra.mxu0 %v7274
    %7320 = vmatprep.subr.bf16.mxu0 %v7278
    %7321 = vmatpush1.bf16.msra.mxu0 %v7277
    %7322 = vmatprep.subr.bf16.mxu0 %v7281
    %7323 = vmatpush1.bf16.msra.mxu0 %v7280
    %7324 = vmatprep.subr.bf16.mxu0 %v7284
    %7325 = vmatpush1.bf16.msra.mxu0 %v7283
    %7326 = vmatprep.subr.bf16.mxu0 0
    %7327 = vmatpush1.bf16.msra.mxu0 0
    %7328 = vmatprep.subr.bf16.mxu0 0
    %7329 = vmatpush1.bf16.msra.mxu0 0
    %7330 = vmatprep.subr.bf16.mxu0 0
    %7331 = vmatpush1.bf16.msra.mxu0 0
    %7332 = vmatprep.subr.bf16.mxu0 0
    %7333 = vmatpush1.bf16.msra.mxu0 0
    %7334 = vmatprep.subr.bf16.mxu0 0
    %7335 = vmatpush1.bf16.msra.mxu0 0
    %7336 = vmatprep.subr.bf16.mxu0 0
    %7337 = vmatpush1.bf16.msra.mxu0 0
    %7338 = vmatprep.subr.bf16.mxu0 0
    %7339 = vmatpush1.bf16.msra.mxu0 0
    %7340 = vmatprep.subr.bf16.mxu0 0
    %7341 = vmatpush1.bf16.msra.mxu0 0
    %7342 = vmatprep.mubr.bf16.mxu0 0
    %7343 = vmatmul.mubr.bf16.gmra.mrb[0].mxu0 %v7132
    %v7344 = vpop.f32.mrb[0].mxu0
    %v7345 = vadd.f32 %v7170, %v7344
    %v7346 = vpop.f32.mrb[0].mxu0
    %v7347 = vadd.f32 %v7174, %v7346
    %v7348 = vpop.f32.mrb[0].mxu0
    %v7349 = vadd.f32 %v7170, %v7348
    %v7350 = vpop.f32.mrb[0].mxu0
    %v7351 = vadd.f32 %v7174, %v7350
    %7352 = vdwg.mxu0
    %7353 = vmatprep.subr.bf16.mxu0 0
    %7354 = vmatpush1.bf16.msra.mxu0 %v7264
    %7355 = vmatprep.subr.bf16.mxu0 0
    %7356 = vmatpush1.bf16.msra.mxu0 %v7267
    %7357 = vmatprep.subr.bf16.mxu0 0
    %7358 = vmatpush1.bf16.msra.mxu0 %v7270
    %7359 = vmatprep.subr.bf16.mxu0 0
    %7360 = vmatpush1.bf16.msra.mxu0 %v7273
    %7361 = vmatprep.subr.bf16.mxu0 0
    %7362 = vmatpush1.bf16.msra.mxu0 %v7276
    %7363 = vmatprep.subr.bf16.mxu0 0
    %7364 = vmatpush1.bf16.msra.mxu0 %v7279
    %7365 = vmatprep.subr.bf16.mxu0 0
    %7366 = vmatpush1.bf16.msra.mxu0 %v7282
    %7367 = vmatprep.subr.bf16.mxu0 0
    %7368 = vmatpush1.bf16.msra.mxu0 %v7285
    %7369 = vmatprep.subr.bf16.mxu0 0
    %7370 = vmatpush1.bf16.msra.mxu0 0
    %7371 = vmatprep.subr.bf16.mxu0 0
    %7372 = vmatpush1.bf16.msra.mxu0 0
    %7373 = vmatprep.subr.bf16.mxu0 0
    %7374 = vmatpush1.bf16.msra.mxu0 0
    %7375 = vmatprep.subr.bf16.mxu0 0
    %7376 = vmatpush1.bf16.msra.mxu0 0
    %7377 = vmatprep.subr.bf16.mxu0 0
    %7378 = vmatpush1.bf16.msra.mxu0 0
    %7379 = vmatprep.subr.bf16.mxu0 0
    %7380 = vmatpush1.bf16.msra.mxu0 0
    %7381 = vmatprep.subr.bf16.mxu0 0
    %7382 = vmatpush1.bf16.msra.mxu0 0
    %7383 = vmatprep.subr.bf16.mxu0 0
    %7384 = vmatpush1.bf16.msra.mxu0 0
    %7385 = vmatprep.mubr.bf16.mxu0 0
    %7386 = vmatmul.mubr.bf16.gmra.mrb[0].mxu0 %v7132
    %v7387 = vpop.f32.mrb[0].mxu0
    %v7388 = vadd.f32 %v7178, %v7387
    %v7389 = vpop.f32.mrb[0].mxu0
    %v7390 = vpop.f32.mrb[0].mxu0
    %v7391 = vadd.f32 %v7178, %v7390
    %v7392 = vpop.f32.mrb[0].mxu0
    %7393 = vdwg.mxu0
    %v7394 = vpack.c.bf16 %v7345, %v7345
    %v7395 = vpack.c.bf16 %v7349, %v7349
    %v7396 = vpack.c.bf16 %v7347, %v7347
    %v7397 = vpack.c.bf16 %v7351, %v7351
    %7398 = vmatprep.subr.bf16.mxu0 0
    %7399 = vmatpush1.bf16.xpose.msra.mxu0 %v7396
    %7400 = vmatprep.subr.bf16.mxu0 0
    %7401 = vmatpush1.bf16.xpose.msra.mxu0 0
    %7402 = vmatprep.subr.bf16.mxu0 0
    %7403 = vmatpush1.bf16.xpose.msra.mxu0 0
    %7404 = vmatprep.subr.bf16.mxu0 0
    %7405 = vmatpush1.bf16.xpose.msra.mxu0 0
    %7406 = vmatprep.subr.bf16.mxu0 0
    %7407 = vmatpush1.bf16.xpose.msra.mxu0 0
    %7408 = vmatprep.subr.bf16.mxu0 0
    %7409 = vmatpush1.bf16.xpose.msra.mxu0 0
    %7410 = vmatprep.subr.bf16.mxu0 0
    %7411 = vmatpush1.bf16.xpose.msra.mxu0 0
    %7412 = vmatprep.subr.bf16.mxu0 0
    %7413 = vmatpush1.bf16.xpose.msra.mxu0 0
    %7414 = vmatprep.subr.bf16.mxu0 0
    %7415 = vmatpush1.bf16.xpose.msra.mxu0 0
    %7416 = vmatprep.subr.bf16.mxu0 0
    %7417 = vmatpush1.bf16.xpose.msra.mxu0 0
    %7418 = vmatprep.subr.bf16.mxu0 0
    %7419 = vmatpush1.bf16.xpose.msra.mxu0 0
    %7420 = vmatprep.subr.bf16.mxu0 0
    %7421 = vmatpush1.bf16.xpose.msra.mxu0 0
    %7422 = vmatprep.subr.bf16.mxu0 0
    %7423 = vmatpush1.bf16.xpose.msra.mxu0 0
    %7424 = vmatprep.subr.bf16.mxu0 0
    %7425 = vmatpush1.bf16.xpose.msra.mxu0 0
    %7426 = vmatprep.subr.bf16.mxu0 0
    %7427 = vmatpush1.bf16.xpose.msra.mxu0 0
    %7428 = vmatprep.subr.bf16.mxu0 0
    %7429 = vmatpush1.bf16.xpose.msra.mxu0 0
    %7430 = vmatprep.mubr.bf16.mxu0 0
    %7431 = vmatmul.mubr.bf16.gmra.mrb[0].mxu0 %v7394
    %v7432 = vpop.f32.mrb[0].mxu0
    %v7433 = vadd.f32 0.0, %v7432
    %v7434 = vpop.f32.mrb[0].mxu0
    %v7435 = vpop.f32.mrb[0].mxu0
    %v7436 = vpop.f32.mrb[0].mxu0
    %7437 = vdwg.mxu0
    %7438 = vmatprep.subr.bf16.mxu0 0
    %7439 = vmatpush1.bf16.xpose.msra.mxu0 %v7397
    %7440 = vmatprep.subr.bf16.mxu0 0
    %7441 = vmatpush1.bf16.xpose.msra.mxu0 0
    %7442 = vmatprep.subr.bf16.mxu0 0
    %7443 = vmatpush1.bf16.xpose.msra.mxu0 0
    %7444 = vmatprep.subr.bf16.mxu0 0
    %7445 = vmatpush1.bf16.xpose.msra.mxu0 0
    %7446 = vmatprep.subr.bf16.mxu0 0
    %7447 = vmatpush1.bf16.xpose.msra.mxu0 0
    %7448 = vmatprep.subr.bf16.mxu0 0
    %7449 = vmatpush1.bf16.xpose.msra.mxu0 0
    %7450 = vmatprep.subr.bf16.mxu0 0
    %7451 = vmatpush1.bf16.xpose.msra.mxu0 0
    %7452 = vmatprep.subr.bf16.mxu0 0
    %7453 = vmatpush1.bf16.xpose.msra.mxu0 0
    %7454 = vmatprep.subr.bf16.mxu0 0
    %7455 = vmatpush1.bf16.xpose.msra.mxu0 0
    %7456 = vmatprep.subr.bf16.mxu0 0
    %7457 = vmatpush1.bf16.xpose.msra.mxu0 0
    %7458 = vmatprep.subr.bf16.mxu0 0
    %7459 = vmatpush1.bf16.xpose.msra.mxu0 0
    %7460 = vmatprep.subr.bf16.mxu0 0
    %7461 = vmatpush1.bf16.xpose.msra.mxu0 0
    %7462 = vmatprep.subr.bf16.mxu0 0
    %7463 = vmatpush1.bf16.xpose.msra.mxu0 0
    %7464 = vmatprep.subr.bf16.mxu0 0
    %7465 = vmatpush1.bf16.xpose.msra.mxu0 0
    %7466 = vmatprep.subr.bf16.mxu0 0
    %7467 = vmatpush1.bf16.xpose.msra.mxu0 0
    %7468 = vmatprep.subr.bf16.mxu0 0
    %7469 = vmatpush1.bf16.xpose.msra.mxu0 0
    %7470 = vmatprep.mubr.bf16.mxu0 0
    %7471 = vmatmul.mubr.bf16.gmra.mrb[0].mxu0 %v7395
    %v7472 = vpop.f32.mrb[0].mxu0
    %v7473 = vadd.f32 0.0, %v7472
    %v7474 = vpop.f32.mrb[0].mxu0
    %v7475 = vpop.f32.mrb[0].mxu0
    %v7476 = vpop.f32.mrb[0].mxu0
    %7477 = vdwg.mxu0
    %v7478 = vmul.f32 %v7433, 0.17677669
    %v7479 = vmul.f32 %v7473, 0.17677669
    %vm7480 = vcmask 64512
    %v7481 = vsel %vm7480, %v7478, -inf
    %7482 = vmax.xlane.f32.xlu0 %v7481
    %v7483 = vpop.xlane.xlu0 %7482
    %v7484 = vsel %vm7480, %v7479, -inf
    %7485 = vmax.xlane.f32.xlu0 %v7484
    %v7486 = vpop.xlane.xlu0 %7485
    %v7487 = vsub.f32 %v7478, %v7483
    %v7488 = vsub.f32 %v7479, %v7486
    %v7489 = vmul.f32 %v7487, 1.442695
    %v7490 = vpow.pop %v7489
    %v7491 = vmul.f32 %v7488, 1.442695
    %v7492 = vpow.pop %v7491
    %v7493 = vsel %vm7480, %v7490, 0.0
    %7494 = vadd.xlane.f32.xlu0 %v7493
    %v7495 = vpop.xlane.xlu0 %7494
    %v7496 = vsel %vm7480, %v7492, 0.0
    %7497 = vadd.xlane.f32.xlu0 %v7496
    %v7498 = vpop.xlane.xlu0 %7497
    %v7499 = vrcp.pop %v7495
    %v7500 = vrcp.pop %v7498
    %v7501 = vmul.f32 %v7490, %v7499
    %v7502 = vmul.f32 %v7492, %v7500
    %v7503 = vpack.c.bf16 %v7501, %v7501
    %v7504 = vpack.c.bf16 %v7502, %v7502
    %v7505 = vpack.c.bf16 %v7388, %v7388
    %v7506 = vpack.c.bf16 %v7391, %v7391
    %v7508 = vsel %vm7480, %v7503, 0
    %vm7510 = vcmask 1043456
    %v7512 = vsel %vm7510, %v7505, 0
    %7514 = vmatprep.subr.bf16.mxu0 0
    %7515 = vmatpush1.bf16.msra.mxu0 %v7512
    %7516 = vmatprep.subr.bf16.mxu0 0
    %7517 = vmatpush1.bf16.msra.mxu0 0
    %7518 = vmatprep.subr.bf16.mxu0 0
    %7519 = vmatpush1.bf16.msra.mxu0 0
    %7520 = vmatprep.subr.bf16.mxu0 0
    %7521 = vmatpush1.bf16.msra.mxu0 0
    %7522 = vmatprep.subr.bf16.mxu0 0
    %7523 = vmatpush1.bf16.msra.mxu0 0
    %7524 = vmatprep.subr.bf16.mxu0 0
    %7525 = vmatpush1.bf16.msra.mxu0 0
    %7526 = vmatprep.subr.bf16.mxu0 0
    %7527 = vmatpush1.bf16.msra.mxu0 0
    %7528 = vmatprep.subr.bf16.mxu0 0
    %7529 = vmatpush1.bf16.msra.mxu0 0
    %7530 = vmatprep.subr.bf16.mxu0 0
    %7531 = vmatpush1.bf16.msra.mxu0 0
    %7532 = vmatprep.subr.bf16.mxu0 0
    %7533 = vmatpush1.bf16.msra.mxu0 0
    %7534 = vmatprep.subr.bf16.mxu0 0
    %7535 = vmatpush1.bf16.msra.mxu0 0
    %7536 = vmatprep.subr.bf16.mxu0 0
    %7537 = vmatpush1.bf16.msra.mxu0 0
    %7538 = vmatprep.subr.bf16.mxu0 0
    %7539 = vmatpush1.bf16.msra.mxu0 0
    %7540 = vmatprep.subr.bf16.mxu0 0
    %7541 = vmatpush1.bf16.msra.mxu0 0
    %7542 = vmatprep.subr.bf16.mxu0 0
    %7543 = vmatpush1.bf16.msra.mxu0 0
    %7544 = vmatprep.subr.bf16.mxu0 0
    %7545 = vmatpush1.bf16.msra.mxu0 0
    %7546 = vmatprep.mubr.bf16.mxu0 0
    %7547 = vmatmul.mubr.bf16.gmra.mrb[0].mxu0 %v7508
    %v7548 = vpop.f32.mrb[0].mxu0
    %v7549 = vadd.f32 %v7130, %v7548
    %v7550 = vpop.f32.mrb[0].mxu0
    %v7551 = vpop.f32.mrb[0].mxu0
    %v7552 = vpop.f32.mrb[0].mxu0
    %7553 = vdwg.mxu0
    %v7555 = vsel %vm7480, %v7504, 0
    %v7558 = vsel %vm7510, %v7506, 0
    %7560 = vmatprep.subr.bf16.mxu0 0
    %7561 = vmatpush1.bf16.msra.mxu0 %v7558
    %7562 = vmatprep.subr.bf16.mxu0 0
    %7563 = vmatpush1.bf16.msra.mxu0 0
    %7564 = vmatprep.subr.bf16.mxu0 0
    %7565 = vmatpush1.bf16.msra.mxu0 0
    %7566 = vmatprep.subr.bf16.mxu0 0
    %7567 = vmatpush1.bf16.msra.mxu0 0
    %7568 = vmatprep.subr.bf16.mxu0 0
    %7569 = vmatpush1.bf16.msra.mxu0 0
    %7570 = vmatprep.subr.bf16.mxu0 0
    %7571 = vmatpush1.bf16.msra.mxu0 0
    %7572 = vmatprep.subr.bf16.mxu0 0
    %7573 = vmatpush1.bf16.msra.mxu0 0
    %7574 = vmatprep.subr.bf16.mxu0 0
    %7575 = vmatpush1.bf16.msra.mxu0 0
    %7576 = vmatprep.subr.bf16.mxu0 0
    %7577 = vmatpush1.bf16.msra.mxu0 0
    %7578 = vmatprep.subr.bf16.mxu0 0
    %7579 = vmatpush1.bf16.msra.mxu0 0
    %7580 = vmatprep.subr.bf16.mxu0 0
    %7581 = vmatpush1.bf16.msra.mxu0 0
    %7582 = vmatprep.subr.bf16.mxu0 0
    %7583 = vmatpush1.bf16.msra.mxu0 0
    %7584 = vmatprep.subr.bf16.mxu0 0
    %7585 = vmatpush1.bf16.msra.mxu0 0
    %7586 = vmatprep.subr.bf16.mxu0 0
    %7587 = vmatpush1.bf16.msra.mxu0 0
    %7588 = vmatprep.subr.bf16.mxu0 0
    %7589 = vmatpush1.bf16.msra.mxu0 0
    %7590 = vmatprep.subr.bf16.mxu0 0
    %7591 = vmatpush1.bf16.msra.mxu0 0
    %7592 = vmatprep.mubr.bf16.mxu0 0
    %7593 = vmatmul.mubr.bf16.gmra.mrb[0].mxu0 %v7555
    %v7594 = vpop.f32.mrb[0].mxu0
    %v7595 = vadd.f32 %v7131, %v7594
    %v7596 = vpop.f32.mrb[0].mxu0
    %v7597 = vpop.f32.mrb[0].mxu0
    %v7598 = vpop.f32.mrb[0].mxu0
    %7599 = vdwg.mxu0
    %7600 = vst [vmem:[#allocation2] sm:$0xff] %v7549
    %7601 = vst [vmem:[#allocation2 + $0x8] sm:$0xff] %v7595
    %v7602 = vld [vmem:[#allocation19] sm:$0x1]
    %v7603 = vld [vmem:[#allocation2] sm:$0x1]
    %v7604 = vld [vmem:[#allocation2 + $0x8] sm:$0x1]
    %v7605 = vpack.c.bf16 %v7603, %v7603
    %v7606 = vpack.c.bf16 %v7604, %v7604
    %v7607 = vld [vmem:[#allocation18] sm:$0xf]
    %v7608 = vld [vmem:[#allocation18 + $0x4] sm:$0xf]
    %v7609 = vld [vmem:[#allocation18 + $0x8] sm:$0xf]
    %v7610 = vld [vmem:[#allocation18 + $0xc] sm:$0xf]
    %v7611 = vld [vmem:[#allocation18 + $0x10] sm:$0xf]
    %v7612 = vld [vmem:[#allocation18 + $0x14] sm:$0xf]
    %v7613 = vld [vmem:[#allocation18 + $0x18] sm:$0xf]
    %v7614 = vld [vmem:[#allocation18 + $0x1c] sm:$0xf]
    %v7615 = vld [vmem:[#allocation18 + $0x20] sm:$0xf]
    %v7616 = vld [vmem:[#allocation18 + $0x24] sm:$0xf]
    %v7617 = vld [vmem:[#allocation18 + $0x28] sm:$0xf]
    %v7618 = vld [vmem:[#allocation18 + $0x2c] sm:$0xf]
    %v7619 = vld [vmem:[#allocation18 + $0x30] sm:$0xf]
    %v7620 = vld [vmem:[#allocation18 + $0x34] sm:$0xf]
    %v7621 = vld [vmem:[#allocation18 + $0x38] sm:$0xf]
    %v7622 = vld [vmem:[#allocation18 + $0x3c] sm:$0xf]
    %v7625 = vunpack.c.l.b16 %v7605
    %v7626 = vunpack.c.l.b16 %v7606
    %v7627 = vrot.slane %v7626, 7
    %v7628 = vsel %vm1004, %v7627, %v7625
    %v7629 = vpack.c.b16 %v7628, %v7628
    %v7647 = vunpack.c.l.b16 %v7607
    %v7648 = vunpack.c.l.b16 %v7608
    %v7649 = vunpack.c.l.b16 %v7609
    %v7650 = vunpack.c.l.b16 %v7610
    %v7651 = vunpack.c.l.b16 %v7611
    %v7652 = vunpack.c.l.b16 %v7612
    %v7653 = vunpack.c.l.b16 %v7613
    %v7654 = vunpack.c.l.b16 %v7614
    %v7655 = vunpack.c.l.b16 %v7615
    %v7656 = vunpack.c.l.b16 %v7616
    %v7657 = vunpack.c.l.b16 %v7617
    %v7658 = vunpack.c.l.b16 %v7618
    %v7659 = vunpack.c.l.b16 %v7619
    %v7660 = vunpack.c.l.b16 %v7620
    %v7661 = vunpack.c.l.b16 %v7621
    %v7662 = vunpack.c.l.b16 %v7622
    %v7663 = vpack.c.b16 %v7648, %v7647
    %v7664 = vpack.c.b16 %v7650, %v7649
    %v7665 = vpack.c.b16 %v7652, %v7651
    %v7666 = vpack.c.b16 %v7654, %v7653
    %v7667 = vpack.c.b16 %v7656, %v7655
    %v7668 = vpack.c.b16 %v7658, %v7657
    %v7669 = vpack.c.b16 %v7660, %v7659
    %v7670 = vpack.c.b16 %v7662, %v7661
    %7679 = vmatprep.subr.bf16.mxu0 0
    %7680 = vmatpush1.bf16.msra.mxu0 %v7663
    %7681 = vmatprep.subr.bf16.mxu0 0
    %7682 = vmatpush1.bf16.msra.mxu0 %v7664
    %7683 = vmatprep.subr.bf16.mxu0 0
    %7684 = vmatpush1.bf16.msra.mxu0 %v7665
    %7685 = vmatprep.subr.bf16.mxu0 0
    %7686 = vmatpush1.bf16.msra.mxu0 %v7666
    %7687 = vmatprep.subr.bf16.mxu0 0
    %7688 = vmatpush1.bf16.msra.mxu0 %v7667
    %7689 = vmatprep.subr.bf16.mxu0 0
    %7690 = vmatpush1.bf16.msra.mxu0 %v7668
    %7691 = vmatprep.subr.bf16.mxu0 0
    %7692 = vmatpush1.bf16.msra.mxu0 %v7669
    %7693 = vmatprep.subr.bf16.mxu0 0
    %7694 = vmatpush1.bf16.msra.mxu0 %v7670
    %7695 = vmatprep.subr.bf16.mxu0 0
    %7696 = vmatpush1.bf16.msra.mxu0 0
    %7697 = vmatprep.subr.bf16.mxu0 0
    %7698 = vmatpush1.bf16.msra.mxu0 0
    %7699 = vmatprep.subr.bf16.mxu0 0
    %7700 = vmatpush1.bf16.msra.mxu0 0
    %7701 = vmatprep.subr.bf16.mxu0 0
    %7702 = vmatpush1.bf16.msra.mxu0 0
    %7703 = vmatprep.subr.bf16.mxu0 0
    %7704 = vmatpush1.bf16.msra.mxu0 0
    %7705 = vmatprep.subr.bf16.mxu0 0
    %7706 = vmatpush1.bf16.msra.mxu0 0
    %7707 = vmatprep.subr.bf16.mxu0 0
    %7708 = vmatpush1.bf16.msra.mxu0 0
    %7709 = vmatprep.subr.bf16.mxu0 0
    %7710 = vmatpush1.bf16.msra.mxu0 0
    %7711 = vmatprep.mubr.bf16.mxu0 0
    %7712 = vmatmul.mubr.bf16.gmra.mrb[0].mxu0 %v7629
    %v7713 = vpop.f32.mrb[0].mxu0
    %v7714 = vadd.f32 0.0, %v7713
    %v7715 = vpop.f32.mrb[0].mxu0
    %v7716 = vpop.f32.mrb[0].mxu0
    %v7717 = vpop.f32.mrb[0].mxu0
    %7718 = vdwg.mxu0
    %v7720 = vlaneseq
    %v7721 = vshrl.u32 %v7720, 7
    %v7722 = vsub.s32 0, %v7721
    %v7723 = vrot.slane %v7602, %v7722
    %v7725 = vadd.f32 %v7723, %v7714
    %v7726 = vld [vmem:[#allocation2 + $0x1] sm:$0x1]
    %v7727 = vld [vmem:[#allocation2 + $0x9] sm:$0x1]
    %v7728 = vpack.c.bf16 %v7726, %v7726
    %v7729 = vpack.c.bf16 %v7727, %v7727
    %s7730 = scalar_lea.vmem [#allocation18], 64
    %v7731 = vld [vmem:[%s7730] sm:$0xf]
    %v7732 = vld [vmem:[%s7730 + $0x4] sm:$0xf]
    %v7733 = vld [vmem:[%s7730 + $0x8] sm:$0xf]
    %v7734 = vld [vmem:[%s7730 + $0xc] sm:$0xf]
    %v7735 = vld [vmem:[%s7730 + $0x10] sm:$0xf]
    %v7736 = vld [vmem:[%s7730 + $0x14] sm:$0xf]
    %v7737 = vld [vmem:[%s7730 + $0x18] sm:$0xf]
    %v7738 = vld [vmem:[%s7730 + $0x1c] sm:$0xf]
    %v7739 = vld [vmem:[%s7730 + $0x20] sm:$0xf]
    %v7740 = vld [vmem:[%s7730 + $0x24] sm:$0xf]
    %v7741 = vld [vmem:[%s7730 + $0x28] sm:$0xf]
    %v7742 = vld [vmem:[%s7730 + $0x2c] sm:$0xf]
    %v7743 = vld [vmem:[%s7730 + $0x30] sm:$0xf]
    %v7744 = vld [vmem:[%s7730 + $0x34] sm:$0xf]
    %v7745 = vld [vmem:[%s7730 + $0x38] sm:$0xf]
    %v7746 = vld [vmem:[%s7730 + $0x3c] sm:$0xf]
    %v7749 = vunpack.c.l.b16 %v7728
    %v7750 = vunpack.c.l.b16 %v7729
    %v7751 = vrot.slane %v7750, 7
    %v7752 = vsel %vm1004, %v7751, %v7749
    %v7753 = vpack.c.b16 %v7752, %v7752
    %v7771 = vunpack.c.l.b16 %v7731
    %v7772 = vunpack.c.l.b16 %v7732
    %v7773 = vunpack.c.l.b16 %v7733
    %v7774 = vunpack.c.l.b16 %v7734
    %v7775 = vunpack.c.l.b16 %v7735
    %v7776 = vunpack.c.l.b16 %v7736
    %v7777 = vunpack.c.l.b16 %v7737
    %v7778 = vunpack.c.l.b16 %v7738
    %v7779 = vunpack.c.l.b16 %v7739
    %v7780 = vunpack.c.l.b16 %v7740
    %v7781 = vunpack.c.l.b16 %v7741
    %v7782 = vunpack.c.l.b16 %v7742
    %v7783 = vunpack.c.l.b16 %v7743
    %v7784 = vunpack.c.l.b16 %v7744
    %v7785 = vunpack.c.l.b16 %v7745
    %v7786 = vunpack.c.l.b16 %v7746
    %v7787 = vpack.c.b16 %v7772, %v7771
    %v7788 = vpack.c.b16 %v7774, %v7773
    %v7789 = vpack.c.b16 %v7776, %v7775
    %v7790 = vpack.c.b16 %v7778, %v7777
    %v7791 = vpack.c.b16 %v7780, %v7779
    %v7792 = vpack.c.b16 %v7782, %v7781
    %v7793 = vpack.c.b16 %v7784, %v7783
    %v7794 = vpack.c.b16 %v7786, %v7785
    %7803 = vmatprep.subr.bf16.mxu0 0
    %7804 = vmatpush1.bf16.msra.mxu0 %v7787
    %7805 = vmatprep.subr.bf16.mxu0 0
    %7806 = vmatpush1.bf16.msra.mxu0 %v7788
    %7807 = vmatprep.subr.bf16.mxu0 0
    %7808 = vmatpush1.bf16.msra.mxu0 %v7789
    %7809 = vmatprep.subr.bf16.mxu0 0
    %7810 = vmatpush1.bf16.msra.mxu0 %v7790
    %7811 = vmatprep.subr.bf16.mxu0 0
    %7812 = vmatpush1.bf16.msra.mxu0 %v7791
    %7813 = vmatprep.subr.bf16.mxu0 0
    %7814 = vmatpush1.bf16.msra.mxu0 %v7792
    %7815 = vmatprep.subr.bf16.mxu0 0
    %7816 = vmatpush1.bf16.msra.mxu0 %v7793
    %7817 = vmatprep.subr.bf16.mxu0 0
    %7818 = vmatpush1.bf16.msra.mxu0 %v7794
    %7819 = vmatprep.subr.bf16.mxu0 0
    %7820 = vmatpush1.bf16.msra.mxu0 0
    %7821 = vmatprep.subr.bf16.mxu0 0
    %7822 = vmatpush1.bf16.msra.mxu0 0
    %7823 = vmatprep.subr.bf16.mxu0 0
    %7824 = vmatpush1.bf16.msra.mxu0 0
    %7825 = vmatprep.subr.bf16.mxu0 0
    %7826 = vmatpush1.bf16.msra.mxu0 0
    %7827 = vmatprep.subr.bf16.mxu0 0
    %7828 = vmatpush1.bf16.msra.mxu0 0
    %7829 = vmatprep.subr.bf16.mxu0 0
    %7830 = vmatpush1.bf16.msra.mxu0 0
    %7831 = vmatprep.subr.bf16.mxu0 0
    %7832 = vmatpush1.bf16.msra.mxu0 0
    %7833 = vmatprep.subr.bf16.mxu0 0
    %7834 = vmatpush1.bf16.msra.mxu0 0
    %7835 = vmatprep.mubr.bf16.mxu0 0
    %7836 = vmatmul.mubr.bf16.gmra.mrb[0].mxu0 %v7753
    %v7837 = vpop.f32.mrb[0].mxu0
    %v7838 = vadd.f32 0.0, %v7837
    %v7839 = vpop.f32.mrb[0].mxu0
    %v7840 = vpop.f32.mrb[0].mxu0
    %v7841 = vpop.f32.mrb[0].mxu0
    %7842 = vdwg.mxu0
    %v7843 = vadd.f32 %v7725, %v7838
    %v7844 = vld [vmem:[#allocation2 + $0x2] sm:$0x1]
    %v7845 = vld [vmem:[#allocation2 + $0xa] sm:$0x1]
    %v7846 = vpack.c.bf16 %v7844, %v7844
    %v7847 = vpack.c.bf16 %v7845, %v7845
    %s7848 = scalar_lea.vmem [#allocation18], 128
    %v7849 = vld [vmem:[%s7848] sm:$0xf]
    %v7850 = vld [vmem:[%s7848 + $0x4] sm:$0xf]
    %v7851 = vld [vmem:[%s7848 + $0x8] sm:$0xf]
    %v7852 = vld [vmem:[%s7848 + $0xc] sm:$0xf]
    %v7853 = vld [vmem:[%s7848 + $0x10] sm:$0xf]
    %v7854 = vld [vmem:[%s7848 + $0x14] sm:$0xf]
    %v7855 = vld [vmem:[%s7848 + $0x18] sm:$0xf]
    %v7856 = vld [vmem:[%s7848 + $0x1c] sm:$0xf]
    %v7857 = vld [vmem:[%s7848 + $0x20] sm:$0xf]
    %v7858 = vld [vmem:[%s7848 + $0x24] sm:$0xf]
    %v7859 = vld [vmem:[%s7848 + $0x28] sm:$0xf]
    %v7860 = vld [vmem:[%s7848 + $0x2c] sm:$0xf]
    %v7861 = vld [vmem:[%s7848 + $0x30] sm:$0xf]
    %v7862 = vld [vmem:[%s7848 + $0x34] sm:$0xf]
    %v7863 = vld [vmem:[%s7848 + $0x38] sm:$0xf]
    %v7864 = vld [vmem:[%s7848 + $0x3c] sm:$0xf]
    %v7867 = vunpack.c.l.b16 %v7846
    %v7868 = vunpack.c.l.b16 %v7847
    %v7869 = vrot.slane %v7868, 7
    %v7870 = vsel %vm1004, %v7869, %v7867
    %v7871 = vpack.c.b16 %v7870, %v7870
    %v7889 = vunpack.c.l.b16 %v7849
    %v7890 = vunpack.c.l.b16 %v7850
    %v7891 = vunpack.c.l.b16 %v7851
    %v7892 = vunpack.c.l.b16 %v7852
    %v7893 = vunpack.c.l.b16 %v7853
    %v7894 = vunpack.c.l.b16 %v7854
    %v7895 = vunpack.c.l.b16 %v7855
    %v7896 = vunpack.c.l.b16 %v7856
    %v7897 = vunpack.c.l.b16 %v7857
    %v7898 = vunpack.c.l.b16 %v7858
    %v7899 = vunpack.c.l.b16 %v7859
    %v7900 = vunpack.c.l.b16 %v7860
    %v7901 = vunpack.c.l.b16 %v7861
    %v7902 = vunpack.c.l.b16 %v7862
    %v7903 = vunpack.c.l.b16 %v7863
    %v7904 = vunpack.c.l.b16 %v7864
    %v7905 = vpack.c.b16 %v7890, %v7889
    %v7906 = vpack.c.b16 %v7892, %v7891
    %v7907 = vpack.c.b16 %v7894, %v7893
    %v7908 = vpack.c.b16 %v7896, %v7895
    %v7909 = vpack.c.b16 %v7898, %v7897
    %v7910 = vpack.c.b16 %v7900, %v7899
    %v7911 = vpack.c.b16 %v7902, %v7901
    %v7912 = vpack.c.b16 %v7904, %v7903
    %7921 = vmatprep.subr.bf16.mxu0 0
    %7922 = vmatpush1.bf16.msra.mxu0 %v7905
    %7923 = vmatprep.subr.bf16.mxu0 0
    %7924 = vmatpush1.bf16.msra.mxu0 %v7906
    %7925 = vmatprep.subr.bf16.mxu0 0
    %7926 = vmatpush1.bf16.msra.mxu0 %v7907
    %7927 = vmatprep.subr.bf16.mxu0 0
    %7928 = vmatpush1.bf16.msra.mxu0 %v7908
    %7929 = vmatprep.subr.bf16.mxu0 0
    %7930 = vmatpush1.bf16.msra.mxu0 %v7909
    %7931 = vmatprep.subr.bf16.mxu0 0
    %7932 = vmatpush1.bf16.msra.mxu0 %v7910
    %7933 = vmatprep.subr.bf16.mxu0 0
    %7934 = vmatpush1.bf16.msra.mxu0 %v7911
    %7935 = vmatprep.subr.bf16.mxu0 0
    %7936 = vmatpush1.bf16.msra.mxu0 %v7912
    %7937 = vmatprep.subr.bf16.mxu0 0
    %7938 = vmatpush1.bf16.msra.mxu0 0
    %7939 = vmatprep.subr.bf16.mxu0 0
    %7940 = vmatpush1.bf16.msra.mxu0 0
    %7941 = vmatprep.subr.bf16.mxu0 0
    %7942 = vmatpush1.bf16.msra.mxu0 0
    %7943 = vmatprep.subr.bf16.mxu0 0
    %7944 = vmatpush1.bf16.msra.mxu0 0
    %7945 = vmatprep.subr.bf16.mxu0 0
    %7946 = vmatpush1.bf16.msra.mxu0 0
    %7947 = vmatprep.subr.bf16.mxu0 0
    %7948 = vmatpush1.bf16.msra.mxu0 0
    %7949 = vmatprep.subr.bf16.mxu0 0
    %7950 = vmatpush1.bf16.msra.mxu0 0
    %7951 = vmatprep.subr.bf16.mxu0 0
    %7952 = vmatpush1.bf16.msra.mxu0 0
    %7953 = vmatprep.mubr.bf16.mxu0 0
    %7954 = vmatmul.mubr.bf16.gmra.mrb[0].mxu0 %v7871
    %v7955 = vpop.f32.mrb[0].mxu0
    %v7956 = vadd.f32 0.0, %v7955
    %v7957 = vpop.f32.mrb[0].mxu0
    %v7958 = vpop.f32.mrb[0].mxu0
    %v7959 = vpop.f32.mrb[0].mxu0
    %7960 = vdwg.mxu0
    %v7961 = vadd.f32 %v7843, %v7956
    %v7962 = vld [vmem:[#allocation2 + $0x3] sm:$0x1]
    %v7963 = vld [vmem:[#allocation2 + $0xb] sm:$0x1]
    %v7964 = vpack.c.bf16 %v7962, %v7962
    %v7965 = vpack.c.bf16 %v7963, %v7963
    %s7966 = scalar_lea.vmem [#allocation18], 192
    %v7967 = vld [vmem:[%s7966] sm:$0xf]
    %v7968 = vld [vmem:[%s7966 + $0x4] sm:$0xf]
    %v7969 = vld [vmem:[%s7966 + $0x8] sm:$0xf]
    %v7970 = vld [vmem:[%s7966 + $0xc] sm:$0xf]
    %v7971 = vld [vmem:[%s7966 + $0x10] sm:$0xf]
    %v7972 = vld [vmem:[%s7966 + $0x14] sm:$0xf]
    %v7973 = vld [vmem:[%s7966 + $0x18] sm:$0xf]
    %v7974 = vld [vmem:[%s7966 + $0x1c] sm:$0xf]
    %v7975 = vld [vmem:[%s7966 + $0x20] sm:$0xf]
    %v7976 = vld [vmem:[%s7966 + $0x24] sm:$0xf]
    %v7977 = vld [vmem:[%s7966 + $0x28] sm:$0xf]
    %v7978 = vld [vmem:[%s7966 + $0x2c] sm:$0xf]
    %v7979 = vld [vmem:[%s7966 + $0x30] sm:$0xf]
    %v7980 = vld [vmem:[%s7966 + $0x34] sm:$0xf]
    %v7981 = vld [vmem:[%s7966 + $0x38] sm:$0xf]
    %v7982 = vld [vmem:[%s7966 + $0x3c] sm:$0xf]
    %v7985 = vunpack.c.l.b16 %v7964
    %v7986 = vunpack.c.l.b16 %v7965
    %v7987 = vrot.slane %v7986, 7
    %v7988 = vsel %vm1004, %v7987, %v7985
    %v7989 = vpack.c.b16 %v7988, %v7988
    %v8007 = vunpack.c.l.b16 %v7967
    %v8008 = vunpack.c.l.b16 %v7968
    %v8009 = vunpack.c.l.b16 %v7969
    %v8010 = vunpack.c.l.b16 %v7970
    %v8011 = vunpack.c.l.b16 %v7971
    %v8012 = vunpack.c.l.b16 %v7972
    %v8013 = vunpack.c.l.b16 %v7973
    %v8014 = vunpack.c.l.b16 %v7974
    %v8015 = vunpack.c.l.b16 %v7975
    %v8016 = vunpack.c.l.b16 %v7976
    %v8017 = vunpack.c.l.b16 %v7977
    %v8018 = vunpack.c.l.b16 %v7978
    %v8019 = vunpack.c.l.b16 %v7979
    %v8020 = vunpack.c.l.b16 %v7980
    %v8021 = vunpack.c.l.b16 %v7981
    %v8022 = vunpack.c.l.b16 %v7982
    %v8023 = vpack.c.b16 %v8008, %v8007
    %v8024 = vpack.c.b16 %v8010, %v8009
    %v8025 = vpack.c.b16 %v8012, %v8011
    %v8026 = vpack.c.b16 %v8014, %v8013
    %v8027 = vpack.c.b16 %v8016, %v8015
    %v8028 = vpack.c.b16 %v8018, %v8017
    %v8029 = vpack.c.b16 %v8020, %v8019
    %v8030 = vpack.c.b16 %v8022, %v8021
    %8039 = vmatprep.subr.bf16.mxu0 0
    %8040 = vmatpush1.bf16.msra.mxu0 %v8023
    %8041 = vmatprep.subr.bf16.mxu0 0
    %8042 = vmatpush1.bf16.msra.mxu0 %v8024
    %8043 = vmatprep.subr.bf16.mxu0 0
    %8044 = vmatpush1.bf16.msra.mxu0 %v8025
    %8045 = vmatprep.subr.bf16.mxu0 0
    %8046 = vmatpush1.bf16.msra.mxu0 %v8026
    %8047 = vmatprep.subr.bf16.mxu0 0
    %8048 = vmatpush1.bf16.msra.mxu0 %v8027
    %8049 = vmatprep.subr.bf16.mxu0 0
    %8050 = vmatpush1.bf16.msra.mxu0 %v8028
    %8051 = vmatprep.subr.bf16.mxu0 0
    %8052 = vmatpush1.bf16.msra.mxu0 %v8029
    %8053 = vmatprep.subr.bf16.mxu0 0
    %8054 = vmatpush1.bf16.msra.mxu0 %v8030
    %8055 = vmatprep.subr.bf16.mxu0 0
    %8056 = vmatpush1.bf16.msra.mxu0 0
    %8057 = vmatprep.subr.bf16.mxu0 0
    %8058 = vmatpush1.bf16.msra.mxu0 0
    %8059 = vmatprep.subr.bf16.mxu0 0
    %8060 = vmatpush1.bf16.msra.mxu0 0
    %8061 = vmatprep.subr.bf16.mxu0 0
    %8062 = vmatpush1.bf16.msra.mxu0 0
    %8063 = vmatprep.subr.bf16.mxu0 0
    %8064 = vmatpush1.bf16.msra.mxu0 0
    %8065 = vmatprep.subr.bf16.mxu0 0
    %8066 = vmatpush1.bf16.msra.mxu0 0
    %8067 = vmatprep.subr.bf16.mxu0 0
    %8068 = vmatpush1.bf16.msra.mxu0 0
    %8069 = vmatprep.subr.bf16.mxu0 0
    %8070 = vmatpush1.bf16.msra.mxu0 0
    %8071 = vmatprep.mubr.bf16.mxu0 0
    %8072 = vmatmul.mubr.bf16.gmra.mrb[0].mxu0 %v7989
    %v8073 = vpop.f32.mrb[0].mxu0
    %v8074 = vadd.f32 0.0, %v8073
    %v8075 = vpop.f32.mrb[0].mxu0
    %v8076 = vpop.f32.mrb[0].mxu0
    %v8077 = vpop.f32.mrb[0].mxu0
    %8078 = vdwg.mxu0
    %v8079 = vadd.f32 %v7961, %v8074
    %v8080 = vld [vmem:[#allocation2 + $0x4] sm:$0x1]
    %v8081 = vld [vmem:[#allocation2 + $0xc] sm:$0x1]
    %v8082 = vpack.c.bf16 %v8080, %v8080
    %v8083 = vpack.c.bf16 %v8081, %v8081
    %s8084 = scalar_lea.vmem [#allocation18], 256
    %v8085 = vld [vmem:[%s8084] sm:$0xf]
    %v8086 = vld [vmem:[%s8084 + $0x4] sm:$0xf]
    %v8087 = vld [vmem:[%s8084 + $0x8] sm:$0xf]
    %v8088 = vld [vmem:[%s8084 + $0xc] sm:$0xf]
    %v8089 = vld [vmem:[%s8084 + $0x10] sm:$0xf]
    %v8090 = vld [vmem:[%s8084 + $0x14] sm:$0xf]
    %v8091 = vld [vmem:[%s8084 + $0x18] sm:$0xf]
    %v8092 = vld [vmem:[%s8084 + $0x1c] sm:$0xf]
    %v8093 = vld [vmem:[%s8084 + $0x20] sm:$0xf]
    %v8094 = vld [vmem:[%s8084 + $0x24] sm:$0xf]
    %v8095 = vld [vmem:[%s8084 + $0x28] sm:$0xf]
    %v8096 = vld [vmem:[%s8084 + $0x2c] sm:$0xf]
    %v8097 = vld [vmem:[%s8084 + $0x30] sm:$0xf]
    %v8098 = vld [vmem:[%s8084 + $0x34] sm:$0xf]
    %v8099 = vld [vmem:[%s8084 + $0x38] sm:$0xf]
    %v8100 = vld [vmem:[%s8084 + $0x3c] sm:$0xf]
    %v8103 = vunpack.c.l.b16 %v8082
    %v8104 = vunpack.c.l.b16 %v8083
    %v8105 = vrot.slane %v8104, 7
    %v8106 = vsel %vm1004, %v8105, %v8103
    %v8107 = vpack.c.b16 %v8106, %v8106
    %v8125 = vunpack.c.l.b16 %v8085
    %v8126 = vunpack.c.l.b16 %v8086
    %v8127 = vunpack.c.l.b16 %v8087
    %v8128 = vunpack.c.l.b16 %v8088
    %v8129 = vunpack.c.l.b16 %v8089
    %v8130 = vunpack.c.l.b16 %v8090
    %v8131 = vunpack.c.l.b16 %v8091
    %v8132 = vunpack.c.l.b16 %v8092
    %v8133 = vunpack.c.l.b16 %v8093
    %v8134 = vunpack.c.l.b16 %v8094
    %v8135 = vunpack.c.l.b16 %v8095
    %v8136 = vunpack.c.l.b16 %v8096
    %v8137 = vunpack.c.l.b16 %v8097
    %v8138 = vunpack.c.l.b16 %v8098
    %v8139 = vunpack.c.l.b16 %v8099
    %v8140 = vunpack.c.l.b16 %v8100
    %v8141 = vpack.c.b16 %v8126, %v8125
    %v8142 = vpack.c.b16 %v8128, %v8127
    %v8143 = vpack.c.b16 %v8130, %v8129
    %v8144 = vpack.c.b16 %v8132, %v8131
    %v8145 = vpack.c.b16 %v8134, %v8133
    %v8146 = vpack.c.b16 %v8136, %v8135
    %v8147 = vpack.c.b16 %v8138, %v8137
    %v8148 = vpack.c.b16 %v8140, %v8139
    %8157 = vmatprep.subr.bf16.mxu0 0
    %8158 = vmatpush1.bf16.msra.mxu0 %v8141
    %8159 = vmatprep.subr.bf16.mxu0 0
    %8160 = vmatpush1.bf16.msra.mxu0 %v8142
    %8161 = vmatprep.subr.bf16.mxu0 0
    %8162 = vmatpush1.bf16.msra.mxu0 %v8143
    %8163 = vmatprep.subr.bf16.mxu0 0
    %8164 = vmatpush1.bf16.msra.mxu0 %v8144
    %8165 = vmatprep.subr.bf16.mxu0 0
    %8166 = vmatpush1.bf16.msra.mxu0 %v8145
    %8167 = vmatprep.subr.bf16.mxu0 0
    %8168 = vmatpush1.bf16.msra.mxu0 %v8146
    %8169 = vmatprep.subr.bf16.mxu0 0
    %8170 = vmatpush1.bf16.msra.mxu0 %v8147
    %8171 = vmatprep.subr.bf16.mxu0 0
    %8172 = vmatpush1.bf16.msra.mxu0 %v8148
    %8173 = vmatprep.subr.bf16.mxu0 0
    %8174 = vmatpush1.bf16.msra.mxu0 0
    %8175 = vmatprep.subr.bf16.mxu0 0
    %8176 = vmatpush1.bf16.msra.mxu0 0
    %8177 = vmatprep.subr.bf16.mxu0 0
    %8178 = vmatpush1.bf16.msra.mxu0 0
    %8179 = vmatprep.subr.bf16.mxu0 0
    %8180 = vmatpush1.bf16.msra.mxu0 0
    %8181 = vmatprep.subr.bf16.mxu0 0
    %8182 = vmatpush1.bf16.msra.mxu0 0
    %8183 = vmatprep.subr.bf16.mxu0 0
    %8184 = vmatpush1.bf16.msra.mxu0 0
    %8185 = vmatprep.subr.bf16.mxu0 0
    %8186 = vmatpush1.bf16.msra.mxu0 0
    %8187 = vmatprep.subr.bf16.mxu0 0
    %8188 = vmatpush1.bf16.msra.mxu0 0
    %8189 = vmatprep.mubr.bf16.mxu0 0
    %8190 = vmatmul.mubr.bf16.gmra.mrb[0].mxu0 %v8107
    %v8191 = vpop.f32.mrb[0].mxu0
    %v8192 = vadd.f32 0.0, %v8191
    %v8193 = vpop.f32.mrb[0].mxu0
    %v8194 = vpop.f32.mrb[0].mxu0
    %v8195 = vpop.f32.mrb[0].mxu0
    %8196 = vdwg.mxu0
    %v8197 = vadd.f32 %v8079, %v8192
    %v8198 = vld [vmem:[#allocation2 + $0x5] sm:$0x1]
    %v8199 = vld [vmem:[#allocation2 + $0xd] sm:$0x1]
    %v8200 = vpack.c.bf16 %v8198, %v8198
    %v8201 = vpack.c.bf16 %v8199, %v8199
    %s8202 = scalar_lea.vmem [#allocation18], 320
    %v8203 = vld [vmem:[%s8202] sm:$0xf]
    %v8204 = vld [vmem:[%s8202 + $0x4] sm:$0xf]
    %v8205 = vld [vmem:[%s8202 + $0x8] sm:$0xf]
    %v8206 = vld [vmem:[%s8202 + $0xc] sm:$0xf]
    %v8207 = vld [vmem:[%s8202 + $0x10] sm:$0xf]
    %v8208 = vld [vmem:[%s8202 + $0x14] sm:$0xf]
    %v8209 = vld [vmem:[%s8202 + $0x18] sm:$0xf]
    %v8210 = vld [vmem:[%s8202 + $0x1c] sm:$0xf]
    %v8211 = vld [vmem:[%s8202 + $0x20] sm:$0xf]
    %v8212 = vld [vmem:[%s8202 + $0x24] sm:$0xf]
    %v8213 = vld [vmem:[%s8202 + $0x28] sm:$0xf]
    %v8214 = vld [vmem:[%s8202 + $0x2c] sm:$0xf]
    %v8215 = vld [vmem:[%s8202 + $0x30] sm:$0xf]
    %v8216 = vld [vmem:[%s8202 + $0x34] sm:$0xf]
    %v8217 = vld [vmem:[%s8202 + $0x38] sm:$0xf]
    %v8218 = vld [vmem:[%s8202 + $0x3c] sm:$0xf]
    %v8221 = vunpack.c.l.b16 %v8200
    %v8222 = vunpack.c.l.b16 %v8201
    %v8223 = vrot.slane %v8222, 7
    %v8224 = vsel %vm1004, %v8223, %v8221
    %v8225 = vpack.c.b16 %v8224, %v8224
    %v8243 = vunpack.c.l.b16 %v8203
    %v8244 = vunpack.c.l.b16 %v8204
    %v8245 = vunpack.c.l.b16 %v8205
    %v8246 = vunpack.c.l.b16 %v8206
    %v8247 = vunpack.c.l.b16 %v8207
    %v8248 = vunpack.c.l.b16 %v8208
    %v8249 = vunpack.c.l.b16 %v8209
    %v8250 = vunpack.c.l.b16 %v8210
    %v8251 = vunpack.c.l.b16 %v8211
    %v8252 = vunpack.c.l.b16 %v8212
    %v8253 = vunpack.c.l.b16 %v8213
    %v8254 = vunpack.c.l.b16 %v8214
    %v8255 = vunpack.c.l.b16 %v8215
    %v8256 = vunpack.c.l.b16 %v8216
    %v8257 = vunpack.c.l.b16 %v8217
    %v8258 = vunpack.c.l.b16 %v8218
    %v8259 = vpack.c.b16 %v8244, %v8243
    %v8260 = vpack.c.b16 %v8246, %v8245
    %v8261 = vpack.c.b16 %v8248, %v8247
    %v8262 = vpack.c.b16 %v8250, %v8249
    %v8263 = vpack.c.b16 %v8252, %v8251
    %v8264 = vpack.c.b16 %v8254, %v8253
    %v8265 = vpack.c.b16 %v8256, %v8255
    %v8266 = vpack.c.b16 %v8258, %v8257
    %8275 = vmatprep.subr.bf16.mxu0 0
    %8276 = vmatpush1.bf16.msra.mxu0 %v8259
    %8277 = vmatprep.subr.bf16.mxu0 0
    %8278 = vmatpush1.bf16.msra.mxu0 %v8260
    %8279 = vmatprep.subr.bf16.mxu0 0
    %8280 = vmatpush1.bf16.msra.mxu0 %v8261
    %8281 = vmatprep.subr.bf16.mxu0 0
    %8282 = vmatpush1.bf16.msra.mxu0 %v8262
    %8283 = vmatprep.subr.bf16.mxu0 0
    %8284 = vmatpush1.bf16.msra.mxu0 %v8263
    %8285 = vmatprep.subr.bf16.mxu0 0
    %8286 = vmatpush1.bf16.msra.mxu0 %v8264
    %8287 = vmatprep.subr.bf16.mxu0 0
    %8288 = vmatpush1.bf16.msra.mxu0 %v8265
    %8289 = vmatprep.subr.bf16.mxu0 0
    %8290 = vmatpush1.bf16.msra.mxu0 %v8266
    %8291 = vmatprep.subr.bf16.mxu0 0
    %8292 = vmatpush1.bf16.msra.mxu0 0
    %8293 = vmatprep.subr.bf16.mxu0 0
    %8294 = vmatpush1.bf16.msra.mxu0 0
    %8295 = vmatprep.subr.bf16.mxu0 0
    %8296 = vmatpush1.bf16.msra.mxu0 0
    %8297 = vmatprep.subr.bf16.mxu0 0
    %8298 = vmatpush1.bf16.msra.mxu0 0
    %8299 = vmatprep.subr.bf16.mxu0 0
    %8300 = vmatpush1.bf16.msra.mxu0 0
    %8301 = vmatprep.subr.bf16.mxu0 0
    %8302 = vmatpush1.bf16.msra.mxu0 0
    %8303 = vmatprep.subr.bf16.mxu0 0
    %8304 = vmatpush1.bf16.msra.mxu0 0
    %8305 = vmatprep.subr.bf16.mxu0 0
    %8306 = vmatpush1.bf16.msra.mxu0 0
    %8307 = vmatprep.mubr.bf16.mxu0 0
    %8308 = vmatmul.mubr.bf16.gmra.mrb[0].mxu0 %v8225
    %v8309 = vpop.f32.mrb[0].mxu0
    %v8310 = vadd.f32 0.0, %v8309
    %v8311 = vpop.f32.mrb[0].mxu0
    %v8312 = vpop.f32.mrb[0].mxu0
    %v8313 = vpop.f32.mrb[0].mxu0
    %8314 = vdwg.mxu0
    %v8315 = vadd.f32 %v8197, %v8310
    %v8316 = vld [vmem:[#allocation2 + $0x6] sm:$0x1]
    %v8317 = vld [vmem:[#allocation2 + $0xe] sm:$0x1]
    %v8318 = vpack.c.bf16 %v8316, %v8316
    %v8319 = vpack.c.bf16 %v8317, %v8317
    %s8320 = scalar_lea.vmem [#allocation18], 384
    %v8321 = vld [vmem:[%s8320] sm:$0xf]
    %v8322 = vld [vmem:[%s8320 + $0x4] sm:$0xf]
    %v8323 = vld [vmem:[%s8320 + $0x8] sm:$0xf]
    %v8324 = vld [vmem:[%s8320 + $0xc] sm:$0xf]
    %v8325 = vld [vmem:[%s8320 + $0x10] sm:$0xf]
    %v8326 = vld [vmem:[%s8320 + $0x14] sm:$0xf]
    %v8327 = vld [vmem:[%s8320 + $0x18] sm:$0xf]
    %v8328 = vld [vmem:[%s8320 + $0x1c] sm:$0xf]
    %v8329 = vld [vmem:[%s8320 + $0x20] sm:$0xf]
    %v8330 = vld [vmem:[%s8320 + $0x24] sm:$0xf]
    %v8331 = vld [vmem:[%s8320 + $0x28] sm:$0xf]
    %v8332 = vld [vmem:[%s8320 + $0x2c] sm:$0xf]
    %v8333 = vld [vmem:[%s8320 + $0x30] sm:$0xf]
    %v8334 = vld [vmem:[%s8320 + $0x34] sm:$0xf]
    %v8335 = vld [vmem:[%s8320 + $0x38] sm:$0xf]
    %v8336 = vld [vmem:[%s8320 + $0x3c] sm:$0xf]
    %v8339 = vunpack.c.l.b16 %v8318
    %v8340 = vunpack.c.l.b16 %v8319
    %v8341 = vrot.slane %v8340, 7
    %v8342 = vsel %vm1004, %v8341, %v8339
    %v8343 = vpack.c.b16 %v8342, %v8342
    %v8361 = vunpack.c.l.b16 %v8321
    %v8362 = vunpack.c.l.b16 %v8322
    %v8363 = vunpack.c.l.b16 %v8323
    %v8364 = vunpack.c.l.b16 %v8324
    %v8365 = vunpack.c.l.b16 %v8325
    %v8366 = vunpack.c.l.b16 %v8326
    %v8367 = vunpack.c.l.b16 %v8327
    %v8368 = vunpack.c.l.b16 %v8328
    %v8369 = vunpack.c.l.b16 %v8329
    %v8370 = vunpack.c.l.b16 %v8330
    %v8371 = vunpack.c.l.b16 %v8331
    %v8372 = vunpack.c.l.b16 %v8332
    %v8373 = vunpack.c.l.b16 %v8333
    %v8374 = vunpack.c.l.b16 %v8334
    %v8375 = vunpack.c.l.b16 %v8335
    %v8376 = vunpack.c.l.b16 %v8336
    %v8377 = vpack.c.b16 %v8362, %v8361
    %v8378 = vpack.c.b16 %v8364, %v8363
    %v8379 = vpack.c.b16 %v8366, %v8365
    %v8380 = vpack.c.b16 %v8368, %v8367
    %v8381 = vpack.c.b16 %v8370, %v8369
    %v8382 = vpack.c.b16 %v8372, %v8371
    %v8383 = vpack.c.b16 %v8374, %v8373
    %v8384 = vpack.c.b16 %v8376, %v8375
    %8393 = vmatprep.subr.bf16.mxu0 0
    %8394 = vmatpush1.bf16.msra.mxu0 %v8377
    %8395 = vmatprep.subr.bf16.mxu0 0
    %8396 = vmatpush1.bf16.msra.mxu0 %v8378
    %8397 = vmatprep.subr.bf16.mxu0 0
    %8398 = vmatpush1.bf16.msra.mxu0 %v8379
    %8399 = vmatprep.subr.bf16.mxu0 0
    %8400 = vmatpush1.bf16.msra.mxu0 %v8380
    %8401 = vmatprep.subr.bf16.mxu0 0
    %8402 = vmatpush1.bf16.msra.mxu0 %v8381
    %8403 = vmatprep.subr.bf16.mxu0 0
    %8404 = vmatpush1.bf16.msra.mxu0 %v8382
    %8405 = vmatprep.subr.bf16.mxu0 0
    %8406 = vmatpush1.bf16.msra.mxu0 %v8383
    %8407 = vmatprep.subr.bf16.mxu0 0
    %8408 = vmatpush1.bf16.msra.mxu0 %v8384
    %8409 = vmatprep.subr.bf16.mxu0 0
    %8410 = vmatpush1.bf16.msra.mxu0 0
    %8411 = vmatprep.subr.bf16.mxu0 0
    %8412 = vmatpush1.bf16.msra.mxu0 0
    %8413 = vmatprep.subr.bf16.mxu0 0
    %8414 = vmatpush1.bf16.msra.mxu0 0
    %8415 = vmatprep.subr.bf16.mxu0 0
    %8416 = vmatpush1.bf16.msra.mxu0 0
    %8417 = vmatprep.subr.bf16.mxu0 0
    %8418 = vmatpush1.bf16.msra.mxu0 0
    %8419 = vmatprep.subr.bf16.mxu0 0
    %8420 = vmatpush1.bf16.msra.mxu0 0
    %8421 = vmatprep.subr.bf16.mxu0 0
    %8422 = vmatpush1.bf16.msra.mxu0 0
    %8423 = vmatprep.subr.bf16.mxu0 0
    %8424 = vmatpush1.bf16.msra.mxu0 0
    %8425 = vmatprep.mubr.bf16.mxu0 0
    %8426 = vmatmul.mubr.bf16.gmra.mrb[0].mxu0 %v8343
    %v8427 = vpop.f32.mrb[0].mxu0
    %v8428 = vadd.f32 0.0, %v8427
    %v8429 = vpop.f32.mrb[0].mxu0
    %v8430 = vpop.f32.mrb[0].mxu0
    %v8431 = vpop.f32.mrb[0].mxu0
    %8432 = vdwg.mxu0
    %v8433 = vadd.f32 %v8315, %v8428
    %v8434 = vld [vmem:[#allocation2 + $0x7] sm:$0x1]
    %v8435 = vld [vmem:[#allocation2 + $0xf] sm:$0x1]
    %v8436 = vpack.c.bf16 %v8434, %v8434
    %v8437 = vpack.c.bf16 %v8435, %v8435
    %s8438 = scalar_lea.vmem [#allocation18], 448
    %v8439 = vld [vmem:[%s8438] sm:$0xf]
    %v8440 = vld [vmem:[%s8438 + $0x4] sm:$0xf]
    %v8441 = vld [vmem:[%s8438 + $0x8] sm:$0xf]
    %v8442 = vld [vmem:[%s8438 + $0xc] sm:$0xf]
    %v8443 = vld [vmem:[%s8438 + $0x10] sm:$0xf]
    %v8444 = vld [vmem:[%s8438 + $0x14] sm:$0xf]
    %v8445 = vld [vmem:[%s8438 + $0x18] sm:$0xf]
    %v8446 = vld [vmem:[%s8438 + $0x1c] sm:$0xf]
    %v8447 = vld [vmem:[%s8438 + $0x20] sm:$0xf]
    %v8448 = vld [vmem:[%s8438 + $0x24] sm:$0xf]
    %v8449 = vld [vmem:[%s8438 + $0x28] sm:$0xf]
    %v8450 = vld [vmem:[%s8438 + $0x2c] sm:$0xf]
    %v8451 = vld [vmem:[%s8438 + $0x30] sm:$0xf]
    %v8452 = vld [vmem:[%s8438 + $0x34] sm:$0xf]
    %v8453 = vld [vmem:[%s8438 + $0x38] sm:$0xf]
    %v8454 = vld [vmem:[%s8438 + $0x3c] sm:$0xf]
    %v8457 = vunpack.c.l.b16 %v8436
    %v8458 = vunpack.c.l.b16 %v8437
    %v8459 = vrot.slane %v8458, 7
    %v8460 = vsel %vm1004, %v8459, %v8457
    %v8461 = vpack.c.b16 %v8460, %v8460
    %v8479 = vunpack.c.l.b16 %v8439
    %v8480 = vunpack.c.l.b16 %v8440
    %v8481 = vunpack.c.l.b16 %v8441
    %v8482 = vunpack.c.l.b16 %v8442
    %v8483 = vunpack.c.l.b16 %v8443
    %v8484 = vunpack.c.l.b16 %v8444
    %v8485 = vunpack.c.l.b16 %v8445
    %v8486 = vunpack.c.l.b16 %v8446
    %v8487 = vunpack.c.l.b16 %v8447
    %v8488 = vunpack.c.l.b16 %v8448
    %v8489 = vunpack.c.l.b16 %v8449
    %v8490 = vunpack.c.l.b16 %v8450
    %v8491 = vunpack.c.l.b16 %v8451
    %v8492 = vunpack.c.l.b16 %v8452
    %v8493 = vunpack.c.l.b16 %v8453
    %v8494 = vunpack.c.l.b16 %v8454
    %v8495 = vpack.c.b16 %v8480, %v8479
    %v8496 = vpack.c.b16 %v8482, %v8481
    %v8497 = vpack.c.b16 %v8484, %v8483
    %v8498 = vpack.c.b16 %v8486, %v8485
    %v8499 = vpack.c.b16 %v8488, %v8487
    %v8500 = vpack.c.b16 %v8490, %v8489
    %v8501 = vpack.c.b16 %v8492, %v8491
    %v8502 = vpack.c.b16 %v8494, %v8493
    %8511 = vmatprep.subr.bf16.mxu0 0
    %8512 = vmatpush1.bf16.msra.mxu0 %v8495
    %8513 = vmatprep.subr.bf16.mxu0 0
    %8514 = vmatpush1.bf16.msra.mxu0 %v8496
    %8515 = vmatprep.subr.bf16.mxu0 0
    %8516 = vmatpush1.bf16.msra.mxu0 %v8497
    %8517 = vmatprep.subr.bf16.mxu0 0
    %8518 = vmatpush1.bf16.msra.mxu0 %v8498
    %8519 = vmatprep.subr.bf16.mxu0 0
    %8520 = vmatpush1.bf16.msra.mxu0 %v8499
    %8521 = vmatprep.subr.bf16.mxu0 0
    %8522 = vmatpush1.bf16.msra.mxu0 %v8500
    %8523 = vmatprep.subr.bf16.mxu0 0
    %8524 = vmatpush1.bf16.msra.mxu0 %v8501
    %8525 = vmatprep.subr.bf16.mxu0 0
    %8526 = vmatpush1.bf16.msra.mxu0 %v8502
    %8527 = vmatprep.subr.bf16.mxu0 0
    %8528 = vmatpush1.bf16.msra.mxu0 0
    %8529 = vmatprep.subr.bf16.mxu0 0
    %8530 = vmatpush1.bf16.msra.mxu0 0
    %8531 = vmatprep.subr.bf16.mxu0 0
    %8532 = vmatpush1.bf16.msra.mxu0 0
    %8533 = vmatprep.subr.bf16.mxu0 0
    %8534 = vmatpush1.bf16.msra.mxu0 0
    %8535 = vmatprep.subr.bf16.mxu0 0
    %8536 = vmatpush1.bf16.msra.mxu0 0
    %8537 = vmatprep.subr.bf16.mxu0 0
    %8538 = vmatpush1.bf16.msra.mxu0 0
    %8539 = vmatprep.subr.bf16.mxu0 0
    %8540 = vmatpush1.bf16.msra.mxu0 0
    %8541 = vmatprep.subr.bf16.mxu0 0
    %8542 = vmatpush1.bf16.msra.mxu0 0
    %8543 = vmatprep.mubr.bf16.mxu0 0
    %8544 = vmatmul.mubr.bf16.gmra.mrb[0].mxu0 %v8461
    %v8545 = vpop.f32.mrb[0].mxu0
    %v8546 = vadd.f32 0.0, %v8545
    %v8547 = vpop.f32.mrb[0].mxu0
    %v8548 = vpop.f32.mrb[0].mxu0
    %v8549 = vpop.f32.mrb[0].mxu0
    %8550 = vdwg.mxu0
    %v8551 = vadd.f32 %v8433, %v8546
    %v8552 = vmax.f32 %v8551, 0.0
    %v8553 = vpack.c.bf16 %v8552, %v8552
    %v8554 = vld [vmem:[#allocation21] sm:$0xf]
    %v8555 = vld [vmem:[#allocation21 + $0x4] sm:$0xf]
    %v8556 = vld [vmem:[#allocation21 + $0x8] sm:$0xf]
    %v8557 = vld [vmem:[#allocation21 + $0xc] sm:$0xf]
    %v8558 = vld [vmem:[#allocation22] sm:$0x1]
    %v8560 = vlaneseq
    %v8561 = vshrl.u32 %v8560, 7
    %v8562 = vsub.s32 0, %v8561
    %v8563 = vrot.slane %v8558, %v8562
    %v8569 = vunpack.c.l.b16 %v8554
    %v8570 = vunpack.c.l.b16 %v8555
    %v8571 = vunpack.c.l.b16 %v8556
    %v8572 = vunpack.c.l.b16 %v8557
    %v8573 = vpack.c.b16 %v8570, %v8569
    %v8574 = vpack.c.b16 %v8572, %v8571
    %vm8577 = vcmask 261120
    %v8579 = vsel %vm8577, %v8553, 0
    %8581 = vmatprep.subr.bf16.mxu0 0
    %8582 = vmatpush1.bf16.msra.mxu0 %v8573
    %8583 = vmatprep.subr.bf16.mxu0 0
    %8584 = vmatpush1.bf16.msra.mxu0 %v8574
    %8585 = vmatprep.subr.bf16.mxu0 0
    %8586 = vmatpush1.bf16.msra.mxu0 0
    %8587 = vmatprep.subr.bf16.mxu0 0
    %8588 = vmatpush1.bf16.msra.mxu0 0
    %8589 = vmatprep.subr.bf16.mxu0 0
    %8590 = vmatpush1.bf16.msra.mxu0 0
    %8591 = vmatprep.subr.bf16.mxu0 0
    %8592 = vmatpush1.bf16.msra.mxu0 0
    %8593 = vmatprep.subr.bf16.mxu0 0
    %8594 = vmatpush1.bf16.msra.mxu0 0
    %8595 = vmatprep.subr.bf16.mxu0 0
    %8596 = vmatpush1.bf16.msra.mxu0 0
    %8597 = vmatprep.subr.bf16.mxu0 0
    %8598 = vmatpush1.bf16.msra.mxu0 0
    %8599 = vmatprep.subr.bf16.mxu0 0
    %8600 = vmatpush1.bf16.msra.mxu0 0
    %8601 = vmatprep.subr.bf16.mxu0 0
    %8602 = vmatpush1.bf16.msra.mxu0 0
    %8603 = vmatprep.subr.bf16.mxu0 0
    %8604 = vmatpush1.bf16.msra.mxu0 0
    %8605 = vmatprep.subr.bf16.mxu0 0
    %8606 = vmatpush1.bf16.msra.mxu0 0
    %8607 = vmatprep.subr.bf16.mxu0 0
    %8608 = vmatpush1.bf16.msra.mxu0 0
    %8609 = vmatprep.subr.bf16.mxu0 0
    %8610 = vmatpush1.bf16.msra.mxu0 0
    %8611 = vmatprep.subr.bf16.mxu0 0
    %8612 = vmatpush1.bf16.msra.mxu0 0
    %8613 = vmatprep.mubr.bf16.mxu0 0
    %8614 = vmatmul.mubr.bf16.gmra.mrb[0].mxu0 %v8579
    %v8615 = vpop.f32.mrb[0].mxu0
    %v8616 = vadd.f32 %v8563, %v8615
    %v8617 = vpop.f32.mrb[0].mxu0
    %v8618 = vpop.f32.mrb[0].mxu0
    %v8619 = vpop.f32.mrb[0].mxu0
    %8620 = vdwg.mxu0
    %8621 = vst [vmem:[#allocation24] sm:$0x3] %v8616
    // Predicated region
    $region98: #{sissa_lstm_forward.1} parent=1 // pred_check
      _
    $region99: #{sissa_lstm_forward.1} parent=1 // pred_check_branch
      %8623 = sbr.rel (0) target = $region101
    $region100: #{sissa_lstm_forward.1} parent=1 // pred_region
      %s8625 = ssub.s32 32, 32
      %8626 = vsyncadd [#allocation6], %s8625
      %s8628 = sshll.u32 [#allocation24], 4
      %s8629 = int_to_ptr.vmem [resolvable:$true] %s8628
      %8631 = dma.vmem_to_hbm [thread:$0]  %s8629, 32, %s12, [#allocation6]
    $region101: #{sissa_lstm_forward.1} parent=1 // pred_fallthru
      _
    // Predicated region
    $region102: #{sissa_lstm_forward.1} parent=1 // pred_check
      _
    $region103: #{sissa_lstm_forward.1} parent=1 // pred_check_branch
      %8633 = sbr.rel (0) target = $region105
    $region104: #{sissa_lstm_forward.1} parent=1 // pred_region
      %8634 = dma.done [#allocation6], 32
    $region105: #{sissa_lstm_forward.1} parent=1 // pred_fallthru
      _
    %8635 = vsyncpa [#allocation5], 1
    %8636 = vsyncpa [#allocation8], 1
    %8637 = vsyncpa [#allocation11], 1
    %8638 = vsyncpa [#allocation14], 1
    %8639 = vsyncpa [#allocation17], 1
    %8640 = vsyncpa [#allocation20], 1
    %8641 = vsyncpa [#allocation23], 1
    %8642 = vsyncpa [#allocation6], 1

</llo_original>
